<compile_context>
chip_gen: v5e
topology: v5e:2x2
jax: 0.10.0
libtpu: 0.0.40
codegen_flags: <defaults>
</compile_context>

<pallas_src>
import functools

import jax
import jax.numpy as jnp
import numpy as np
from jax import lax
from jax.experimental import pallas as pl
from jax.experimental.pallas import tpu as pltpu


# -----------------------------------------------------------------------------
# Fused kernel: permutes + 3 branch matmuls + mean + reweight MLP + gating + proj
# -----------------------------------------------------------------------------
def _vip_fused_kernel(seg, S,
                      x_ref, wc_ref, wh_ref, ww_ref,
                      w1_ref, b1_ref, w2_ref, b2_ref,
                      wp_ref, bp_ref,
                      out_ref,
                      hin_s, win_s, h_s, w_s):
    Bt, H, W, C = x_ref.shape
    f32 = jnp.float32

    x = x_ref[...]                                        # (Bt, H, W, C)

    # ---- build the permuted mlp_h / mlp_w inputs in VMEM (no HBM round trip) --
    #   h_in[b, s, w, h*S + t] = x[b, h, w, s*S + t]
    #   w_in[b, h, s, w*S + t] = x[b, h, w, s*S + t]
    # Static rectangular slice copies only (no general transposes needed).
    # For very large segment_dim this unrolled loop should become a fori_loop.
    for s in range(seg):
        src = x[:, :, :, s * S:(s + 1) * S]               # (Bt, H, W, S)
        for h in range(H):
            hin_s[:, s:s + 1, :, h * S:(h + 1) * S] = src[:, h:h + 1, :, :]
        for w in range(W):
            win_s[:, :, s:s + 1, w * S:(w + 1) * S] = src[:, :, w:w + 1, :]

    # ---- the three branch projections on the MXU (f32 accumulation) -----------
    c_val = jnp.dot(x.reshape(Bt * H * W, C), wc_ref[...],
                    preferred_element_type=f32).reshape(Bt, H, W, C)
    h_mm = jnp.dot(hin_s[...].reshape(Bt * seg * W, C), wh_ref[...],
                   preferred_element_type=f32).reshape(Bt, seg, W, C)
    w_mm = jnp.dot(win_s[...].reshape(Bt * H * seg, C), ww_ref[...],
                   preferred_element_type=f32).reshape(Bt, H, seg, C)

    # ---- inverse permutes back to the natural (Bt, H, W, C) layout ------------
    #   h[b, h', w, s*S + t'] = h_mm[b, s, w, h'*S + t']
    #   w[b, h, w', s*S + t'] = w_mm[b, h, s, w'*S + t']
    for s in range(seg):
        hsrc = h_mm[:, s:s + 1, :, :]                     # (Bt, 1, W, C)
        for hp in range(H):
            h_s[:, hp:hp + 1, :, s * S:(s + 1) * S] = \
                hsrc[:, :, :, hp * S:(hp + 1) * S]
        wsrc = w_mm[:, :, s:s + 1, :]                     # (Bt, H, 1, C)
        for wq in range(W):
            w_s[:, :, wq:wq + 1, s * S:(s + 1) * S] = \
                wsrc[:, :, :, wq * S:(wq + 1) * S]

    h_val = h_s[...]
    w_val = w_s[...]

    # ---- a = mean over (H, W) of (h + w + c)  -> (Bt, C) -----------------------
    a = jnp.mean((h_val + w_val + c_val).reshape(Bt, H * W, C), axis=1)

    # ---- reweight MLP: fc1 -> exact GELU -> fc2 (all 3 gates in one matmul) ----
    z1 = jnp.dot(a.astype(w1_ref.dtype), w1_ref[...],
                 preferred_element_type=f32) + b1_ref[...]
    z1 = 0.5 * z1 * (1.0 + lax.erf(z1 * jnp.float32(0.7071067811865476)))
    z2 = jnp.dot(z1.astype(w2_ref.dtype), w2_ref[...],
                 preferred_element_type=f32) + b2_ref[...]   # (Bt, 3C), gates contiguous

    l0, l1, l2 = z2[:, 0:C], z2[:, C:2 * C], z2[:, 2 * C:3 * C]

    # softmax over the 3 gates (stable)
    m = jnp.maximum(jnp.maximum(l0, l1), l2)
    e0, e1, e2 = jnp.exp(l0 - m), jnp.exp(l1 - m), jnp.exp(l2 - m)
    inv = 1.0 / (e0 + e1 + e2)
    a0 = (e0 * inv).reshape(Bt, 1, 1, C)
    a1 = (e1 * inv).reshape(Bt, 1, 1, C)
    a2 = (e2 * inv).reshape(Bt, 1, 1, C)

    comb = h_val * a0 + w_val * a1 + c_val * a2           # (Bt, H, W, C) f32

    # ---- proj Linear (with bias) ----------------------------------------------
    y = jnp.dot(comb.reshape(Bt * H * W, C).astype(wp_ref.dtype), wp_ref[...],
                preferred_element_type=f32) + bp_ref[...]
    out_ref[...] = y.reshape(Bt, H, W, C).astype(out_ref.dtype)


# -----------------------------------------------------------------------------
# Wrapper
# -----------------------------------------------------------------------------
def _pick_block_batch(B, H, W, C, itemsize):
    """Batch elements per grid step: aim for >=~256 matmul rows, divisor of B,
    modest per-step VMEM footprint."""
    bt = max(1, min(B, max(1, 256 // max(1, H * W))))
    budget = 24 * 1024 * 1024
    while bt > 1 and (B % bt != 0
                      or bt * H * W * C * (4 * itemsize + 24) > budget):
        bt -= 1
    return bt


def weighted_permute_mlp(x, params, *, mxu_dtype=None):
    """WeightedPermuteMLP forward; x is NHWC (B, H, W, C).
    Set mxu_dtype=jnp.bfloat16 on v6e/v7x to feed the MXU bf16 (f32 accumulate)."""
    B, H, W, C = x.shape
    seg = int(params["segment_dim"])
    S = C // seg
    assert seg * S == C and H * S == C and W * S == C, \
        "module requires H == W == segment_dim"

    out_dtype = x.dtype
    cdt = jnp.dtype(mxu_dtype) if mxu_dtype is not None else x.dtype

    # Weights stored as (in, out) = W^T.  De-interleave reweight.fc2 so that the
    # three gates become contiguous C-wide column blocks (one MXU matmul).
    # PyTorch: reweight(a).reshape(B, C, 3) -> raw column 3*c + k is gate k.
    W2, b2 = params["W2"], params["b2"]
    W2r = jnp.concatenate([W2[:, 0::3], W2[:, 1::3], W2[:, 2::3]], axis=1)
    b2r = jnp.concatenate([b2[0::3], b2[1::3], b2[2::3]], axis=0)

    xk = x.astype(cdt)
    Wc = params["Wc"].astype(cdt)
    Wh = params["Wh"].astype(cdt)
    Ww = params["Ww"].astype(cdt)
    Wp = params["Wp"].astype(cdt)
    W1 = params["W1"].astype(cdt)
    W2r = W2r.astype(cdt)
    b1 = params["b1"].astype(jnp.float32)[None, :]
    b2r = b2r.astype(jnp.float32)[None, :]
    bp = params["bp"].astype(jnp.float32)[None, :]
    C4 = W1.shape[1]

    Bt = _pick_block_batch(B, H, W, C, xk.dtype.itemsize)
    grid = (B // Bt,)

    # Per-step VMEM estimate: in/out (double-buffered) + 4 scratch + weights.
    blk = Bt * H * W * C
    est = (4 * blk * xk.dtype.itemsize
           + 2 * blk * xk.dtype.itemsize
           + 2 * blk * 4
           + 2 * (4 * C * C + C * C4 + C4 * 3 * C) * xk.dtype.itemsize)
    vmem_limit = int(min(64 * 1024 * 1024, max(32 * 1024 * 1024, 2 * est)))

    def full(shape):
        zeros = (0,) * len(shape)
        return pl.BlockSpec(shape, lambda b: zeros)

    kernel = functools.partial(_vip_fused_kernel, seg, S)

    out = pl.pallas_call(
        kernel,
        out_shape=jax.ShapeDtypeStruct((B, H, W, C), out_dtype),
        grid_spec=pltpu.PrefetchScalarGridSpec(
            num_scalar_prefetch=0,
            grid=grid,
            in_specs=[
                pl.BlockSpec((Bt, H, W, C), lambda b: (b, 0, 0, 0)),  # x
                full((C, C)), full((C, C)), full((C, C)),             # Wc, Wh, Ww
                full((C, C4)), full((1, C4)),                         # W1, b1
                full((C4, 3 * C)), full((1, 3 * C)),                  # W2 (gates), b2
                full((C, C)), full((1, C)),                           # Wp, bp
            ],
            out_specs=pl.BlockSpec((Bt, H, W, C), lambda b: (b, 0, 0, 0)),
            scratch_shapes=[
                pltpu.VMEM((Bt, seg, W, C), cdt),         # permuted mlp_h input
                pltpu.VMEM((Bt, H, seg, C), cdt),         # permuted mlp_w input
                pltpu.VMEM((Bt, H, W, C), jnp.float32),   # h branch, natural layout
                pltpu.VMEM((Bt, H, W, C), jnp.float32),   # w branch, natural layout
            ],
        ),
        compiler_params=pltpu.CompilerParams(
            dimension_semantics=("parallel",),
            vmem_limit_bytes=vmem_limit,
        ),
    )(xk, Wc, Wh, Ww, W1, b1, W2r, b2r, Wp, bp)
    return out


# -----------------------------------------------------------------------------
# Pure-JAX reference (mirrors the PyTorch forward line by line)
# -----------------------------------------------------------------------------
def reference(x, params):
    B, H, W, C = x.shape
    seg = params["segment_dim"]
    S = C // seg
    x5 = x.reshape(B, H, W, seg, S)

    h = x5.transpose(0, 3, 2, 1, 4).reshape(B, seg, W, H * S) @ params["Wh"]
    h = h.reshape(B, seg, W, H, S).transpose(0, 3, 2, 1, 4).reshape(B, H, W, C)

    w = x5.transpose(0, 1, 3, 2, 4).reshape(B, H, seg, W * S) @ params["Ww"]
    w = w.reshape(B, H, seg, W, S).transpose(0, 1, 3, 2, 4).reshape(B, H, W, C)

    c = x @ params["Wc"]

    a = (h + w + c).transpose(0, 3, 1, 2).reshape(B, C, H * W).mean(axis=2)
    a = jax.nn.gelu(a @ params["W1"] + params["b1"], approximate=False)
    a = a @ params["W2"] + params["b2"]
    a = a.reshape(B, C, 3).transpose(2, 0, 1)
    a = jax.nn.softmax(a, axis=0)[:, :, None, None, :]

    y = h * a[0] + w * a[1] + c * a[2]
    return y @ params["Wp"] + params["bp"]


# -----------------------------------------------------------------------------
def make_params(key, dim, segment_dim):
    # Deterministic synthetic parameters (weights stored as (in, out), i.e. W^T)
    ks = jax.random.split(key, 10)
    n = lambda k, s: (0.02 * jax.random.normal(k, s)).astype(jnp.float32)
    return {
        "segment_dim": segment_dim,
        "Wc": n(ks[0], (dim, dim)),
        "Wh": n(ks[1], (dim, dim)),
        "Ww": n(ks[2], (dim, dim)),
        "W1": n(ks[3], (dim, dim // 4)),
        "b1": n(ks[4], (dim // 4,)),
        "W2": n(ks[5], (dim // 4, dim * 3)),
        "b2": n(ks[6], (dim * 3,)),
        "Wp": n(ks[7], (dim, dim)),
        "bp": n(ks[8], (dim,)),
    }


if __name__ == "__main__":
    B, H, W, C = 2, 8, 8, 32
    segment_dim = 8  # S = C // segment_dim = 4; H == W == segment_dim required

    key = jax.random.PRNGKey(0)
    kx, kp = jax.random.split(key)
    x = jax.random.normal(kx, (B, H, W, C), dtype=jnp.float32)
    params = make_params(kp, C, segment_dim)

    out = jax.block_until_ready(weighted_permute_mlp(x, params))
    ref = jax.block_until_ready(reference(x, params))

    assert out.shape == (B, H, W, C)
    np.testing.assert_allclose(np.asarray(out), np.asarray(ref), rtol=1e-4, atol=1e-4)
    print("KERNEL_OK")
</pallas_src>

<mosaic_0001>
module attributes {stable_mosaic.version = 11 : i64} {
  func.func @_vip_fused_kernel(%arg0: i32, %arg1: memref<2x8x8x32xf32, #tpu.memory_space<vmem>>, %arg2: memref<32x32xf32, #tpu.memory_space<vmem>>, %arg3: memref<32x32xf32, #tpu.memory_space<vmem>>, %arg4: memref<32x32xf32, #tpu.memory_space<vmem>>, %arg5: memref<32x8xf32, #tpu.memory_space<vmem>>, %arg6: memref<1x8xf32, #tpu.memory_space<vmem>>, %arg7: memref<8x96xf32, #tpu.memory_space<vmem>>, %arg8: memref<1x96xf32, #tpu.memory_space<vmem>>, %arg9: memref<32x32xf32, #tpu.memory_space<vmem>>, %arg10: memref<1x32xf32, #tpu.memory_space<vmem>>, %arg11: memref<2x8x8x32xf32, #tpu.memory_space<vmem>>, %arg12: memref<2x8x8x32xf32, #tpu.memory_space<vmem>>, %arg13: memref<2x8x8x32xf32, #tpu.memory_space<vmem>>, %arg14: memref<2x8x8x32xf32, #tpu.memory_space<vmem>>, %arg15: memref<2x8x8x32xf32, #tpu.memory_space<vmem>>) attributes {dimension_semantics = [#tpu.dimension_semantics<parallel>], iteration_bounds = array<i64: 1>, scalar_prefetch = 0 : i64, scratch_operands = 4 : i64, tpu.core_type = #tpu.core_type<tc>, window_params = [{transform_indices = @transform_0, window_bounds = array<i64: 2, 8, 8, 32>}, {pipeline_mode = #tpu.pipeline_mode<synchronous>, transform_indices = @transform_1, window_bounds = array<i64: 32, 32>}, {pipeline_mode = #tpu.pipeline_mode<synchronous>, transform_indices = @transform_2, window_bounds = array<i64: 32, 32>}, {pipeline_mode = #tpu.pipeline_mode<synchronous>, transform_indices = @transform_3, window_bounds = array<i64: 32, 32>}, {pipeline_mode = #tpu.pipeline_mode<synchronous>, transform_indices = @transform_4, window_bounds = array<i64: 32, 8>}, {pipeline_mode = #tpu.pipeline_mode<synchronous>, transform_indices = @transform_5, window_bounds = array<i64: 1, 8>}, {pipeline_mode = #tpu.pipeline_mode<synchronous>, transform_indices = @transform_6, window_bounds = array<i64: 8, 96>}, {pipeline_mode = #tpu.pipeline_mode<synchronous>, transform_indices = @transform_7, window_bounds = array<i64: 1, 96>}, {pipeline_mode = #tpu.pipeline_mode<synchronous>, transform_indices = @transform_8, window_bounds = array<i64: 32, 32>}, {pipeline_mode = #tpu.pipeline_mode<synchronous>, transform_indices = @transform_9, window_bounds = array<i64: 1, 32>}, {transform_indices = @transform_10, window_bounds = array<i64: 2, 8, 8, 32>}]} {
    %c0 = arith.constant 0 : index
    %c0_0 = arith.constant 0 : index
    %c0_1 = arith.constant 0 : index
    %c0_2 = arith.constant 0 : index
    %0 = vector.load %arg1[%c0, %c0_0, %c0_1, %c0_2] : memref<2x8x8x32xf32, #tpu.memory_space<vmem>>, vector<2x8x8x32xf32>
    %1 = vector.extract_strided_slice %0 {offsets = [0, 0, 0, 0], sizes = [2, 8, 8, 4], strides = [1, 1, 1, 1]} : vector<2x8x8x32xf32> to vector<2x8x8x4xf32>
    %2 = vector.extract_strided_slice %1 {offsets = [0, 0, 0, 0], sizes = [2, 1, 8, 4], strides = [1, 1, 1, 1]} : vector<2x8x8x4xf32> to vector<2x1x8x4xf32>
    %c0_3 = arith.constant 0 : index
    %c0_4 = arith.constant 0 : index
    %c0_5 = arith.constant 0 : index
    %c0_6 = arith.constant 0 : index
    %3 = vector.load %arg12[%c0_3, %c0_4, %c0_5, %c0_6] : memref<2x8x8x32xf32, #tpu.memory_space<vmem>>, vector<2x1x8x4xf32>
    tpu.vector_store %arg12[%c0_3, %c0_4, %c0_5, %c0_6], %2 {strides = array<i32>} : memref<2x8x8x32xf32, #tpu.memory_space<vmem>>, vector<2x1x8x4xf32>,
    %4 = vector.extract_strided_slice %1 {offsets = [0, 1, 0, 0], sizes = [2, 1, 8, 4], strides = [1, 1, 1, 1]} : vector<2x8x8x4xf32> to vector<2x1x8x4xf32>
    %c0_7 = arith.constant 0 : index
    %c0_8 = arith.constant 0 : index
    %c0_9 = arith.constant 0 : index
    %c4 = arith.constant 4 : index
    %5 = vector.load %arg12[%c0_7, %c0_8, %c0_9, %c4] : memref<2x8x8x32xf32, #tpu.memory_space<vmem>>, vector<2x1x8x4xf32>
    tpu.vector_store %arg12[%c0_7, %c0_8, %c0_9, %c4], %4 {strides = array<i32>} : memref<2x8x8x32xf32, #tpu.memory_space<vmem>>, vector<2x1x8x4xf32>,
    %6 = vector.extract_strided_slice %1 {offsets = [0, 2, 0, 0], sizes = [2, 1, 8, 4], strides = [1, 1, 1, 1]} : vector<2x8x8x4xf32> to vector<2x1x8x4xf32>
    %c0_10 = arith.constant 0 : index
    %c0_11 = arith.constant 0 : index
    %c0_12 = arith.constant 0 : index
    %c8 = arith.constant 8 : index
    %7 = vector.load %arg12[%c0_10, %c0_11, %c0_12, %c8] : memref<2x8x8x32xf32, #tpu.memory_space<vmem>>, vector<2x1x8x4xf32>
    tpu.vector_store %arg12[%c0_10, %c0_11, %c0_12, %c8], %6 {strides = array<i32>} : memref<2x8x8x32xf32, #tpu.memory_space<vmem>>, vector<2x1x8x4xf32>,
    %8 = vector.extract_strided_slice %1 {offsets = [0, 3, 0, 0], sizes = [2, 1, 8, 4], strides = [1, 1, 1, 1]} : vector<2x8x8x4xf32> to vector<2x1x8x4xf32>
    %c0_13 = arith.constant 0 : index
    %c0_14 = arith.constant 0 : index
    %c0_15 = arith.constant 0 : index
    %c12 = arith.constant 12 : index
    %9 = vector.load %arg12[%c0_13, %c0_14, %c0_15, %c12] : memref<2x8x8x32xf32, #tpu.memory_space<vmem>>, vector<2x1x8x4xf32>
    tpu.vector_store %arg12[%c0_13, %c0_14, %c0_15, %c12], %8 {strides = array<i32>} : memref<2x8x8x32xf32, #tpu.memory_space<vmem>>, vector<2x1x8x4xf32>,
    %10 = vector.extract_strided_slice %1 {offsets = [0, 4, 0, 0], sizes = [2, 1, 8, 4], strides = [1, 1, 1, 1]} : vector<2x8x8x4xf32> to vector<2x1x8x4xf32>
    %c0_16 = arith.constant 0 : index
    %c0_17 = arith.constant 0 : index
    %c0_18 = arith.constant 0 : index
    %c16 = arith.constant 16 : index
    %11 = vector.load %arg12[%c0_16, %c0_17, %c0_18, %c16] : memref<2x8x8x32xf32, #tpu.memory_space<vmem>>, vector<2x1x8x4xf32>
    tpu.vector_store %arg12[%c0_16, %c0_17, %c0_18, %c16], %10 {strides = array<i32>} : memref<2x8x8x32xf32, #tpu.memory_space<vmem>>, vector<2x1x8x4xf32>,
    %12 = vector.extract_strided_slice %1 {offsets = [0, 5, 0, 0], sizes = [2, 1, 8, 4], strides = [1, 1, 1, 1]} : vector<2x8x8x4xf32> to vector<2x1x8x4xf32>
    %c0_19 = arith.constant 0 : index
    %c0_20 = arith.constant 0 : index
    %c0_21 = arith.constant 0 : index
    %c20 = arith.constant 20 : index
    %13 = vector.load %arg12[%c0_19, %c0_20, %c0_21, %c20] : memref<2x8x8x32xf32, #tpu.memory_space<vmem>>, vector<2x1x8x4xf32>
    tpu.vector_store %arg12[%c0_19, %c0_20, %c0_21, %c20], %12 {strides = array<i32>} : memref<2x8x8x32xf32, #tpu.memory_space<vmem>>, vector<2x1x8x4xf32>,
    %14 = vector.extract_strided_slice %1 {offsets = [0, 6, 0, 0], sizes = [2, 1, 8, 4], strides = [1, 1, 1, 1]} : vector<2x8x8x4xf32> to vector<2x1x8x4xf32>
    %c0_22 = arith.constant 0 : index
    %c0_23 = arith.constant 0 : index
    %c0_24 = arith.constant 0 : index
    %c24 = arith.constant 24 : index
    %15 = vector.load %arg12[%c0_22, %c0_23, %c0_24, %c24] : memref<2x8x8x32xf32, #tpu.memory_space<vmem>>, vector<2x1x8x4xf32>
    tpu.vector_store %arg12[%c0_22, %c0_23, %c0_24, %c24], %14 {strides = array<i32>} : memref<2x8x8x32xf32, #tpu.memory_space<vmem>>, vector<2x1x8x4xf32>,
    %16 = vector.extract_strided_slice %1 {offsets = [0, 7, 0, 0], sizes = [2, 1, 8, 4], strides = [1, 1, 1, 1]} : vector<2x8x8x4xf32> to vector<2x1x8x4xf32>
    %c0_25 = arith.constant 0 : index
    %c0_26 = arith.constant 0 : index
    %c0_27 = arith.constant 0 : index
    %c28 = arith.constant 28 : index
    %17 = vector.load %arg12[%c0_25, %c0_26, %c0_27, %c28] : memref<2x8x8x32xf32, #tpu.memory_space<vmem>>, vector<2x1x8x4xf32>
    tpu.vector_store %arg12[%c0_25, %c0_26, %c0_27, %c28], %16 {strides = array<i32>} : memref<2x8x8x32xf32, #tpu.memory_space<vmem>>, vector<2x1x8x4xf32>,
    %18 = vector.extract_strided_slice %1 {offsets = [0, 0, 0, 0], sizes = [2, 8, 1, 4], strides = [1, 1, 1, 1]} : vector<2x8x8x4xf32> to vector<2x8x1x4xf32>
    %c0_28 = arith.constant 0 : index
    %c0_29 = arith.constant 0 : index
    %c0_30 = arith.constant 0 : index
    %c0_31 = arith.constant 0 : index
    %19 = vector.load %arg13[%c0_28, %c0_29, %c0_30, %c0_31] : memref<2x8x8x32xf32, #tpu.memory_space<vmem>>, vector<2x8x1x4xf32>
    tpu.vector_store %arg13[%c0_28, %c0_29, %c0_30, %c0_31], %18 {strides = array<i32>} : memref<2x8x8x32xf32, #tpu.memory_space<vmem>>, vector<2x8x1x4xf32>,
    %20 = vector.extract_strided_slice %1 {offsets = [0, 0, 1, 0], sizes = [2, 8, 1, 4], strides = [1, 1, 1, 1]} : vector<2x8x8x4xf32> to vector<2x8x1x4xf32>
    %c0_32 = arith.constant 0 : index
    %c0_33 = arith.constant 0 : index
    %c0_34 = arith.constant 0 : index
    %c4_35 = arith.constant 4 : index
    %21 = vector.load %arg13[%c0_32, %c0_33, %c0_34, %c4_35] : memref<2x8x8x32xf32, #tpu.memory_space<vmem>>, vector<2x8x1x4xf32>
    tpu.vector_store %arg13[%c0_32, %c0_33, %c0_34, %c4_35], %20 {strides = array<i32>} : memref<2x8x8x32xf32, #tpu.memory_space<vmem>>, vector<2x8x1x4xf32>,
    %22 = vector.extract_strided_slice %1 {offsets = [0, 0, 2, 0], sizes = [2, 8, 1, 4], strides = [1, 1, 1, 1]} : vector<2x8x8x4xf32> to vector<2x8x1x4xf32>
    %c0_36 = arith.constant 0 : index
    %c0_37 = arith.constant 0 : index
    %c0_38 = arith.constant 0 : index
    %c8_39 = arith.constant 8 : index
    %23 = vector.load %arg13[%c0_36, %c0_37, %c0_38, %c8_39] : memref<2x8x8x32xf32, #tpu.memory_space<vmem>>, vector<2x8x1x4xf32>
    tpu.vector_store %arg13[%c0_36, %c0_37, %c0_38, %c8_39], %22 {strides = array<i32>} : memref<2x8x8x32xf32, #tpu.memory_space<vmem>>, vector<2x8x1x4xf32>,
    %24 = vector.extract_strided_slice %1 {offsets = [0, 0, 3, 0], sizes = [2, 8, 1, 4], strides = [1, 1, 1, 1]} : vector<2x8x8x4xf32> to vector<2x8x1x4xf32>
    %c0_40 = arith.constant 0 : index
    %c0_41 = arith.constant 0 : index
    %c0_42 = arith.constant 0 : index
    %c12_43 = arith.constant 12 : index
    %25 = vector.load %arg13[%c0_40, %c0_41, %c0_42, %c12_43] : memref<2x8x8x32xf32, #tpu.memory_space<vmem>>, vector<2x8x1x4xf32>
    tpu.vector_store %arg13[%c0_40, %c0_41, %c0_42, %c12_43], %24 {strides = array<i32>} : memref<2x8x8x32xf32, #tpu.memory_space<vmem>>, vector<2x8x1x4xf32>,
    %26 = vector.extract_strided_slice %1 {offsets = [0, 0, 4, 0], sizes = [2, 8, 1, 4], strides = [1, 1, 1, 1]} : vector<2x8x8x4xf32> to vector<2x8x1x4xf32>
    %c0_44 = arith.constant 0 : index
    %c0_45 = arith.constant 0 : index
    %c0_46 = arith.constant 0 : index
    %c16_47 = arith.constant 16 : index
    %27 = vector.load %arg13[%c0_44, %c0_45, %c0_46, %c16_47] : memref<2x8x8x32xf32, #tpu.memory_space<vmem>>, vector<2x8x1x4xf32>
    tpu.vector_store %arg13[%c0_44, %c0_45, %c0_46, %c16_47], %26 {strides = array<i32>} : memref<2x8x8x32xf32, #tpu.memory_space<vmem>>, vector<2x8x1x4xf32>,
    %28 = vector.extract_strided_slice %1 {offsets = [0, 0, 5, 0], sizes = [2, 8, 1, 4], strides = [1, 1, 1, 1]} : vector<2x8x8x4xf32> to vector<2x8x1x4xf32>
    %c0_48 = arith.constant 0 : index
    %c0_49 = arith.constant 0 : index
    %c0_50 = arith.constant 0 : index
    %c20_51 = arith.constant 20 : index
    %29 = vector.load %arg13[%c0_48, %c0_49, %c0_50, %c20_51] : memref<2x8x8x32xf32, #tpu.memory_space<vmem>>, vector<2x8x1x4xf32>
    tpu.vector_store %arg13[%c0_48, %c0_49, %c0_50, %c20_51], %28 {strides = array<i32>} : memref<2x8x8x32xf32, #tpu.memory_space<vmem>>, vector<2x8x1x4xf32>,
    %30 = vector.extract_strided_slice %1 {offsets = [0, 0, 6, 0], sizes = [2, 8, 1, 4], strides = [1, 1, 1, 1]} : vector<2x8x8x4xf32> to vector<2x8x1x4xf32>
    %c0_52 = arith.constant 0 : index
    %c0_53 = arith.constant 0 : index
    %c0_54 = arith.constant 0 : index
    %c24_55 = arith.constant 24 : index
    %31 = vector.load %arg13[%c0_52, %c0_53, %c0_54, %c24_55] : memref<2x8x8x32xf32, #tpu.memory_space<vmem>>, vector<2x8x1x4xf32>
    tpu.vector_store %arg13[%c0_52, %c0_53, %c0_54, %c24_55], %30 {strides = array<i32>} : memref<2x8x8x32xf32, #tpu.memory_space<vmem>>, vector<2x8x1x4xf32>,
    %32 = vector.extract_strided_slice %1 {offsets = [0, 0, 7, 0], sizes = [2, 8, 1, 4], strides = [1, 1, 1, 1]} : vector<2x8x8x4xf32> to vector<2x8x1x4xf32>
    %c0_56 = arith.constant 0 : index
    %c0_57 = arith.constant 0 : index
    %c0_58 = arith.constant 0 : index
    %c28_59 = arith.constant 28 : index
    %33 = vector.load %arg13[%c0_56, %c0_57, %c0_58, %c28_59] : memref<2x8x8x32xf32, #tpu.memory_space<vmem>>, vector<2x8x1x4xf32>
    tpu.vector_store %arg13[%c0_56, %c0_57, %c0_58, %c28_59], %32 {strides = array<i32>} : memref<2x8x8x32xf32, #tpu.memory_space<vmem>>, vector<2x8x1x4xf32>,
    %34 = vector.extract_strided_slice %0 {offsets = [0, 0, 0, 4], sizes = [2, 8, 8, 4], strides = [1, 1, 1, 1]} : vector<2x8x8x32xf32> to vector<2x8x8x4xf32>
    %35 = vector.extract_strided_slice %34 {offsets = [0, 0, 0, 0], sizes = [2, 1, 8, 4], strides = [1, 1, 1, 1]} : vector<2x8x8x4xf32> to vector<2x1x8x4xf32>
    %c0_60 = arith.constant 0 : index
    %c1 = arith.constant 1 : index
    %c0_61 = arith.constant 0 : index
    %c0_62 = arith.constant 0 : index
    %36 = vector.load %arg12[%c0_60, %c1, %c0_61, %c0_62] : memref<2x8x8x32xf32, #tpu.memory_space<vmem>>, vector<2x1x8x4xf32>
    tpu.vector_store %arg12[%c0_60, %c1, %c0_61, %c0_62], %35 {strides = array<i32>} : memref<2x8x8x32xf32, #tpu.memory_space<vmem>>, vector<2x1x8x4xf32>,
    %37 = vector.extract_strided_slice %34 {offsets = [0, 1, 0, 0], sizes = [2, 1, 8, 4], strides = [1, 1, 1, 1]} : vector<2x8x8x4xf32> to vector<2x1x8x4xf32>
    %c0_63 = arith.constant 0 : index
    %c1_64 = arith.constant 1 : index
    %c0_65 = arith.constant 0 : index
    %c4_66 = arith.constant 4 : index
    %38 = vector.load %arg12[%c0_63, %c1_64, %c0_65, %c4_66] : memref<2x8x8x32xf32, #tpu.memory_space<vmem>>, vector<2x1x8x4xf32>
    tpu.vector_store %arg12[%c0_63, %c1_64, %c0_65, %c4_66], %37 {strides = array<i32>} : memref<2x8x8x32xf32, #tpu.memory_space<vmem>>, vector<2x1x8x4xf32>,
    %39 = vector.extract_strided_slice %34 {offsets = [0, 2, 0, 0], sizes = [2, 1, 8, 4], strides = [1, 1, 1, 1]} : vector<2x8x8x4xf32> to vector<2x1x8x4xf32>
    %c0_67 = arith.constant 0 : index
    %c1_68 = arith.constant 1 : index
    %c0_69 = arith.constant 0 : index
    %c8_70 = arith.constant 8 : index
    %40 = vector.load %arg12[%c0_67, %c1_68, %c0_69, %c8_70] : memref<2x8x8x32xf32, #tpu.memory_space<vmem>>, vector<2x1x8x4xf32>
    tpu.vector_store %arg12[%c0_67, %c1_68, %c0_69, %c8_70], %39 {strides = array<i32>} : memref<2x8x8x32xf32, #tpu.memory_space<vmem>>, vector<2x1x8x4xf32>,
    %41 = vector.extract_strided_slice %34 {offsets = [0, 3, 0, 0], sizes = [2, 1, 8, 4], strides = [1, 1, 1, 1]} : vector<2x8x8x4xf32> to vector<2x1x8x4xf32>
    %c0_71 = arith.constant 0 : index
    %c1_72 = arith.constant 1 : index
    %c0_73 = arith.constant 0 : index
    %c12_74 = arith.constant 12 : index
    %42 = vector.load %arg12[%c0_71, %c1_72, %c0_73, %c12_74] : memref<2x8x8x32xf32, #tpu.memory_space<vmem>>, vector<2x1x8x4xf32>
    tpu.vector_store %arg12[%c0_71, %c1_72, %c0_73, %c12_74], %41 {strides = array<i32>} : memref<2x8x8x32xf32, #tpu.memory_space<vmem>>, vector<2x1x8x4xf32>,
    %43 = vector.extract_strided_slice %34 {offsets = [0, 4, 0, 0], sizes = [2, 1, 8, 4], strides = [1, 1, 1, 1]} : vector<2x8x8x4xf32> to vector<2x1x8x4xf32>
    %c0_75 = arith.constant 0 : index
    %c1_76 = arith.constant 1 : index
    %c0_77 = arith.constant 0 : index
    %c16_78 = arith.constant 16 : index
    %44 = vector.load %arg12[%c0_75, %c1_76, %c0_77, %c16_78] : memref<2x8x8x32xf32, #tpu.memory_space<vmem>>, vector<2x1x8x4xf32>
    tpu.vector_store %arg12[%c0_75, %c1_76, %c0_77, %c16_78], %43 {strides = array<i32>} : memref<2x8x8x32xf32, #tpu.memory_space<vmem>>, vector<2x1x8x4xf32>,
    %45 = vector.extract_strided_slice %34 {offsets = [0, 5, 0, 0], sizes = [2, 1, 8, 4], strides = [1, 1, 1, 1]} : vector<2x8x8x4xf32> to vector<2x1x8x4xf32>
    %c0_79 = arith.constant 0 : index
    %c1_80 = arith.constant 1 : index
    %c0_81 = arith.constant 0 : index
    %c20_82 = arith.constant 20 : index
    %46 = vector.load %arg12[%c0_79, %c1_80, %c0_81, %c20_82] : memref<2x8x8x32xf32, #tpu.memory_space<vmem>>, vector<2x1x8x4xf32>
    tpu.vector_store %arg12[%c0_79, %c1_80, %c0_81, %c20_82], %45 {strides = array<i32>} : memref<2x8x8x32xf32, #tpu.memory_space<vmem>>, vector<2x1x8x4xf32>,
    %47 = vector.extract_strided_slice %34 {offsets = [0, 6, 0, 0], sizes = [2, 1, 8, 4], strides = [1, 1, 1, 1]} : vector<2x8x8x4xf32> to vector<2x1x8x4xf32>
    %c0_83 = arith.constant 0 : index
    %c1_84 = arith.constant 1 : index
    %c0_85 = arith.constant 0 : index
    %c24_86 = arith.constant 24 : index
    %48 = vector.load %arg12[%c0_83, %c1_84, %c0_85, %c24_86] : memref<2x8x8x32xf32, #tpu.memory_space<vmem>>, vector<2x1x8x4xf32>
    tpu.vector_store %arg12[%c0_83, %c1_84, %c0_85, %c24_86], %47 {strides = array<i32>} : memref<2x8x8x32xf32, #tpu.memory_space<vmem>>, vector<2x1x8x4xf32>,
    %49 = vector.extract_strided_slice %34 {offsets = [0, 7, 0, 0], sizes = [2, 1, 8, 4], strides = [1, 1, 1, 1]} : vector<2x8x8x4xf32> to vector<2x1x8x4xf32>
    %c0_87 = arith.constant 0 : index
    %c1_88 = arith.constant 1 : index
    %c0_89 = arith.constant 0 : index
    %c28_90 = arith.constant 28 : index
    %50 = vector.load %arg12[%c0_87, %c1_88, %c0_89, %c28_90] : memref<2x8x8x32xf32, #tpu.memory_space<vmem>>, vector<2x1x8x4xf32>
    tpu.vector_store %arg12[%c0_87, %c1_88, %c0_89, %c28_90], %49 {strides = array<i32>} : memref<2x8x8x32xf32, #tpu.memory_space<vmem>>, vector<2x1x8x4xf32>,
    %51 = vector.extract_strided_slice %34 {offsets = [0, 0, 0, 0], sizes = [2, 8, 1, 4], strides = [1, 1, 1, 1]} : vector<2x8x8x4xf32> to vector<2x8x1x4xf32>
    %c0_91 = arith.constant 0 : index
    %c0_92 = arith.constant 0 : index
    %c1_93 = arith.constant 1 : index
    %c0_94 = arith.constant 0 : index
    %52 = vector.load %arg13[%c0_91, %c0_92, %c1_93, %c0_94] : memref<2x8x8x32xf32, #tpu.memory_space<vmem>>, vector<2x8x1x4xf32>
    tpu.vector_store %arg13[%c0_91, %c0_92, %c1_93, %c0_94], %51 {strides = array<i32>} : memref<2x8x8x32xf32, #tpu.memory_space<vmem>>, vector<2x8x1x4xf32>,
    %53 = vector.extract_strided_slice %34 {offsets = [0, 0, 1, 0], sizes = [2, 8, 1, 4], strides = [1, 1, 1, 1]} : vector<2x8x8x4xf32> to vector<2x8x1x4xf32>
    %c0_95 = arith.constant 0 : index
    %c0_96 = arith.constant 0 : index
    %c1_97 = arith.constant 1 : index
    %c4_98 = arith.constant 4 : index
    %54 = vector.load %arg13[%c0_95, %c0_96, %c1_97, %c4_98] : memref<2x8x8x32xf32, #tpu.memory_space<vmem>>, vector<2x8x1x4xf32>
    tpu.vector_store %arg13[%c0_95, %c0_96, %c1_97, %c4_98], %53 {strides = array<i32>} : memref<2x8x8x32xf32, #tpu.memory_space<vmem>>, vector<2x8x1x4xf32>,
    %55 = vector.extract_strided_slice %34 {offsets = [0, 0, 2, 0], sizes = [2, 8, 1, 4], strides = [1, 1, 1, 1]} : vector<2x8x8x4xf32> to vector<2x8x1x4xf32>
    %c0_99 = arith.constant 0 : index
    %c0_100 = arith.constant 0 : index
    %c1_101 = arith.constant 1 : index
    %c8_102 = arith.constant 8 : index
    %56 = vector.load %arg13[%c0_99, %c0_100, %c1_101, %c8_102] : memref<2x8x8x32xf32, #tpu.memory_space<vmem>>, vector<2x8x1x4xf32>
    tpu.vector_store %arg13[%c0_99, %c0_100, %c1_101, %c8_102], %55 {strides = array<i32>} : memref<2x8x8x32xf32, #tpu.memory_space<vmem>>, vector<2x8x1x4xf32>,
    %57 = vector.extract_strided_slice %34 {offsets = [0, 0, 3, 0], sizes = [2, 8, 1, 4], strides = [1, 1, 1, 1]} : vector<2x8x8x4xf32> to vector<2x8x1x4xf32>
    %c0_103 = arith.constant 0 : index
    %c0_104 = arith.constant 0 : index
    %c1_105 = arith.constant 1 : index
    %c12_106 = arith.constant 12 : index
    %58 = vector.load %arg13[%c0_103, %c0_104, %c1_105, %c12_106] : memref<2x8x8x32xf32, #tpu.memory_space<vmem>>, vector<2x8x1x4xf32>
    tpu.vector_store %arg13[%c0_103, %c0_104, %c1_105, %c12_106], %57 {strides = array<i32>} : memref<2x8x8x32xf32, #tpu.memory_space<vmem>>, vector<2x8x1x4xf32>,
    %59 = vector.extract_strided_slice %34 {offsets = [0, 0, 4, 0], sizes = [2, 8, 1, 4], strides = [1, 1, 1, 1]} : vector<2x8x8x4xf32> to vector<2x8x1x4xf32>
    %c0_107 = arith.constant 0 : index
    %c0_108 = arith.constant 0 : index
    %c1_109 = arith.constant 1 : index
    %c16_110 = arith.constant 16 : index
    %60 = vector.load %arg13[%c0_107, %c0_108, %c1_109, %c16_110] : memref<2x8x8x32xf32, #tpu.memory_space<vmem>>, vector<2x8x1x4xf32>
    tpu.vector_store %arg13[%c0_107, %c0_108, %c1_109, %c16_110], %59 {strides = array<i32>} : memref<2x8x8x32xf32, #tpu.memory_space<vmem>>, vector<2x8x1x4xf32>,
    %61 = vector.extract_strided_slice %34 {offsets = [0, 0, 5, 0], sizes = [2, 8, 1, 4], strides = [1, 1, 1, 1]} : vector<2x8x8x4xf32> to vector<2x8x1x4xf32>
    %c0_111 = arith.constant 0 : index
    %c0_112 = arith.constant 0 : index
    %c1_113 = arith.constant 1 : index
    %c20_114 = arith.constant 20 : index
    %62 = vector.load %arg13[%c0_111, %c0_112, %c1_113, %c20_114] : memref<2x8x8x32xf32, #tpu.memory_space<vmem>>, vector<2x8x1x4xf32>
    tpu.vector_store %arg13[%c0_111, %c0_112, %c1_113, %c20_114], %61 {strides = array<i32>} : memref<2x8x8x32xf32, #tpu.memory_space<vmem>>, vector<2x8x1x4xf32>,
    %63 = vector.extract_strided_slice %34 {offsets = [0, 0, 6, 0], sizes = [2, 8, 1, 4], strides = [1, 1, 1, 1]} : vector<2x8x8x4xf32> to vector<2x8x1x4xf32>
    %c0_115 = arith.constant 0 : index
    %c0_116 = arith.constant 0 : index
    %c1_117 = arith.constant 1 : index
    %c24_118 = arith.constant 24 : index
    %64 = vector.load %arg13[%c0_115, %c0_116, %c1_117, %c24_118] : memref<2x8x8x32xf32, #tpu.memory_space<vmem>>, vector<2x8x1x4xf32>
    tpu.vector_store %arg13[%c0_115, %c0_116, %c1_117, %c24_118], %63 {strides = array<i32>} : memref<2x8x8x32xf32, #tpu.memory_space<vmem>>, vector<2x8x1x4xf32>,
    %65 = vector.extract_strided_slice %34 {offsets = [0, 0, 7, 0], sizes = [2, 8, 1, 4], strides = [1, 1, 1, 1]} : vector<2x8x8x4xf32> to vector<2x8x1x4xf32>
    %c0_119 = arith.constant 0 : index
    %c0_120 = arith.constant 0 : index
    %c1_121 = arith.constant 1 : index
    %c28_122 = arith.constant 28 : index
    %66 = vector.load %arg13[%c0_119, %c0_120, %c1_121, %c28_122] : memref<2x8x8x32xf32, #tpu.memory_space<vmem>>, vector<2x8x1x4xf32>
    tpu.vector_store %arg13[%c0_119, %c0_120, %c1_121, %c28_122], %65 {strides = array<i32>} : memref<2x8x8x32xf32, #tpu.memory_space<vmem>>, vector<2x8x1x4xf32>,
    %67 = vector.extract_strided_slice %0 {offsets = [0, 0, 0, 8], sizes = [2, 8, 8, 4], strides = [1, 1, 1, 1]} : vector<2x8x8x32xf32> to vector<2x8x8x4xf32>
    %68 = vector.extract_strided_slice %67 {offsets = [0, 0, 0, 0], sizes = [2, 1, 8, 4], strides = [1, 1, 1, 1]} : vector<2x8x8x4xf32> to vector<2x1x8x4xf32>
    %c0_123 = arith.constant 0 : index
    %c2 = arith.constant 2 : index
    %c0_124 = arith.constant 0 : index
    %c0_125 = arith.constant 0 : index
    %69 = vector.load %arg12[%c0_123, %c2, %c0_124, %c0_125] : memref<2x8x8x32xf32, #tpu.memory_space<vmem>>, vector<2x1x8x4xf32>
    tpu.vector_store %arg12[%c0_123, %c2, %c0_124, %c0_125], %68 {strides = array<i32>} : memref<2x8x8x32xf32, #tpu.memory_space<vmem>>, vector<2x1x8x4xf32>,
    %70 = vector.extract_strided_slice %67 {offsets = [0, 1, 0, 0], sizes = [2, 1, 8, 4], strides = [1, 1, 1, 1]} : vector<2x8x8x4xf32> to vector<2x1x8x4xf32>
    %c0_126 = arith.constant 0 : index
    %c2_127 = arith.constant 2 : index
    %c0_128 = arith.constant 0 : index
    %c4_129 = arith.constant 4 : index
    %71 = vector.load %arg12[%c0_126, %c2_127, %c0_128, %c4_129] : memref<2x8x8x32xf32, #tpu.memory_space<vmem>>, vector<2x1x8x4xf32>
    tpu.vector_store %arg12[%c0_126, %c2_127, %c0_128, %c4_129], %70 {strides = array<i32>} : memref<2x8x8x32xf32, #tpu.memory_space<vmem>>, vector<2x1x8x4xf32>,
    %72 = vector.extract_strided_slice %67 {offsets = [0, 2, 0, 0], sizes = [2, 1, 8, 4], strides = [1, 1, 1, 1]} : vector<2x8x8x4xf32> to vector<2x1x8x4xf32>
    %c0_130 = arith.constant 0 : index
    %c2_131 = arith.constant 2 : index
    %c0_132 = arith.constant 0 : index
    %c8_133 = arith.constant 8 : index
    %73 = vector.load %arg12[%c0_130, %c2_131, %c0_132, %c8_133] : memref<2x8x8x32xf32, #tpu.memory_space<vmem>>, vector<2x1x8x4xf32>
    tpu.vector_store %arg12[%c0_130, %c2_131, %c0_132, %c8_133], %72 {strides = array<i32>} : memref<2x8x8x32xf32, #tpu.memory_space<vmem>>, vector<2x1x8x4xf32>,
    %74 = vector.extract_strided_slice %67 {offsets = [0, 3, 0, 0], sizes = [2, 1, 8, 4], strides = [1, 1, 1, 1]} : vector<2x8x8x4xf32> to vector<2x1x8x4xf32>
    %c0_134 = arith.constant 0 : index
    %c2_135 = arith.constant 2 : index
    %c0_136 = arith.constant 0 : index
    %c12_137 = arith.constant 12 : index
    %75 = vector.load %arg12[%c0_134, %c2_135, %c0_136, %c12_137] : memref<2x8x8x32xf32, #tpu.memory_space<vmem>>, vector<2x1x8x4xf32>
    tpu.vector_store %arg12[%c0_134, %c2_135, %c0_136, %c12_137], %74 {strides = array<i32>} : memref<2x8x8x32xf32, #tpu.memory_space<vmem>>, vector<2x1x8x4xf32>,
    %76 = vector.extract_strided_slice %67 {offsets = [0, 4, 0, 0], sizes = [2, 1, 8, 4], strides = [1, 1, 1, 1]} : vector<2x8x8x4xf32> to vector<2x1x8x4xf32>
    %c0_138 = arith.constant 0 : index
    %c2_139 = arith.constant 2 : index
    %c0_140 = arith.constant 0 : index
    %c16_141 = arith.constant 16 : index
    %77 = vector.load %arg12[%c0_138, %c2_139, %c0_140, %c16_141] : memref<2x8x8x32xf32, #tpu.memory_space<vmem>>, vector<2x1x8x4xf32>
    tpu.vector_store %arg12[%c0_138, %c2_139, %c0_140, %c16_141], %76 {strides = array<i32>} : memref<2x8x8x32xf32, #tpu.memory_space<vmem>>, vector<2x1x8x4xf32>,
    %78 = vector.extract_strided_slice %67 {offsets = [0, 5, 0, 0], sizes = [2, 1, 8, 4], strides = [1, 1, 1, 1]} : vector<2x8x8x4xf32> to vector<2x1x8x4xf32>
    %c0_142 = arith.constant 0 : index
    %c2_143 = arith.constant 2 : index
    %c0_144 = arith.constant 0 : index
    %c20_145 = arith.constant 20 : index
    %79 = vector.load %arg12[%c0_142, %c2_143, %c0_144, %c20_145] : memref<2x8x8x32xf32, #tpu.memory_space<vmem>>, vector<2x1x8x4xf32>
    tpu.vector_store %arg12[%c0_142, %c2_143, %c0_144, %c20_145], %78 {strides = array<i32>} : memref<2x8x8x32xf32, #tpu.memory_space<vmem>>, vector<2x1x8x4xf32>,
    %80 = vector.extract_strided_slice %67 {offsets = [0, 6, 0, 0], sizes = [2, 1, 8, 4], strides = [1, 1, 1, 1]} : vector<2x8x8x4xf32> to vector<2x1x8x4xf32>
    %c0_146 = arith.constant 0 : index
    %c2_147 = arith.constant 2 : index
    %c0_148 = arith.constant 0 : index
    %c24_149 = arith.constant 24 : index
    %81 = vector.load %arg12[%c0_146, %c2_147, %c0_148, %c24_149] : memref<2x8x8x32xf32, #tpu.memory_space<vmem>>, vector<2x1x8x4xf32>
    tpu.vector_store %arg12[%c0_146, %c2_147, %c0_148, %c24_149], %80 {strides = array<i32>} : memref<2x8x8x32xf32, #tpu.memory_space<vmem>>, vector<2x1x8x4xf32>,
    %82 = vector.extract_strided_slice %67 {offsets = [0, 7, 0, 0], sizes = [2, 1, 8, 4], strides = [1, 1, 1, 1]} : vector<2x8x8x4xf32> to vector<2x1x8x4xf32>
    %c0_150 = arith.constant 0 : index
    %c2_151 = arith.constant 2 : index
    %c0_152 = arith.constant 0 : index
    %c28_153 = arith.constant 28 : index
    %83 = vector.load %arg12[%c0_150, %c2_151, %c0_152, %c28_153] : memref<2x8x8x32xf32, #tpu.memory_space<vmem>>, vector<2x1x8x4xf32>
    tpu.vector_store %arg12[%c0_150, %c2_151, %c0_152, %c28_153], %82 {strides = array<i32>} : memref<2x8x8x32xf32, #tpu.memory_space<vmem>>, vector<2x1x8x4xf32>,
    %84 = vector.extract_strided_slice %67 {offsets = [0, 0, 0, 0], sizes = [2, 8, 1, 4], strides = [1, 1, 1, 1]} : vector<2x8x8x4xf32> to vector<2x8x1x4xf32>
    %c0_154 = arith.constant 0 : index
    %c0_155 = arith.constant 0 : index
    %c2_156 = arith.constant 2 : index
    %c0_157 = arith.constant 0 : index
    %85 = vector.load %arg13[%c0_154, %c0_155, %c2_156, %c0_157] : memref<2x8x8x32xf32, #tpu.memory_space<vmem>>, vector<2x8x1x4xf32>
    tpu.vector_store %arg13[%c0_154, %c0_155, %c2_156, %c0_157], %84 {strides = array<i32>} : memref<2x8x8x32xf32, #tpu.memory_space<vmem>>, vector<2x8x1x4xf32>,
    %86 = vector.extract_strided_slice %67 {offsets = [0, 0, 1, 0], sizes = [2, 8, 1, 4], strides = [1, 1, 1, 1]} : vector<2x8x8x4xf32> to vector<2x8x1x4xf32>
    %c0_158 = arith.constant 0 : index
    %c0_159 = arith.constant 0 : index
    %c2_160 = arith.constant 2 : index
    %c4_161 = arith.constant 4 : index
    %87 = vector.load %arg13[%c0_158, %c0_159, %c2_160, %c4_161] : memref<2x8x8x32xf32, #tpu.memory_space<vmem>>, vector<2x8x1x4xf32>
    tpu.vector_store %arg13[%c0_158, %c0_159, %c2_160, %c4_161], %86 {strides = array<i32>} : memref<2x8x8x32xf32, #tpu.memory_space<vmem>>, vector<2x8x1x4xf32>,
    %88 = vector.extract_strided_slice %67 {offsets = [0, 0, 2, 0], sizes = [2, 8, 1, 4], strides = [1, 1, 1, 1]} : vector<2x8x8x4xf32> to vector<2x8x1x4xf32>
    %c0_162 = arith.constant 0 : index
    %c0_163 = arith.constant 0 : index
    %c2_164 = arith.constant 2 : index
    %c8_165 = arith.constant 8 : index
    %89 = vector.load %arg13[%c0_162, %c0_163, %c2_164, %c8_165] : memref<2x8x8x32xf32, #tpu.memory_space<vmem>>, vector<2x8x1x4xf32>
    tpu.vector_store %arg13[%c0_162, %c0_163, %c2_164, %c8_165], %88 {strides = array<i32>} : memref<2x8x8x32xf32, #tpu.memory_space<vmem>>, vector<2x8x1x4xf32>,
    %90 = vector.extract_strided_slice %67 {offsets = [0, 0, 3, 0], sizes = [2, 8, 1, 4], strides = [1, 1, 1, 1]} : vector<2x8x8x4xf32> to vector<2x8x1x4xf32>
    %c0_166 = arith.constant 0 : index
    %c0_167 = arith.constant 0 : index
    %c2_168 = arith.constant 2 : index
    %c12_169 = arith.constant 12 : index
    %91 = vector.load %arg13[%c0_166, %c0_167, %c2_168, %c12_169] : memref<2x8x8x32xf32, #tpu.memory_space<vmem>>, vector<2x8x1x4xf32>
    tpu.vector_store %arg13[%c0_166, %c0_167, %c2_168, %c12_169], %90 {strides = array<i32>} : memref<2x8x8x32xf32, #tpu.memory_space<vmem>>, vector<2x8x1x4xf32>,
    %92 = vector.extract_strided_slice %67 {offsets = [0, 0, 4, 0], sizes = [2, 8, 1, 4], strides = [1, 1, 1, 1]} : vector<2x8x8x4xf32> to vector<2x8x1x4xf32>
    %c0_170 = arith.constant 0 : index
    %c0_171 = arith.constant 0 : index
    %c2_172 = arith.constant 2 : index
    %c16_173 = arith.constant 16 : index
    %93 = vector.load %arg13[%c0_170, %c0_171, %c2_172, %c16_173] : memref<2x8x8x32xf32, #tpu.memory_space<vmem>>, vector<2x8x1x4xf32>
    tpu.vector_store %arg13[%c0_170, %c0_171, %c2_172, %c16_173], %92 {strides = array<i32>} : memref<2x8x8x32xf32, #tpu.memory_space<vmem>>, vector<2x8x1x4xf32>,
    %94 = vector.extract_strided_slice %67 {offsets = [0, 0, 5, 0], sizes = [2, 8, 1, 4], strides = [1, 1, 1, 1]} : vector<2x8x8x4xf32> to vector<2x8x1x4xf32>
    %c0_174 = arith.constant 0 : index
    %c0_175 = arith.constant 0 : index
    %c2_176 = arith.constant 2 : index
    %c20_177 = arith.constant 20 : index
    %95 = vector.load %arg13[%c0_174, %c0_175, %c2_176, %c20_177] : memref<2x8x8x32xf32, #tpu.memory_space<vmem>>, vector<2x8x1x4xf32>
    tpu.vector_store %arg13[%c0_174, %c0_175, %c2_176, %c20_177], %94 {strides = array<i32>} : memref<2x8x8x32xf32, #tpu.memory_space<vmem>>, vector<2x8x1x4xf32>,
    %96 = vector.extract_strided_slice %67 {offsets = [0, 0, 6, 0], sizes = [2, 8, 1, 4], strides = [1, 1, 1, 1]} : vector<2x8x8x4xf32> to vector<2x8x1x4xf32>
    %c0_178 = arith.constant 0 : index
    %c0_179 = arith.constant 0 : index
    %c2_180 = arith.constant 2 : index
    %c24_181 = arith.constant 24 : index
    %97 = vector.load %arg13[%c0_178, %c0_179, %c2_180, %c24_181] : memref<2x8x8x32xf32, #tpu.memory_space<vmem>>, vector<2x8x1x4xf32>
    tpu.vector_store %arg13[%c0_178, %c0_179, %c2_180, %c24_181], %96 {strides = array<i32>} : memref<2x8x8x32xf32, #tpu.memory_space<vmem>>, vector<2x8x1x4xf32>,
    %98 = vector.extract_strided_slice %67 {offsets = [0, 0, 7, 0], sizes = [2, 8, 1, 4], strides = [1, 1, 1, 1]} : vector<2x8x8x4xf32> to vector<2x8x1x4xf32>
    %c0_182 = arith.constant 0 : index
    %c0_183 = arith.constant 0 : index
    %c2_184 = arith.constant 2 : index
    %c28_185 = arith.constant 28 : index
    %99 = vector.load %arg13[%c0_182, %c0_183, %c2_184, %c28_185] : memref<2x8x8x32xf32, #tpu.memory_space<vmem>>, vector<2x8x1x4xf32>
    tpu.vector_store %arg13[%c0_182, %c0_183, %c2_184, %c28_185], %98 {strides = array<i32>} : memref<2x8x8x32xf32, #tpu.memory_space<vmem>>, vector<2x8x1x4xf32>,
    %100 = vector.extract_strided_slice %0 {offsets = [0, 0, 0, 12], sizes = [2, 8, 8, 4], strides = [1, 1, 1, 1]} : vector<2x8x8x32xf32> to vector<2x8x8x4xf32>
    %101 = vector.extract_strided_slice %100 {offsets = [0, 0, 0, 0], sizes = [2, 1, 8, 4], strides = [1, 1, 1, 1]} : vector<2x8x8x4xf32> to vector<2x1x8x4xf32>
    %c0_186 = arith.constant 0 : index
    %c3 = arith.constant 3 : index
    %c0_187 = arith.constant 0 : index
    %c0_188 = arith.constant 0 : index
    %102 = vector.load %arg12[%c0_186, %c3, %c0_187, %c0_188] : memref<2x8x8x32xf32, #tpu.memory_space<vmem>>, vector<2x1x8x4xf32>
    tpu.vector_store %arg12[%c0_186, %c3, %c0_187, %c0_188], %101 {strides = array<i32>} : memref<2x8x8x32xf32, #tpu.memory_space<vmem>>, vector<2x1x8x4xf32>,
    %103 = vector.extract_strided_slice %100 {offsets = [0, 1, 0, 0], sizes = [2, 1, 8, 4], strides = [1, 1, 1, 1]} : vector<2x8x8x4xf32> to vector<2x1x8x4xf32>
    %c0_189 = arith.constant 0 : index
    %c3_190 = arith.constant 3 : index
    %c0_191 = arith.constant 0 : index
    %c4_192 = arith.constant 4 : index
    %104 = vector.load %arg12[%c0_189, %c3_190, %c0_191, %c4_192] : memref<2x8x8x32xf32, #tpu.memory_space<vmem>>, vector<2x1x8x4xf32>
    tpu.vector_store %arg12[%c0_189, %c3_190, %c0_191, %c4_192], %103 {strides = array<i32>} : memref<2x8x8x32xf32, #tpu.memory_space<vmem>>, vector<2x1x8x4xf32>,
    %105 = vector.extract_strided_slice %100 {offsets = [0, 2, 0, 0], sizes = [2, 1, 8, 4], strides = [1, 1, 1, 1]} : vector<2x8x8x4xf32> to vector<2x1x8x4xf32>
    %c0_193 = arith.constant 0 : index
    %c3_194 = arith.constant 3 : index
    %c0_195 = arith.constant 0 : index
    %c8_196 = arith.constant 8 : index
    %106 = vector.load %arg12[%c0_193, %c3_194, %c0_195, %c8_196] : memref<2x8x8x32xf32, #tpu.memory_space<vmem>>, vector<2x1x8x4xf32>
    tpu.vector_store %arg12[%c0_193, %c3_194, %c0_195, %c8_196], %105 {strides = array<i32>} : memref<2x8x8x32xf32, #tpu.memory_space<vmem>>, vector<2x1x8x4xf32>,
    %107 = vector.extract_strided_slice %100 {offsets = [0, 3, 0, 0], sizes = [2, 1, 8, 4], strides = [1, 1, 1, 1]} : vector<2x8x8x4xf32> to vector<2x1x8x4xf32>
    %c0_197 = arith.constant 0 : index
    %c3_198 = arith.constant 3 : index
    %c0_199 = arith.constant 0 : index
    %c12_200 = arith.constant 12 : index
    %108 = vector.load %arg12[%c0_197, %c3_198, %c0_199, %c12_200] : memref<2x8x8x32xf32, #tpu.memory_space<vmem>>, vector<2x1x8x4xf32>
    tpu.vector_store %arg12[%c0_197, %c3_198, %c0_199, %c12_200], %107 {strides = array<i32>} : memref<2x8x8x32xf32, #tpu.memory_space<vmem>>, vector<2x1x8x4xf32>,
    %109 = vector.extract_strided_slice %100 {offsets = [0, 4, 0, 0], sizes = [2, 1, 8, 4], strides = [1, 1, 1, 1]} : vector<2x8x8x4xf32> to vector<2x1x8x4xf32>
    %c0_201 = arith.constant 0 : index
    %c3_202 = arith.constant 3 : index
    %c0_203 = arith.constant 0 : index
    %c16_204 = arith.constant 16 : index
    %110 = vector.load %arg12[%c0_201, %c3_202, %c0_203, %c16_204] : memref<2x8x8x32xf32, #tpu.memory_space<vmem>>, vector<2x1x8x4xf32>
    tpu.vector_store %arg12[%c0_201, %c3_202, %c0_203, %c16_204], %109 {strides = array<i32>} : memref<2x8x8x32xf32, #tpu.memory_space<vmem>>, vector<2x1x8x4xf32>,
    %111 = vector.extract_strided_slice %100 {offsets = [0, 5, 0, 0], sizes = [2, 1, 8, 4], strides = [1, 1, 1, 1]} : vector<2x8x8x4xf32> to vector<2x1x8x4xf32>
    %c0_205 = arith.constant 0 : index
    %c3_206 = arith.constant 3 : index
    %c0_207 = arith.constant 0 : index
    %c20_208 = arith.constant 20 : index
    %112 = vector.load %arg12[%c0_205, %c3_206, %c0_207, %c20_208] : memref<2x8x8x32xf32, #tpu.memory_space<vmem>>, vector<2x1x8x4xf32>
    tpu.vector_store %arg12[%c0_205, %c3_206, %c0_207, %c20_208], %111 {strides = array<i32>} : memref<2x8x8x32xf32, #tpu.memory_space<vmem>>, vector<2x1x8x4xf32>,
    %113 = vector.extract_strided_slice %100 {offsets = [0, 6, 0, 0], sizes = [2, 1, 8, 4], strides = [1, 1, 1, 1]} : vector<2x8x8x4xf32> to vector<2x1x8x4xf32>
    %c0_209 = arith.constant 0 : index
    %c3_210 = arith.constant 3 : index
    %c0_211 = arith.constant 0 : index
    %c24_212 = arith.constant 24 : index
    %114 = vector.load %arg12[%c0_209, %c3_210, %c0_211, %c24_212] : memref<2x8x8x32xf32, #tpu.memory_space<vmem>>, vector<2x1x8x4xf32>
    tpu.vector_store %arg12[%c0_209, %c3_210, %c0_211, %c24_212], %113 {strides = array<i32>} : memref<2x8x8x32xf32, #tpu.memory_space<vmem>>, vector<2x1x8x4xf32>,
    %115 = vector.extract_strided_slice %100 {offsets = [0, 7, 0, 0], sizes = [2, 1, 8, 4], strides = [1, 1, 1, 1]} : vector<2x8x8x4xf32> to vector<2x1x8x4xf32>
    %c0_213 = arith.constant 0 : index
    %c3_214 = arith.constant 3 : index
    %c0_215 = arith.constant 0 : index
    %c28_216 = arith.constant 28 : index
    %116 = vector.load %arg12[%c0_213, %c3_214, %c0_215, %c28_216] : memref<2x8x8x32xf32, #tpu.memory_space<vmem>>, vector<2x1x8x4xf32>
    tpu.vector_store %arg12[%c0_213, %c3_214, %c0_215, %c28_216], %115 {strides = array<i32>} : memref<2x8x8x32xf32, #tpu.memory_space<vmem>>, vector<2x1x8x4xf32>,
    %117 = vector.extract_strided_slice %100 {offsets = [0, 0, 0, 0], sizes = [2, 8, 1, 4], strides = [1, 1, 1, 1]} : vector<2x8x8x4xf32> to vector<2x8x1x4xf32>
    %c0_217 = arith.constant 0 : index
    %c0_218 = arith.constant 0 : index
    %c3_219 = arith.constant 3 : index
    %c0_220 = arith.constant 0 : index
    %118 = vector.load %arg13[%c0_217, %c0_218, %c3_219, %c0_220] : memref<2x8x8x32xf32, #tpu.memory_space<vmem>>, vector<2x8x1x4xf32>
    tpu.vector_store %arg13[%c0_217, %c0_218, %c3_219, %c0_220], %117 {strides = array<i32>} : memref<2x8x8x32xf32, #tpu.memory_space<vmem>>, vector<2x8x1x4xf32>,
    %119 = vector.extract_strided_slice %100 {offsets = [0, 0, 1, 0], sizes = [2, 8, 1, 4], strides = [1, 1, 1, 1]} : vector<2x8x8x4xf32> to vector<2x8x1x4xf32>
    %c0_221 = arith.constant 0 : index
    %c0_222 = arith.constant 0 : index
    %c3_223 = arith.constant 3 : index
    %c4_224 = arith.constant 4 : index
    %120 = vector.load %arg13[%c0_221, %c0_222, %c3_223, %c4_224] : memref<2x8x8x32xf32, #tpu.memory_space<vmem>>, vector<2x8x1x4xf32>
    tpu.vector_store %arg13[%c0_221, %c0_222, %c3_223, %c4_224], %119 {strides = array<i32>} : memref<2x8x8x32xf32, #tpu.memory_space<vmem>>, vector<2x8x1x4xf32>,
    %121 = vector.extract_strided_slice %100 {offsets = [0, 0, 2, 0], sizes = [2, 8, 1, 4], strides = [1, 1, 1, 1]} : vector<2x8x8x4xf32> to vector<2x8x1x4xf32>
    %c0_225 = arith.constant 0 : index
    %c0_226 = arith.constant 0 : index
    %c3_227 = arith.constant 3 : index
    %c8_228 = arith.constant 8 : index
    %122 = vector.load %arg13[%c0_225, %c0_226, %c3_227, %c8_228] : memref<2x8x8x32xf32, #tpu.memory_space<vmem>>, vector<2x8x1x4xf32>
    tpu.vector_store %arg13[%c0_225, %c0_226, %c3_227, %c8_228], %121 {strides = array<i32>} : memref<2x8x8x32xf32, #tpu.memory_space<vmem>>, vector<2x8x1x4xf32>,
    %123 = vector.extract_strided_slice %100 {offsets = [0, 0, 3, 0], sizes = [2, 8, 1, 4], strides = [1, 1, 1, 1]} : vector<2x8x8x4xf32> to vector<2x8x1x4xf32>
    %c0_229 = arith.constant 0 : index
    %c0_230 = arith.constant 0 : index
    %c3_231 = arith.constant 3 : index
    %c12_232 = arith.constant 12 : index
    %124 = vector.load %arg13[%c0_229, %c0_230, %c3_231, %c12_232] : memref<2x8x8x32xf32, #tpu.memory_space<vmem>>, vector<2x8x1x4xf32>
    tpu.vector_store %arg13[%c0_229, %c0_230, %c3_231, %c12_232], %123 {strides = array<i32>} : memref<2x8x8x32xf32, #tpu.memory_space<vmem>>, vector<2x8x1x4xf32>,
    %125 = vector.extract_strided_slice %100 {offsets = [0, 0, 4, 0], sizes = [2, 8, 1, 4], strides = [1, 1, 1, 1]} : vector<2x8x8x4xf32> to vector<2x8x1x4xf32>
    %c0_233 = arith.constant 0 : index
    %c0_234 = arith.constant 0 : index
    %c3_235 = arith.constant 3 : index
    %c16_236 = arith.constant 16 : index
    %126 = vector.load %arg13[%c0_233, %c0_234, %c3_235, %c16_236] : memref<2x8x8x32xf32, #tpu.memory_space<vmem>>, vector<2x8x1x4xf32>
    tpu.vector_store %arg13[%c0_233, %c0_234, %c3_235, %c16_236], %125 {strides = array<i32>} : memref<2x8x8x32xf32, #tpu.memory_space<vmem>>, vector<2x8x1x4xf32>,
    %127 = vector.extract_strided_slice %100 {offsets = [0, 0, 5, 0], sizes = [2, 8, 1, 4], strides = [1, 1, 1, 1]} : vector<2x8x8x4xf32> to vector<2x8x1x4xf32>
    %c0_237 = arith.constant 0 : index
    %c0_238 = arith.constant 0 : index
    %c3_239 = arith.constant 3 : index
    %c20_240 = arith.constant 20 : index
    %128 = vector.load %arg13[%c0_237, %c0_238, %c3_239, %c20_240] : memref<2x8x8x32xf32, #tpu.memory_space<vmem>>, vector<2x8x1x4xf32>
    tpu.vector_store %arg13[%c0_237, %c0_238, %c3_239, %c20_240], %127 {strides = array<i32>} : memref<2x8x8x32xf32, #tpu.memory_space<vmem>>, vector<2x8x1x4xf32>,
    %129 = vector.extract_strided_slice %100 {offsets = [0, 0, 6, 0], sizes = [2, 8, 1, 4], strides = [1, 1, 1, 1]} : vector<2x8x8x4xf32> to vector<2x8x1x4xf32>
    %c0_241 = arith.constant 0 : index
    %c0_242 = arith.constant 0 : index
    %c3_243 = arith.constant 3 : index
    %c24_244 = arith.constant 24 : index
    %130 = vector.load %arg13[%c0_241, %c0_242, %c3_243, %c24_244] : memref<2x8x8x32xf32, #tpu.memory_space<vmem>>, vector<2x8x1x4xf32>
    tpu.vector_store %arg13[%c0_241, %c0_242, %c3_243, %c24_244], %129 {strides = array<i32>} : memref<2x8x8x32xf32, #tpu.memory_space<vmem>>, vector<2x8x1x4xf32>,
    %131 = vector.extract_strided_slice %100 {offsets = [0, 0, 7, 0], sizes = [2, 8, 1, 4], strides = [1, 1, 1, 1]} : vector<2x8x8x4xf32> to vector<2x8x1x4xf32>
    %c0_245 = arith.constant 0 : index
    %c0_246 = arith.constant 0 : index
    %c3_247 = arith.constant 3 : index
    %c28_248 = arith.constant 28 : index
    %132 = vector.load %arg13[%c0_245, %c0_246, %c3_247, %c28_248] : memref<2x8x8x32xf32, #tpu.memory_space<vmem>>, vector<2x8x1x4xf32>
    tpu.vector_store %arg13[%c0_245, %c0_246, %c3_247, %c28_248], %131 {strides = array<i32>} : memref<2x8x8x32xf32, #tpu.memory_space<vmem>>, vector<2x8x1x4xf32>,
    %133 = vector.extract_strided_slice %0 {offsets = [0, 0, 0, 16], sizes = [2, 8, 8, 4], strides = [1, 1, 1, 1]} : vector<2x8x8x32xf32> to vector<2x8x8x4xf32>
    %134 = vector.extract_strided_slice %133 {offsets = [0, 0, 0, 0], sizes = [2, 1, 8, 4], strides = [1, 1, 1, 1]} : vector<2x8x8x4xf32> to vector<2x1x8x4xf32>
    %c0_249 = arith.constant 0 : index
    %c4_250 = arith.constant 4 : index
    %c0_251 = arith.constant 0 : index
    %c0_252 = arith.constant 0 : index
    %135 = vector.load %arg12[%c0_249, %c4_250, %c0_251, %c0_252] : memref<2x8x8x32xf32, #tpu.memory_space<vmem>>, vector<2x1x8x4xf32>
    tpu.vector_store %arg12[%c0_249, %c4_250, %c0_251, %c0_252], %134 {strides = array<i32>} : memref<2x8x8x32xf32, #tpu.memory_space<vmem>>, vector<2x1x8x4xf32>,
    %136 = vector.extract_strided_slice %133 {offsets = [0, 1, 0, 0], sizes = [2, 1, 8, 4], strides = [1, 1, 1, 1]} : vector<2x8x8x4xf32> to vector<2x1x8x4xf32>
    %c0_253 = arith.constant 0 : index
    %c4_254 = arith.constant 4 : index
    %c0_255 = arith.constant 0 : index
    %c4_256 = arith.constant 4 : index
    %137 = vector.load %arg12[%c0_253, %c4_254, %c0_255, %c4_256] : memref<2x8x8x32xf32, #tpu.memory_space<vmem>>, vector<2x1x8x4xf32>
    tpu.vector_store %arg12[%c0_253, %c4_254, %c0_255, %c4_256], %136 {strides = array<i32>} : memref<2x8x8x32xf32, #tpu.memory_space<vmem>>, vector<2x1x8x4xf32>,
    %138 = vector.extract_strided_slice %133 {offsets = [0, 2, 0, 0], sizes = [2, 1, 8, 4], strides = [1, 1, 1, 1]} : vector<2x8x8x4xf32> to vector<2x1x8x4xf32>
    %c0_257 = arith.constant 0 : index
    %c4_258 = arith.constant 4 : index
    %c0_259 = arith.constant 0 : index
    %c8_260 = arith.constant 8 : index
    %139 = vector.load %arg12[%c0_257, %c4_258, %c0_259, %c8_260] : memref<2x8x8x32xf32, #tpu.memory_space<vmem>>, vector<2x1x8x4xf32>
    tpu.vector_store %arg12[%c0_257, %c4_258, %c0_259, %c8_260], %138 {strides = array<i32>} : memref<2x8x8x32xf32, #tpu.memory_space<vmem>>, vector<2x1x8x4xf32>,
    %140 = vector.extract_strided_slice %133 {offsets = [0, 3, 0, 0], sizes = [2, 1, 8, 4], strides = [1, 1, 1, 1]} : vector<2x8x8x4xf32> to vector<2x1x8x4xf32>
    %c0_261 = arith.constant 0 : index
    %c4_262 = arith.constant 4 : index
    %c0_263 = arith.constant 0 : index
    %c12_264 = arith.constant 12 : index
    %141 = vector.load %arg12[%c0_261, %c4_262, %c0_263, %c12_264] : memref<2x8x8x32xf32, #tpu.memory_space<vmem>>, vector<2x1x8x4xf32>
    tpu.vector_store %arg12[%c0_261, %c4_262, %c0_263, %c12_264], %140 {strides = array<i32>} : memref<2x8x8x32xf32, #tpu.memory_space<vmem>>, vector<2x1x8x4xf32>,
    %142 = vector.extract_strided_slice %133 {offsets = [0, 4, 0, 0], sizes = [2, 1, 8, 4], strides = [1, 1, 1, 1]} : vector<2x8x8x4xf32> to vector<2x1x8x4xf32>
    %c0_265 = arith.constant 0 : index
    %c4_266 = arith.constant 4 : index
    %c0_267 = arith.constant 0 : index
    %c16_268 = arith.constant 16 : index
    %143 = vector.load %arg12[%c0_265, %c4_266, %c0_267, %c16_268] : memref<2x8x8x32xf32, #tpu.memory_space<vmem>>, vector<2x1x8x4xf32>
    tpu.vector_store %arg12[%c0_265, %c4_266, %c0_267, %c16_268], %142 {strides = array<i32>} : memref<2x8x8x32xf32, #tpu.memory_space<vmem>>, vector<2x1x8x4xf32>,
    %144 = vector.extract_strided_slice %133 {offsets = [0, 5, 0, 0], sizes = [2, 1, 8, 4], strides = [1, 1, 1, 1]} : vector<2x8x8x4xf32> to vector<2x1x8x4xf32>
    %c0_269 = arith.constant 0 : index
    %c4_270 = arith.constant 4 : index
    %c0_271 = arith.constant 0 : index
    %c20_272 = arith.constant 20 : index
    %145 = vector.load %arg12[%c0_269, %c4_270, %c0_271, %c20_272] : memref<2x8x8x32xf32, #tpu.memory_space<vmem>>, vector<2x1x8x4xf32>
    tpu.vector_store %arg12[%c0_269, %c4_270, %c0_271, %c20_272], %144 {strides = array<i32>} : memref<2x8x8x32xf32, #tpu.memory_space<vmem>>, vector<2x1x8x4xf32>,
    %146 = vector.extract_strided_slice %133 {offsets = [0, 6, 0, 0], sizes = [2, 1, 8, 4], strides = [1, 1, 1, 1]} : vector<2x8x8x4xf32> to vector<2x1x8x4xf32>
    %c0_273 = arith.constant 0 : index
    %c4_274 = arith.constant 4 : index
    %c0_275 = arith.constant 0 : index
    %c24_276 = arith.constant 24 : index
    %147 = vector.load %arg12[%c0_273, %c4_274, %c0_275, %c24_276] : memref<2x8x8x32xf32, #tpu.memory_space<vmem>>, vector<2x1x8x4xf32>
    tpu.vector_store %arg12[%c0_273, %c4_274, %c0_275, %c24_276], %146 {strides = array<i32>} : memref<2x8x8x32xf32, #tpu.memory_space<vmem>>, vector<2x1x8x4xf32>,
    %148 = vector.extract_strided_slice %133 {offsets = [0, 7, 0, 0], sizes = [2, 1, 8, 4], strides = [1, 1, 1, 1]} : vector<2x8x8x4xf32> to vector<2x1x8x4xf32>
    %c0_277 = arith.constant 0 : index
    %c4_278 = arith.constant 4 : index
    %c0_279 = arith.constant 0 : index
    %c28_280 = arith.constant 28 : index
    %149 = vector.load %arg12[%c0_277, %c4_278, %c0_279, %c28_280] : memref<2x8x8x32xf32, #tpu.memory_space<vmem>>, vector<2x1x8x4xf32>
    tpu.vector_store %arg12[%c0_277, %c4_278, %c0_279, %c28_280], %148 {strides = array<i32>} : memref<2x8x8x32xf32, #tpu.memory_space<vmem>>, vector<2x1x8x4xf32>,
    %150 = vector.extract_strided_slice %133 {offsets = [0, 0, 0, 0], sizes = [2, 8, 1, 4], strides = [1, 1, 1, 1]} : vector<2x8x8x4xf32> to vector<2x8x1x4xf32>
    %c0_281 = arith.constant 0 : index
    %c0_282 = arith.constant 0 : index
    %c4_283 = arith.constant 4 : index
    %c0_284 = arith.constant 0 : index
    %151 = vector.load %arg13[%c0_281, %c0_282, %c4_283, %c0_284] : memref<2x8x8x32xf32, #tpu.memory_space<vmem>>, vector<2x8x1x4xf32>
    tpu.vector_store %arg13[%c0_281, %c0_282, %c4_283, %c0_284], %150 {strides = array<i32>} : memref<2x8x8x32xf32, #tpu.memory_space<vmem>>, vector<2x8x1x4xf32>,
    %152 = vector.extract_strided_slice %133 {offsets = [0, 0, 1, 0], sizes = [2, 8, 1, 4], strides = [1, 1, 1, 1]} : vector<2x8x8x4xf32> to vector<2x8x1x4xf32>
    %c0_285 = arith.constant 0 : index
    %c0_286 = arith.constant 0 : index
    %c4_287 = arith.constant 4 : index
    %c4_288 = arith.constant 4 : index
    %153 = vector.load %arg13[%c0_285, %c0_286, %c4_287, %c4_288] : memref<2x8x8x32xf32, #tpu.memory_space<vmem>>, vector<2x8x1x4xf32>
    tpu.vector_store %arg13[%c0_285, %c0_286, %c4_287, %c4_288], %152 {strides = array<i32>} : memref<2x8x8x32xf32, #tpu.memory_space<vmem>>, vector<2x8x1x4xf32>,
    %154 = vector.extract_strided_slice %133 {offsets = [0, 0, 2, 0], sizes = [2, 8, 1, 4], strides = [1, 1, 1, 1]} : vector<2x8x8x4xf32> to vector<2x8x1x4xf32>
    %c0_289 = arith.constant 0 : index
    %c0_290 = arith.constant 0 : index
    %c4_291 = arith.constant 4 : index
    %c8_292 = arith.constant 8 : index
    %155 = vector.load %arg13[%c0_289, %c0_290, %c4_291, %c8_292] : memref<2x8x8x32xf32, #tpu.memory_space<vmem>>, vector<2x8x1x4xf32>
    tpu.vector_store %arg13[%c0_289, %c0_290, %c4_291, %c8_292], %154 {strides = array<i32>} : memref<2x8x8x32xf32, #tpu.memory_space<vmem>>, vector<2x8x1x4xf32>,
    %156 = vector.extract_strided_slice %133 {offsets = [0, 0, 3, 0], sizes = [2, 8, 1, 4], strides = [1, 1, 1, 1]} : vector<2x8x8x4xf32> to vector<2x8x1x4xf32>
    %c0_293 = arith.constant 0 : index
    %c0_294 = arith.constant 0 : index
    %c4_295 = arith.constant 4 : index
    %c12_296 = arith.constant 12 : index
    %157 = vector.load %arg13[%c0_293, %c0_294, %c4_295, %c12_296] : memref<2x8x8x32xf32, #tpu.memory_space<vmem>>, vector<2x8x1x4xf32>
    tpu.vector_store %arg13[%c0_293, %c0_294, %c4_295, %c12_296], %156 {strides = array<i32>} : memref<2x8x8x32xf32, #tpu.memory_space<vmem>>, vector<2x8x1x4xf32>,
    %158 = vector.extract_strided_slice %133 {offsets = [0, 0, 4, 0], sizes = [2, 8, 1, 4], strides = [1, 1, 1, 1]} : vector<2x8x8x4xf32> to vector<2x8x1x4xf32>
    %c0_297 = arith.constant 0 : index
    %c0_298 = arith.constant 0 : index
    %c4_299 = arith.constant 4 : index
    %c16_300 = arith.constant 16 : index
    %159 = vector.load %arg13[%c0_297, %c0_298, %c4_299, %c16_300] : memref<2x8x8x32xf32, #tpu.memory_space<vmem>>, vector<2x8x1x4xf32>
    tpu.vector_store %arg13[%c0_297, %c0_298, %c4_299, %c16_300], %158 {strides = array<i32>} : memref<2x8x8x32xf32, #tpu.memory_space<vmem>>, vector<2x8x1x4xf32>,
    %160 = vector.extract_strided_slice %133 {offsets = [0, 0, 5, 0], sizes = [2, 8, 1, 4], strides = [1, 1, 1, 1]} : vector<2x8x8x4xf32> to vector<2x8x1x4xf32>
    %c0_301 = arith.constant 0 : index
    %c0_302 = arith.constant 0 : index
    %c4_303 = arith.constant 4 : index
    %c20_304 = arith.constant 20 : index
    %161 = vector.load %arg13[%c0_301, %c0_302, %c4_303, %c20_304] : memref<2x8x8x32xf32, #tpu.memory_space<vmem>>, vector<2x8x1x4xf32>
    tpu.vector_store %arg13[%c0_301, %c0_302, %c4_303, %c20_304], %160 {strides = array<i32>} : memref<2x8x8x32xf32, #tpu.memory_space<vmem>>, vector<2x8x1x4xf32>,
    %162 = vector.extract_strided_slice %133 {offsets = [0, 0, 6, 0], sizes = [2, 8, 1, 4], strides = [1, 1, 1, 1]} : vector<2x8x8x4xf32> to vector<2x8x1x4xf32>
    %c0_305 = arith.constant 0 : index
    %c0_306 = arith.constant 0 : index
    %c4_307 = arith.constant 4 : index
    %c24_308 = arith.constant 24 : index
    %163 = vector.load %arg13[%c0_305, %c0_306, %c4_307, %c24_308] : memref<2x8x8x32xf32, #tpu.memory_space<vmem>>, vector<2x8x1x4xf32>
    tpu.vector_store %arg13[%c0_305, %c0_306, %c4_307, %c24_308], %162 {strides = array<i32>} : memref<2x8x8x32xf32, #tpu.memory_space<vmem>>, vector<2x8x1x4xf32>,
    %164 = vector.extract_strided_slice %133 {offsets = [0, 0, 7, 0], sizes = [2, 8, 1, 4], strides = [1, 1, 1, 1]} : vector<2x8x8x4xf32> to vector<2x8x1x4xf32>
    %c0_309 = arith.constant 0 : index
    %c0_310 = arith.constant 0 : index
    %c4_311 = arith.constant 4 : index
    %c28_312 = arith.constant 28 : index
    %165 = vector.load %arg13[%c0_309, %c0_310, %c4_311, %c28_312] : memref<2x8x8x32xf32, #tpu.memory_space<vmem>>, vector<2x8x1x4xf32>
    tpu.vector_store %arg13[%c0_309, %c0_310, %c4_311, %c28_312], %164 {strides = array<i32>} : memref<2x8x8x32xf32, #tpu.memory_space<vmem>>, vector<2x8x1x4xf32>,
    %166 = vector.extract_strided_slice %0 {offsets = [0, 0, 0, 20], sizes = [2, 8, 8, 4], strides = [1, 1, 1, 1]} : vector<2x8x8x32xf32> to vector<2x8x8x4xf32>
    %167 = vector.extract_strided_slice %166 {offsets = [0, 0, 0, 0], sizes = [2, 1, 8, 4], strides = [1, 1, 1, 1]} : vector<2x8x8x4xf32> to vector<2x1x8x4xf32>
    %c0_313 = arith.constant 0 : index
    %c5 = arith.constant 5 : index
    %c0_314 = arith.constant 0 : index
    %c0_315 = arith.constant 0 : index
    %168 = vector.load %arg12[%c0_313, %c5, %c0_314, %c0_315] : memref<2x8x8x32xf32, #tpu.memory_space<vmem>>, vector<2x1x8x4xf32>
    tpu.vector_store %arg12[%c0_313, %c5, %c0_314, %c0_315], %167 {strides = array<i32>} : memref<2x8x8x32xf32, #tpu.memory_space<vmem>>, vector<2x1x8x4xf32>,
    %169 = vector.extract_strided_slice %166 {offsets = [0, 1, 0, 0], sizes = [2, 1, 8, 4], strides = [1, 1, 1, 1]} : vector<2x8x8x4xf32> to vector<2x1x8x4xf32>
    %c0_316 = arith.constant 0 : index
    %c5_317 = arith.constant 5 : index
    %c0_318 = arith.constant 0 : index
    %c4_319 = arith.constant 4 : index
    %170 = vector.load %arg12[%c0_316, %c5_317, %c0_318, %c4_319] : memref<2x8x8x32xf32, #tpu.memory_space<vmem>>, vector<2x1x8x4xf32>
    tpu.vector_store %arg12[%c0_316, %c5_317, %c0_318, %c4_319], %169 {strides = array<i32>} : memref<2x8x8x32xf32, #tpu.memory_space<vmem>>, vector<2x1x8x4xf32>,
    %171 = vector.extract_strided_slice %166 {offsets = [0, 2, 0, 0], sizes = [2, 1, 8, 4], strides = [1, 1, 1, 1]} : vector<2x8x8x4xf32> to vector<2x1x8x4xf32>
    %c0_320 = arith.constant 0 : index
    %c5_321 = arith.constant 5 : index
    %c0_322 = arith.constant 0 : index
    %c8_323 = arith.constant 8 : index
    %172 = vector.load %arg12[%c0_320, %c5_321, %c0_322, %c8_323] : memref<2x8x8x32xf32, #tpu.memory_space<vmem>>, vector<2x1x8x4xf32>
    tpu.vector_store %arg12[%c0_320, %c5_321, %c0_322, %c8_323], %171 {strides = array<i32>} : memref<2x8x8x32xf32, #tpu.memory_space<vmem>>, vector<2x1x8x4xf32>,
    %173 = vector.extract_strided_slice %166 {offsets = [0, 3, 0, 0], sizes = [2, 1, 8, 4], strides = [1, 1, 1, 1]} : vector<2x8x8x4xf32> to vector<2x1x8x4xf32>
    %c0_324 = arith.constant 0 : index
    %c5_325 = arith.constant 5 : index
    %c0_326 = arith.constant 0 : index
    %c12_327 = arith.constant 12 : index
    %174 = vector.load %arg12[%c0_324, %c5_325, %c0_326, %c12_327] : memref<2x8x8x32xf32, #tpu.memory_space<vmem>>, vector<2x1x8x4xf32>
    tpu.vector_store %arg12[%c0_324, %c5_325, %c0_326, %c12_327], %173 {strides = array<i32>} : memref<2x8x8x32xf32, #tpu.memory_space<vmem>>, vector<2x1x8x4xf32>,
    %175 = vector.extract_strided_slice %166 {offsets = [0, 4, 0, 0], sizes = [2, 1, 8, 4], strides = [1, 1, 1, 1]} : vector<2x8x8x4xf32> to vector<2x1x8x4xf32>
    %c0_328 = arith.constant 0 : index
    %c5_329 = arith.constant 5 : index
    %c0_330 = arith.constant 0 : index
    %c16_331 = arith.constant 16 : index
    %176 = vector.load %arg12[%c0_328, %c5_329, %c0_330, %c16_331] : memref<2x8x8x32xf32, #tpu.memory_space<vmem>>, vector<2x1x8x4xf32>
    tpu.vector_store %arg12[%c0_328, %c5_329, %c0_330, %c16_331], %175 {strides = array<i32>} : memref<2x8x8x32xf32, #tpu.memory_space<vmem>>, vector<2x1x8x4xf32>,
    %177 = vector.extract_strided_slice %166 {offsets = [0, 5, 0, 0], sizes = [2, 1, 8, 4], strides = [1, 1, 1, 1]} : vector<2x8x8x4xf32> to vector<2x1x8x4xf32>
    %c0_332 = arith.constant 0 : index
    %c5_333 = arith.constant 5 : index
    %c0_334 = arith.constant 0 : index
    %c20_335 = arith.constant 20 : index
    %178 = vector.load %arg12[%c0_332, %c5_333, %c0_334, %c20_335] : memref<2x8x8x32xf32, #tpu.memory_space<vmem>>, vector<2x1x8x4xf32>
    tpu.vector_store %arg12[%c0_332, %c5_333, %c0_334, %c20_335], %177 {strides = array<i32>} : memref<2x8x8x32xf32, #tpu.memory_space<vmem>>, vector<2x1x8x4xf32>,
    %179 = vector.extract_strided_slice %166 {offsets = [0, 6, 0, 0], sizes = [2, 1, 8, 4], strides = [1, 1, 1, 1]} : vector<2x8x8x4xf32> to vector<2x1x8x4xf32>
    %c0_336 = arith.constant 0 : index
    %c5_337 = arith.constant 5 : index
    %c0_338 = arith.constant 0 : index
    %c24_339 = arith.constant 24 : index
    %180 = vector.load %arg12[%c0_336, %c5_337, %c0_338, %c24_339] : memref<2x8x8x32xf32, #tpu.memory_space<vmem>>, vector<2x1x8x4xf32>
    tpu.vector_store %arg12[%c0_336, %c5_337, %c0_338, %c24_339], %179 {strides = array<i32>} : memref<2x8x8x32xf32, #tpu.memory_space<vmem>>, vector<2x1x8x4xf32>,
    %181 = vector.extract_strided_slice %166 {offsets = [0, 7, 0, 0], sizes = [2, 1, 8, 4], strides = [1, 1, 1, 1]} : vector<2x8x8x4xf32> to vector<2x1x8x4xf32>
    %c0_340 = arith.constant 0 : index
    %c5_341 = arith.constant 5 : index
    %c0_342 = arith.constant 0 : index
    %c28_343 = arith.constant 28 : index
    %182 = vector.load %arg12[%c0_340, %c5_341, %c0_342, %c28_343] : memref<2x8x8x32xf32, #tpu.memory_space<vmem>>, vector<2x1x8x4xf32>
    tpu.vector_store %arg12[%c0_340, %c5_341, %c0_342, %c28_343], %181 {strides = array<i32>} : memref<2x8x8x32xf32, #tpu.memory_space<vmem>>, vector<2x1x8x4xf32>,
    %183 = vector.extract_strided_slice %166 {offsets = [0, 0, 0, 0], sizes = [2, 8, 1, 4], strides = [1, 1, 1, 1]} : vector<2x8x8x4xf32> to vector<2x8x1x4xf32>
    %c0_344 = arith.constant 0 : index
    %c0_345 = arith.constant 0 : index
    %c5_346 = arith.constant 5 : index
    %c0_347 = arith.constant 0 : index
    %184 = vector.load %arg13[%c0_344, %c0_345, %c5_346, %c0_347] : memref<2x8x8x32xf32, #tpu.memory_space<vmem>>, vector<2x8x1x4xf32>
    tpu.vector_store %arg13[%c0_344, %c0_345, %c5_346, %c0_347], %183 {strides = array<i32>} : memref<2x8x8x32xf32, #tpu.memory_space<vmem>>, vector<2x8x1x4xf32>,
    %185 = vector.extract_strided_slice %166 {offsets = [0, 0, 1, 0], sizes = [2, 8, 1, 4], strides = [1, 1, 1, 1]} : vector<2x8x8x4xf32> to vector<2x8x1x4xf32>
    %c0_348 = arith.constant 0 : index
    %c0_349 = arith.constant 0 : index
    %c5_350 = arith.constant 5 : index
    %c4_351 = arith.constant 4 : index
    %186 = vector.load %arg13[%c0_348, %c0_349, %c5_350, %c4_351] : memref<2x8x8x32xf32, #tpu.memory_space<vmem>>, vector<2x8x1x4xf32>
    tpu.vector_store %arg13[%c0_348, %c0_349, %c5_350, %c4_351], %185 {strides = array<i32>} : memref<2x8x8x32xf32, #tpu.memory_space<vmem>>, vector<2x8x1x4xf32>,
    %187 = vector.extract_strided_slice %166 {offsets = [0, 0, 2, 0], sizes = [2, 8, 1, 4], strides = [1, 1, 1, 1]} : vector<2x8x8x4xf32> to vector<2x8x1x4xf32>
    %c0_352 = arith.constant 0 : index
    %c0_353 = arith.constant 0 : index
    %c5_354 = arith.constant 5 : index
    %c8_355 = arith.constant 8 : index
    %188 = vector.load %arg13[%c0_352, %c0_353, %c5_354, %c8_355] : memref<2x8x8x32xf32, #tpu.memory_space<vmem>>, vector<2x8x1x4xf32>
    tpu.vector_store %arg13[%c0_352, %c0_353, %c5_354, %c8_355], %187 {strides = array<i32>} : memref<2x8x8x32xf32, #tpu.memory_space<vmem>>, vector<2x8x1x4xf32>,
    %189 = vector.extract_strided_slice %166 {offsets = [0, 0, 3, 0], sizes = [2, 8, 1, 4], strides = [1, 1, 1, 1]} : vector<2x8x8x4xf32> to vector<2x8x1x4xf32>
    %c0_356 = arith.constant 0 : index
    %c0_357 = arith.constant 0 : index
    %c5_358 = arith.constant 5 : index
    %c12_359 = arith.constant 12 : index
    %190 = vector.load %arg13[%c0_356, %c0_357, %c5_358, %c12_359] : memref<2x8x8x32xf32, #tpu.memory_space<vmem>>, vector<2x8x1x4xf32>
    tpu.vector_store %arg13[%c0_356, %c0_357, %c5_358, %c12_359], %189 {strides = array<i32>} : memref<2x8x8x32xf32, #tpu.memory_space<vmem>>, vector<2x8x1x4xf32>,
    %191 = vector.extract_strided_slice %166 {offsets = [0, 0, 4, 0], sizes = [2, 8, 1, 4], strides = [1, 1, 1, 1]} : vector<2x8x8x4xf32> to vector<2x8x1x4xf32>
    %c0_360 = arith.constant 0 : index
    %c0_361 = arith.constant 0 : index
    %c5_362 = arith.constant 5 : index
    %c16_363 = arith.constant 16 : index
    %192 = vector.load %arg13[%c0_360, %c0_361, %c5_362, %c16_363] : memref<2x8x8x32xf32, #tpu.memory_space<vmem>>, vector<2x8x1x4xf32>
    tpu.vector_store %arg13[%c0_360, %c0_361, %c5_362, %c16_363], %191 {strides = array<i32>} : memref<2x8x8x32xf32, #tpu.memory_space<vmem>>, vector<2x8x1x4xf32>,
    %193 = vector.extract_strided_slice %166 {offsets = [0, 0, 5, 0], sizes = [2, 8, 1, 4], strides = [1, 1, 1, 1]} : vector<2x8x8x4xf32> to vector<2x8x1x4xf32>
    %c0_364 = arith.constant 0 : index
    %c0_365 = arith.constant 0 : index
    %c5_366 = arith.constant 5 : index
    %c20_367 = arith.constant 20 : index
    %194 = vector.load %arg13[%c0_364, %c0_365, %c5_366, %c20_367] : memref<2x8x8x32xf32, #tpu.memory_space<vmem>>, vector<2x8x1x4xf32>
    tpu.vector_store %arg13[%c0_364, %c0_365, %c5_366, %c20_367], %193 {strides = array<i32>} : memref<2x8x8x32xf32, #tpu.memory_space<vmem>>, vector<2x8x1x4xf32>,
    %195 = vector.extract_strided_slice %166 {offsets = [0, 0, 6, 0], sizes = [2, 8, 1, 4], strides = [1, 1, 1, 1]} : vector<2x8x8x4xf32> to vector<2x8x1x4xf32>
    %c0_368 = arith.constant 0 : index
    %c0_369 = arith.constant 0 : index
    %c5_370 = arith.constant 5 : index
    %c24_371 = arith.constant 24 : index
    %196 = vector.load %arg13[%c0_368, %c0_369, %c5_370, %c24_371] : memref<2x8x8x32xf32, #tpu.memory_space<vmem>>, vector<2x8x1x4xf32>
    tpu.vector_store %arg13[%c0_368, %c0_369, %c5_370, %c24_371], %195 {strides = array<i32>} : memref<2x8x8x32xf32, #tpu.memory_space<vmem>>, vector<2x8x1x4xf32>,
    %197 = vector.extract_strided_slice %166 {offsets = [0, 0, 7, 0], sizes = [2, 8, 1, 4], strides = [1, 1, 1, 1]} : vector<2x8x8x4xf32> to vector<2x8x1x4xf32>
    %c0_372 = arith.constant 0 : index
    %c0_373 = arith.constant 0 : index
    %c5_374 = arith.constant 5 : index
    %c28_375 = arith.constant 28 : index
    %198 = vector.load %arg13[%c0_372, %c0_373, %c5_374, %c28_375] : memref<2x8x8x32xf32, #tpu.memory_space<vmem>>, vector<2x8x1x4xf32>
    tpu.vector_store %arg13[%c0_372, %c0_373, %c5_374, %c28_375], %197 {strides = array<i32>} : memref<2x8x8x32xf32, #tpu.memory_space<vmem>>, vector<2x8x1x4xf32>,
    %199 = vector.extract_strided_slice %0 {offsets = [0, 0, 0, 24], sizes = [2, 8, 8, 4], strides = [1, 1, 1, 1]} : vector<2x8x8x32xf32> to vector<2x8x8x4xf32>
    %200 = vector.extract_strided_slice %199 {offsets = [0, 0, 0, 0], sizes = [2, 1, 8, 4], strides = [1, 1, 1, 1]} : vector<2x8x8x4xf32> to vector<2x1x8x4xf32>
    %c0_376 = arith.constant 0 : index
    %c6 = arith.constant 6 : index
    %c0_377 = arith.constant 0 : index
    %c0_378 = arith.constant 0 : index
    %201 = vector.load %arg12[%c0_376, %c6, %c0_377, %c0_378] : memref<2x8x8x32xf32, #tpu.memory_space<vmem>>, vector<2x1x8x4xf32>
    tpu.vector_store %arg12[%c0_376, %c6, %c0_377, %c0_378], %200 {strides = array<i32>} : memref<2x8x8x32xf32, #tpu.memory_space<vmem>>, vector<2x1x8x4xf32>,
    %202 = vector.extract_strided_slice %199 {offsets = [0, 1, 0, 0], sizes = [2, 1, 8, 4], strides = [1, 1, 1, 1]} : vector<2x8x8x4xf32> to vector<2x1x8x4xf32>
    %c0_379 = arith.constant 0 : index
    %c6_380 = arith.constant 6 : index
    %c0_381 = arith.constant 0 : index
    %c4_382 = arith.constant 4 : index
    %203 = vector.load %arg12[%c0_379, %c6_380, %c0_381, %c4_382] : memref<2x8x8x32xf32, #tpu.memory_space<vmem>>, vector<2x1x8x4xf32>
    tpu.vector_store %arg12[%c0_379, %c6_380, %c0_381, %c4_382], %202 {strides = array<i32>} : memref<2x8x8x32xf32, #tpu.memory_space<vmem>>, vector<2x1x8x4xf32>,
    %204 = vector.extract_strided_slice %199 {offsets = [0, 2, 0, 0], sizes = [2, 1, 8, 4], strides = [1, 1, 1, 1]} : vector<2x8x8x4xf32> to vector<2x1x8x4xf32>
    %c0_383 = arith.constant 0 : index
    %c6_384 = arith.constant 6 : index
    %c0_385 = arith.constant 0 : index
    %c8_386 = arith.constant 8 : index
    %205 = vector.load %arg12[%c0_383, %c6_384, %c0_385, %c8_386] : memref<2x8x8x32xf32, #tpu.memory_space<vmem>>, vector<2x1x8x4xf32>
    tpu.vector_store %arg12[%c0_383, %c6_384, %c0_385, %c8_386], %204 {strides = array<i32>} : memref<2x8x8x32xf32, #tpu.memory_space<vmem>>, vector<2x1x8x4xf32>,
    %206 = vector.extract_strided_slice %199 {offsets = [0, 3, 0, 0], sizes = [2, 1, 8, 4], strides = [1, 1, 1, 1]} : vector<2x8x8x4xf32> to vector<2x1x8x4xf32>
    %c0_387 = arith.constant 0 : index
    %c6_388 = arith.constant 6 : index
    %c0_389 = arith.constant 0 : index
    %c12_390 = arith.constant 12 : index
    %207 = vector.load %arg12[%c0_387, %c6_388, %c0_389, %c12_390] : memref<2x8x8x32xf32, #tpu.memory_space<vmem>>, vector<2x1x8x4xf32>
    tpu.vector_store %arg12[%c0_387, %c6_388, %c0_389, %c12_390], %206 {strides = array<i32>} : memref<2x8x8x32xf32, #tpu.memory_space<vmem>>, vector<2x1x8x4xf32>,
    %208 = vector.extract_strided_slice %199 {offsets = [0, 4, 0, 0], sizes = [2, 1, 8, 4], strides = [1, 1, 1, 1]} : vector<2x8x8x4xf32> to vector<2x1x8x4xf32>
    %c0_391 = arith.constant 0 : index
    %c6_392 = arith.constant 6 : index
    %c0_393 = arith.constant 0 : index
    %c16_394 = arith.constant 16 : index
    %209 = vector.load %arg12[%c0_391, %c6_392, %c0_393, %c16_394] : memref<2x8x8x32xf32, #tpu.memory_space<vmem>>, vector<2x1x8x4xf32>
    tpu.vector_store %arg12[%c0_391, %c6_392, %c0_393, %c16_394], %208 {strides = array<i32>} : memref<2x8x8x32xf32, #tpu.memory_space<vmem>>, vector<2x1x8x4xf32>,
    %210 = vector.extract_strided_slice %199 {offsets = [0, 5, 0, 0], sizes = [2, 1, 8, 4], strides = [1, 1, 1, 1]} : vector<2x8x8x4xf32> to vector<2x1x8x4xf32>
    %c0_395 = arith.constant 0 : index
    %c6_396 = arith.constant 6 : index
    %c0_397 = arith.constant 0 : index
    %c20_398 = arith.constant 20 : index
    %211 = vector.load %arg12[%c0_395, %c6_396, %c0_397, %c20_398] : memref<2x8x8x32xf32, #tpu.memory_space<vmem>>, vector<2x1x8x4xf32>
    tpu.vector_store %arg12[%c0_395, %c6_396, %c0_397, %c20_398], %210 {strides = array<i32>} : memref<2x8x8x32xf32, #tpu.memory_space<vmem>>, vector<2x1x8x4xf32>,
    %212 = vector.extract_strided_slice %199 {offsets = [0, 6, 0, 0], sizes = [2, 1, 8, 4], strides = [1, 1, 1, 1]} : vector<2x8x8x4xf32> to vector<2x1x8x4xf32>
    %c0_399 = arith.constant 0 : index
    %c6_400 = arith.constant 6 : index
    %c0_401 = arith.constant 0 : index
    %c24_402 = arith.constant 24 : index
    %213 = vector.load %arg12[%c0_399, %c6_400, %c0_401, %c24_402] : memref<2x8x8x32xf32, #tpu.memory_space<vmem>>, vector<2x1x8x4xf32>
    tpu.vector_store %arg12[%c0_399, %c6_400, %c0_401, %c24_402], %212 {strides = array<i32>} : memref<2x8x8x32xf32, #tpu.memory_space<vmem>>, vector<2x1x8x4xf32>,
    %214 = vector.extract_strided_slice %199 {offsets = [0, 7, 0, 0], sizes = [2, 1, 8, 4], strides = [1, 1, 1, 1]} : vector<2x8x8x4xf32> to vector<2x1x8x4xf32>
    %c0_403 = arith.constant 0 : index
    %c6_404 = arith.constant 6 : index
    %c0_405 = arith.constant 0 : index
    %c28_406 = arith.constant 28 : index
    %215 = vector.load %arg12[%c0_403, %c6_404, %c0_405, %c28_406] : memref<2x8x8x32xf32, #tpu.memory_space<vmem>>, vector<2x1x8x4xf32>
    tpu.vector_store %arg12[%c0_403, %c6_404, %c0_405, %c28_406], %214 {strides = array<i32>} : memref<2x8x8x32xf32, #tpu.memory_space<vmem>>, vector<2x1x8x4xf32>,
    %216 = vector.extract_strided_slice %199 {offsets = [0, 0, 0, 0], sizes = [2, 8, 1, 4], strides = [1, 1, 1, 1]} : vector<2x8x8x4xf32> to vector<2x8x1x4xf32>
    %c0_407 = arith.constant 0 : index
    %c0_408 = arith.constant 0 : index
    %c6_409 = arith.constant 6 : index
    %c0_410 = arith.constant 0 : index
    %217 = vector.load %arg13[%c0_407, %c0_408, %c6_409, %c0_410] : memref<2x8x8x32xf32, #tpu.memory_space<vmem>>, vector<2x8x1x4xf32>
    tpu.vector_store %arg13[%c0_407, %c0_408, %c6_409, %c0_410], %216 {strides = array<i32>} : memref<2x8x8x32xf32, #tpu.memory_space<vmem>>, vector<2x8x1x4xf32>,
    %218 = vector.extract_strided_slice %199 {offsets = [0, 0, 1, 0], sizes = [2, 8, 1, 4], strides = [1, 1, 1, 1]} : vector<2x8x8x4xf32> to vector<2x8x1x4xf32>
    %c0_411 = arith.constant 0 : index
    %c0_412 = arith.constant 0 : index
    %c6_413 = arith.constant 6 : index
    %c4_414 = arith.constant 4 : index
    %219 = vector.load %arg13[%c0_411, %c0_412, %c6_413, %c4_414] : memref<2x8x8x32xf32, #tpu.memory_space<vmem>>, vector<2x8x1x4xf32>
    tpu.vector_store %arg13[%c0_411, %c0_412, %c6_413, %c4_414], %218 {strides = array<i32>} : memref<2x8x8x32xf32, #tpu.memory_space<vmem>>, vector<2x8x1x4xf32>,
    %220 = vector.extract_strided_slice %199 {offsets = [0, 0, 2, 0], sizes = [2, 8, 1, 4], strides = [1, 1, 1, 1]} : vector<2x8x8x4xf32> to vector<2x8x1x4xf32>
    %c0_415 = arith.constant 0 : index
    %c0_416 = arith.constant 0 : index
    %c6_417 = arith.constant 6 : index
    %c8_418 = arith.constant 8 : index
    %221 = vector.load %arg13[%c0_415, %c0_416, %c6_417, %c8_418] : memref<2x8x8x32xf32, #tpu.memory_space<vmem>>, vector<2x8x1x4xf32>
    tpu.vector_store %arg13[%c0_415, %c0_416, %c6_417, %c8_418], %220 {strides = array<i32>} : memref<2x8x8x32xf32, #tpu.memory_space<vmem>>, vector<2x8x1x4xf32>,
    %222 = vector.extract_strided_slice %199 {offsets = [0, 0, 3, 0], sizes = [2, 8, 1, 4], strides = [1, 1, 1, 1]} : vector<2x8x8x4xf32> to vector<2x8x1x4xf32>
    %c0_419 = arith.constant 0 : index
    %c0_420 = arith.constant 0 : index
    %c6_421 = arith.constant 6 : index
    %c12_422 = arith.constant 12 : index
    %223 = vector.load %arg13[%c0_419, %c0_420, %c6_421, %c12_422] : memref<2x8x8x32xf32, #tpu.memory_space<vmem>>, vector<2x8x1x4xf32>
    tpu.vector_store %arg13[%c0_419, %c0_420, %c6_421, %c12_422], %222 {strides = array<i32>} : memref<2x8x8x32xf32, #tpu.memory_space<vmem>>, vector<2x8x1x4xf32>,
    %224 = vector.extract_strided_slice %199 {offsets = [0, 0, 4, 0], sizes = [2, 8, 1, 4], strides = [1, 1, 1, 1]} : vector<2x8x8x4xf32> to vector<2x8x1x4xf32>
    %c0_423 = arith.constant 0 : index
    %c0_424 = arith.constant 0 : index
    %c6_425 = arith.constant 6 : index
    %c16_426 = arith.constant 16 : index
    %225 = vector.load %arg13[%c0_423, %c0_424, %c6_425, %c16_426] : memref<2x8x8x32xf32, #tpu.memory_space<vmem>>, vector<2x8x1x4xf32>
    tpu.vector_store %arg13[%c0_423, %c0_424, %c6_425, %c16_426], %224 {strides = array<i32>} : memref<2x8x8x32xf32, #tpu.memory_space<vmem>>, vector<2x8x1x4xf32>,
    %226 = vector.extract_strided_slice %199 {offsets = [0, 0, 5, 0], sizes = [2, 8, 1, 4], strides = [1, 1, 1, 1]} : vector<2x8x8x4xf32> to vector<2x8x1x4xf32>
    %c0_427 = arith.constant 0 : index
    %c0_428 = arith.constant 0 : index
    %c6_429 = arith.constant 6 : index
    %c20_430 = arith.constant 20 : index
    %227 = vector.load %arg13[%c0_427, %c0_428, %c6_429, %c20_430] : memref<2x8x8x32xf32, #tpu.memory_space<vmem>>, vector<2x8x1x4xf32>
    tpu.vector_store %arg13[%c0_427, %c0_428, %c6_429, %c20_430], %226 {strides = array<i32>} : memref<2x8x8x32xf32, #tpu.memory_space<vmem>>, vector<2x8x1x4xf32>,
    %228 = vector.extract_strided_slice %199 {offsets = [0, 0, 6, 0], sizes = [2, 8, 1, 4], strides = [1, 1, 1, 1]} : vector<2x8x8x4xf32> to vector<2x8x1x4xf32>
    %c0_431 = arith.constant 0 : index
    %c0_432 = arith.constant 0 : index
    %c6_433 = arith.constant 6 : index
    %c24_434 = arith.constant 24 : index
    %229 = vector.load %arg13[%c0_431, %c0_432, %c6_433, %c24_434] : memref<2x8x8x32xf32, #tpu.memory_space<vmem>>, vector<2x8x1x4xf32>
    tpu.vector_store %arg13[%c0_431, %c0_432, %c6_433, %c24_434], %228 {strides = array<i32>} : memref<2x8x8x32xf32, #tpu.memory_space<vmem>>, vector<2x8x1x4xf32>,
    %230 = vector.extract_strided_slice %199 {offsets = [0, 0, 7, 0], sizes = [2, 8, 1, 4], strides = [1, 1, 1, 1]} : vector<2x8x8x4xf32> to vector<2x8x1x4xf32>
    %c0_435 = arith.constant 0 : index
    %c0_436 = arith.constant 0 : index
    %c6_437 = arith.constant 6 : index
    %c28_438 = arith.constant 28 : index
    %231 = vector.load %arg13[%c0_435, %c0_436, %c6_437, %c28_438] : memref<2x8x8x32xf32, #tpu.memory_space<vmem>>, vector<2x8x1x4xf32>
    tpu.vector_store %arg13[%c0_435, %c0_436, %c6_437, %c28_438], %230 {strides = array<i32>} : memref<2x8x8x32xf32, #tpu.memory_space<vmem>>, vector<2x8x1x4xf32>,
    %232 = vector.extract_strided_slice %0 {offsets = [0, 0, 0, 28], sizes = [2, 8, 8, 4], strides = [1, 1, 1, 1]} : vector<2x8x8x32xf32> to vector<2x8x8x4xf32>
    %233 = vector.extract_strided_slice %232 {offsets = [0, 0, 0, 0], sizes = [2, 1, 8, 4], strides = [1, 1, 1, 1]} : vector<2x8x8x4xf32> to vector<2x1x8x4xf32>
    %c0_439 = arith.constant 0 : index
    %c7 = arith.constant 7 : index
    %c0_440 = arith.constant 0 : index
    %c0_441 = arith.constant 0 : index
    %234 = vector.load %arg12[%c0_439, %c7, %c0_440, %c0_441] : memref<2x8x8x32xf32, #tpu.memory_space<vmem>>, vector<2x1x8x4xf32>
    tpu.vector_store %arg12[%c0_439, %c7, %c0_440, %c0_441], %233 {strides = array<i32>} : memref<2x8x8x32xf32, #tpu.memory_space<vmem>>, vector<2x1x8x4xf32>,
    %235 = vector.extract_strided_slice %232 {offsets = [0, 1, 0, 0], sizes = [2, 1, 8, 4], strides = [1, 1, 1, 1]} : vector<2x8x8x4xf32> to vector<2x1x8x4xf32>
    %c0_442 = arith.constant 0 : index
    %c7_443 = arith.constant 7 : index
    %c0_444 = arith.constant 0 : index
    %c4_445 = arith.constant 4 : index
    %236 = vector.load %arg12[%c0_442, %c7_443, %c0_444, %c4_445] : memref<2x8x8x32xf32, #tpu.memory_space<vmem>>, vector<2x1x8x4xf32>
    tpu.vector_store %arg12[%c0_442, %c7_443, %c0_444, %c4_445], %235 {strides = array<i32>} : memref<2x8x8x32xf32, #tpu.memory_space<vmem>>, vector<2x1x8x4xf32>,
    %237 = vector.extract_strided_slice %232 {offsets = [0, 2, 0, 0], sizes = [2, 1, 8, 4], strides = [1, 1, 1, 1]} : vector<2x8x8x4xf32> to vector<2x1x8x4xf32>
    %c0_446 = arith.constant 0 : index
    %c7_447 = arith.constant 7 : index
    %c0_448 = arith.constant 0 : index
    %c8_449 = arith.constant 8 : index
    %238 = vector.load %arg12[%c0_446, %c7_447, %c0_448, %c8_449] : memref<2x8x8x32xf32, #tpu.memory_space<vmem>>, vector<2x1x8x4xf32>
    tpu.vector_store %arg12[%c0_446, %c7_447, %c0_448, %c8_449], %237 {strides = array<i32>} : memref<2x8x8x32xf32, #tpu.memory_space<vmem>>, vector<2x1x8x4xf32>,
    %239 = vector.extract_strided_slice %232 {offsets = [0, 3, 0, 0], sizes = [2, 1, 8, 4], strides = [1, 1, 1, 1]} : vector<2x8x8x4xf32> to vector<2x1x8x4xf32>
    %c0_450 = arith.constant 0 : index
    %c7_451 = arith.constant 7 : index
    %c0_452 = arith.constant 0 : index
    %c12_453 = arith.constant 12 : index
    %240 = vector.load %arg12[%c0_450, %c7_451, %c0_452, %c12_453] : memref<2x8x8x32xf32, #tpu.memory_space<vmem>>, vector<2x1x8x4xf32>
    tpu.vector_store %arg12[%c0_450, %c7_451, %c0_452, %c12_453], %239 {strides = array<i32>} : memref<2x8x8x32xf32, #tpu.memory_space<vmem>>, vector<2x1x8x4xf32>,
    %241 = vector.extract_strided_slice %232 {offsets = [0, 4, 0, 0], sizes = [2, 1, 8, 4], strides = [1, 1, 1, 1]} : vector<2x8x8x4xf32> to vector<2x1x8x4xf32>
    %c0_454 = arith.constant 0 : index
    %c7_455 = arith.constant 7 : index
    %c0_456 = arith.constant 0 : index
    %c16_457 = arith.constant 16 : index
    %242 = vector.load %arg12[%c0_454, %c7_455, %c0_456, %c16_457] : memref<2x8x8x32xf32, #tpu.memory_space<vmem>>, vector<2x1x8x4xf32>
    tpu.vector_store %arg12[%c0_454, %c7_455, %c0_456, %c16_457], %241 {strides = array<i32>} : memref<2x8x8x32xf32, #tpu.memory_space<vmem>>, vector<2x1x8x4xf32>,
    %243 = vector.extract_strided_slice %232 {offsets = [0, 5, 0, 0], sizes = [2, 1, 8, 4], strides = [1, 1, 1, 1]} : vector<2x8x8x4xf32> to vector<2x1x8x4xf32>
    %c0_458 = arith.constant 0 : index
    %c7_459 = arith.constant 7 : index
    %c0_460 = arith.constant 0 : index
    %c20_461 = arith.constant 20 : index
    %244 = vector.load %arg12[%c0_458, %c7_459, %c0_460, %c20_461] : memref<2x8x8x32xf32, #tpu.memory_space<vmem>>, vector<2x1x8x4xf32>
    tpu.vector_store %arg12[%c0_458, %c7_459, %c0_460, %c20_461], %243 {strides = array<i32>} : memref<2x8x8x32xf32, #tpu.memory_space<vmem>>, vector<2x1x8x4xf32>,
    %245 = vector.extract_strided_slice %232 {offsets = [0, 6, 0, 0], sizes = [2, 1, 8, 4], strides = [1, 1, 1, 1]} : vector<2x8x8x4xf32> to vector<2x1x8x4xf32>
    %c0_462 = arith.constant 0 : index
    %c7_463 = arith.constant 7 : index
    %c0_464 = arith.constant 0 : index
    %c24_465 = arith.constant 24 : index
    %246 = vector.load %arg12[%c0_462, %c7_463, %c0_464, %c24_465] : memref<2x8x8x32xf32, #tpu.memory_space<vmem>>, vector<2x1x8x4xf32>
    tpu.vector_store %arg12[%c0_462, %c7_463, %c0_464, %c24_465], %245 {strides = array<i32>} : memref<2x8x8x32xf32, #tpu.memory_space<vmem>>, vector<2x1x8x4xf32>,
    %247 = vector.extract_strided_slice %232 {offsets = [0, 7, 0, 0], sizes = [2, 1, 8, 4], strides = [1, 1, 1, 1]} : vector<2x8x8x4xf32> to vector<2x1x8x4xf32>
    %c0_466 = arith.constant 0 : index
    %c7_467 = arith.constant 7 : index
    %c0_468 = arith.constant 0 : index
    %c28_469 = arith.constant 28 : index
    %248 = vector.load %arg12[%c0_466, %c7_467, %c0_468, %c28_469] : memref<2x8x8x32xf32, #tpu.memory_space<vmem>>, vector<2x1x8x4xf32>
    tpu.vector_store %arg12[%c0_466, %c7_467, %c0_468, %c28_469], %247 {strides = array<i32>} : memref<2x8x8x32xf32, #tpu.memory_space<vmem>>, vector<2x1x8x4xf32>,
    %249 = vector.extract_strided_slice %232 {offsets = [0, 0, 0, 0], sizes = [2, 8, 1, 4], strides = [1, 1, 1, 1]} : vector<2x8x8x4xf32> to vector<2x8x1x4xf32>
    %c0_470 = arith.constant 0 : index
    %c0_471 = arith.constant 0 : index
    %c7_472 = arith.constant 7 : index
    %c0_473 = arith.constant 0 : index
    %250 = vector.load %arg13[%c0_470, %c0_471, %c7_472, %c0_473] : memref<2x8x8x32xf32, #tpu.memory_space<vmem>>, vector<2x8x1x4xf32>
    tpu.vector_store %arg13[%c0_470, %c0_471, %c7_472, %c0_473], %249 {strides = array<i32>} : memref<2x8x8x32xf32, #tpu.memory_space<vmem>>, vector<2x8x1x4xf32>,
    %251 = vector.extract_strided_slice %232 {offsets = [0, 0, 1, 0], sizes = [2, 8, 1, 4], strides = [1, 1, 1, 1]} : vector<2x8x8x4xf32> to vector<2x8x1x4xf32>
    %c0_474 = arith.constant 0 : index
    %c0_475 = arith.constant 0 : index
    %c7_476 = arith.constant 7 : index
    %c4_477 = arith.constant 4 : index
    %252 = vector.load %arg13[%c0_474, %c0_475, %c7_476, %c4_477] : memref<2x8x8x32xf32, #tpu.memory_space<vmem>>, vector<2x8x1x4xf32>
    tpu.vector_store %arg13[%c0_474, %c0_475, %c7_476, %c4_477], %251 {strides = array<i32>} : memref<2x8x8x32xf32, #tpu.memory_space<vmem>>, vector<2x8x1x4xf32>,
    %253 = vector.extract_strided_slice %232 {offsets = [0, 0, 2, 0], sizes = [2, 8, 1, 4], strides = [1, 1, 1, 1]} : vector<2x8x8x4xf32> to vector<2x8x1x4xf32>
    %c0_478 = arith.constant 0 : index
    %c0_479 = arith.constant 0 : index
    %c7_480 = arith.constant 7 : index
    %c8_481 = arith.constant 8 : index
    %254 = vector.load %arg13[%c0_478, %c0_479, %c7_480, %c8_481] : memref<2x8x8x32xf32, #tpu.memory_space<vmem>>, vector<2x8x1x4xf32>
    tpu.vector_store %arg13[%c0_478, %c0_479, %c7_480, %c8_481], %253 {strides = array<i32>} : memref<2x8x8x32xf32, #tpu.memory_space<vmem>>, vector<2x8x1x4xf32>,
    %255 = vector.extract_strided_slice %232 {offsets = [0, 0, 3, 0], sizes = [2, 8, 1, 4], strides = [1, 1, 1, 1]} : vector<2x8x8x4xf32> to vector<2x8x1x4xf32>
    %c0_482 = arith.constant 0 : index
    %c0_483 = arith.constant 0 : index
    %c7_484 = arith.constant 7 : index
    %c12_485 = arith.constant 12 : index
    %256 = vector.load %arg13[%c0_482, %c0_483, %c7_484, %c12_485] : memref<2x8x8x32xf32, #tpu.memory_space<vmem>>, vector<2x8x1x4xf32>
    tpu.vector_store %arg13[%c0_482, %c0_483, %c7_484, %c12_485], %255 {strides = array<i32>} : memref<2x8x8x32xf32, #tpu.memory_space<vmem>>, vector<2x8x1x4xf32>,
    %257 = vector.extract_strided_slice %232 {offsets = [0, 0, 4, 0], sizes = [2, 8, 1, 4], strides = [1, 1, 1, 1]} : vector<2x8x8x4xf32> to vector<2x8x1x4xf32>
    %c0_486 = arith.constant 0 : index
    %c0_487 = arith.constant 0 : index
    %c7_488 = arith.constant 7 : index
    %c16_489 = arith.constant 16 : index
    %258 = vector.load %arg13[%c0_486, %c0_487, %c7_488, %c16_489] : memref<2x8x8x32xf32, #tpu.memory_space<vmem>>, vector<2x8x1x4xf32>
    tpu.vector_store %arg13[%c0_486, %c0_487, %c7_488, %c16_489], %257 {strides = array<i32>} : memref<2x8x8x32xf32, #tpu.memory_space<vmem>>, vector<2x8x1x4xf32>,
    %259 = vector.extract_strided_slice %232 {offsets = [0, 0, 5, 0], sizes = [2, 8, 1, 4], strides = [1, 1, 1, 1]} : vector<2x8x8x4xf32> to vector<2x8x1x4xf32>
    %c0_490 = arith.constant 0 : index
    %c0_491 = arith.constant 0 : index
    %c7_492 = arith.constant 7 : index
    %c20_493 = arith.constant 20 : index
    %260 = vector.load %arg13[%c0_490, %c0_491, %c7_492, %c20_493] : memref<2x8x8x32xf32, #tpu.memory_space<vmem>>, vector<2x8x1x4xf32>
    tpu.vector_store %arg13[%c0_490, %c0_491, %c7_492, %c20_493], %259 {strides = array<i32>} : memref<2x8x8x32xf32, #tpu.memory_space<vmem>>, vector<2x8x1x4xf32>,
    %261 = vector.extract_strided_slice %232 {offsets = [0, 0, 6, 0], sizes = [2, 8, 1, 4], strides = [1, 1, 1, 1]} : vector<2x8x8x4xf32> to vector<2x8x1x4xf32>
    %c0_494 = arith.constant 0 : index
    %c0_495 = arith.constant 0 : index
    %c7_496 = arith.constant 7 : index
    %c24_497 = arith.constant 24 : index
    %262 = vector.load %arg13[%c0_494, %c0_495, %c7_496, %c24_497] : memref<2x8x8x32xf32, #tpu.memory_space<vmem>>, vector<2x8x1x4xf32>
    tpu.vector_store %arg13[%c0_494, %c0_495, %c7_496, %c24_497], %261 {strides = array<i32>} : memref<2x8x8x32xf32, #tpu.memory_space<vmem>>, vector<2x8x1x4xf32>,
    %263 = vector.extract_strided_slice %232 {offsets = [0, 0, 7, 0], sizes = [2, 8, 1, 4], strides = [1, 1, 1, 1]} : vector<2x8x8x4xf32> to vector<2x8x1x4xf32>
    %c0_498 = arith.constant 0 : index
    %c0_499 = arith.constant 0 : index
    %c7_500 = arith.constant 7 : index
    %c28_501 = arith.constant 28 : index
    %264 = vector.load %arg13[%c0_498, %c0_499, %c7_500, %c28_501] : memref<2x8x8x32xf32, #tpu.memory_space<vmem>>, vector<2x8x1x4xf32>
    tpu.vector_store %arg13[%c0_498, %c0_499, %c7_500, %c28_501], %263 {strides = array<i32>} : memref<2x8x8x32xf32, #tpu.memory_space<vmem>>, vector<2x8x1x4xf32>,
    %265 = vector.shape_cast %0 : vector<2x8x8x32xf32> to vector<128x32xf32>
    %c0_502 = arith.constant 0 : index
    %c0_503 = arith.constant 0 : index
    %266 = vector.load %arg2[%c0_502, %c0_503] : memref<32x32xf32, #tpu.memory_space<vmem>>, vector<32x32xf32>
    %cst = arith.constant dense<0.000000e+00> : vector<128x32xf32>
    %267 = tpu.matmul %265, %266, %cst {dimension_numbers = #tpu.dot_dimension_numbers<[1], [0], [0], [1], [0, 0, 1, 1], [], []>} : vector<128x32xf32>, vector<32x32xf32>, vector<128x32xf32> -> vector<128x32xf32>
    %268 = vector.shape_cast %267 : vector<128x32xf32> to vector<2x8x8x32xf32>
    %c0_504 = arith.constant 0 : index
    %c0_505 = arith.constant 0 : index
    %c0_506 = arith.constant 0 : index
    %c0_507 = arith.constant 0 : index
    %269 = vector.load %arg12[%c0_504, %c0_505, %c0_506, %c0_507] : memref<2x8x8x32xf32, #tpu.memory_space<vmem>>, vector<2x8x8x32xf32>
    %270 = vector.shape_cast %269 : vector<2x8x8x32xf32> to vector<128x32xf32>
    %c0_508 = arith.constant 0 : index
    %c0_509 = arith.constant 0 : index
    %271 = vector.load %arg3[%c0_508, %c0_509] : memref<32x32xf32, #tpu.memory_space<vmem>>, vector<32x32xf32>
    %cst_510 = arith.constant dense<0.000000e+00> : vector<128x32xf32>
    %272 = tpu.matmul %270, %271, %cst_510 {dimension_numbers = #tpu.dot_dimension_numbers<[1], [0], [0], [1], [0, 0, 1, 1], [], []>} : vector<128x32xf32>, vector<32x32xf32>, vector<128x32xf32> -> vector<128x32xf32>
    %273 = vector.shape_cast %272 : vector<128x32xf32> to vector<2x8x8x32xf32>
    %c0_511 = arith.constant 0 : index
    %c0_512 = arith.constant 0 : index
    %c0_513 = arith.constant 0 : index
    %c0_514 = arith.constant 0 : index
    %274 = vector.load %arg13[%c0_511, %c0_512, %c0_513, %c0_514] : memref<2x8x8x32xf32, #tpu.memory_space<vmem>>, vector<2x8x8x32xf32>
    %275 = vector.shape_cast %274 : vector<2x8x8x32xf32> to vector<128x32xf32>
    %c0_515 = arith.constant 0 : index
    %c0_516 = arith.constant 0 : index
    %276 = vector.load %arg4[%c0_515, %c0_516] : memref<32x32xf32, #tpu.memory_space<vmem>>, vector<32x32xf32>
    %cst_517 = arith.constant dense<0.000000e+00> : vector<128x32xf32>
    %277 = tpu.matmul %275, %276, %cst_517 {dimension_numbers = #tpu.dot_dimension_numbers<[1], [0], [0], [1], [0, 0, 1, 1], [], []>} : vector<128x32xf32>, vector<32x32xf32>, vector<128x32xf32> -> vector<128x32xf32>
    %278 = vector.shape_cast %277 : vector<128x32xf32> to vector<2x8x8x32xf32>
    %279 = vector.extract_strided_slice %273 {offsets = [0, 0, 0, 0], sizes = [2, 1, 8, 32], strides = [1, 1, 1, 1]} : vector<2x8x8x32xf32> to vector<2x1x8x32xf32>
    %280 = vector.extract_strided_slice %279 {offsets = [0, 0, 0, 0], sizes = [2, 1, 8, 4], strides = [1, 1, 1, 1]} : vector<2x1x8x32xf32> to vector<2x1x8x4xf32>
    %c0_518 = arith.constant 0 : index
    %c0_519 = arith.constant 0 : index
    %c0_520 = arith.constant 0 : index
    %c0_521 = arith.constant 0 : index
    %281 = vector.load %arg14[%c0_518, %c0_519, %c0_520, %c0_521] : memref<2x8x8x32xf32, #tpu.memory_space<vmem>>, vector<2x1x8x4xf32>
    tpu.vector_store %arg14[%c0_518, %c0_519, %c0_520, %c0_521], %280 {strides = array<i32>} : memref<2x8x8x32xf32, #tpu.memory_space<vmem>>, vector<2x1x8x4xf32>,
    %282 = vector.extract_strided_slice %279 {offsets = [0, 0, 0, 4], sizes = [2, 1, 8, 4], strides = [1, 1, 1, 1]} : vector<2x1x8x32xf32> to vector<2x1x8x4xf32>
    %c0_522 = arith.constant 0 : index
    %c1_523 = arith.constant 1 : index
    %c0_524 = arith.constant 0 : index
    %c0_525 = arith.constant 0 : index
    %283 = vector.load %arg14[%c0_522, %c1_523, %c0_524, %c0_525] : memref<2x8x8x32xf32, #tpu.memory_space<vmem>>, vector<2x1x8x4xf32>
    tpu.vector_store %arg14[%c0_522, %c1_523, %c0_524, %c0_525], %282 {strides = array<i32>} : memref<2x8x8x32xf32, #tpu.memory_space<vmem>>, vector<2x1x8x4xf32>,
    %284 = vector.extract_strided_slice %279 {offsets = [0, 0, 0, 8], sizes = [2, 1, 8, 4], strides = [1, 1, 1, 1]} : vector<2x1x8x32xf32> to vector<2x1x8x4xf32>
    %c0_526 = arith.constant 0 : index
    %c2_527 = arith.constant 2 : index
    %c0_528 = arith.constant 0 : index
    %c0_529 = arith.constant 0 : index
    %285 = vector.load %arg14[%c0_526, %c2_527, %c0_528, %c0_529] : memref<2x8x8x32xf32, #tpu.memory_space<vmem>>, vector<2x1x8x4xf32>
    tpu.vector_store %arg14[%c0_526, %c2_527, %c0_528, %c0_529], %284 {strides = array<i32>} : memref<2x8x8x32xf32, #tpu.memory_space<vmem>>, vector<2x1x8x4xf32>,
    %286 = vector.extract_strided_slice %279 {offsets = [0, 0, 0, 12], sizes = [2, 1, 8, 4], strides = [1, 1, 1, 1]} : vector<2x1x8x32xf32> to vector<2x1x8x4xf32>
    %c0_530 = arith.constant 0 : index
    %c3_531 = arith.constant 3 : index
    %c0_532 = arith.constant 0 : index
    %c0_533 = arith.constant 0 : index
    %287 = vector.load %arg14[%c0_530, %c3_531, %c0_532, %c0_533] : memref<2x8x8x32xf32, #tpu.memory_space<vmem>>, vector<2x1x8x4xf32>
    tpu.vector_store %arg14[%c0_530, %c3_531, %c0_532, %c0_533], %286 {strides = array<i32>} : memref<2x8x8x32xf32, #tpu.memory_space<vmem>>, vector<2x1x8x4xf32>,
    %288 = vector.extract_strided_slice %279 {offsets = [0, 0, 0, 16], sizes = [2, 1, 8, 4], strides = [1, 1, 1, 1]} : vector<2x1x8x32xf32> to vector<2x1x8x4xf32>
    %c0_534 = arith.constant 0 : index
    %c4_535 = arith.constant 4 : index
    %c0_536 = arith.constant 0 : index
    %c0_537 = arith.constant 0 : index
    %289 = vector.load %arg14[%c0_534, %c4_535, %c0_536, %c0_537] : memref<2x8x8x32xf32, #tpu.memory_space<vmem>>, vector<2x1x8x4xf32>
    tpu.vector_store %arg14[%c0_534, %c4_535, %c0_536, %c0_537], %288 {strides = array<i32>} : memref<2x8x8x32xf32, #tpu.memory_space<vmem>>, vector<2x1x8x4xf32>,
    %290 = vector.extract_strided_slice %279 {offsets = [0, 0, 0, 20], sizes = [2, 1, 8, 4], strides = [1, 1, 1, 1]} : vector<2x1x8x32xf32> to vector<2x1x8x4xf32>
    %c0_538 = arith.constant 0 : index
    %c5_539 = arith.constant 5 : index
    %c0_540 = arith.constant 0 : index
    %c0_541 = arith.constant 0 : index
    %291 = vector.load %arg14[%c0_538, %c5_539, %c0_540, %c0_541] : memref<2x8x8x32xf32, #tpu.memory_space<vmem>>, vector<2x1x8x4xf32>
    tpu.vector_store %arg14[%c0_538, %c5_539, %c0_540, %c0_541], %290 {strides = array<i32>} : memref<2x8x8x32xf32, #tpu.memory_space<vmem>>, vector<2x1x8x4xf32>,
    %292 = vector.extract_strided_slice %279 {offsets = [0, 0, 0, 24], sizes = [2, 1, 8, 4], strides = [1, 1, 1, 1]} : vector<2x1x8x32xf32> to vector<2x1x8x4xf32>
    %c0_542 = arith.constant 0 : index
    %c6_543 = arith.constant 6 : index
    %c0_544 = arith.constant 0 : index
    %c0_545 = arith.constant 0 : index
    %293 = vector.load %arg14[%c0_542, %c6_543, %c0_544, %c0_545] : memref<2x8x8x32xf32, #tpu.memory_space<vmem>>, vector<2x1x8x4xf32>
    tpu.vector_store %arg14[%c0_542, %c6_543, %c0_544, %c0_545], %292 {strides = array<i32>} : memref<2x8x8x32xf32, #tpu.memory_space<vmem>>, vector<2x1x8x4xf32>,
    %294 = vector.extract_strided_slice %279 {offsets = [0, 0, 0, 28], sizes = [2, 1, 8, 4], strides = [1, 1, 1, 1]} : vector<2x1x8x32xf32> to vector<2x1x8x4xf32>
    %c0_546 = arith.constant 0 : index
    %c7_547 = arith.constant 7 : index
    %c0_548 = arith.constant 0 : index
    %c0_549 = arith.constant 0 : index
    %295 = vector.load %arg14[%c0_546, %c7_547, %c0_548, %c0_549] : memref<2x8x8x32xf32, #tpu.memory_space<vmem>>, vector<2x1x8x4xf32>
    tpu.vector_store %arg14[%c0_546, %c7_547, %c0_548, %c0_549], %294 {strides = array<i32>} : memref<2x8x8x32xf32, #tpu.memory_space<vmem>>, vector<2x1x8x4xf32>,
    %296 = vector.extract_strided_slice %278 {offsets = [0, 0, 0, 0], sizes = [2, 8, 1, 32], strides = [1, 1, 1, 1]} : vector<2x8x8x32xf32> to vector<2x8x1x32xf32>
    %297 = vector.extract_strided_slice %296 {offsets = [0, 0, 0, 0], sizes = [2, 8, 1, 4], strides = [1, 1, 1, 1]} : vector<2x8x1x32xf32> to vector<2x8x1x4xf32>
    %c0_550 = arith.constant 0 : index
    %c0_551 = arith.constant 0 : index
    %c0_552 = arith.constant 0 : index
    %c0_553 = arith.constant 0 : index
    %298 = vector.load %arg15[%c0_550, %c0_551, %c0_552, %c0_553] : memref<2x8x8x32xf32, #tpu.memory_space<vmem>>, vector<2x8x1x4xf32>
    tpu.vector_store %arg15[%c0_550, %c0_551, %c0_552, %c0_553], %297 {strides = array<i32>} : memref<2x8x8x32xf32, #tpu.memory_space<vmem>>, vector<2x8x1x4xf32>,
    %299 = vector.extract_strided_slice %296 {offsets = [0, 0, 0, 4], sizes = [2, 8, 1, 4], strides = [1, 1, 1, 1]} : vector<2x8x1x32xf32> to vector<2x8x1x4xf32>
    %c0_554 = arith.constant 0 : index
    %c0_555 = arith.constant 0 : index
    %c1_556 = arith.constant 1 : index
    %c0_557 = arith.constant 0 : index
    %300 = vector.load %arg15[%c0_554, %c0_555, %c1_556, %c0_557] : memref<2x8x8x32xf32, #tpu.memory_space<vmem>>, vector<2x8x1x4xf32>
    tpu.vector_store %arg15[%c0_554, %c0_555, %c1_556, %c0_557], %299 {strides = array<i32>} : memref<2x8x8x32xf32, #tpu.memory_space<vmem>>, vector<2x8x1x4xf32>,
    %301 = vector.extract_strided_slice %296 {offsets = [0, 0, 0, 8], sizes = [2, 8, 1, 4], strides = [1, 1, 1, 1]} : vector<2x8x1x32xf32> to vector<2x8x1x4xf32>
    %c0_558 = arith.constant 0 : index
    %c0_559 = arith.constant 0 : index
    %c2_560 = arith.constant 2 : index
    %c0_561 = arith.constant 0 : index
    %302 = vector.load %arg15[%c0_558, %c0_559, %c2_560, %c0_561] : memref<2x8x8x32xf32, #tpu.memory_space<vmem>>, vector<2x8x1x4xf32>
    tpu.vector_store %arg15[%c0_558, %c0_559, %c2_560, %c0_561], %301 {strides = array<i32>} : memref<2x8x8x32xf32, #tpu.memory_space<vmem>>, vector<2x8x1x4xf32>,
    %303 = vector.extract_strided_slice %296 {offsets = [0, 0, 0, 12], sizes = [2, 8, 1, 4], strides = [1, 1, 1, 1]} : vector<2x8x1x32xf32> to vector<2x8x1x4xf32>
    %c0_562 = arith.constant 0 : index
    %c0_563 = arith.constant 0 : index
    %c3_564 = arith.constant 3 : index
    %c0_565 = arith.constant 0 : index
    %304 = vector.load %arg15[%c0_562, %c0_563, %c3_564, %c0_565] : memref<2x8x8x32xf32, #tpu.memory_space<vmem>>, vector<2x8x1x4xf32>
    tpu.vector_store %arg15[%c0_562, %c0_563, %c3_564, %c0_565], %303 {strides = array<i32>} : memref<2x8x8x32xf32, #tpu.memory_space<vmem>>, vector<2x8x1x4xf32>,
    %305 = vector.extract_strided_slice %296 {offsets = [0, 0, 0, 16], sizes = [2, 8, 1, 4], strides = [1, 1, 1, 1]} : vector<2x8x1x32xf32> to vector<2x8x1x4xf32>
    %c0_566 = arith.constant 0 : index
    %c0_567 = arith.constant 0 : index
    %c4_568 = arith.constant 4 : index
    %c0_569 = arith.constant 0 : index
    %306 = vector.load %arg15[%c0_566, %c0_567, %c4_568, %c0_569] : memref<2x8x8x32xf32, #tpu.memory_space<vmem>>, vector<2x8x1x4xf32>
    tpu.vector_store %arg15[%c0_566, %c0_567, %c4_568, %c0_569], %305 {strides = array<i32>} : memref<2x8x8x32xf32, #tpu.memory_space<vmem>>, vector<2x8x1x4xf32>,
    %307 = vector.extract_strided_slice %296 {offsets = [0, 0, 0, 20], sizes = [2, 8, 1, 4], strides = [1, 1, 1, 1]} : vector<2x8x1x32xf32> to vector<2x8x1x4xf32>
    %c0_570 = arith.constant 0 : index
    %c0_571 = arith.constant 0 : index
    %c5_572 = arith.constant 5 : index
    %c0_573 = arith.constant 0 : index
    %308 = vector.load %arg15[%c0_570, %c0_571, %c5_572, %c0_573] : memref<2x8x8x32xf32, #tpu.memory_space<vmem>>, vector<2x8x1x4xf32>
    tpu.vector_store %arg15[%c0_570, %c0_571, %c5_572, %c0_573], %307 {strides = array<i32>} : memref<2x8x8x32xf32, #tpu.memory_space<vmem>>, vector<2x8x1x4xf32>,
    %309 = vector.extract_strided_slice %296 {offsets = [0, 0, 0, 24], sizes = [2, 8, 1, 4], strides = [1, 1, 1, 1]} : vector<2x8x1x32xf32> to vector<2x8x1x4xf32>
    %c0_574 = arith.constant 0 : index
    %c0_575 = arith.constant 0 : index
    %c6_576 = arith.constant 6 : index
    %c0_577 = arith.constant 0 : index
    %310 = vector.load %arg15[%c0_574, %c0_575, %c6_576, %c0_577] : memref<2x8x8x32xf32, #tpu.memory_space<vmem>>, vector<2x8x1x4xf32>
    tpu.vector_store %arg15[%c0_574, %c0_575, %c6_576, %c0_577], %309 {strides = array<i32>} : memref<2x8x8x32xf32, #tpu.memory_space<vmem>>, vector<2x8x1x4xf32>,
    %311 = vector.extract_strided_slice %296 {offsets = [0, 0, 0, 28], sizes = [2, 8, 1, 4], strides = [1, 1, 1, 1]} : vector<2x8x1x32xf32> to vector<2x8x1x4xf32>
    %c0_578 = arith.constant 0 : index
    %c0_579 = arith.constant 0 : index
    %c7_580 = arith.constant 7 : index
    %c0_581 = arith.constant 0 : index
    %312 = vector.load %arg15[%c0_578, %c0_579, %c7_580, %c0_581] : memref<2x8x8x32xf32, #tpu.memory_space<vmem>>, vector<2x8x1x4xf32>
    tpu.vector_store %arg15[%c0_578, %c0_579, %c7_580, %c0_581], %311 {strides = array<i32>} : memref<2x8x8x32xf32, #tpu.memory_space<vmem>>, vector<2x8x1x4xf32>,
    %313 = vector.extract_strided_slice %273 {offsets = [0, 1, 0, 0], sizes = [2, 1, 8, 32], strides = [1, 1, 1, 1]} : vector<2x8x8x32xf32> to vector<2x1x8x32xf32>
    %314 = vector.extract_strided_slice %313 {offsets = [0, 0, 0, 0], sizes = [2, 1, 8, 4], strides = [1, 1, 1, 1]} : vector<2x1x8x32xf32> to vector<2x1x8x4xf32>
    %c0_582 = arith.constant 0 : index
    %c0_583 = arith.constant 0 : index
    %c0_584 = arith.constant 0 : index
    %c4_585 = arith.constant 4 : index
    %315 = vector.load %arg14[%c0_582, %c0_583, %c0_584, %c4_585] : memref<2x8x8x32xf32, #tpu.memory_space<vmem>>, vector<2x1x8x4xf32>
    tpu.vector_store %arg14[%c0_582, %c0_583, %c0_584, %c4_585], %314 {strides = array<i32>} : memref<2x8x8x32xf32, #tpu.memory_space<vmem>>, vector<2x1x8x4xf32>,
    %316 = vector.extract_strided_slice %313 {offsets = [0, 0, 0, 4], sizes = [2, 1, 8, 4], strides = [1, 1, 1, 1]} : vector<2x1x8x32xf32> to vector<2x1x8x4xf32>
    %c0_586 = arith.constant 0 : index
    %c1_587 = arith.constant 1 : index
    %c0_588 = arith.constant 0 : index
    %c4_589 = arith.constant 4 : index
    %317 = vector.load %arg14[%c0_586, %c1_587, %c0_588, %c4_589] : memref<2x8x8x32xf32, #tpu.memory_space<vmem>>, vector<2x1x8x4xf32>
    tpu.vector_store %arg14[%c0_586, %c1_587, %c0_588, %c4_589], %316 {strides = array<i32>} : memref<2x8x8x32xf32, #tpu.memory_space<vmem>>, vector<2x1x8x4xf32>,
    %318 = vector.extract_strided_slice %313 {offsets = [0, 0, 0, 8], sizes = [2, 1, 8, 4], strides = [1, 1, 1, 1]} : vector<2x1x8x32xf32> to vector<2x1x8x4xf32>
    %c0_590 = arith.constant 0 : index
    %c2_591 = arith.constant 2 : index
    %c0_592 = arith.constant 0 : index
    %c4_593 = arith.constant 4 : index
    %319 = vector.load %arg14[%c0_590, %c2_591, %c0_592, %c4_593] : memref<2x8x8x32xf32, #tpu.memory_space<vmem>>, vector<2x1x8x4xf32>
    tpu.vector_store %arg14[%c0_590, %c2_591, %c0_592, %c4_593], %318 {strides = array<i32>} : memref<2x8x8x32xf32, #tpu.memory_space<vmem>>, vector<2x1x8x4xf32>,
    %320 = vector.extract_strided_slice %313 {offsets = [0, 0, 0, 12], sizes = [2, 1, 8, 4], strides = [1, 1, 1, 1]} : vector<2x1x8x32xf32> to vector<2x1x8x4xf32>
    %c0_594 = arith.constant 0 : index
    %c3_595 = arith.constant 3 : index
    %c0_596 = arith.constant 0 : index
    %c4_597 = arith.constant 4 : index
    %321 = vector.load %arg14[%c0_594, %c3_595, %c0_596, %c4_597] : memref<2x8x8x32xf32, #tpu.memory_space<vmem>>, vector<2x1x8x4xf32>
    tpu.vector_store %arg14[%c0_594, %c3_595, %c0_596, %c4_597], %320 {strides = array<i32>} : memref<2x8x8x32xf32, #tpu.memory_space<vmem>>, vector<2x1x8x4xf32>,
    %322 = vector.extract_strided_slice %313 {offsets = [0, 0, 0, 16], sizes = [2, 1, 8, 4], strides = [1, 1, 1, 1]} : vector<2x1x8x32xf32> to vector<2x1x8x4xf32>
    %c0_598 = arith.constant 0 : index
    %c4_599 = arith.constant 4 : index
    %c0_600 = arith.constant 0 : index
    %c4_601 = arith.constant 4 : index
    %323 = vector.load %arg14[%c0_598, %c4_599, %c0_600, %c4_601] : memref<2x8x8x32xf32, #tpu.memory_space<vmem>>, vector<2x1x8x4xf32>
    tpu.vector_store %arg14[%c0_598, %c4_599, %c0_600, %c4_601], %322 {strides = array<i32>} : memref<2x8x8x32xf32, #tpu.memory_space<vmem>>, vector<2x1x8x4xf32>,
    %324 = vector.extract_strided_slice %313 {offsets = [0, 0, 0, 20], sizes = [2, 1, 8, 4], strides = [1, 1, 1, 1]} : vector<2x1x8x32xf32> to vector<2x1x8x4xf32>
    %c0_602 = arith.constant 0 : index
    %c5_603 = arith.constant 5 : index
    %c0_604 = arith.constant 0 : index
    %c4_605 = arith.constant 4 : index
    %325 = vector.load %arg14[%c0_602, %c5_603, %c0_604, %c4_605] : memref<2x8x8x32xf32, #tpu.memory_space<vmem>>, vector<2x1x8x4xf32>
    tpu.vector_store %arg14[%c0_602, %c5_603, %c0_604, %c4_605], %324 {strides = array<i32>} : memref<2x8x8x32xf32, #tpu.memory_space<vmem>>, vector<2x1x8x4xf32>,
    %326 = vector.extract_strided_slice %313 {offsets = [0, 0, 0, 24], sizes = [2, 1, 8, 4], strides = [1, 1, 1, 1]} : vector<2x1x8x32xf32> to vector<2x1x8x4xf32>
    %c0_606 = arith.constant 0 : index
    %c6_607 = arith.constant 6 : index
    %c0_608 = arith.constant 0 : index
    %c4_609 = arith.constant 4 : index
    %327 = vector.load %arg14[%c0_606, %c6_607, %c0_608, %c4_609] : memref<2x8x8x32xf32, #tpu.memory_space<vmem>>, vector<2x1x8x4xf32>
    tpu.vector_store %arg14[%c0_606, %c6_607, %c0_608, %c4_609], %326 {strides = array<i32>} : memref<2x8x8x32xf32, #tpu.memory_space<vmem>>, vector<2x1x8x4xf32>,
    %328 = vector.extract_strided_slice %313 {offsets = [0, 0, 0, 28], sizes = [2, 1, 8, 4], strides = [1, 1, 1, 1]} : vector<2x1x8x32xf32> to vector<2x1x8x4xf32>
    %c0_610 = arith.constant 0 : index
    %c7_611 = arith.constant 7 : index
    %c0_612 = arith.constant 0 : index
    %c4_613 = arith.constant 4 : index
    %329 = vector.load %arg14[%c0_610, %c7_611, %c0_612, %c4_613] : memref<2x8x8x32xf32, #tpu.memory_space<vmem>>, vector<2x1x8x4xf32>
    tpu.vector_store %arg14[%c0_610, %c7_611, %c0_612, %c4_613], %328 {strides = array<i32>} : memref<2x8x8x32xf32, #tpu.memory_space<vmem>>, vector<2x1x8x4xf32>,
    %330 = vector.extract_strided_slice %278 {offsets = [0, 0, 1, 0], sizes = [2, 8, 1, 32], strides = [1, 1, 1, 1]} : vector<2x8x8x32xf32> to vector<2x8x1x32xf32>
    %331 = vector.extract_strided_slice %330 {offsets = [0, 0, 0, 0], sizes = [2, 8, 1, 4], strides = [1, 1, 1, 1]} : vector<2x8x1x32xf32> to vector<2x8x1x4xf32>
    %c0_614 = arith.constant 0 : index
    %c0_615 = arith.constant 0 : index
    %c0_616 = arith.constant 0 : index
    %c4_617 = arith.constant 4 : index
    %332 = vector.load %arg15[%c0_614, %c0_615, %c0_616, %c4_617] : memref<2x8x8x32xf32, #tpu.memory_space<vmem>>, vector<2x8x1x4xf32>
    tpu.vector_store %arg15[%c0_614, %c0_615, %c0_616, %c4_617], %331 {strides = array<i32>} : memref<2x8x8x32xf32, #tpu.memory_space<vmem>>, vector<2x8x1x4xf32>,
    %333 = vector.extract_strided_slice %330 {offsets = [0, 0, 0, 4], sizes = [2, 8, 1, 4], strides = [1, 1, 1, 1]} : vector<2x8x1x32xf32> to vector<2x8x1x4xf32>
    %c0_618 = arith.constant 0 : index
    %c0_619 = arith.constant 0 : index
    %c1_620 = arith.constant 1 : index
    %c4_621 = arith.constant 4 : index
    %334 = vector.load %arg15[%c0_618, %c0_619, %c1_620, %c4_621] : memref<2x8x8x32xf32, #tpu.memory_space<vmem>>, vector<2x8x1x4xf32>
    tpu.vector_store %arg15[%c0_618, %c0_619, %c1_620, %c4_621], %333 {strides = array<i32>} : memref<2x8x8x32xf32, #tpu.memory_space<vmem>>, vector<2x8x1x4xf32>,
    %335 = vector.extract_strided_slice %330 {offsets = [0, 0, 0, 8], sizes = [2, 8, 1, 4], strides = [1, 1, 1, 1]} : vector<2x8x1x32xf32> to vector<2x8x1x4xf32>
    %c0_622 = arith.constant 0 : index
    %c0_623 = arith.constant 0 : index
    %c2_624 = arith.constant 2 : index
    %c4_625 = arith.constant 4 : index
    %336 = vector.load %arg15[%c0_622, %c0_623, %c2_624, %c4_625] : memref<2x8x8x32xf32, #tpu.memory_space<vmem>>, vector<2x8x1x4xf32>
    tpu.vector_store %arg15[%c0_622, %c0_623, %c2_624, %c4_625], %335 {strides = array<i32>} : memref<2x8x8x32xf32, #tpu.memory_space<vmem>>, vector<2x8x1x4xf32>,
    %337 = vector.extract_strided_slice %330 {offsets = [0, 0, 0, 12], sizes = [2, 8, 1, 4], strides = [1, 1, 1, 1]} : vector<2x8x1x32xf32> to vector<2x8x1x4xf32>
    %c0_626 = arith.constant 0 : index
    %c0_627 = arith.constant 0 : index
    %c3_628 = arith.constant 3 : index
    %c4_629 = arith.constant 4 : index
    %338 = vector.load %arg15[%c0_626, %c0_627, %c3_628, %c4_629] : memref<2x8x8x32xf32, #tpu.memory_space<vmem>>, vector<2x8x1x4xf32>
    tpu.vector_store %arg15[%c0_626, %c0_627, %c3_628, %c4_629], %337 {strides = array<i32>} : memref<2x8x8x32xf32, #tpu.memory_space<vmem>>, vector<2x8x1x4xf32>,
    %339 = vector.extract_strided_slice %330 {offsets = [0, 0, 0, 16], sizes = [2, 8, 1, 4], strides = [1, 1, 1, 1]} : vector<2x8x1x32xf32> to vector<2x8x1x4xf32>
    %c0_630 = arith.constant 0 : index
    %c0_631 = arith.constant 0 : index
    %c4_632 = arith.constant 4 : index
    %c4_633 = arith.constant 4 : index
    %340 = vector.load %arg15[%c0_630, %c0_631, %c4_632, %c4_633] : memref<2x8x8x32xf32, #tpu.memory_space<vmem>>, vector<2x8x1x4xf32>
    tpu.vector_store %arg15[%c0_630, %c0_631, %c4_632, %c4_633], %339 {strides = array<i32>} : memref<2x8x8x32xf32, #tpu.memory_space<vmem>>, vector<2x8x1x4xf32>,
    %341 = vector.extract_strided_slice %330 {offsets = [0, 0, 0, 20], sizes = [2, 8, 1, 4], strides = [1, 1, 1, 1]} : vector<2x8x1x32xf32> to vector<2x8x1x4xf32>
    %c0_634 = arith.constant 0 : index
    %c0_635 = arith.constant 0 : index
    %c5_636 = arith.constant 5 : index
    %c4_637 = arith.constant 4 : index
    %342 = vector.load %arg15[%c0_634, %c0_635, %c5_636, %c4_637] : memref<2x8x8x32xf32, #tpu.memory_space<vmem>>, vector<2x8x1x4xf32>
    tpu.vector_store %arg15[%c0_634, %c0_635, %c5_636, %c4_637], %341 {strides = array<i32>} : memref<2x8x8x32xf32, #tpu.memory_space<vmem>>, vector<2x8x1x4xf32>,
    %343 = vector.extract_strided_slice %330 {offsets = [0, 0, 0, 24], sizes = [2, 8, 1, 4], strides = [1, 1, 1, 1]} : vector<2x8x1x32xf32> to vector<2x8x1x4xf32>
    %c0_638 = arith.constant 0 : index
    %c0_639 = arith.constant 0 : index
    %c6_640 = arith.constant 6 : index
    %c4_641 = arith.constant 4 : index
    %344 = vector.load %arg15[%c0_638, %c0_639, %c6_640, %c4_641] : memref<2x8x8x32xf32, #tpu.memory_space<vmem>>, vector<2x8x1x4xf32>
    tpu.vector_store %arg15[%c0_638, %c0_639, %c6_640, %c4_641], %343 {strides = array<i32>} : memref<2x8x8x32xf32, #tpu.memory_space<vmem>>, vector<2x8x1x4xf32>,
    %345 = vector.extract_strided_slice %330 {offsets = [0, 0, 0, 28], sizes = [2, 8, 1, 4], strides = [1, 1, 1, 1]} : vector<2x8x1x32xf32> to vector<2x8x1x4xf32>
    %c0_642 = arith.constant 0 : index
    %c0_643 = arith.constant 0 : index
    %c7_644 = arith.constant 7 : index
    %c4_645 = arith.constant 4 : index
    %346 = vector.load %arg15[%c0_642, %c0_643, %c7_644, %c4_645] : memref<2x8x8x32xf32, #tpu.memory_space<vmem>>, vector<2x8x1x4xf32>
    tpu.vector_store %arg15[%c0_642, %c0_643, %c7_644, %c4_645], %345 {strides = array<i32>} : memref<2x8x8x32xf32, #tpu.memory_space<vmem>>, vector<2x8x1x4xf32>,
    %347 = vector.extract_strided_slice %273 {offsets = [0, 2, 0, 0], sizes = [2, 1, 8, 32], strides = [1, 1, 1, 1]} : vector<2x8x8x32xf32> to vector<2x1x8x32xf32>
    %348 = vector.extract_strided_slice %347 {offsets = [0, 0, 0, 0], sizes = [2, 1, 8, 4], strides = [1, 1, 1, 1]} : vector<2x1x8x32xf32> to vector<2x1x8x4xf32>
    %c0_646 = arith.constant 0 : index
    %c0_647 = arith.constant 0 : index
    %c0_648 = arith.constant 0 : index
    %c8_649 = arith.constant 8 : index
    %349 = vector.load %arg14[%c0_646, %c0_647, %c0_648, %c8_649] : memref<2x8x8x32xf32, #tpu.memory_space<vmem>>, vector<2x1x8x4xf32>
    tpu.vector_store %arg14[%c0_646, %c0_647, %c0_648, %c8_649], %348 {strides = array<i32>} : memref<2x8x8x32xf32, #tpu.memory_space<vmem>>, vector<2x1x8x4xf32>,
    %350 = vector.extract_strided_slice %347 {offsets = [0, 0, 0, 4], sizes = [2, 1, 8, 4], strides = [1, 1, 1, 1]} : vector<2x1x8x32xf32> to vector<2x1x8x4xf32>
    %c0_650 = arith.constant 0 : index
    %c1_651 = arith.constant 1 : index
    %c0_652 = arith.constant 0 : index
    %c8_653 = arith.constant 8 : index
    %351 = vector.load %arg14[%c0_650, %c1_651, %c0_652, %c8_653] : memref<2x8x8x32xf32, #tpu.memory_space<vmem>>, vector<2x1x8x4xf32>
    tpu.vector_store %arg14[%c0_650, %c1_651, %c0_652, %c8_653], %350 {strides = array<i32>} : memref<2x8x8x32xf32, #tpu.memory_space<vmem>>, vector<2x1x8x4xf32>,
    %352 = vector.extract_strided_slice %347 {offsets = [0, 0, 0, 8], sizes = [2, 1, 8, 4], strides = [1, 1, 1, 1]} : vector<2x1x8x32xf32> to vector<2x1x8x4xf32>
    %c0_654 = arith.constant 0 : index
    %c2_655 = arith.constant 2 : index
    %c0_656 = arith.constant 0 : index
    %c8_657 = arith.constant 8 : index
    %353 = vector.load %arg14[%c0_654, %c2_655, %c0_656, %c8_657] : memref<2x8x8x32xf32, #tpu.memory_space<vmem>>, vector<2x1x8x4xf32>
    tpu.vector_store %arg14[%c0_654, %c2_655, %c0_656, %c8_657], %352 {strides = array<i32>} : memref<2x8x8x32xf32, #tpu.memory_space<vmem>>, vector<2x1x8x4xf32>,
    %354 = vector.extract_strided_slice %347 {offsets = [0, 0, 0, 12], sizes = [2, 1, 8, 4], strides = [1, 1, 1, 1]} : vector<2x1x8x32xf32> to vector<2x1x8x4xf32>
    %c0_658 = arith.constant 0 : index
    %c3_659 = arith.constant 3 : index
    %c0_660 = arith.constant 0 : index
    %c8_661 = arith.constant 8 : index
    %355 = vector.load %arg14[%c0_658, %c3_659, %c0_660, %c8_661] : memref<2x8x8x32xf32, #tpu.memory_space<vmem>>, vector<2x1x8x4xf32>
    tpu.vector_store %arg14[%c0_658, %c3_659, %c0_660, %c8_661], %354 {strides = array<i32>} : memref<2x8x8x32xf32, #tpu.memory_space<vmem>>, vector<2x1x8x4xf32>,
    %356 = vector.extract_strided_slice %347 {offsets = [0, 0, 0, 16], sizes = [2, 1, 8, 4], strides = [1, 1, 1, 1]} : vector<2x1x8x32xf32> to vector<2x1x8x4xf32>
    %c0_662 = arith.constant 0 : index
    %c4_663 = arith.constant 4 : index
    %c0_664 = arith.constant 0 : index
    %c8_665 = arith.constant 8 : index
    %357 = vector.load %arg14[%c0_662, %c4_663, %c0_664, %c8_665] : memref<2x8x8x32xf32, #tpu.memory_space<vmem>>, vector<2x1x8x4xf32>
    tpu.vector_store %arg14[%c0_662, %c4_663, %c0_664, %c8_665], %356 {strides = array<i32>} : memref<2x8x8x32xf32, #tpu.memory_space<vmem>>, vector<2x1x8x4xf32>,
    %358 = vector.extract_strided_slice %347 {offsets = [0, 0, 0, 20], sizes = [2, 1, 8, 4], strides = [1, 1, 1, 1]} : vector<2x1x8x32xf32> to vector<2x1x8x4xf32>
    %c0_666 = arith.constant 0 : index
    %c5_667 = arith.constant 5 : index
    %c0_668 = arith.constant 0 : index
    %c8_669 = arith.constant 8 : index
    %359 = vector.load %arg14[%c0_666, %c5_667, %c0_668, %c8_669] : memref<2x8x8x32xf32, #tpu.memory_space<vmem>>, vector<2x1x8x4xf32>
    tpu.vector_store %arg14[%c0_666, %c5_667, %c0_668, %c8_669], %358 {strides = array<i32>} : memref<2x8x8x32xf32, #tpu.memory_space<vmem>>, vector<2x1x8x4xf32>,
    %360 = vector.extract_strided_slice %347 {offsets = [0, 0, 0, 24], sizes = [2, 1, 8, 4], strides = [1, 1, 1, 1]} : vector<2x1x8x32xf32> to vector<2x1x8x4xf32>
    %c0_670 = arith.constant 0 : index
    %c6_671 = arith.constant 6 : index
    %c0_672 = arith.constant 0 : index
    %c8_673 = arith.constant 8 : index
    %361 = vector.load %arg14[%c0_670, %c6_671, %c0_672, %c8_673] : memref<2x8x8x32xf32, #tpu.memory_space<vmem>>, vector<2x1x8x4xf32>
    tpu.vector_store %arg14[%c0_670, %c6_671, %c0_672, %c8_673], %360 {strides = array<i32>} : memref<2x8x8x32xf32, #tpu.memory_space<vmem>>, vector<2x1x8x4xf32>,
    %362 = vector.extract_strided_slice %347 {offsets = [0, 0, 0, 28], sizes = [2, 1, 8, 4], strides = [1, 1, 1, 1]} : vector<2x1x8x32xf32> to vector<2x1x8x4xf32>
    %c0_674 = arith.constant 0 : index
    %c7_675 = arith.constant 7 : index
    %c0_676 = arith.constant 0 : index
    %c8_677 = arith.constant 8 : index
    %363 = vector.load %arg14[%c0_674, %c7_675, %c0_676, %c8_677] : memref<2x8x8x32xf32, #tpu.memory_space<vmem>>, vector<2x1x8x4xf32>
    tpu.vector_store %arg14[%c0_674, %c7_675, %c0_676, %c8_677], %362 {strides = array<i32>} : memref<2x8x8x32xf32, #tpu.memory_space<vmem>>, vector<2x1x8x4xf32>,
    %364 = vector.extract_strided_slice %278 {offsets = [0, 0, 2, 0], sizes = [2, 8, 1, 32], strides = [1, 1, 1, 1]} : vector<2x8x8x32xf32> to vector<2x8x1x32xf32>
    %365 = vector.extract_strided_slice %364 {offsets = [0, 0, 0, 0], sizes = [2, 8, 1, 4], strides = [1, 1, 1, 1]} : vector<2x8x1x32xf32> to vector<2x8x1x4xf32>
    %c0_678 = arith.constant 0 : index
    %c0_679 = arith.constant 0 : index
    %c0_680 = arith.constant 0 : index
    %c8_681 = arith.constant 8 : index
    %366 = vector.load %arg15[%c0_678, %c0_679, %c0_680, %c8_681] : memref<2x8x8x32xf32, #tpu.memory_space<vmem>>, vector<2x8x1x4xf32>
    tpu.vector_store %arg15[%c0_678, %c0_679, %c0_680, %c8_681], %365 {strides = array<i32>} : memref<2x8x8x32xf32, #tpu.memory_space<vmem>>, vector<2x8x1x4xf32>,
    %367 = vector.extract_strided_slice %364 {offsets = [0, 0, 0, 4], sizes = [2, 8, 1, 4], strides = [1, 1, 1, 1]} : vector<2x8x1x32xf32> to vector<2x8x1x4xf32>
    %c0_682 = arith.constant 0 : index
    %c0_683 = arith.constant 0 : index
    %c1_684 = arith.constant 1 : index
    %c8_685 = arith.constant 8 : index
    %368 = vector.load %arg15[%c0_682, %c0_683, %c1_684, %c8_685] : memref<2x8x8x32xf32, #tpu.memory_space<vmem>>, vector<2x8x1x4xf32>
    tpu.vector_store %arg15[%c0_682, %c0_683, %c1_684, %c8_685], %367 {strides = array<i32>} : memref<2x8x8x32xf32, #tpu.memory_space<vmem>>, vector<2x8x1x4xf32>,
    %369 = vector.extract_strided_slice %364 {offsets = [0, 0, 0, 8], sizes = [2, 8, 1, 4], strides = [1, 1, 1, 1]} : vector<2x8x1x32xf32> to vector<2x8x1x4xf32>
    %c0_686 = arith.constant 0 : index
    %c0_687 = arith.constant 0 : index
    %c2_688 = arith.constant 2 : index
    %c8_689 = arith.constant 8 : index
    %370 = vector.load %arg15[%c0_686, %c0_687, %c2_688, %c8_689] : memref<2x8x8x32xf32, #tpu.memory_space<vmem>>, vector<2x8x1x4xf32>
    tpu.vector_store %arg15[%c0_686, %c0_687, %c2_688, %c8_689], %369 {strides = array<i32>} : memref<2x8x8x32xf32, #tpu.memory_space<vmem>>, vector<2x8x1x4xf32>,
    %371 = vector.extract_strided_slice %364 {offsets = [0, 0, 0, 12], sizes = [2, 8, 1, 4], strides = [1, 1, 1, 1]} : vector<2x8x1x32xf32> to vector<2x8x1x4xf32>
    %c0_690 = arith.constant 0 : index
    %c0_691 = arith.constant 0 : index
    %c3_692 = arith.constant 3 : index
    %c8_693 = arith.constant 8 : index
    %372 = vector.load %arg15[%c0_690, %c0_691, %c3_692, %c8_693] : memref<2x8x8x32xf32, #tpu.memory_space<vmem>>, vector<2x8x1x4xf32>
    tpu.vector_store %arg15[%c0_690, %c0_691, %c3_692, %c8_693], %371 {strides = array<i32>} : memref<2x8x8x32xf32, #tpu.memory_space<vmem>>, vector<2x8x1x4xf32>,
    %373 = vector.extract_strided_slice %364 {offsets = [0, 0, 0, 16], sizes = [2, 8, 1, 4], strides = [1, 1, 1, 1]} : vector<2x8x1x32xf32> to vector<2x8x1x4xf32>
    %c0_694 = arith.constant 0 : index
    %c0_695 = arith.constant 0 : index
    %c4_696 = arith.constant 4 : index
    %c8_697 = arith.constant 8 : index
    %374 = vector.load %arg15[%c0_694, %c0_695, %c4_696, %c8_697] : memref<2x8x8x32xf32, #tpu.memory_space<vmem>>, vector<2x8x1x4xf32>
    tpu.vector_store %arg15[%c0_694, %c0_695, %c4_696, %c8_697], %373 {strides = array<i32>} : memref<2x8x8x32xf32, #tpu.memory_space<vmem>>, vector<2x8x1x4xf32>,
    %375 = vector.extract_strided_slice %364 {offsets = [0, 0, 0, 20], sizes = [2, 8, 1, 4], strides = [1, 1, 1, 1]} : vector<2x8x1x32xf32> to vector<2x8x1x4xf32>
    %c0_698 = arith.constant 0 : index
    %c0_699 = arith.constant 0 : index
    %c5_700 = arith.constant 5 : index
    %c8_701 = arith.constant 8 : index
    %376 = vector.load %arg15[%c0_698, %c0_699, %c5_700, %c8_701] : memref<2x8x8x32xf32, #tpu.memory_space<vmem>>, vector<2x8x1x4xf32>
    tpu.vector_store %arg15[%c0_698, %c0_699, %c5_700, %c8_701], %375 {strides = array<i32>} : memref<2x8x8x32xf32, #tpu.memory_space<vmem>>, vector<2x8x1x4xf32>,
    %377 = vector.extract_strided_slice %364 {offsets = [0, 0, 0, 24], sizes = [2, 8, 1, 4], strides = [1, 1, 1, 1]} : vector<2x8x1x32xf32> to vector<2x8x1x4xf32>
    %c0_702 = arith.constant 0 : index
    %c0_703 = arith.constant 0 : index
    %c6_704 = arith.constant 6 : index
    %c8_705 = arith.constant 8 : index
    %378 = vector.load %arg15[%c0_702, %c0_703, %c6_704, %c8_705] : memref<2x8x8x32xf32, #tpu.memory_space<vmem>>, vector<2x8x1x4xf32>
    tpu.vector_store %arg15[%c0_702, %c0_703, %c6_704, %c8_705], %377 {strides = array<i32>} : memref<2x8x8x32xf32, #tpu.memory_space<vmem>>, vector<2x8x1x4xf32>,
    %379 = vector.extract_strided_slice %364 {offsets = [0, 0, 0, 28], sizes = [2, 8, 1, 4], strides = [1, 1, 1, 1]} : vector<2x8x1x32xf32> to vector<2x8x1x4xf32>
    %c0_706 = arith.constant 0 : index
    %c0_707 = arith.constant 0 : index
    %c7_708 = arith.constant 7 : index
    %c8_709 = arith.constant 8 : index
    %380 = vector.load %arg15[%c0_706, %c0_707, %c7_708, %c8_709] : memref<2x8x8x32xf32, #tpu.memory_space<vmem>>, vector<2x8x1x4xf32>
    tpu.vector_store %arg15[%c0_706, %c0_707, %c7_708, %c8_709], %379 {strides = array<i32>} : memref<2x8x8x32xf32, #tpu.memory_space<vmem>>, vector<2x8x1x4xf32>,
    %381 = vector.extract_strided_slice %273 {offsets = [0, 3, 0, 0], sizes = [2, 1, 8, 32], strides = [1, 1, 1, 1]} : vector<2x8x8x32xf32> to vector<2x1x8x32xf32>
    %382 = vector.extract_strided_slice %381 {offsets = [0, 0, 0, 0], sizes = [2, 1, 8, 4], strides = [1, 1, 1, 1]} : vector<2x1x8x32xf32> to vector<2x1x8x4xf32>
    %c0_710 = arith.constant 0 : index
    %c0_711 = arith.constant 0 : index
    %c0_712 = arith.constant 0 : index
    %c12_713 = arith.constant 12 : index
    %383 = vector.load %arg14[%c0_710, %c0_711, %c0_712, %c12_713] : memref<2x8x8x32xf32, #tpu.memory_space<vmem>>, vector<2x1x8x4xf32>
    tpu.vector_store %arg14[%c0_710, %c0_711, %c0_712, %c12_713], %382 {strides = array<i32>} : memref<2x8x8x32xf32, #tpu.memory_space<vmem>>, vector<2x1x8x4xf32>,
    %384 = vector.extract_strided_slice %381 {offsets = [0, 0, 0, 4], sizes = [2, 1, 8, 4], strides = [1, 1, 1, 1]} : vector<2x1x8x32xf32> to vector<2x1x8x4xf32>
    %c0_714 = arith.constant 0 : index
    %c1_715 = arith.constant 1 : index
    %c0_716 = arith.constant 0 : index
    %c12_717 = arith.constant 12 : index
    %385 = vector.load %arg14[%c0_714, %c1_715, %c0_716, %c12_717] : memref<2x8x8x32xf32, #tpu.memory_space<vmem>>, vector<2x1x8x4xf32>
    tpu.vector_store %arg14[%c0_714, %c1_715, %c0_716, %c12_717], %384 {strides = array<i32>} : memref<2x8x8x32xf32, #tpu.memory_space<vmem>>, vector<2x1x8x4xf32>,
    %386 = vector.extract_strided_slice %381 {offsets = [0, 0, 0, 8], sizes = [2, 1, 8, 4], strides = [1, 1, 1, 1]} : vector<2x1x8x32xf32> to vector<2x1x8x4xf32>
    %c0_718 = arith.constant 0 : index
    %c2_719 = arith.constant 2 : index
    %c0_720 = arith.constant 0 : index
    %c12_721 = arith.constant 12 : index
    %387 = vector.load %arg14[%c0_718, %c2_719, %c0_720, %c12_721] : memref<2x8x8x32xf32, #tpu.memory_space<vmem>>, vector<2x1x8x4xf32>
    tpu.vector_store %arg14[%c0_718, %c2_719, %c0_720, %c12_721], %386 {strides = array<i32>} : memref<2x8x8x32xf32, #tpu.memory_space<vmem>>, vector<2x1x8x4xf32>,
    %388 = vector.extract_strided_slice %381 {offsets = [0, 0, 0, 12], sizes = [2, 1, 8, 4], strides = [1, 1, 1, 1]} : vector<2x1x8x32xf32> to vector<2x1x8x4xf32>
    %c0_722 = arith.constant 0 : index
    %c3_723 = arith.constant 3 : index
    %c0_724 = arith.constant 0 : index
    %c12_725 = arith.constant 12 : index
    %389 = vector.load %arg14[%c0_722, %c3_723, %c0_724, %c12_725] : memref<2x8x8x32xf32, #tpu.memory_space<vmem>>, vector<2x1x8x4xf32>
    tpu.vector_store %arg14[%c0_722, %c3_723, %c0_724, %c12_725], %388 {strides = array<i32>} : memref<2x8x8x32xf32, #tpu.memory_space<vmem>>, vector<2x1x8x4xf32>,
    %390 = vector.extract_strided_slice %381 {offsets = [0, 0, 0, 16], sizes = [2, 1, 8, 4], strides = [1, 1, 1, 1]} : vector<2x1x8x32xf32> to vector<2x1x8x4xf32>
    %c0_726 = arith.constant 0 : index
    %c4_727 = arith.constant 4 : index
    %c0_728 = arith.constant 0 : index
    %c12_729 = arith.constant 12 : index
    %391 = vector.load %arg14[%c0_726, %c4_727, %c0_728, %c12_729] : memref<2x8x8x32xf32, #tpu.memory_space<vmem>>, vector<2x1x8x4xf32>
    tpu.vector_store %arg14[%c0_726, %c4_727, %c0_728, %c12_729], %390 {strides = array<i32>} : memref<2x8x8x32xf32, #tpu.memory_space<vmem>>, vector<2x1x8x4xf32>,
    %392 = vector.extract_strided_slice %381 {offsets = [0, 0, 0, 20], sizes = [2, 1, 8, 4], strides = [1, 1, 1, 1]} : vector<2x1x8x32xf32> to vector<2x1x8x4xf32>
    %c0_730 = arith.constant 0 : index
    %c5_731 = arith.constant 5 : index
    %c0_732 = arith.constant 0 : index
    %c12_733 = arith.constant 12 : index
    %393 = vector.load %arg14[%c0_730, %c5_731, %c0_732, %c12_733] : memref<2x8x8x32xf32, #tpu.memory_space<vmem>>, vector<2x1x8x4xf32>
    tpu.vector_store %arg14[%c0_730, %c5_731, %c0_732, %c12_733], %392 {strides = array<i32>} : memref<2x8x8x32xf32, #tpu.memory_space<vmem>>, vector<2x1x8x4xf32>,
    %394 = vector.extract_strided_slice %381 {offsets = [0, 0, 0, 24], sizes = [2, 1, 8, 4], strides = [1, 1, 1, 1]} : vector<2x1x8x32xf32> to vector<2x1x8x4xf32>
    %c0_734 = arith.constant 0 : index
    %c6_735 = arith.constant 6 : index
    %c0_736 = arith.constant 0 : index
    %c12_737 = arith.constant 12 : index
    %395 = vector.load %arg14[%c0_734, %c6_735, %c0_736, %c12_737] : memref<2x8x8x32xf32, #tpu.memory_space<vmem>>, vector<2x1x8x4xf32>
    tpu.vector_store %arg14[%c0_734, %c6_735, %c0_736, %c12_737], %394 {strides = array<i32>} : memref<2x8x8x32xf32, #tpu.memory_space<vmem>>, vector<2x1x8x4xf32>,
    %396 = vector.extract_strided_slice %381 {offsets = [0, 0, 0, 28], sizes = [2, 1, 8, 4], strides = [1, 1, 1, 1]} : vector<2x1x8x32xf32> to vector<2x1x8x4xf32>
    %c0_738 = arith.constant 0 : index
    %c7_739 = arith.constant 7 : index
    %c0_740 = arith.constant 0 : index
    %c12_741 = arith.constant 12 : index
    %397 = vector.load %arg14[%c0_738, %c7_739, %c0_740, %c12_741] : memref<2x8x8x32xf32, #tpu.memory_space<vmem>>, vector<2x1x8x4xf32>
    tpu.vector_store %arg14[%c0_738, %c7_739, %c0_740, %c12_741], %396 {strides = array<i32>} : memref<2x8x8x32xf32, #tpu.memory_space<vmem>>, vector<2x1x8x4xf32>,
    %398 = vector.extract_strided_slice %278 {offsets = [0, 0, 3, 0], sizes = [2, 8, 1, 32], strides = [1, 1, 1, 1]} : vector<2x8x8x32xf32> to vector<2x8x1x32xf32>
    %399 = vector.extract_strided_slice %398 {offsets = [0, 0, 0, 0], sizes = [2, 8, 1, 4], strides = [1, 1, 1, 1]} : vector<2x8x1x32xf32> to vector<2x8x1x4xf32>
    %c0_742 = arith.constant 0 : index
    %c0_743 = arith.constant 0 : index
    %c0_744 = arith.constant 0 : index
    %c12_745 = arith.constant 12 : index
    %400 = vector.load %arg15[%c0_742, %c0_743, %c0_744, %c12_745] : memref<2x8x8x32xf32, #tpu.memory_space<vmem>>, vector<2x8x1x4xf32>
    tpu.vector_store %arg15[%c0_742, %c0_743, %c0_744, %c12_745], %399 {strides = array<i32>} : memref<2x8x8x32xf32, #tpu.memory_space<vmem>>, vector<2x8x1x4xf32>,
    %401 = vector.extract_strided_slice %398 {offsets = [0, 0, 0, 4], sizes = [2, 8, 1, 4], strides = [1, 1, 1, 1]} : vector<2x8x1x32xf32> to vector<2x8x1x4xf32>
    %c0_746 = arith.constant 0 : index
    %c0_747 = arith.constant 0 : index
    %c1_748 = arith.constant 1 : index
    %c12_749 = arith.constant 12 : index
    %402 = vector.load %arg15[%c0_746, %c0_747, %c1_748, %c12_749] : memref<2x8x8x32xf32, #tpu.memory_space<vmem>>, vector<2x8x1x4xf32>
    tpu.vector_store %arg15[%c0_746, %c0_747, %c1_748, %c12_749], %401 {strides = array<i32>} : memref<2x8x8x32xf32, #tpu.memory_space<vmem>>, vector<2x8x1x4xf32>,
    %403 = vector.extract_strided_slice %398 {offsets = [0, 0, 0, 8], sizes = [2, 8, 1, 4], strides = [1, 1, 1, 1]} : vector<2x8x1x32xf32> to vector<2x8x1x4xf32>
    %c0_750 = arith.constant 0 : index
    %c0_751 = arith.constant 0 : index
    %c2_752 = arith.constant 2 : index
    %c12_753 = arith.constant 12 : index
    %404 = vector.load %arg15[%c0_750, %c0_751, %c2_752, %c12_753] : memref<2x8x8x32xf32, #tpu.memory_space<vmem>>, vector<2x8x1x4xf32>
    tpu.vector_store %arg15[%c0_750, %c0_751, %c2_752, %c12_753], %403 {strides = array<i32>} : memref<2x8x8x32xf32, #tpu.memory_space<vmem>>, vector<2x8x1x4xf32>,
    %405 = vector.extract_strided_slice %398 {offsets = [0, 0, 0, 12], sizes = [2, 8, 1, 4], strides = [1, 1, 1, 1]} : vector<2x8x1x32xf32> to vector<2x8x1x4xf32>
    %c0_754 = arith.constant 0 : index
    %c0_755 = arith.constant 0 : index
    %c3_756 = arith.constant 3 : index
    %c12_757 = arith.constant 12 : index
    %406 = vector.load %arg15[%c0_754, %c0_755, %c3_756, %c12_757] : memref<2x8x8x32xf32, #tpu.memory_space<vmem>>, vector<2x8x1x4xf32>
    tpu.vector_store %arg15[%c0_754, %c0_755, %c3_756, %c12_757], %405 {strides = array<i32>} : memref<2x8x8x32xf32, #tpu.memory_space<vmem>>, vector<2x8x1x4xf32>,
    %407 = vector.extract_strided_slice %398 {offsets = [0, 0, 0, 16], sizes = [2, 8, 1, 4], strides = [1, 1, 1, 1]} : vector<2x8x1x32xf32> to vector<2x8x1x4xf32>
    %c0_758 = arith.constant 0 : index
    %c0_759 = arith.constant 0 : index
    %c4_760 = arith.constant 4 : index
    %c12_761 = arith.constant 12 : index
    %408 = vector.load %arg15[%c0_758, %c0_759, %c4_760, %c12_761] : memref<2x8x8x32xf32, #tpu.memory_space<vmem>>, vector<2x8x1x4xf32>
    tpu.vector_store %arg15[%c0_758, %c0_759, %c4_760, %c12_761], %407 {strides = array<i32>} : memref<2x8x8x32xf32, #tpu.memory_space<vmem>>, vector<2x8x1x4xf32>,
    %409 = vector.extract_strided_slice %398 {offsets = [0, 0, 0, 20], sizes = [2, 8, 1, 4], strides = [1, 1, 1, 1]} : vector<2x8x1x32xf32> to vector<2x8x1x4xf32>
    %c0_762 = arith.constant 0 : index
    %c0_763 = arith.constant 0 : index
    %c5_764 = arith.constant 5 : index
    %c12_765 = arith.constant 12 : index
    %410 = vector.load %arg15[%c0_762, %c0_763, %c5_764, %c12_765] : memref<2x8x8x32xf32, #tpu.memory_space<vmem>>, vector<2x8x1x4xf32>
    tpu.vector_store %arg15[%c0_762, %c0_763, %c5_764, %c12_765], %409 {strides = array<i32>} : memref<2x8x8x32xf32, #tpu.memory_space<vmem>>, vector<2x8x1x4xf32>,
    %411 = vector.extract_strided_slice %398 {offsets = [0, 0, 0, 24], sizes = [2, 8, 1, 4], strides = [1, 1, 1, 1]} : vector<2x8x1x32xf32> to vector<2x8x1x4xf32>
    %c0_766 = arith.constant 0 : index
    %c0_767 = arith.constant 0 : index
    %c6_768 = arith.constant 6 : index
    %c12_769 = arith.constant 12 : index
    %412 = vector.load %arg15[%c0_766, %c0_767, %c6_768, %c12_769] : memref<2x8x8x32xf32, #tpu.memory_space<vmem>>, vector<2x8x1x4xf32>
    tpu.vector_store %arg15[%c0_766, %c0_767, %c6_768, %c12_769], %411 {strides = array<i32>} : memref<2x8x8x32xf32, #tpu.memory_space<vmem>>, vector<2x8x1x4xf32>,
    %413 = vector.extract_strided_slice %398 {offsets = [0, 0, 0, 28], sizes = [2, 8, 1, 4], strides = [1, 1, 1, 1]} : vector<2x8x1x32xf32> to vector<2x8x1x4xf32>
    %c0_770 = arith.constant 0 : index
    %c0_771 = arith.constant 0 : index
    %c7_772 = arith.constant 7 : index
    %c12_773 = arith.constant 12 : index
    %414 = vector.load %arg15[%c0_770, %c0_771, %c7_772, %c12_773] : memref<2x8x8x32xf32, #tpu.memory_space<vmem>>, vector<2x8x1x4xf32>
    tpu.vector_store %arg15[%c0_770, %c0_771, %c7_772, %c12_773], %413 {strides = array<i32>} : memref<2x8x8x32xf32, #tpu.memory_space<vmem>>, vector<2x8x1x4xf32>,
    %415 = vector.extract_strided_slice %273 {offsets = [0, 4, 0, 0], sizes = [2, 1, 8, 32], strides = [1, 1, 1, 1]} : vector<2x8x8x32xf32> to vector<2x1x8x32xf32>
    %416 = vector.extract_strided_slice %415 {offsets = [0, 0, 0, 0], sizes = [2, 1, 8, 4], strides = [1, 1, 1, 1]} : vector<2x1x8x32xf32> to vector<2x1x8x4xf32>
    %c0_774 = arith.constant 0 : index
    %c0_775 = arith.constant 0 : index
    %c0_776 = arith.constant 0 : index
    %c16_777 = arith.constant 16 : index
    %417 = vector.load %arg14[%c0_774, %c0_775, %c0_776, %c16_777] : memref<2x8x8x32xf32, #tpu.memory_space<vmem>>, vector<2x1x8x4xf32>
    tpu.vector_store %arg14[%c0_774, %c0_775, %c0_776, %c16_777], %416 {strides = array<i32>} : memref<2x8x8x32xf32, #tpu.memory_space<vmem>>, vector<2x1x8x4xf32>,
    %418 = vector.extract_strided_slice %415 {offsets = [0, 0, 0, 4], sizes = [2, 1, 8, 4], strides = [1, 1, 1, 1]} : vector<2x1x8x32xf32> to vector<2x1x8x4xf32>
    %c0_778 = arith.constant 0 : index
    %c1_779 = arith.constant 1 : index
    %c0_780 = arith.constant 0 : index
    %c16_781 = arith.constant 16 : index
    %419 = vector.load %arg14[%c0_778, %c1_779, %c0_780, %c16_781] : memref<2x8x8x32xf32, #tpu.memory_space<vmem>>, vector<2x1x8x4xf32>
    tpu.vector_store %arg14[%c0_778, %c1_779, %c0_780, %c16_781], %418 {strides = array<i32>} : memref<2x8x8x32xf32, #tpu.memory_space<vmem>>, vector<2x1x8x4xf32>,
    %420 = vector.extract_strided_slice %415 {offsets = [0, 0, 0, 8], sizes = [2, 1, 8, 4], strides = [1, 1, 1, 1]} : vector<2x1x8x32xf32> to vector<2x1x8x4xf32>
    %c0_782 = arith.constant 0 : index
    %c2_783 = arith.constant 2 : index
    %c0_784 = arith.constant 0 : index
    %c16_785 = arith.constant 16 : index
    %421 = vector.load %arg14[%c0_782, %c2_783, %c0_784, %c16_785] : memref<2x8x8x32xf32, #tpu.memory_space<vmem>>, vector<2x1x8x4xf32>
    tpu.vector_store %arg14[%c0_782, %c2_783, %c0_784, %c16_785], %420 {strides = array<i32>} : memref<2x8x8x32xf32, #tpu.memory_space<vmem>>, vector<2x1x8x4xf32>,
    %422 = vector.extract_strided_slice %415 {offsets = [0, 0, 0, 12], sizes = [2, 1, 8, 4], strides = [1, 1, 1, 1]} : vector<2x1x8x32xf32> to vector<2x1x8x4xf32>
    %c0_786 = arith.constant 0 : index
    %c3_787 = arith.constant 3 : index
    %c0_788 = arith.constant 0 : index
    %c16_789 = arith.constant 16 : index
    %423 = vector.load %arg14[%c0_786, %c3_787, %c0_788, %c16_789] : memref<2x8x8x32xf32, #tpu.memory_space<vmem>>, vector<2x1x8x4xf32>
    tpu.vector_store %arg14[%c0_786, %c3_787, %c0_788, %c16_789], %422 {strides = array<i32>} : memref<2x8x8x32xf32, #tpu.memory_space<vmem>>, vector<2x1x8x4xf32>,
    %424 = vector.extract_strided_slice %415 {offsets = [0, 0, 0, 16], sizes = [2, 1, 8, 4], strides = [1, 1, 1, 1]} : vector<2x1x8x32xf32> to vector<2x1x8x4xf32>
    %c0_790 = arith.constant 0 : index
    %c4_791 = arith.constant 4 : index
    %c0_792 = arith.constant 0 : index
    %c16_793 = arith.constant 16 : index
    %425 = vector.load %arg14[%c0_790, %c4_791, %c0_792, %c16_793] : memref<2x8x8x32xf32, #tpu.memory_space<vmem>>, vector<2x1x8x4xf32>
    tpu.vector_store %arg14[%c0_790, %c4_791, %c0_792, %c16_793], %424 {strides = array<i32>} : memref<2x8x8x32xf32, #tpu.memory_space<vmem>>, vector<2x1x8x4xf32>,
    %426 = vector.extract_strided_slice %415 {offsets = [0, 0, 0, 20], sizes = [2, 1, 8, 4], strides = [1, 1, 1, 1]} : vector<2x1x8x32xf32> to vector<2x1x8x4xf32>
    %c0_794 = arith.constant 0 : index
    %c5_795 = arith.constant 5 : index
    %c0_796 = arith.constant 0 : index
    %c16_797 = arith.constant 16 : index
    %427 = vector.load %arg14[%c0_794, %c5_795, %c0_796, %c16_797] : memref<2x8x8x32xf32, #tpu.memory_space<vmem>>, vector<2x1x8x4xf32>
    tpu.vector_store %arg14[%c0_794, %c5_795, %c0_796, %c16_797], %426 {strides = array<i32>} : memref<2x8x8x32xf32, #tpu.memory_space<vmem>>, vector<2x1x8x4xf32>,
    %428 = vector.extract_strided_slice %415 {offsets = [0, 0, 0, 24], sizes = [2, 1, 8, 4], strides = [1, 1, 1, 1]} : vector<2x1x8x32xf32> to vector<2x1x8x4xf32>
    %c0_798 = arith.constant 0 : index
    %c6_799 = arith.constant 6 : index
    %c0_800 = arith.constant 0 : index
    %c16_801 = arith.constant 16 : index
    %429 = vector.load %arg14[%c0_798, %c6_799, %c0_800, %c16_801] : memref<2x8x8x32xf32, #tpu.memory_space<vmem>>, vector<2x1x8x4xf32>
    tpu.vector_store %arg14[%c0_798, %c6_799, %c0_800, %c16_801], %428 {strides = array<i32>} : memref<2x8x8x32xf32, #tpu.memory_space<vmem>>, vector<2x1x8x4xf32>,
    %430 = vector.extract_strided_slice %415 {offsets = [0, 0, 0, 28], sizes = [2, 1, 8, 4], strides = [1, 1, 1, 1]} : vector<2x1x8x32xf32> to vector<2x1x8x4xf32>
    %c0_802 = arith.constant 0 : index
    %c7_803 = arith.constant 7 : index
    %c0_804 = arith.constant 0 : index
    %c16_805 = arith.constant 16 : index
    %431 = vector.load %arg14[%c0_802, %c7_803, %c0_804, %c16_805] : memref<2x8x8x32xf32, #tpu.memory_space<vmem>>, vector<2x1x8x4xf32>
    tpu.vector_store %arg14[%c0_802, %c7_803, %c0_804, %c16_805], %430 {strides = array<i32>} : memref<2x8x8x32xf32, #tpu.memory_space<vmem>>, vector<2x1x8x4xf32>,
    %432 = vector.extract_strided_slice %278 {offsets = [0, 0, 4, 0], sizes = [2, 8, 1, 32], strides = [1, 1, 1, 1]} : vector<2x8x8x32xf32> to vector<2x8x1x32xf32>
    %433 = vector.extract_strided_slice %432 {offsets = [0, 0, 0, 0], sizes = [2, 8, 1, 4], strides = [1, 1, 1, 1]} : vector<2x8x1x32xf32> to vector<2x8x1x4xf32>
    %c0_806 = arith.constant 0 : index
    %c0_807 = arith.constant 0 : index
    %c0_808 = arith.constant 0 : index
    %c16_809 = arith.constant 16 : index
    %434 = vector.load %arg15[%c0_806, %c0_807, %c0_808, %c16_809] : memref<2x8x8x32xf32, #tpu.memory_space<vmem>>, vector<2x8x1x4xf32>
    tpu.vector_store %arg15[%c0_806, %c0_807, %c0_808, %c16_809], %433 {strides = array<i32>} : memref<2x8x8x32xf32, #tpu.memory_space<vmem>>, vector<2x8x1x4xf32>,
    %435 = vector.extract_strided_slice %432 {offsets = [0, 0, 0, 4], sizes = [2, 8, 1, 4], strides = [1, 1, 1, 1]} : vector<2x8x1x32xf32> to vector<2x8x1x4xf32>
    %c0_810 = arith.constant 0 : index
    %c0_811 = arith.constant 0 : index
    %c1_812 = arith.constant 1 : index
    %c16_813 = arith.constant 16 : index
    %436 = vector.load %arg15[%c0_810, %c0_811, %c1_812, %c16_813] : memref<2x8x8x32xf32, #tpu.memory_space<vmem>>, vector<2x8x1x4xf32>
    tpu.vector_store %arg15[%c0_810, %c0_811, %c1_812, %c16_813], %435 {strides = array<i32>} : memref<2x8x8x32xf32, #tpu.memory_space<vmem>>, vector<2x8x1x4xf32>,
    %437 = vector.extract_strided_slice %432 {offsets = [0, 0, 0, 8], sizes = [2, 8, 1, 4], strides = [1, 1, 1, 1]} : vector<2x8x1x32xf32> to vector<2x8x1x4xf32>
    %c0_814 = arith.constant 0 : index
    %c0_815 = arith.constant 0 : index
    %c2_816 = arith.constant 2 : index
    %c16_817 = arith.constant 16 : index
    %438 = vector.load %arg15[%c0_814, %c0_815, %c2_816, %c16_817] : memref<2x8x8x32xf32, #tpu.memory_space<vmem>>, vector<2x8x1x4xf32>
    tpu.vector_store %arg15[%c0_814, %c0_815, %c2_816, %c16_817], %437 {strides = array<i32>} : memref<2x8x8x32xf32, #tpu.memory_space<vmem>>, vector<2x8x1x4xf32>,
    %439 = vector.extract_strided_slice %432 {offsets = [0, 0, 0, 12], sizes = [2, 8, 1, 4], strides = [1, 1, 1, 1]} : vector<2x8x1x32xf32> to vector<2x8x1x4xf32>
    %c0_818 = arith.constant 0 : index
    %c0_819 = arith.constant 0 : index
    %c3_820 = arith.constant 3 : index
    %c16_821 = arith.constant 16 : index
    %440 = vector.load %arg15[%c0_818, %c0_819, %c3_820, %c16_821] : memref<2x8x8x32xf32, #tpu.memory_space<vmem>>, vector<2x8x1x4xf32>
    tpu.vector_store %arg15[%c0_818, %c0_819, %c3_820, %c16_821], %439 {strides = array<i32>} : memref<2x8x8x32xf32, #tpu.memory_space<vmem>>, vector<2x8x1x4xf32>,
    %441 = vector.extract_strided_slice %432 {offsets = [0, 0, 0, 16], sizes = [2, 8, 1, 4], strides = [1, 1, 1, 1]} : vector<2x8x1x32xf32> to vector<2x8x1x4xf32>
    %c0_822 = arith.constant 0 : index
    %c0_823 = arith.constant 0 : index
    %c4_824 = arith.constant 4 : index
    %c16_825 = arith.constant 16 : index
    %442 = vector.load %arg15[%c0_822, %c0_823, %c4_824, %c16_825] : memref<2x8x8x32xf32, #tpu.memory_space<vmem>>, vector<2x8x1x4xf32>
    tpu.vector_store %arg15[%c0_822, %c0_823, %c4_824, %c16_825], %441 {strides = array<i32>} : memref<2x8x8x32xf32, #tpu.memory_space<vmem>>, vector<2x8x1x4xf32>,
    %443 = vector.extract_strided_slice %432 {offsets = [0, 0, 0, 20], sizes = [2, 8, 1, 4], strides = [1, 1, 1, 1]} : vector<2x8x1x32xf32> to vector<2x8x1x4xf32>
    %c0_826 = arith.constant 0 : index
    %c0_827 = arith.constant 0 : index
    %c5_828 = arith.constant 5 : index
    %c16_829 = arith.constant 16 : index
    %444 = vector.load %arg15[%c0_826, %c0_827, %c5_828, %c16_829] : memref<2x8x8x32xf32, #tpu.memory_space<vmem>>, vector<2x8x1x4xf32>
    tpu.vector_store %arg15[%c0_826, %c0_827, %c5_828, %c16_829], %443 {strides = array<i32>} : memref<2x8x8x32xf32, #tpu.memory_space<vmem>>, vector<2x8x1x4xf32>,
    %445 = vector.extract_strided_slice %432 {offsets = [0, 0, 0, 24], sizes = [2, 8, 1, 4], strides = [1, 1, 1, 1]} : vector<2x8x1x32xf32> to vector<2x8x1x4xf32>
    %c0_830 = arith.constant 0 : index
    %c0_831 = arith.constant 0 : index
    %c6_832 = arith.constant 6 : index
    %c16_833 = arith.constant 16 : index
    %446 = vector.load %arg15[%c0_830, %c0_831, %c6_832, %c16_833] : memref<2x8x8x32xf32, #tpu.memory_space<vmem>>, vector<2x8x1x4xf32>
    tpu.vector_store %arg15[%c0_830, %c0_831, %c6_832, %c16_833], %445 {strides = array<i32>} : memref<2x8x8x32xf32, #tpu.memory_space<vmem>>, vector<2x8x1x4xf32>,
    %447 = vector.extract_strided_slice %432 {offsets = [0, 0, 0, 28], sizes = [2, 8, 1, 4], strides = [1, 1, 1, 1]} : vector<2x8x1x32xf32> to vector<2x8x1x4xf32>
    %c0_834 = arith.constant 0 : index
    %c0_835 = arith.constant 0 : index
    %c7_836 = arith.constant 7 : index
    %c16_837 = arith.constant 16 : index
    %448 = vector.load %arg15[%c0_834, %c0_835, %c7_836, %c16_837] : memref<2x8x8x32xf32, #tpu.memory_space<vmem>>, vector<2x8x1x4xf32>
    tpu.vector_store %arg15[%c0_834, %c0_835, %c7_836, %c16_837], %447 {strides = array<i32>} : memref<2x8x8x32xf32, #tpu.memory_space<vmem>>, vector<2x8x1x4xf32>,
    %449 = vector.extract_strided_slice %273 {offsets = [0, 5, 0, 0], sizes = [2, 1, 8, 32], strides = [1, 1, 1, 1]} : vector<2x8x8x32xf32> to vector<2x1x8x32xf32>
    %450 = vector.extract_strided_slice %449 {offsets = [0, 0, 0, 0], sizes = [2, 1, 8, 4], strides = [1, 1, 1, 1]} : vector<2x1x8x32xf32> to vector<2x1x8x4xf32>
    %c0_838 = arith.constant 0 : index
    %c0_839 = arith.constant 0 : index
    %c0_840 = arith.constant 0 : index
    %c20_841 = arith.constant 20 : index
    %451 = vector.load %arg14[%c0_838, %c0_839, %c0_840, %c20_841] : memref<2x8x8x32xf32, #tpu.memory_space<vmem>>, vector<2x1x8x4xf32>
    tpu.vector_store %arg14[%c0_838, %c0_839, %c0_840, %c20_841], %450 {strides = array<i32>} : memref<2x8x8x32xf32, #tpu.memory_space<vmem>>, vector<2x1x8x4xf32>,
    %452 = vector.extract_strided_slice %449 {offsets = [0, 0, 0, 4], sizes = [2, 1, 8, 4], strides = [1, 1, 1, 1]} : vector<2x1x8x32xf32> to vector<2x1x8x4xf32>
    %c0_842 = arith.constant 0 : index
    %c1_843 = arith.constant 1 : index
    %c0_844 = arith.constant 0 : index
    %c20_845 = arith.constant 20 : index
    %453 = vector.load %arg14[%c0_842, %c1_843, %c0_844, %c20_845] : memref<2x8x8x32xf32, #tpu.memory_space<vmem>>, vector<2x1x8x4xf32>
    tpu.vector_store %arg14[%c0_842, %c1_843, %c0_844, %c20_845], %452 {strides = array<i32>} : memref<2x8x8x32xf32, #tpu.memory_space<vmem>>, vector<2x1x8x4xf32>,
    %454 = vector.extract_strided_slice %449 {offsets = [0, 0, 0, 8], sizes = [2, 1, 8, 4], strides = [1, 1, 1, 1]} : vector<2x1x8x32xf32> to vector<2x1x8x4xf32>
    %c0_846 = arith.constant 0 : index
    %c2_847 = arith.constant 2 : index
    %c0_848 = arith.constant 0 : index
    %c20_849 = arith.constant 20 : index
    %455 = vector.load %arg14[%c0_846, %c2_847, %c0_848, %c20_849] : memref<2x8x8x32xf32, #tpu.memory_space<vmem>>, vector<2x1x8x4xf32>
    tpu.vector_store %arg14[%c0_846, %c2_847, %c0_848, %c20_849], %454 {strides = array<i32>} : memref<2x8x8x32xf32, #tpu.memory_space<vmem>>, vector<2x1x8x4xf32>,
    %456 = vector.extract_strided_slice %449 {offsets = [0, 0, 0, 12], sizes = [2, 1, 8, 4], strides = [1, 1, 1, 1]} : vector<2x1x8x32xf32> to vector<2x1x8x4xf32>
    %c0_850 = arith.constant 0 : index
    %c3_851 = arith.constant 3 : index
    %c0_852 = arith.constant 0 : index
    %c20_853 = arith.constant 20 : index
    %457 = vector.load %arg14[%c0_850, %c3_851, %c0_852, %c20_853] : memref<2x8x8x32xf32, #tpu.memory_space<vmem>>, vector<2x1x8x4xf32>
    tpu.vector_store %arg14[%c0_850, %c3_851, %c0_852, %c20_853], %456 {strides = array<i32>} : memref<2x8x8x32xf32, #tpu.memory_space<vmem>>, vector<2x1x8x4xf32>,
    %458 = vector.extract_strided_slice %449 {offsets = [0, 0, 0, 16], sizes = [2, 1, 8, 4], strides = [1, 1, 1, 1]} : vector<2x1x8x32xf32> to vector<2x1x8x4xf32>
    %c0_854 = arith.constant 0 : index
    %c4_855 = arith.constant 4 : index
    %c0_856 = arith.constant 0 : index
    %c20_857 = arith.constant 20 : index
    %459 = vector.load %arg14[%c0_854, %c4_855, %c0_856, %c20_857] : memref<2x8x8x32xf32, #tpu.memory_space<vmem>>, vector<2x1x8x4xf32>
    tpu.vector_store %arg14[%c0_854, %c4_855, %c0_856, %c20_857], %458 {strides = array<i32>} : memref<2x8x8x32xf32, #tpu.memory_space<vmem>>, vector<2x1x8x4xf32>,
    %460 = vector.extract_strided_slice %449 {offsets = [0, 0, 0, 20], sizes = [2, 1, 8, 4], strides = [1, 1, 1, 1]} : vector<2x1x8x32xf32> to vector<2x1x8x4xf32>
    %c0_858 = arith.constant 0 : index
    %c5_859 = arith.constant 5 : index
    %c0_860 = arith.constant 0 : index
    %c20_861 = arith.constant 20 : index
    %461 = vector.load %arg14[%c0_858, %c5_859, %c0_860, %c20_861] : memref<2x8x8x32xf32, #tpu.memory_space<vmem>>, vector<2x1x8x4xf32>
    tpu.vector_store %arg14[%c0_858, %c5_859, %c0_860, %c20_861], %460 {strides = array<i32>} : memref<2x8x8x32xf32, #tpu.memory_space<vmem>>, vector<2x1x8x4xf32>,
    %462 = vector.extract_strided_slice %449 {offsets = [0, 0, 0, 24], sizes = [2, 1, 8, 4], strides = [1, 1, 1, 1]} : vector<2x1x8x32xf32> to vector<2x1x8x4xf32>
    %c0_862 = arith.constant 0 : index
    %c6_863 = arith.constant 6 : index
    %c0_864 = arith.constant 0 : index
    %c20_865 = arith.constant 20 : index
    %463 = vector.load %arg14[%c0_862, %c6_863, %c0_864, %c20_865] : memref<2x8x8x32xf32, #tpu.memory_space<vmem>>, vector<2x1x8x4xf32>
    tpu.vector_store %arg14[%c0_862, %c6_863, %c0_864, %c20_865], %462 {strides = array<i32>} : memref<2x8x8x32xf32, #tpu.memory_space<vmem>>, vector<2x1x8x4xf32>,
    %464 = vector.extract_strided_slice %449 {offsets = [0, 0, 0, 28], sizes = [2, 1, 8, 4], strides = [1, 1, 1, 1]} : vector<2x1x8x32xf32> to vector<2x1x8x4xf32>
    %c0_866 = arith.constant 0 : index
    %c7_867 = arith.constant 7 : index
    %c0_868 = arith.constant 0 : index
    %c20_869 = arith.constant 20 : index
    %465 = vector.load %arg14[%c0_866, %c7_867, %c0_868, %c20_869] : memref<2x8x8x32xf32, #tpu.memory_space<vmem>>, vector<2x1x8x4xf32>
    tpu.vector_store %arg14[%c0_866, %c7_867, %c0_868, %c20_869], %464 {strides = array<i32>} : memref<2x8x8x32xf32, #tpu.memory_space<vmem>>, vector<2x1x8x4xf32>,
    %466 = vector.extract_strided_slice %278 {offsets = [0, 0, 5, 0], sizes = [2, 8, 1, 32], strides = [1, 1, 1, 1]} : vector<2x8x8x32xf32> to vector<2x8x1x32xf32>
    %467 = vector.extract_strided_slice %466 {offsets = [0, 0, 0, 0], sizes = [2, 8, 1, 4], strides = [1, 1, 1, 1]} : vector<2x8x1x32xf32> to vector<2x8x1x4xf32>
    %c0_870 = arith.constant 0 : index
    %c0_871 = arith.constant 0 : index
    %c0_872 = arith.constant 0 : index
    %c20_873 = arith.constant 20 : index
    %468 = vector.load %arg15[%c0_870, %c0_871, %c0_872, %c20_873] : memref<2x8x8x32xf32, #tpu.memory_space<vmem>>, vector<2x8x1x4xf32>
    tpu.vector_store %arg15[%c0_870, %c0_871, %c0_872, %c20_873], %467 {strides = array<i32>} : memref<2x8x8x32xf32, #tpu.memory_space<vmem>>, vector<2x8x1x4xf32>,
    %469 = vector.extract_strided_slice %466 {offsets = [0, 0, 0, 4], sizes = [2, 8, 1, 4], strides = [1, 1, 1, 1]} : vector<2x8x1x32xf32> to vector<2x8x1x4xf32>
    %c0_874 = arith.constant 0 : index
    %c0_875 = arith.constant 0 : index
    %c1_876 = arith.constant 1 : index
    %c20_877 = arith.constant 20 : index
    %470 = vector.load %arg15[%c0_874, %c0_875, %c1_876, %c20_877] : memref<2x8x8x32xf32, #tpu.memory_space<vmem>>, vector<2x8x1x4xf32>
    tpu.vector_store %arg15[%c0_874, %c0_875, %c1_876, %c20_877], %469 {strides = array<i32>} : memref<2x8x8x32xf32, #tpu.memory_space<vmem>>, vector<2x8x1x4xf32>,
    %471 = vector.extract_strided_slice %466 {offsets = [0, 0, 0, 8], sizes = [2, 8, 1, 4], strides = [1, 1, 1, 1]} : vector<2x8x1x32xf32> to vector<2x8x1x4xf32>
    %c0_878 = arith.constant 0 : index
    %c0_879 = arith.constant 0 : index
    %c2_880 = arith.constant 2 : index
    %c20_881 = arith.constant 20 : index
    %472 = vector.load %arg15[%c0_878, %c0_879, %c2_880, %c20_881] : memref<2x8x8x32xf32, #tpu.memory_space<vmem>>, vector<2x8x1x4xf32>
    tpu.vector_store %arg15[%c0_878, %c0_879, %c2_880, %c20_881], %471 {strides = array<i32>} : memref<2x8x8x32xf32, #tpu.memory_space<vmem>>, vector<2x8x1x4xf32>,
    %473 = vector.extract_strided_slice %466 {offsets = [0, 0, 0, 12], sizes = [2, 8, 1, 4], strides = [1, 1, 1, 1]} : vector<2x8x1x32xf32> to vector<2x8x1x4xf32>
    %c0_882 = arith.constant 0 : index
    %c0_883 = arith.constant 0 : index
    %c3_884 = arith.constant 3 : index
    %c20_885 = arith.constant 20 : index
    %474 = vector.load %arg15[%c0_882, %c0_883, %c3_884, %c20_885] : memref<2x8x8x32xf32, #tpu.memory_space<vmem>>, vector<2x8x1x4xf32>
    tpu.vector_store %arg15[%c0_882, %c0_883, %c3_884, %c20_885], %473 {strides = array<i32>} : memref<2x8x8x32xf32, #tpu.memory_space<vmem>>, vector<2x8x1x4xf32>,
    %475 = vector.extract_strided_slice %466 {offsets = [0, 0, 0, 16], sizes = [2, 8, 1, 4], strides = [1, 1, 1, 1]} : vector<2x8x1x32xf32> to vector<2x8x1x4xf32>
    %c0_886 = arith.constant 0 : index
    %c0_887 = arith.constant 0 : index
    %c4_888 = arith.constant 4 : index
    %c20_889 = arith.constant 20 : index
    %476 = vector.load %arg15[%c0_886, %c0_887, %c4_888, %c20_889] : memref<2x8x8x32xf32, #tpu.memory_space<vmem>>, vector<2x8x1x4xf32>
    tpu.vector_store %arg15[%c0_886, %c0_887, %c4_888, %c20_889], %475 {strides = array<i32>} : memref<2x8x8x32xf32, #tpu.memory_space<vmem>>, vector<2x8x1x4xf32>,
    %477 = vector.extract_strided_slice %466 {offsets = [0, 0, 0, 20], sizes = [2, 8, 1, 4], strides = [1, 1, 1, 1]} : vector<2x8x1x32xf32> to vector<2x8x1x4xf32>
    %c0_890 = arith.constant 0 : index
    %c0_891 = arith.constant 0 : index
    %c5_892 = arith.constant 5 : index
    %c20_893 = arith.constant 20 : index
    %478 = vector.load %arg15[%c0_890, %c0_891, %c5_892, %c20_893] : memref<2x8x8x32xf32, #tpu.memory_space<vmem>>, vector<2x8x1x4xf32>
    tpu.vector_store %arg15[%c0_890, %c0_891, %c5_892, %c20_893], %477 {strides = array<i32>} : memref<2x8x8x32xf32, #tpu.memory_space<vmem>>, vector<2x8x1x4xf32>,
    %479 = vector.extract_strided_slice %466 {offsets = [0, 0, 0, 24], sizes = [2, 8, 1, 4], strides = [1, 1, 1, 1]} : vector<2x8x1x32xf32> to vector<2x8x1x4xf32>
    %c0_894 = arith.constant 0 : index
    %c0_895 = arith.constant 0 : index
    %c6_896 = arith.constant 6 : index
    %c20_897 = arith.constant 20 : index
    %480 = vector.load %arg15[%c0_894, %c0_895, %c6_896, %c20_897] : memref<2x8x8x32xf32, #tpu.memory_space<vmem>>, vector<2x8x1x4xf32>
    tpu.vector_store %arg15[%c0_894, %c0_895, %c6_896, %c20_897], %479 {strides = array<i32>} : memref<2x8x8x32xf32, #tpu.memory_space<vmem>>, vector<2x8x1x4xf32>,
    %481 = vector.extract_strided_slice %466 {offsets = [0, 0, 0, 28], sizes = [2, 8, 1, 4], strides = [1, 1, 1, 1]} : vector<2x8x1x32xf32> to vector<2x8x1x4xf32>
    %c0_898 = arith.constant 0 : index
    %c0_899 = arith.constant 0 : index
    %c7_900 = arith.constant 7 : index
    %c20_901 = arith.constant 20 : index
    %482 = vector.load %arg15[%c0_898, %c0_899, %c7_900, %c20_901] : memref<2x8x8x32xf32, #tpu.memory_space<vmem>>, vector<2x8x1x4xf32>
    tpu.vector_store %arg15[%c0_898, %c0_899, %c7_900, %c20_901], %481 {strides = array<i32>} : memref<2x8x8x32xf32, #tpu.memory_space<vmem>>, vector<2x8x1x4xf32>,
    %483 = vector.extract_strided_slice %273 {offsets = [0, 6, 0, 0], sizes = [2, 1, 8, 32], strides = [1, 1, 1, 1]} : vector<2x8x8x32xf32> to vector<2x1x8x32xf32>
    %484 = vector.extract_strided_slice %483 {offsets = [0, 0, 0, 0], sizes = [2, 1, 8, 4], strides = [1, 1, 1, 1]} : vector<2x1x8x32xf32> to vector<2x1x8x4xf32>
    %c0_902 = arith.constant 0 : index
    %c0_903 = arith.constant 0 : index
    %c0_904 = arith.constant 0 : index
    %c24_905 = arith.constant 24 : index
    %485 = vector.load %arg14[%c0_902, %c0_903, %c0_904, %c24_905] : memref<2x8x8x32xf32, #tpu.memory_space<vmem>>, vector<2x1x8x4xf32>
    tpu.vector_store %arg14[%c0_902, %c0_903, %c0_904, %c24_905], %484 {strides = array<i32>} : memref<2x8x8x32xf32, #tpu.memory_space<vmem>>, vector<2x1x8x4xf32>,
    %486 = vector.extract_strided_slice %483 {offsets = [0, 0, 0, 4], sizes = [2, 1, 8, 4], strides = [1, 1, 1, 1]} : vector<2x1x8x32xf32> to vector<2x1x8x4xf32>
    %c0_906 = arith.constant 0 : index
    %c1_907 = arith.constant 1 : index
    %c0_908 = arith.constant 0 : index
    %c24_909 = arith.constant 24 : index
    %487 = vector.load %arg14[%c0_906, %c1_907, %c0_908, %c24_909] : memref<2x8x8x32xf32, #tpu.memory_space<vmem>>, vector<2x1x8x4xf32>
    tpu.vector_store %arg14[%c0_906, %c1_907, %c0_908, %c24_909], %486 {strides = array<i32>} : memref<2x8x8x32xf32, #tpu.memory_space<vmem>>, vector<2x1x8x4xf32>,
    %488 = vector.extract_strided_slice %483 {offsets = [0, 0, 0, 8], sizes = [2, 1, 8, 4], strides = [1, 1, 1, 1]} : vector<2x1x8x32xf32> to vector<2x1x8x4xf32>
    %c0_910 = arith.constant 0 : index
    %c2_911 = arith.constant 2 : index
    %c0_912 = arith.constant 0 : index
    %c24_913 = arith.constant 24 : index
    %489 = vector.load %arg14[%c0_910, %c2_911, %c0_912, %c24_913] : memref<2x8x8x32xf32, #tpu.memory_space<vmem>>, vector<2x1x8x4xf32>
    tpu.vector_store %arg14[%c0_910, %c2_911, %c0_912, %c24_913], %488 {strides = array<i32>} : memref<2x8x8x32xf32, #tpu.memory_space<vmem>>, vector<2x1x8x4xf32>,
    %490 = vector.extract_strided_slice %483 {offsets = [0, 0, 0, 12], sizes = [2, 1, 8, 4], strides = [1, 1, 1, 1]} : vector<2x1x8x32xf32> to vector<2x1x8x4xf32>
    %c0_914 = arith.constant 0 : index
    %c3_915 = arith.constant 3 : index
    %c0_916 = arith.constant 0 : index
    %c24_917 = arith.constant 24 : index
    %491 = vector.load %arg14[%c0_914, %c3_915, %c0_916, %c24_917] : memref<2x8x8x32xf32, #tpu.memory_space<vmem>>, vector<2x1x8x4xf32>
    tpu.vector_store %arg14[%c0_914, %c3_915, %c0_916, %c24_917], %490 {strides = array<i32>} : memref<2x8x8x32xf32, #tpu.memory_space<vmem>>, vector<2x1x8x4xf32>,
    %492 = vector.extract_strided_slice %483 {offsets = [0, 0, 0, 16], sizes = [2, 1, 8, 4], strides = [1, 1, 1, 1]} : vector<2x1x8x32xf32> to vector<2x1x8x4xf32>
    %c0_918 = arith.constant 0 : index
    %c4_919 = arith.constant 4 : index
    %c0_920 = arith.constant 0 : index
    %c24_921 = arith.constant 24 : index
    %493 = vector.load %arg14[%c0_918, %c4_919, %c0_920, %c24_921] : memref<2x8x8x32xf32, #tpu.memory_space<vmem>>, vector<2x1x8x4xf32>
    tpu.vector_store %arg14[%c0_918, %c4_919, %c0_920, %c24_921], %492 {strides = array<i32>} : memref<2x8x8x32xf32, #tpu.memory_space<vmem>>, vector<2x1x8x4xf32>,
    %494 = vector.extract_strided_slice %483 {offsets = [0, 0, 0, 20], sizes = [2, 1, 8, 4], strides = [1, 1, 1, 1]} : vector<2x1x8x32xf32> to vector<2x1x8x4xf32>
    %c0_922 = arith.constant 0 : index
    %c5_923 = arith.constant 5 : index
    %c0_924 = arith.constant 0 : index
    %c24_925 = arith.constant 24 : index
    %495 = vector.load %arg14[%c0_922, %c5_923, %c0_924, %c24_925] : memref<2x8x8x32xf32, #tpu.memory_space<vmem>>, vector<2x1x8x4xf32>
    tpu.vector_store %arg14[%c0_922, %c5_923, %c0_924, %c24_925], %494 {strides = array<i32>} : memref<2x8x8x32xf32, #tpu.memory_space<vmem>>, vector<2x1x8x4xf32>,
    %496 = vector.extract_strided_slice %483 {offsets = [0, 0, 0, 24], sizes = [2, 1, 8, 4], strides = [1, 1, 1, 1]} : vector<2x1x8x32xf32> to vector<2x1x8x4xf32>
    %c0_926 = arith.constant 0 : index
    %c6_927 = arith.constant 6 : index
    %c0_928 = arith.constant 0 : index
    %c24_929 = arith.constant 24 : index
    %497 = vector.load %arg14[%c0_926, %c6_927, %c0_928, %c24_929] : memref<2x8x8x32xf32, #tpu.memory_space<vmem>>, vector<2x1x8x4xf32>
    tpu.vector_store %arg14[%c0_926, %c6_927, %c0_928, %c24_929], %496 {strides = array<i32>} : memref<2x8x8x32xf32, #tpu.memory_space<vmem>>, vector<2x1x8x4xf32>,
    %498 = vector.extract_strided_slice %483 {offsets = [0, 0, 0, 28], sizes = [2, 1, 8, 4], strides = [1, 1, 1, 1]} : vector<2x1x8x32xf32> to vector<2x1x8x4xf32>
    %c0_930 = arith.constant 0 : index
    %c7_931 = arith.constant 7 : index
    %c0_932 = arith.constant 0 : index
    %c24_933 = arith.constant 24 : index
    %499 = vector.load %arg14[%c0_930, %c7_931, %c0_932, %c24_933] : memref<2x8x8x32xf32, #tpu.memory_space<vmem>>, vector<2x1x8x4xf32>
    tpu.vector_store %arg14[%c0_930, %c7_931, %c0_932, %c24_933], %498 {strides = array<i32>} : memref<2x8x8x32xf32, #tpu.memory_space<vmem>>, vector<2x1x8x4xf32>,
    %500 = vector.extract_strided_slice %278 {offsets = [0, 0, 6, 0], sizes = [2, 8, 1, 32], strides = [1, 1, 1, 1]} : vector<2x8x8x32xf32> to vector<2x8x1x32xf32>
    %501 = vector.extract_strided_slice %500 {offsets = [0, 0, 0, 0], sizes = [2, 8, 1, 4], strides = [1, 1, 1, 1]} : vector<2x8x1x32xf32> to vector<2x8x1x4xf32>
    %c0_934 = arith.constant 0 : index
    %c0_935 = arith.constant 0 : index
    %c0_936 = arith.constant 0 : index
    %c24_937 = arith.constant 24 : index
    %502 = vector.load %arg15[%c0_934, %c0_935, %c0_936, %c24_937] : memref<2x8x8x32xf32, #tpu.memory_space<vmem>>, vector<2x8x1x4xf32>
    tpu.vector_store %arg15[%c0_934, %c0_935, %c0_936, %c24_937], %501 {strides = array<i32>} : memref<2x8x8x32xf32, #tpu.memory_space<vmem>>, vector<2x8x1x4xf32>,
    %503 = vector.extract_strided_slice %500 {offsets = [0, 0, 0, 4], sizes = [2, 8, 1, 4], strides = [1, 1, 1, 1]} : vector<2x8x1x32xf32> to vector<2x8x1x4xf32>
    %c0_938 = arith.constant 0 : index
    %c0_939 = arith.constant 0 : index
    %c1_940 = arith.constant 1 : index
    %c24_941 = arith.constant 24 : index
    %504 = vector.load %arg15[%c0_938, %c0_939, %c1_940, %c24_941] : memref<2x8x8x32xf32, #tpu.memory_space<vmem>>, vector<2x8x1x4xf32>
    tpu.vector_store %arg15[%c0_938, %c0_939, %c1_940, %c24_941], %503 {strides = array<i32>} : memref<2x8x8x32xf32, #tpu.memory_space<vmem>>, vector<2x8x1x4xf32>,
    %505 = vector.extract_strided_slice %500 {offsets = [0, 0, 0, 8], sizes = [2, 8, 1, 4], strides = [1, 1, 1, 1]} : vector<2x8x1x32xf32> to vector<2x8x1x4xf32>
    %c0_942 = arith.constant 0 : index
    %c0_943 = arith.constant 0 : index
    %c2_944 = arith.constant 2 : index
    %c24_945 = arith.constant 24 : index
    %506 = vector.load %arg15[%c0_942, %c0_943, %c2_944, %c24_945] : memref<2x8x8x32xf32, #tpu.memory_space<vmem>>, vector<2x8x1x4xf32>
    tpu.vector_store %arg15[%c0_942, %c0_943, %c2_944, %c24_945], %505 {strides = array<i32>} : memref<2x8x8x32xf32, #tpu.memory_space<vmem>>, vector<2x8x1x4xf32>,
    %507 = vector.extract_strided_slice %500 {offsets = [0, 0, 0, 12], sizes = [2, 8, 1, 4], strides = [1, 1, 1, 1]} : vector<2x8x1x32xf32> to vector<2x8x1x4xf32>
    %c0_946 = arith.constant 0 : index
    %c0_947 = arith.constant 0 : index
    %c3_948 = arith.constant 3 : index
    %c24_949 = arith.constant 24 : index
    %508 = vector.load %arg15[%c0_946, %c0_947, %c3_948, %c24_949] : memref<2x8x8x32xf32, #tpu.memory_space<vmem>>, vector<2x8x1x4xf32>
    tpu.vector_store %arg15[%c0_946, %c0_947, %c3_948, %c24_949], %507 {strides = array<i32>} : memref<2x8x8x32xf32, #tpu.memory_space<vmem>>, vector<2x8x1x4xf32>,
    %509 = vector.extract_strided_slice %500 {offsets = [0, 0, 0, 16], sizes = [2, 8, 1, 4], strides = [1, 1, 1, 1]} : vector<2x8x1x32xf32> to vector<2x8x1x4xf32>
    %c0_950 = arith.constant 0 : index
    %c0_951 = arith.constant 0 : index
    %c4_952 = arith.constant 4 : index
    %c24_953 = arith.constant 24 : index
    %510 = vector.load %arg15[%c0_950, %c0_951, %c4_952, %c24_953] : memref<2x8x8x32xf32, #tpu.memory_space<vmem>>, vector<2x8x1x4xf32>
    tpu.vector_store %arg15[%c0_950, %c0_951, %c4_952, %c24_953], %509 {strides = array<i32>} : memref<2x8x8x32xf32, #tpu.memory_space<vmem>>, vector<2x8x1x4xf32>,
    %511 = vector.extract_strided_slice %500 {offsets = [0, 0, 0, 20], sizes = [2, 8, 1, 4], strides = [1, 1, 1, 1]} : vector<2x8x1x32xf32> to vector<2x8x1x4xf32>
    %c0_954 = arith.constant 0 : index
    %c0_955 = arith.constant 0 : index
    %c5_956 = arith.constant 5 : index
    %c24_957 = arith.constant 24 : index
    %512 = vector.load %arg15[%c0_954, %c0_955, %c5_956, %c24_957] : memref<2x8x8x32xf32, #tpu.memory_space<vmem>>, vector<2x8x1x4xf32>
    tpu.vector_store %arg15[%c0_954, %c0_955, %c5_956, %c24_957], %511 {strides = array<i32>} : memref<2x8x8x32xf32, #tpu.memory_space<vmem>>, vector<2x8x1x4xf32>,
    %513 = vector.extract_strided_slice %500 {offsets = [0, 0, 0, 24], sizes = [2, 8, 1, 4], strides = [1, 1, 1, 1]} : vector<2x8x1x32xf32> to vector<2x8x1x4xf32>
    %c0_958 = arith.constant 0 : index
    %c0_959 = arith.constant 0 : index
    %c6_960 = arith.constant 6 : index
    %c24_961 = arith.constant 24 : index
    %514 = vector.load %arg15[%c0_958, %c0_959, %c6_960, %c24_961] : memref<2x8x8x32xf32, #tpu.memory_space<vmem>>, vector<2x8x1x4xf32>
    tpu.vector_store %arg15[%c0_958, %c0_959, %c6_960, %c24_961], %513 {strides = array<i32>} : memref<2x8x8x32xf32, #tpu.memory_space<vmem>>, vector<2x8x1x4xf32>,
    %515 = vector.extract_strided_slice %500 {offsets = [0, 0, 0, 28], sizes = [2, 8, 1, 4], strides = [1, 1, 1, 1]} : vector<2x8x1x32xf32> to vector<2x8x1x4xf32>
    %c0_962 = arith.constant 0 : index
    %c0_963 = arith.constant 0 : index
    %c7_964 = arith.constant 7 : index
    %c24_965 = arith.constant 24 : index
    %516 = vector.load %arg15[%c0_962, %c0_963, %c7_964, %c24_965] : memref<2x8x8x32xf32, #tpu.memory_space<vmem>>, vector<2x8x1x4xf32>
    tpu.vector_store %arg15[%c0_962, %c0_963, %c7_964, %c24_965], %515 {strides = array<i32>} : memref<2x8x8x32xf32, #tpu.memory_space<vmem>>, vector<2x8x1x4xf32>,
    %517 = vector.extract_strided_slice %273 {offsets = [0, 7, 0, 0], sizes = [2, 1, 8, 32], strides = [1, 1, 1, 1]} : vector<2x8x8x32xf32> to vector<2x1x8x32xf32>
    %518 = vector.extract_strided_slice %517 {offsets = [0, 0, 0, 0], sizes = [2, 1, 8, 4], strides = [1, 1, 1, 1]} : vector<2x1x8x32xf32> to vector<2x1x8x4xf32>
    %c0_966 = arith.constant 0 : index
    %c0_967 = arith.constant 0 : index
    %c0_968 = arith.constant 0 : index
    %c28_969 = arith.constant 28 : index
    %519 = vector.load %arg14[%c0_966, %c0_967, %c0_968, %c28_969] : memref<2x8x8x32xf32, #tpu.memory_space<vmem>>, vector<2x1x8x4xf32>
    tpu.vector_store %arg14[%c0_966, %c0_967, %c0_968, %c28_969], %518 {strides = array<i32>} : memref<2x8x8x32xf32, #tpu.memory_space<vmem>>, vector<2x1x8x4xf32>,
    %520 = vector.extract_strided_slice %517 {offsets = [0, 0, 0, 4], sizes = [2, 1, 8, 4], strides = [1, 1, 1, 1]} : vector<2x1x8x32xf32> to vector<2x1x8x4xf32>
    %c0_970 = arith.constant 0 : index
    %c1_971 = arith.constant 1 : index
    %c0_972 = arith.constant 0 : index
    %c28_973 = arith.constant 28 : index
    %521 = vector.load %arg14[%c0_970, %c1_971, %c0_972, %c28_973] : memref<2x8x8x32xf32, #tpu.memory_space<vmem>>, vector<2x1x8x4xf32>
    tpu.vector_store %arg14[%c0_970, %c1_971, %c0_972, %c28_973], %520 {strides = array<i32>} : memref<2x8x8x32xf32, #tpu.memory_space<vmem>>, vector<2x1x8x4xf32>,
    %522 = vector.extract_strided_slice %517 {offsets = [0, 0, 0, 8], sizes = [2, 1, 8, 4], strides = [1, 1, 1, 1]} : vector<2x1x8x32xf32> to vector<2x1x8x4xf32>
    %c0_974 = arith.constant 0 : index
    %c2_975 = arith.constant 2 : index
    %c0_976 = arith.constant 0 : index
    %c28_977 = arith.constant 28 : index
    %523 = vector.load %arg14[%c0_974, %c2_975, %c0_976, %c28_977] : memref<2x8x8x32xf32, #tpu.memory_space<vmem>>, vector<2x1x8x4xf32>
    tpu.vector_store %arg14[%c0_974, %c2_975, %c0_976, %c28_977], %522 {strides = array<i32>} : memref<2x8x8x32xf32, #tpu.memory_space<vmem>>, vector<2x1x8x4xf32>,
    %524 = vector.extract_strided_slice %517 {offsets = [0, 0, 0, 12], sizes = [2, 1, 8, 4], strides = [1, 1, 1, 1]} : vector<2x1x8x32xf32> to vector<2x1x8x4xf32>
    %c0_978 = arith.constant 0 : index
    %c3_979 = arith.constant 3 : index
    %c0_980 = arith.constant 0 : index
    %c28_981 = arith.constant 28 : index
    %525 = vector.load %arg14[%c0_978, %c3_979, %c0_980, %c28_981] : memref<2x8x8x32xf32, #tpu.memory_space<vmem>>, vector<2x1x8x4xf32>
    tpu.vector_store %arg14[%c0_978, %c3_979, %c0_980, %c28_981], %524 {strides = array<i32>} : memref<2x8x8x32xf32, #tpu.memory_space<vmem>>, vector<2x1x8x4xf32>,
    %526 = vector.extract_strided_slice %517 {offsets = [0, 0, 0, 16], sizes = [2, 1, 8, 4], strides = [1, 1, 1, 1]} : vector<2x1x8x32xf32> to vector<2x1x8x4xf32>
    %c0_982 = arith.constant 0 : index
    %c4_983 = arith.constant 4 : index
    %c0_984 = arith.constant 0 : index
    %c28_985 = arith.constant 28 : index
    %527 = vector.load %arg14[%c0_982, %c4_983, %c0_984, %c28_985] : memref<2x8x8x32xf32, #tpu.memory_space<vmem>>, vector<2x1x8x4xf32>
    tpu.vector_store %arg14[%c0_982, %c4_983, %c0_984, %c28_985], %526 {strides = array<i32>} : memref<2x8x8x32xf32, #tpu.memory_space<vmem>>, vector<2x1x8x4xf32>,
    %528 = vector.extract_strided_slice %517 {offsets = [0, 0, 0, 20], sizes = [2, 1, 8, 4], strides = [1, 1, 1, 1]} : vector<2x1x8x32xf32> to vector<2x1x8x4xf32>
    %c0_986 = arith.constant 0 : index
    %c5_987 = arith.constant 5 : index
    %c0_988 = arith.constant 0 : index
    %c28_989 = arith.constant 28 : index
    %529 = vector.load %arg14[%c0_986, %c5_987, %c0_988, %c28_989] : memref<2x8x8x32xf32, #tpu.memory_space<vmem>>, vector<2x1x8x4xf32>
    tpu.vector_store %arg14[%c0_986, %c5_987, %c0_988, %c28_989], %528 {strides = array<i32>} : memref<2x8x8x32xf32, #tpu.memory_space<vmem>>, vector<2x1x8x4xf32>,
    %530 = vector.extract_strided_slice %517 {offsets = [0, 0, 0, 24], sizes = [2, 1, 8, 4], strides = [1, 1, 1, 1]} : vector<2x1x8x32xf32> to vector<2x1x8x4xf32>
    %c0_990 = arith.constant 0 : index
    %c6_991 = arith.constant 6 : index
    %c0_992 = arith.constant 0 : index
    %c28_993 = arith.constant 28 : index
    %531 = vector.load %arg14[%c0_990, %c6_991, %c0_992, %c28_993] : memref<2x8x8x32xf32, #tpu.memory_space<vmem>>, vector<2x1x8x4xf32>
    tpu.vector_store %arg14[%c0_990, %c6_991, %c0_992, %c28_993], %530 {strides = array<i32>} : memref<2x8x8x32xf32, #tpu.memory_space<vmem>>, vector<2x1x8x4xf32>,
    %532 = vector.extract_strided_slice %517 {offsets = [0, 0, 0, 28], sizes = [2, 1, 8, 4], strides = [1, 1, 1, 1]} : vector<2x1x8x32xf32> to vector<2x1x8x4xf32>
    %c0_994 = arith.constant 0 : index
    %c7_995 = arith.constant 7 : index
    %c0_996 = arith.constant 0 : index
    %c28_997 = arith.constant 28 : index
    %533 = vector.load %arg14[%c0_994, %c7_995, %c0_996, %c28_997] : memref<2x8x8x32xf32, #tpu.memory_space<vmem>>, vector<2x1x8x4xf32>
    tpu.vector_store %arg14[%c0_994, %c7_995, %c0_996, %c28_997], %532 {strides = array<i32>} : memref<2x8x8x32xf32, #tpu.memory_space<vmem>>, vector<2x1x8x4xf32>,
    %534 = vector.extract_strided_slice %278 {offsets = [0, 0, 7, 0], sizes = [2, 8, 1, 32], strides = [1, 1, 1, 1]} : vector<2x8x8x32xf32> to vector<2x8x1x32xf32>
    %535 = vector.extract_strided_slice %534 {offsets = [0, 0, 0, 0], sizes = [2, 8, 1, 4], strides = [1, 1, 1, 1]} : vector<2x8x1x32xf32> to vector<2x8x1x4xf32>
    %c0_998 = arith.constant 0 : index
    %c0_999 = arith.constant 0 : index
    %c0_1000 = arith.constant 0 : index
    %c28_1001 = arith.constant 28 : index
    %536 = vector.load %arg15[%c0_998, %c0_999, %c0_1000, %c28_1001] : memref<2x8x8x32xf32, #tpu.memory_space<vmem>>, vector<2x8x1x4xf32>
    tpu.vector_store %arg15[%c0_998, %c0_999, %c0_1000, %c28_1001], %535 {strides = array<i32>} : memref<2x8x8x32xf32, #tpu.memory_space<vmem>>, vector<2x8x1x4xf32>,
    %537 = vector.extract_strided_slice %534 {offsets = [0, 0, 0, 4], sizes = [2, 8, 1, 4], strides = [1, 1, 1, 1]} : vector<2x8x1x32xf32> to vector<2x8x1x4xf32>
    %c0_1002 = arith.constant 0 : index
    %c0_1003 = arith.constant 0 : index
    %c1_1004 = arith.constant 1 : index
    %c28_1005 = arith.constant 28 : index
    %538 = vector.load %arg15[%c0_1002, %c0_1003, %c1_1004, %c28_1005] : memref<2x8x8x32xf32, #tpu.memory_space<vmem>>, vector<2x8x1x4xf32>
    tpu.vector_store %arg15[%c0_1002, %c0_1003, %c1_1004, %c28_1005], %537 {strides = array<i32>} : memref<2x8x8x32xf32, #tpu.memory_space<vmem>>, vector<2x8x1x4xf32>,
    %539 = vector.extract_strided_slice %534 {offsets = [0, 0, 0, 8], sizes = [2, 8, 1, 4], strides = [1, 1, 1, 1]} : vector<2x8x1x32xf32> to vector<2x8x1x4xf32>
    %c0_1006 = arith.constant 0 : index
    %c0_1007 = arith.constant 0 : index
    %c2_1008 = arith.constant 2 : index
    %c28_1009 = arith.constant 28 : index
    %540 = vector.load %arg15[%c0_1006, %c0_1007, %c2_1008, %c28_1009] : memref<2x8x8x32xf32, #tpu.memory_space<vmem>>, vector<2x8x1x4xf32>
    tpu.vector_store %arg15[%c0_1006, %c0_1007, %c2_1008, %c28_1009], %539 {strides = array<i32>} : memref<2x8x8x32xf32, #tpu.memory_space<vmem>>, vector<2x8x1x4xf32>,
    %541 = vector.extract_strided_slice %534 {offsets = [0, 0, 0, 12], sizes = [2, 8, 1, 4], strides = [1, 1, 1, 1]} : vector<2x8x1x32xf32> to vector<2x8x1x4xf32>
    %c0_1010 = arith.constant 0 : index
    %c0_1011 = arith.constant 0 : index
    %c3_1012 = arith.constant 3 : index
    %c28_1013 = arith.constant 28 : index
    %542 = vector.load %arg15[%c0_1010, %c0_1011, %c3_1012, %c28_1013] : memref<2x8x8x32xf32, #tpu.memory_space<vmem>>, vector<2x8x1x4xf32>
    tpu.vector_store %arg15[%c0_1010, %c0_1011, %c3_1012, %c28_1013], %541 {strides = array<i32>} : memref<2x8x8x32xf32, #tpu.memory_space<vmem>>, vector<2x8x1x4xf32>,
    %543 = vector.extract_strided_slice %534 {offsets = [0, 0, 0, 16], sizes = [2, 8, 1, 4], strides = [1, 1, 1, 1]} : vector<2x8x1x32xf32> to vector<2x8x1x4xf32>
    %c0_1014 = arith.constant 0 : index
    %c0_1015 = arith.constant 0 : index
    %c4_1016 = arith.constant 4 : index
    %c28_1017 = arith.constant 28 : index
    %544 = vector.load %arg15[%c0_1014, %c0_1015, %c4_1016, %c28_1017] : memref<2x8x8x32xf32, #tpu.memory_space<vmem>>, vector<2x8x1x4xf32>
    tpu.vector_store %arg15[%c0_1014, %c0_1015, %c4_1016, %c28_1017], %543 {strides = array<i32>} : memref<2x8x8x32xf32, #tpu.memory_space<vmem>>, vector<2x8x1x4xf32>,
    %545 = vector.extract_strided_slice %534 {offsets = [0, 0, 0, 20], sizes = [2, 8, 1, 4], strides = [1, 1, 1, 1]} : vector<2x8x1x32xf32> to vector<2x8x1x4xf32>
    %c0_1018 = arith.constant 0 : index
    %c0_1019 = arith.constant 0 : index
    %c5_1020 = arith.constant 5 : index
    %c28_1021 = arith.constant 28 : index
    %546 = vector.load %arg15[%c0_1018, %c0_1019, %c5_1020, %c28_1021] : memref<2x8x8x32xf32, #tpu.memory_space<vmem>>, vector<2x8x1x4xf32>
    tpu.vector_store %arg15[%c0_1018, %c0_1019, %c5_1020, %c28_1021], %545 {strides = array<i32>} : memref<2x8x8x32xf32, #tpu.memory_space<vmem>>, vector<2x8x1x4xf32>,
    %547 = vector.extract_strided_slice %534 {offsets = [0, 0, 0, 24], sizes = [2, 8, 1, 4], strides = [1, 1, 1, 1]} : vector<2x8x1x32xf32> to vector<2x8x1x4xf32>
    %c0_1022 = arith.constant 0 : index
    %c0_1023 = arith.constant 0 : index
    %c6_1024 = arith.constant 6 : index
    %c28_1025 = arith.constant 28 : index
    %548 = vector.load %arg15[%c0_1022, %c0_1023, %c6_1024, %c28_1025] : memref<2x8x8x32xf32, #tpu.memory_space<vmem>>, vector<2x8x1x4xf32>
    tpu.vector_store %arg15[%c0_1022, %c0_1023, %c6_1024, %c28_1025], %547 {strides = array<i32>} : memref<2x8x8x32xf32, #tpu.memory_space<vmem>>, vector<2x8x1x4xf32>,
    %549 = vector.extract_strided_slice %534 {offsets = [0, 0, 0, 28], sizes = [2, 8, 1, 4], strides = [1, 1, 1, 1]} : vector<2x8x1x32xf32> to vector<2x8x1x4xf32>
    %c0_1026 = arith.constant 0 : index
    %c0_1027 = arith.constant 0 : index
    %c7_1028 = arith.constant 7 : index
    %c28_1029 = arith.constant 28 : index
    %550 = vector.load %arg15[%c0_1026, %c0_1027, %c7_1028, %c28_1029] : memref<2x8x8x32xf32, #tpu.memory_space<vmem>>, vector<2x8x1x4xf32>
    tpu.vector_store %arg15[%c0_1026, %c0_1027, %c7_1028, %c28_1029], %549 {strides = array<i32>} : memref<2x8x8x32xf32, #tpu.memory_space<vmem>>, vector<2x8x1x4xf32>,
    %c0_1030 = arith.constant 0 : index
    %c0_1031 = arith.constant 0 : index
    %c0_1032 = arith.constant 0 : index
    %c0_1033 = arith.constant 0 : index
    %551 = vector.load %arg14[%c0_1030, %c0_1031, %c0_1032, %c0_1033] : memref<2x8x8x32xf32, #tpu.memory_space<vmem>>, vector<2x8x8x32xf32>
    %c0_1034 = arith.constant 0 : index
    %c0_1035 = arith.constant 0 : index
    %c0_1036 = arith.constant 0 : index
    %c0_1037 = arith.constant 0 : index
    %552 = vector.load %arg15[%c0_1034, %c0_1035, %c0_1036, %c0_1037] : memref<2x8x8x32xf32, #tpu.memory_space<vmem>>, vector<2x8x8x32xf32>
    %553 = arith.addf %551, %552 : vector<2x8x8x32xf32>
    %554 = arith.addf %553, %268 : vector<2x8x8x32xf32>
    %555 = vector.shape_cast %554 : vector<2x8x8x32xf32> to vector<2x64x32xf32>
    %cst_1038 = arith.constant dense<0.000000e+00> : vector<2x32xf32>
    %556 = vector.multi_reduction <add>, %555, %cst_1038 [1] : vector<2x64x32xf32> to vector<2x32xf32>
    %cst_1039 = arith.constant 6.400000e+01 : f32
    %557 = vector.broadcast %cst_1039 : f32 to vector<2x32xf32>
    %558 = arith.divf %556, %557 : vector<2x32xf32>
    %c0_1040 = arith.constant 0 : index
    %c0_1041 = arith.constant 0 : index
    %559 = vector.load %arg5[%c0_1040, %c0_1041] : memref<32x8xf32, #tpu.memory_space<vmem>>, vector<32x8xf32>
    %cst_1042 = arith.constant dense<0.000000e+00> : vector<2x8xf32>
    %560 = tpu.matmul %558, %559, %cst_1042 {dimension_numbers = #tpu.dot_dimension_numbers<[1], [0], [0], [1], [0, 0, 1, 1], [], []>} : vector<2x32xf32>, vector<32x8xf32>, vector<2x8xf32> -> vector<2x8xf32>
    %c0_1043 = arith.constant 0 : index
    %c0_1044 = arith.constant 0 : index
    %561 = vector.load %arg6[%c0_1043, %c0_1044] : memref<1x8xf32, #tpu.memory_space<vmem>>, vector<1x8xf32>
    %562 = vector.broadcast %561 : vector<1x8xf32> to vector<2x8xf32>
    %563 = arith.addf %560, %562 : vector<2x8xf32>
    %cst_1045 = arith.constant 5.000000e-01 : f32
    %564 = vector.broadcast %cst_1045 : f32 to vector<2x8xf32>
    %565 = arith.mulf %564, %563 : vector<2x8xf32>
    %cst_1046 = arith.constant 0.707106769 : f32
    %566 = vector.broadcast %cst_1046 : f32 to vector<2x8xf32>
    %567 = arith.mulf %563, %566 : vector<2x8xf32>
    %568 = math.erf %567 : vector<2x8xf32>
    %cst_1047 = arith.constant 1.000000e+00 : f32
    %569 = vector.broadcast %cst_1047 : f32 to vector<2x8xf32>
    %570 = arith.addf %569, %568 : vector<2x8xf32>
    %571 = arith.mulf %565, %570 : vector<2x8xf32>
    %c0_1048 = arith.constant 0 : index
    %c0_1049 = arith.constant 0 : index
    %572 = vector.load %arg7[%c0_1048, %c0_1049] : memref<8x96xf32, #tpu.memory_space<vmem>>, vector<8x96xf32>
    %cst_1050 = arith.constant dense<0.000000e+00> : vector<2x96xf32>
    %573 = tpu.matmul %571, %572, %cst_1050 {dimension_numbers = #tpu.dot_dimension_numbers<[1], [0], [0], [1], [0, 0, 1, 1], [], []>} : vector<2x8xf32>, vector<8x96xf32>, vector<2x96xf32> -> vector<2x96xf32>
    %c0_1051 = arith.constant 0 : index
    %c0_1052 = arith.constant 0 : index
    %574 = vector.load %arg8[%c0_1051, %c0_1052] : memref<1x96xf32, #tpu.memory_space<vmem>>, vector<1x96xf32>
    %575 = vector.broadcast %574 : vector<1x96xf32> to vector<2x96xf32>
    %576 = arith.addf %573, %575 : vector<2x96xf32>
    %577 = vector.extract_strided_slice %576 {offsets = [0, 0], sizes = [2, 32], strides = [1, 1]} : vector<2x96xf32> to vector<2x32xf32>
    %578 = vector.extract_strided_slice %576 {offsets = [0, 32], sizes = [2, 32], strides = [1, 1]} : vector<2x96xf32> to vector<2x32xf32>
    %579 = vector.extract_strided_slice %576 {offsets = [0, 64], sizes = [2, 32], strides = [1, 1]} : vector<2x96xf32> to vector<2x32xf32>
    %580 = arith.maximumf %577, %578 : vector<2x32xf32>
    %581 = arith.maximumf %580, %579 : vector<2x32xf32>
    %582 = arith.subf %577, %581 : vector<2x32xf32>
    %583 = math.exp %582 : vector<2x32xf32>
    %584 = arith.subf %578, %581 : vector<2x32xf32>
    %585 = math.exp %584 : vector<2x32xf32>
    %586 = arith.subf %579, %581 : vector<2x32xf32>
    %587 = math.exp %586 : vector<2x32xf32>
    %588 = arith.addf %583, %585 : vector<2x32xf32>
    %589 = arith.addf %588, %587 : vector<2x32xf32>
    %cst_1053 = arith.constant 1.000000e+00 : f32
    %590 = vector.broadcast %cst_1053 : f32 to vector<2x32xf32>
    %591 = arith.divf %590, %589 : vector<2x32xf32>
    %592 = arith.mulf %583, %591 : vector<2x32xf32>
    %593 = vector.shape_cast %592 : vector<2x32xf32> to vector<2x1x1x32xf32>
    %594 = arith.mulf %585, %591 : vector<2x32xf32>
    %595 = vector.shape_cast %594 : vector<2x32xf32> to vector<2x1x1x32xf32>
    %596 = arith.mulf %587, %591 : vector<2x32xf32>
    %597 = vector.shape_cast %596 : vector<2x32xf32> to vector<2x1x1x32xf32>
    %598 = vector.broadcast %593 : vector<2x1x1x32xf32> to vector<2x8x8x32xf32>
    %599 = arith.mulf %551, %598 : vector<2x8x8x32xf32>
    %600 = vector.broadcast %595 : vector<2x1x1x32xf32> to vector<2x8x8x32xf32>
    %601 = arith.mulf %552, %600 : vector<2x8x8x32xf32>
    %602 = arith.addf %599, %601 : vector<2x8x8x32xf32>
    %603 = vector.broadcast %597 : vector<2x1x1x32xf32> to vector<2x8x8x32xf32>
    %604 = arith.mulf %268, %603 : vector<2x8x8x32xf32>
    %605 = arith.addf %602, %604 : vector<2x8x8x32xf32>
    %606 = vector.shape_cast %605 : vector<2x8x8x32xf32> to vector<128x32xf32>
    %c0_1054 = arith.constant 0 : index
    %c0_1055 = arith.constant 0 : index
    %607 = vector.load %arg9[%c0_1054, %c0_1055] : memref<32x32xf32, #tpu.memory_space<vmem>>, vector<32x32xf32>
    %cst_1056 = arith.constant dense<0.000000e+00> : vector<128x32xf32>
    %608 = tpu.matmul %606, %607, %cst_1056 {dimension_numbers = #tpu.dot_dimension_numbers<[1], [0], [0], [1], [0, 0, 1, 1], [], []>} : vector<128x32xf32>, vector<32x32xf32>, vector<128x32xf32> -> vector<128x32xf32>
    %c0_1057 = arith.constant 0 : index
    %c0_1058 = arith.constant 0 : index
    %609 = vector.load %arg10[%c0_1057, %c0_1058] : memref<1x32xf32, #tpu.memory_space<vmem>>, vector<1x32xf32>
    %610 = vector.broadcast %609 : vector<1x32xf32> to vector<128x32xf32>
    %611 = arith.addf %608, %610 : vector<128x32xf32>
    %612 = vector.shape_cast %611 : vector<128x32xf32> to vector<2x8x8x32xf32>
    %c0_1059 = arith.constant 0 : index
    %c0_1060 = arith.constant 0 : index
    %c0_1061 = arith.constant 0 : index
    %c0_1062 = arith.constant 0 : index
    %613 = vector.load %arg11[%c0_1059, %c0_1060, %c0_1061, %c0_1062] : memref<2x8x8x32xf32, #tpu.memory_space<vmem>>, vector<2x8x8x32xf32>
    tpu.vector_store %arg11[%c0_1059, %c0_1060, %c0_1061, %c0_1062], %612 {strides = array<i32>} : memref<2x8x8x32xf32, #tpu.memory_space<vmem>>, vector<2x8x8x32xf32>,
    return
  }
  func.func @transform_0(%arg0: i32) -> (i32, i32, i32, i32) {
    %c0_i32 = arith.constant 0 : i32
    %c0_i32_0 = arith.constant 0 : i32
    %c0_i32_1 = arith.constant 0 : i32
    %c0_i32_2 = arith.constant 0 : i32
    return %arg0, %c0_i32, %c0_i32_0, %c0_i32_1 : i32, i32, i32, i32
  }
  func.func @transform_1(%arg0: i32) -> (i32, i32) {
    %c0_i32 = arith.constant 0 : i32
    %c0_i32_0 = arith.constant 0 : i32
    %c0_i32_1 = arith.constant 0 : i32
    return %c0_i32, %c0_i32_0 : i32, i32
  }
  func.func @transform_2(%arg0: i32) -> (i32, i32) {
    %c0_i32 = arith.constant 0 : i32
    %c0_i32_0 = arith.constant 0 : i32
    %c0_i32_1 = arith.constant 0 : i32
    return %c0_i32, %c0_i32_0 : i32, i32
  }
  func.func @transform_3(%arg0: i32) -> (i32, i32) {
    %c0_i32 = arith.constant 0 : i32
    %c0_i32_0 = arith.constant 0 : i32
    %c0_i32_1 = arith.constant 0 : i32
    return %c0_i32, %c0_i32_0 : i32, i32
  }
  func.func @transform_4(%arg0: i32) -> (i32, i32) {
    %c0_i32 = arith.constant 0 : i32
    %c0_i32_0 = arith.constant 0 : i32
    %c0_i32_1 = arith.constant 0 : i32
    return %c0_i32, %c0_i32_0 : i32, i32
  }
  func.func @transform_5(%arg0: i32) -> (i32, i32) {
    %c0_i32 = arith.constant 0 : i32
    %c0_i32_0 = arith.constant 0 : i32
    %c0_i32_1 = arith.constant 0 : i32
    return %c0_i32, %c0_i32_0 : i32, i32
  }
  func.func @transform_6(%arg0: i32) -> (i32, i32) {
    %c0_i32 = arith.constant 0 : i32
    %c0_i32_0 = arith.constant 0 : i32
    %c0_i32_1 = arith.constant 0 : i32
    return %c0_i32, %c0_i32_0 : i32, i32
  }
  func.func @transform_7(%arg0: i32) -> (i32, i32) {
    %c0_i32 = arith.constant 0 : i32
    %c0_i32_0 = arith.constant 0 : i32
    %c0_i32_1 = arith.constant 0 : i32
    return %c0_i32, %c0_i32_0 : i32, i32
  }
  func.func @transform_8(%arg0: i32) -> (i32, i32) {
    %c0_i32 = arith.constant 0 : i32
    %c0_i32_0 = arith.constant 0 : i32
    %c0_i32_1 = arith.constant 0 : i32
    return %c0_i32, %c0_i32_0 : i32, i32
  }
  func.func @transform_9(%arg0: i32) -> (i32, i32) {
    %c0_i32 = arith.constant 0 : i32
    %c0_i32_0 = arith.constant 0 : i32
    %c0_i32_1 = arith.constant 0 : i32
    return %c0_i32, %c0_i32_0 : i32, i32
  }
  func.func @transform_10(%arg0: i32) -> (i32, i32, i32, i32) {
    %c0_i32 = arith.constant 0 : i32
    %c0_i32_0 = arith.constant 0 : i32
    %c0_i32_1 = arith.constant 0 : i32
    %c0_i32_2 = arith.constant 0 : i32
    return %arg0, %c0_i32, %c0_i32_0, %c0_i32_1 : i32, i32, i32, i32
  }
}

</mosaic_0001>

<llo_original>
// kernel: tpu_custom_call.1
$region0: #{tpu_custom_call.1}
  #allocation0 [shape = 'u32[]', space=smem, size = 0x4, offset = 0x4, fixed_abs, tag = 'smem constant byte address 0x4 - core index']
  #allocation1 [shape = 'u32[72,128]{1,0:T(1,128)}', space=vmem, size = 0x9000, scoped, tag = 'internal scratch']
  #allocation2 [shape = 'f32[2,8,8,32]{3,2,1,0:T(8,128)}', space=vmem, size = 0x10000, scoped, tag = 'scratch operand']
  #allocation3 [shape = 'f32[2,8,8,32]{3,2,1,0:T(8,128)}', space=vmem, size = 0x10000, scoped, tag = 'scratch operand']
  #allocation4 [shape = 'f32[2,8,8,32]{3,2,1,0:T(8,128)}', space=vmem, size = 0x10000, scoped, tag = 'scratch operand']
  #allocation5 [shape = 'f32[2,8,8,32]{3,2,1,0:T(8,128)}', space=vmem, size = 0x10000, scoped, tag = 'scratch operand']
  %s0 = inlined_call_operand.hbm [shape: f32[2,8,8,32], index: 0, kind: input, shape index: {}]
  %s1 = inlined_call_operand.vmem [shape: f32[32,32], index: 1, kind: input, shape index: {}]
  %s2 = inlined_call_operand.hbm [shape: f32[32,32], index: 2, kind: input, shape index: {}]
  %s3 = inlined_call_operand.hbm [shape: f32[32,32], index: 3, kind: input, shape index: {}]
  %s4 = inlined_call_operand.vmem [shape: f32[32,8], index: 4, kind: input, shape index: {}]
  %s5 = inlined_call_operand.vmem [shape: f32[1,8], index: 5, kind: input, shape index: {}]
  %s6 = inlined_call_operand.vmem [shape: f32[8,96], index: 6, kind: input, shape index: {}]
  %s7 = inlined_call_operand.vmem [shape: f32[1,96], index: 7, kind: input, shape index: {}]
  %s8 = inlined_call_operand.hbm [shape: f32[32,32], index: 8, kind: input, shape index: {}]
  %s9 = inlined_call_operand.vmem [shape: f32[1,32], index: 9, kind: input, shape index: {}]
  %s10 = inlined_call_operand.hbm [shape: f32[2,8,8,32], index: 10, kind: output, shape index: {}]
  %s11 = sld [smem:[#allocation0]]
  $region66: #{tpu_custom_call.1} parent=0
    _
  %s13 = ssub.s32 1, %s11
  %s14 = scalar_select 0, %s13, %s11
  $region1: #{tpu_custom_call.1} parent=0
    #allocation6 [shape = 'u8[65536]{0}', space=vmem, size = 0x10000, scoped, tag = 'input window, operand 0, single buffered']
    #allocation7 [shape = 's32[1]{0}', space=sflag, size = 0x4, scoped, tag = 'scoped memory for tpu_custom_call.1']
    #allocation8 [shape = 's32[1]{0}', space=sflag, size = 0x4, scoped, tag = 'scoped memory for tpu_custom_call.1']
    #allocation9 [shape = 'u8[16384]{0}', space=vmem, size = 0x4000, scoped, tag = 'input window, operand 2, single buffered']
    #allocation10 [shape = 's32[1]{0}', space=sflag, size = 0x4, scoped, tag = 'scoped memory for tpu_custom_call.1']
    #allocation11 [shape = 'u8[16384]{0}', space=vmem, size = 0x4000, scoped, tag = 'input window, operand 3, single buffered']
    #allocation12 [shape = 'u8[16384]{0}', space=vmem, size = 0x4000, scoped, tag = 'input window, operand 8, single buffered']
    #allocation13 [shape = 's32[1]{0}', space=sflag, size = 0x4, scoped, tag = 'scoped memory for tpu_custom_call.1']
    #allocation14 [shape = 'u8[65536]{0}', space=vmem, size = 0x10000, scoped, tag = 'output window, operand 0, single buffered']
    %15 = vsyncpa [#allocation7], 0
    %16 = vsyncpa [#allocation10], 0
    %17 = vsyncpa [#allocation13], 0
    %18 = vsyncpa [#allocation8], 0
    // Predicated region
    $region2: #{tpu_custom_call.1} parent=1 // pred_check
      _
    $region3: #{tpu_custom_call.1} parent=1 // pred_check_branch
      %20 = sbr.rel (0) target = $region5
    $region4: #{tpu_custom_call.1} parent=1 // pred_region
      %22 = vsyncadd [#allocation7], 0
      %s23 = sshll.u32 %s0, 4
      %s24 = int_to_ptr.hbm [resolvable:$true] %s23
      %s25 = sshll.u32 [#allocation6], 4
      %s26 = int_to_ptr.vmem [resolvable:$true] %s25
      %31 = dma.hbm_to_vmem [thread:$0]  %s24, 2048, %s26, [#allocation7], 128, 128, 8
    $region5: #{tpu_custom_call.1} parent=1 // pred_fallthru
      _
    // Predicated region
    $region6: #{tpu_custom_call.1} parent=1 // pred_check
      _
    $region7: #{tpu_custom_call.1} parent=1 // pred_check_branch
      %33 = sbr.rel (0) target = $region9
    $region8: #{tpu_custom_call.1} parent=1 // pred_region
      _
    $region9: #{tpu_custom_call.1} parent=1 // pred_fallthru
      _
    // Predicated region
    $region10: #{tpu_custom_call.1} parent=1 // pred_check
      _
    $region11: #{tpu_custom_call.1} parent=1 // pred_check_branch
      %35 = sbr.rel (0) target = $region13
    $region12: #{tpu_custom_call.1} parent=1 // pred_region
      %37 = vsyncadd [#allocation10], 0
      %s38 = sshll.u32 %s2, 4
      %s39 = int_to_ptr.hbm [resolvable:$true] %s38
      %s40 = sshll.u32 [#allocation9], 4
      %s41 = int_to_ptr.vmem [resolvable:$true] %s40
      %46 = dma.hbm_to_vmem [thread:$0]  %s39, 512, %s41, [#allocation10], 128, 128, 8
    $region13: #{tpu_custom_call.1} parent=1 // pred_fallthru
      _
    // Predicated region
    $region14: #{tpu_custom_call.1} parent=1 // pred_check
      _
    $region15: #{tpu_custom_call.1} parent=1 // pred_check_branch
      %48 = sbr.rel (0) target = $region17
    $region16: #{tpu_custom_call.1} parent=1 // pred_region
      %50 = vsyncadd [#allocation10], 0
      %s51 = sshll.u32 %s3, 4
      %s52 = int_to_ptr.hbm [resolvable:$true] %s51
      %s53 = sshll.u32 [#allocation11], 4
      %s54 = int_to_ptr.vmem [resolvable:$true] %s53
      %59 = dma.hbm_to_vmem [thread:$0]  %s52, 512, %s54, [#allocation10], 128, 128, 8
    $region17: #{tpu_custom_call.1} parent=1 // pred_fallthru
      _
    // Predicated region
    $region18: #{tpu_custom_call.1} parent=1 // pred_check
      _
    $region19: #{tpu_custom_call.1} parent=1 // pred_check_branch
      %61 = sbr.rel (0) target = $region21
    $region20: #{tpu_custom_call.1} parent=1 // pred_region
      _
    $region21: #{tpu_custom_call.1} parent=1 // pred_fallthru
      _
    // Predicated region
    $region22: #{tpu_custom_call.1} parent=1 // pred_check
      _
    $region23: #{tpu_custom_call.1} parent=1 // pred_check_branch
      %63 = sbr.rel (0) target = $region25
    $region24: #{tpu_custom_call.1} parent=1 // pred_region
      _
    $region25: #{tpu_custom_call.1} parent=1 // pred_fallthru
      _
    // Predicated region
    $region26: #{tpu_custom_call.1} parent=1 // pred_check
      _
    $region27: #{tpu_custom_call.1} parent=1 // pred_check_branch
      %65 = sbr.rel (0) target = $region29
    $region28: #{tpu_custom_call.1} parent=1 // pred_region
      _
    $region29: #{tpu_custom_call.1} parent=1 // pred_fallthru
      _
    // Predicated region
    $region30: #{tpu_custom_call.1} parent=1 // pred_check
      _
    $region31: #{tpu_custom_call.1} parent=1 // pred_check_branch
      %67 = sbr.rel (0) target = $region33
    $region32: #{tpu_custom_call.1} parent=1 // pred_region
      _
    $region33: #{tpu_custom_call.1} parent=1 // pred_fallthru
      _
    // Predicated region
    $region34: #{tpu_custom_call.1} parent=1 // pred_check
      _
    $region35: #{tpu_custom_call.1} parent=1 // pred_check_branch
      %69 = sbr.rel (0) target = $region37
    $region36: #{tpu_custom_call.1} parent=1 // pred_region
      %71 = vsyncadd [#allocation13], 0
      %s72 = sshll.u32 %s8, 4
      %s73 = int_to_ptr.hbm [resolvable:$true] %s72
      %s74 = sshll.u32 [#allocation12], 4
      %s75 = int_to_ptr.vmem [resolvable:$true] %s74
      %80 = dma.hbm_to_vmem [thread:$0]  %s73, 512, %s75, [#allocation13], 128, 128, 8
    $region37: #{tpu_custom_call.1} parent=1 // pred_fallthru
      _
    // Predicated region
    $region38: #{tpu_custom_call.1} parent=1 // pred_check
      _
    $region39: #{tpu_custom_call.1} parent=1 // pred_check_branch
      %82 = sbr.rel (0) target = $region41
    $region40: #{tpu_custom_call.1} parent=1 // pred_region
      _
    $region41: #{tpu_custom_call.1} parent=1 // pred_fallthru
      _
    // Predicated region
    $region42: #{tpu_custom_call.1} parent=1 // pred_check
      _
    $region43: #{tpu_custom_call.1} parent=1 // pred_check_branch
      %84 = sbr.rel (0) target = $region45
    $region44: #{tpu_custom_call.1} parent=1 // pred_region
      %86 = dma.done [#allocation7], 2048
    $region45: #{tpu_custom_call.1} parent=1 // pred_fallthru
      _
    // Predicated region
    $region46: #{tpu_custom_call.1} parent=1 // pred_check
      _
    $region47: #{tpu_custom_call.1} parent=1 // pred_check_branch
      %88 = sbr.rel (0) target = $region49
    $region48: #{tpu_custom_call.1} parent=1 // pred_region
      %90 = dma.done [#allocation10], 512
    $region49: #{tpu_custom_call.1} parent=1 // pred_fallthru
      _
    // Predicated region
    $region50: #{tpu_custom_call.1} parent=1 // pred_check
      _
    $region51: #{tpu_custom_call.1} parent=1 // pred_check_branch
      %92 = sbr.rel (0) target = $region53
    $region52: #{tpu_custom_call.1} parent=1 // pred_region
      %94 = dma.done [#allocation10], 512
    $region53: #{tpu_custom_call.1} parent=1 // pred_fallthru
      _
    // Predicated region
    $region54: #{tpu_custom_call.1} parent=1 // pred_check
      _
    $region55: #{tpu_custom_call.1} parent=1 // pred_check_branch
      %96 = sbr.rel (0) target = $region57
    $region56: #{tpu_custom_call.1} parent=1 // pred_region
      %98 = dma.done [#allocation13], 512
    $region57: #{tpu_custom_call.1} parent=1 // pred_fallthru
      _
    %v99 = vld [vmem:[#allocation6] sm:$0xff]
    %v100 = vld [vmem:[#allocation6 + $0x8] sm:$0xff]
    %v101 = vld [vmem:[#allocation6 + $0x10] sm:$0xff]
    %v102 = vld [vmem:[#allocation6 + $0x18] sm:$0xff]
    %v103 = vld [vmem:[#allocation6 + $0x20] sm:$0xff]
    %v104 = vld [vmem:[#allocation6 + $0x28] sm:$0xff]
    %v105 = vld [vmem:[#allocation6 + $0x30] sm:$0xff]
    %v106 = vld [vmem:[#allocation6 + $0x38] sm:$0xff]
    %v107 = vld [vmem:[#allocation6 + $0x40] sm:$0xff]
    %v108 = vld [vmem:[#allocation6 + $0x48] sm:$0xff]
    %v109 = vld [vmem:[#allocation6 + $0x50] sm:$0xff]
    %v110 = vld [vmem:[#allocation6 + $0x58] sm:$0xff]
    %v111 = vld [vmem:[#allocation6 + $0x60] sm:$0xff]
    %v112 = vld [vmem:[#allocation6 + $0x68] sm:$0xff]
    %v113 = vld [vmem:[#allocation6 + $0x70] sm:$0xff]
    %v114 = vld [vmem:[#allocation6 + $0x78] sm:$0xff]
    %vm115 = vcmask 31744
    %116 = vst.msk [vmem:[#allocation2] sm:$0xff] %vm115, %v99
    %117 = vst.msk [vmem:[#allocation2 + $0x40] sm:$0xff] %vm115, %v107
    %120 = vrot.lane.b32.xlu0 %v100, 4
    %v121 = vpop.permute.xlu0 %120
    %122 = vrot.lane.b32.xlu0 %v108, 4
    %v123 = vpop.permute.xlu0 %122
    %vm126 = vcmask 64544
    %127 = vst.msk [vmem:[#allocation2] sm:$0xff] %vm126, %v121
    %128 = vst.msk [vmem:[#allocation2 + $0x40] sm:$0xff] %vm126, %v123
    %131 = vrot.lane.b32.xlu0 %v101, 8
    %v132 = vpop.permute.xlu0 %131
    %133 = vrot.lane.b32.xlu0 %v109, 8
    %v134 = vpop.permute.xlu0 %133
    %vm137 = vcmask 97344
    %138 = vst.msk [vmem:[#allocation2] sm:$0xff] %vm137, %v132
    %139 = vst.msk [vmem:[#allocation2 + $0x40] sm:$0xff] %vm137, %v134
    %142 = vrot.lane.b32.xlu0 %v102, 12
    %v143 = vpop.permute.xlu0 %142
    %144 = vrot.lane.b32.xlu0 %v110, 12
    %v145 = vpop.permute.xlu0 %144
    %vm148 = vcmask 130144
    %149 = vst.msk [vmem:[#allocation2] sm:$0xff] %vm148, %v143
    %150 = vst.msk [vmem:[#allocation2 + $0x40] sm:$0xff] %vm148, %v145
    %153 = vrot.lane.b32.xlu0 %v103, 16
    %v154 = vpop.permute.xlu0 %153
    %155 = vrot.lane.b32.xlu0 %v111, 16
    %v156 = vpop.permute.xlu0 %155
    %vm159 = vcmask 162944
    %160 = vst.msk [vmem:[#allocation2] sm:$0xff] %vm159, %v154
    %161 = vst.msk [vmem:[#allocation2 + $0x40] sm:$0xff] %vm159, %v156
    %164 = vrot.lane.b32.xlu0 %v104, 20
    %v165 = vpop.permute.xlu0 %164
    %166 = vrot.lane.b32.xlu0 %v112, 20
    %v167 = vpop.permute.xlu0 %166
    %vm170 = vcmask 195744
    %171 = vst.msk [vmem:[#allocation2] sm:$0xff] %vm170, %v165
    %172 = vst.msk [vmem:[#allocation2 + $0x40] sm:$0xff] %vm170, %v167
    %175 = vrot.lane.b32.xlu0 %v105, 24
    %v176 = vpop.permute.xlu0 %175
    %177 = vrot.lane.b32.xlu0 %v113, 24
    %v178 = vpop.permute.xlu0 %177
    %vm181 = vcmask 228544
    %182 = vst.msk [vmem:[#allocation2] sm:$0xff] %vm181, %v176
    %183 = vst.msk [vmem:[#allocation2 + $0x40] sm:$0xff] %vm181, %v178
    %186 = vrot.lane.b32.xlu0 %v106, 28
    %v187 = vpop.permute.xlu0 %186
    %188 = vrot.lane.b32.xlu0 %v114, 28
    %v189 = vpop.permute.xlu0 %188
    %vm192 = vcmask 261344
    %193 = vst.msk [vmem:[#allocation2] sm:$0xff] %vm192, %v187
    %194 = vst.msk [vmem:[#allocation2 + $0x40] sm:$0xff] %vm192, %v189
    %vm195 = vcmask 24576
    %196 = vst.msk [vmem:[#allocation3] sm:$0x1] %vm195, %v99
    %197 = vst.msk [vmem:[#allocation3 + $0x8] sm:$0x1] %vm195, %v100
    %198 = vst.msk [vmem:[#allocation3 + $0x10] sm:$0x1] %vm195, %v101
    %199 = vst.msk [vmem:[#allocation3 + $0x18] sm:$0x1] %vm195, %v102
    %200 = vst.msk [vmem:[#allocation3 + $0x20] sm:$0x1] %vm195, %v103
    %201 = vst.msk [vmem:[#allocation3 + $0x28] sm:$0x1] %vm195, %v104
    %202 = vst.msk [vmem:[#allocation3 + $0x30] sm:$0x1] %vm195, %v105
    %203 = vst.msk [vmem:[#allocation3 + $0x38] sm:$0x1] %vm195, %v106
    %204 = vst.msk [vmem:[#allocation3 + $0x40] sm:$0x1] %vm195, %v107
    %205 = vst.msk [vmem:[#allocation3 + $0x48] sm:$0x1] %vm195, %v108
    %206 = vst.msk [vmem:[#allocation3 + $0x50] sm:$0x1] %vm195, %v109
    %207 = vst.msk [vmem:[#allocation3 + $0x58] sm:$0x1] %vm195, %v110
    %208 = vst.msk [vmem:[#allocation3 + $0x60] sm:$0x1] %vm195, %v111
    %209 = vst.msk [vmem:[#allocation3 + $0x68] sm:$0x1] %vm195, %v112
    %210 = vst.msk [vmem:[#allocation3 + $0x70] sm:$0x1] %vm195, %v113
    %211 = vst.msk [vmem:[#allocation3 + $0x78] sm:$0x1] %vm195, %v114
    %214 = vrot.lane.b32.xlu0 %v99, 4
    %v215 = vpop.permute.xlu0 %214
    %216 = vrot.lane.b32.xlu0 %v101, 4
    %v217 = vpop.permute.xlu0 %216
    %218 = vrot.lane.b32.xlu0 %v102, 4
    %v219 = vpop.permute.xlu0 %218
    %220 = vrot.lane.b32.xlu0 %v103, 4
    %v221 = vpop.permute.xlu0 %220
    %222 = vrot.lane.b32.xlu0 %v104, 4
    %v223 = vpop.permute.xlu0 %222
    %224 = vrot.lane.b32.xlu0 %v105, 4
    %v225 = vpop.permute.xlu0 %224
    %226 = vrot.lane.b32.xlu0 %v106, 4
    %v227 = vpop.permute.xlu0 %226
    %228 = vrot.lane.b32.xlu0 %v107, 4
    %v229 = vpop.permute.xlu0 %228
    %230 = vrot.lane.b32.xlu0 %v109, 4
    %v231 = vpop.permute.xlu0 %230
    %232 = vrot.lane.b32.xlu0 %v110, 4
    %v233 = vpop.permute.xlu0 %232
    %234 = vrot.lane.b32.xlu0 %v111, 4
    %v235 = vpop.permute.xlu0 %234
    %236 = vrot.lane.b32.xlu0 %v112, 4
    %v237 = vpop.permute.xlu0 %236
    %238 = vrot.lane.b32.xlu0 %v113, 4
    %v239 = vpop.permute.xlu0 %238
    %240 = vrot.lane.b32.xlu0 %v114, 4
    %v241 = vpop.permute.xlu0 %240
    %vm256 = vcmask 58401
    %257 = vst.msk [vmem:[#allocation3 - $0x1] sm:$0x2] %vm256, %v215
    %258 = vst.msk [vmem:[#allocation3 + $0x7] sm:$0x2] %vm256, %v121
    %259 = vst.msk [vmem:[#allocation3 + $0xf] sm:$0x2] %vm256, %v217
    %260 = vst.msk [vmem:[#allocation3 + $0x17] sm:$0x2] %vm256, %v219
    %261 = vst.msk [vmem:[#allocation3 + $0x1f] sm:$0x2] %vm256, %v221
    %262 = vst.msk [vmem:[#allocation3 + $0x27] sm:$0x2] %vm256, %v223
    %263 = vst.msk [vmem:[#allocation3 + $0x2f] sm:$0x2] %vm256, %v225
    %264 = vst.msk [vmem:[#allocation3 + $0x37] sm:$0x2] %vm256, %v227
    %265 = vst.msk [vmem:[#allocation3 + $0x3f] sm:$0x2] %vm256, %v229
    %266 = vst.msk [vmem:[#allocation3 + $0x47] sm:$0x2] %vm256, %v123
    %267 = vst.msk [vmem:[#allocation3 + $0x4f] sm:$0x2] %vm256, %v231
    %268 = vst.msk [vmem:[#allocation3 + $0x57] sm:$0x2] %vm256, %v233
    %269 = vst.msk [vmem:[#allocation3 + $0x5f] sm:$0x2] %vm256, %v235
    %270 = vst.msk [vmem:[#allocation3 + $0x67] sm:$0x2] %vm256, %v237
    %271 = vst.msk [vmem:[#allocation3 + $0x6f] sm:$0x2] %vm256, %v239
    %272 = vst.msk [vmem:[#allocation3 + $0x77] sm:$0x2] %vm256, %v241
    %273 = vrot.lane.b32.xlu0 %v99, 8
    %v274 = vpop.permute.xlu0 %273
    %275 = vrot.lane.b32.xlu0 %v100, 8
    %v276 = vpop.permute.xlu0 %275
    %277 = vrot.lane.b32.xlu0 %v102, 8
    %v278 = vpop.permute.xlu0 %277
    %279 = vrot.lane.b32.xlu0 %v103, 8
    %v280 = vpop.permute.xlu0 %279
    %281 = vrot.lane.b32.xlu0 %v104, 8
    %v282 = vpop.permute.xlu0 %281
    %283 = vrot.lane.b32.xlu0 %v105, 8
    %v284 = vpop.permute.xlu0 %283
    %285 = vrot.lane.b32.xlu0 %v106, 8
    %v286 = vpop.permute.xlu0 %285
    %287 = vrot.lane.b32.xlu0 %v107, 8
    %v288 = vpop.permute.xlu0 %287
    %289 = vrot.lane.b32.xlu0 %v108, 8
    %v290 = vpop.permute.xlu0 %289
    %291 = vrot.lane.b32.xlu0 %v110, 8
    %v292 = vpop.permute.xlu0 %291
    %293 = vrot.lane.b32.xlu0 %v111, 8
    %v294 = vpop.permute.xlu0 %293
    %295 = vrot.lane.b32.xlu0 %v112, 8
    %v296 = vpop.permute.xlu0 %295
    %297 = vrot.lane.b32.xlu0 %v113, 8
    %v298 = vpop.permute.xlu0 %297
    %299 = vrot.lane.b32.xlu0 %v114, 8
    %v300 = vpop.permute.xlu0 %299
    %vm315 = vcmask 92226
    %316 = vst.msk [vmem:[#allocation3 - $0x2] sm:$0x4] %vm315, %v274
    %317 = vst.msk [vmem:[#allocation3 + $0x6] sm:$0x4] %vm315, %v276
    %318 = vst.msk [vmem:[#allocation3 + $0xe] sm:$0x4] %vm315, %v132
    %319 = vst.msk [vmem:[#allocation3 + $0x16] sm:$0x4] %vm315, %v278
    %320 = vst.msk [vmem:[#allocation3 + $0x1e] sm:$0x4] %vm315, %v280
    %321 = vst.msk [vmem:[#allocation3 + $0x26] sm:$0x4] %vm315, %v282
    %322 = vst.msk [vmem:[#allocation3 + $0x2e] sm:$0x4] %vm315, %v284
    %323 = vst.msk [vmem:[#allocation3 + $0x36] sm:$0x4] %vm315, %v286
    %324 = vst.msk [vmem:[#allocation3 + $0x3e] sm:$0x4] %vm315, %v288
    %325 = vst.msk [vmem:[#allocation3 + $0x46] sm:$0x4] %vm315, %v290
    %326 = vst.msk [vmem:[#allocation3 + $0x4e] sm:$0x4] %vm315, %v134
    %327 = vst.msk [vmem:[#allocation3 + $0x56] sm:$0x4] %vm315, %v292
    %328 = vst.msk [vmem:[#allocation3 + $0x5e] sm:$0x4] %vm315, %v294
    %329 = vst.msk [vmem:[#allocation3 + $0x66] sm:$0x4] %vm315, %v296
    %330 = vst.msk [vmem:[#allocation3 + $0x6e] sm:$0x4] %vm315, %v298
    %331 = vst.msk [vmem:[#allocation3 + $0x76] sm:$0x4] %vm315, %v300
    %332 = vrot.lane.b32.xlu0 %v99, 12
    %v333 = vpop.permute.xlu0 %332
    %334 = vrot.lane.b32.xlu0 %v100, 12
    %v335 = vpop.permute.xlu0 %334
    %336 = vrot.lane.b32.xlu0 %v101, 12
    %v337 = vpop.permute.xlu0 %336
    %338 = vrot.lane.b32.xlu0 %v103, 12
    %v339 = vpop.permute.xlu0 %338
    %340 = vrot.lane.b32.xlu0 %v104, 12
    %v341 = vpop.permute.xlu0 %340
    %342 = vrot.lane.b32.xlu0 %v105, 12
    %v343 = vpop.permute.xlu0 %342
    %344 = vrot.lane.b32.xlu0 %v106, 12
    %v345 = vpop.permute.xlu0 %344
    %346 = vrot.lane.b32.xlu0 %v107, 12
    %v347 = vpop.permute.xlu0 %346
    %348 = vrot.lane.b32.xlu0 %v108, 12
    %v349 = vpop.permute.xlu0 %348
    %350 = vrot.lane.b32.xlu0 %v109, 12
    %v351 = vpop.permute.xlu0 %350
    %352 = vrot.lane.b32.xlu0 %v111, 12
    %v353 = vpop.permute.xlu0 %352
    %354 = vrot.lane.b32.xlu0 %v112, 12
    %v355 = vpop.permute.xlu0 %354
    %356 = vrot.lane.b32.xlu0 %v113, 12
    %v357 = vpop.permute.xlu0 %356
    %358 = vrot.lane.b32.xlu0 %v114, 12
    %v359 = vpop.permute.xlu0 %358
    %vm374 = vcmask 126051
    %375 = vst.msk [vmem:[#allocation3 - $0x3] sm:$0x8] %vm374, %v333
    %376 = vst.msk [vmem:[#allocation3 + $0x5] sm:$0x8] %vm374, %v335
    %377 = vst.msk [vmem:[#allocation3 + $0xd] sm:$0x8] %vm374, %v337
    %378 = vst.msk [vmem:[#allocation3 + $0x15] sm:$0x8] %vm374, %v143
    %379 = vst.msk [vmem:[#allocation3 + $0x1d] sm:$0x8] %vm374, %v339
    %380 = vst.msk [vmem:[#allocation3 + $0x25] sm:$0x8] %vm374, %v341
    %381 = vst.msk [vmem:[#allocation3 + $0x2d] sm:$0x8] %vm374, %v343
    %382 = vst.msk [vmem:[#allocation3 + $0x35] sm:$0x8] %vm374, %v345
    %383 = vst.msk [vmem:[#allocation3 + $0x3d] sm:$0x8] %vm374, %v347
    %384 = vst.msk [vmem:[#allocation3 + $0x45] sm:$0x8] %vm374, %v349
    %385 = vst.msk [vmem:[#allocation3 + $0x4d] sm:$0x8] %vm374, %v351
    %386 = vst.msk [vmem:[#allocation3 + $0x55] sm:$0x8] %vm374, %v145
    %387 = vst.msk [vmem:[#allocation3 + $0x5d] sm:$0x8] %vm374, %v353
    %388 = vst.msk [vmem:[#allocation3 + $0x65] sm:$0x8] %vm374, %v355
    %389 = vst.msk [vmem:[#allocation3 + $0x6d] sm:$0x8] %vm374, %v357
    %390 = vst.msk [vmem:[#allocation3 + $0x75] sm:$0x8] %vm374, %v359
    %391 = vrot.lane.b32.xlu0 %v99, 16
    %v392 = vpop.permute.xlu0 %391
    %393 = vrot.lane.b32.xlu0 %v100, 16
    %v394 = vpop.permute.xlu0 %393
    %395 = vrot.lane.b32.xlu0 %v101, 16
    %v396 = vpop.permute.xlu0 %395
    %397 = vrot.lane.b32.xlu0 %v102, 16
    %v398 = vpop.permute.xlu0 %397
    %399 = vrot.lane.b32.xlu0 %v104, 16
    %v400 = vpop.permute.xlu0 %399
    %401 = vrot.lane.b32.xlu0 %v105, 16
    %v402 = vpop.permute.xlu0 %401
    %403 = vrot.lane.b32.xlu0 %v106, 16
    %v404 = vpop.permute.xlu0 %403
    %405 = vrot.lane.b32.xlu0 %v107, 16
    %v406 = vpop.permute.xlu0 %405
    %407 = vrot.lane.b32.xlu0 %v108, 16
    %v408 = vpop.permute.xlu0 %407
    %409 = vrot.lane.b32.xlu0 %v109, 16
    %v410 = vpop.permute.xlu0 %409
    %411 = vrot.lane.b32.xlu0 %v110, 16
    %v412 = vpop.permute.xlu0 %411
    %413 = vrot.lane.b32.xlu0 %v112, 16
    %v414 = vpop.permute.xlu0 %413
    %415 = vrot.lane.b32.xlu0 %v113, 16
    %v416 = vpop.permute.xlu0 %415
    %417 = vrot.lane.b32.xlu0 %v114, 16
    %v418 = vpop.permute.xlu0 %417
    %vm433 = vcmask 159876
    %434 = vst.msk [vmem:[#allocation3 - $0x4] sm:$0x10] %vm433, %v392
    %435 = vst.msk [vmem:[#allocation3 + $0x4] sm:$0x10] %vm433, %v394
    %436 = vst.msk [vmem:[#allocation3 + $0xc] sm:$0x10] %vm433, %v396
    %437 = vst.msk [vmem:[#allocation3 + $0x14] sm:$0x10] %vm433, %v398
    %438 = vst.msk [vmem:[#allocation3 + $0x1c] sm:$0x10] %vm433, %v154
    %439 = vst.msk [vmem:[#allocation3 + $0x24] sm:$0x10] %vm433, %v400
    %440 = vst.msk [vmem:[#allocation3 + $0x2c] sm:$0x10] %vm433, %v402
    %441 = vst.msk [vmem:[#allocation3 + $0x34] sm:$0x10] %vm433, %v404
    %442 = vst.msk [vmem:[#allocation3 + $0x3c] sm:$0x10] %vm433, %v406
    %443 = vst.msk [vmem:[#allocation3 + $0x44] sm:$0x10] %vm433, %v408
    %444 = vst.msk [vmem:[#allocation3 + $0x4c] sm:$0x10] %vm433, %v410
    %445 = vst.msk [vmem:[#allocation3 + $0x54] sm:$0x10] %vm433, %v412
    %446 = vst.msk [vmem:[#allocation3 + $0x5c] sm:$0x10] %vm433, %v156
    %447 = vst.msk [vmem:[#allocation3 + $0x64] sm:$0x10] %vm433, %v414
    %448 = vst.msk [vmem:[#allocation3 + $0x6c] sm:$0x10] %vm433, %v416
    %449 = vst.msk [vmem:[#allocation3 + $0x74] sm:$0x10] %vm433, %v418
    %450 = vrot.lane.b32.xlu0 %v99, 20
    %v451 = vpop.permute.xlu0 %450
    %452 = vrot.lane.b32.xlu0 %v100, 20
    %v453 = vpop.permute.xlu0 %452
    %454 = vrot.lane.b32.xlu0 %v101, 20
    %v455 = vpop.permute.xlu0 %454
    %456 = vrot.lane.b32.xlu0 %v102, 20
    %v457 = vpop.permute.xlu0 %456
    %458 = vrot.lane.b32.xlu0 %v103, 20
    %v459 = vpop.permute.xlu0 %458
    %460 = vrot.lane.b32.xlu0 %v105, 20
    %v461 = vpop.permute.xlu0 %460
    %462 = vrot.lane.b32.xlu0 %v106, 20
    %v463 = vpop.permute.xlu0 %462
    %464 = vrot.lane.b32.xlu0 %v107, 20
    %v465 = vpop.permute.xlu0 %464
    %466 = vrot.lane.b32.xlu0 %v108, 20
    %v467 = vpop.permute.xlu0 %466
    %468 = vrot.lane.b32.xlu0 %v109, 20
    %v469 = vpop.permute.xlu0 %468
    %470 = vrot.lane.b32.xlu0 %v110, 20
    %v471 = vpop.permute.xlu0 %470
    %472 = vrot.lane.b32.xlu0 %v111, 20
    %v473 = vpop.permute.xlu0 %472
    %474 = vrot.lane.b32.xlu0 %v113, 20
    %v475 = vpop.permute.xlu0 %474
    %476 = vrot.lane.b32.xlu0 %v114, 20
    %v477 = vpop.permute.xlu0 %476
    %vm492 = vcmask 193701
    %493 = vst.msk [vmem:[#allocation3 - $0x5] sm:$0x20] %vm492, %v451
    %494 = vst.msk [vmem:[#allocation3 + $0x3] sm:$0x20] %vm492, %v453
    %495 = vst.msk [vmem:[#allocation3 + $0xb] sm:$0x20] %vm492, %v455
    %496 = vst.msk [vmem:[#allocation3 + $0x13] sm:$0x20] %vm492, %v457
    %497 = vst.msk [vmem:[#allocation3 + $0x1b] sm:$0x20] %vm492, %v459
    %498 = vst.msk [vmem:[#allocation3 + $0x23] sm:$0x20] %vm492, %v165
    %499 = vst.msk [vmem:[#allocation3 + $0x2b] sm:$0x20] %vm492, %v461
    %500 = vst.msk [vmem:[#allocation3 + $0x33] sm:$0x20] %vm492, %v463
    %501 = vst.msk [vmem:[#allocation3 + $0x3b] sm:$0x20] %vm492, %v465
    %502 = vst.msk [vmem:[#allocation3 + $0x43] sm:$0x20] %vm492, %v467
    %503 = vst.msk [vmem:[#allocation3 + $0x4b] sm:$0x20] %vm492, %v469
    %504 = vst.msk [vmem:[#allocation3 + $0x53] sm:$0x20] %vm492, %v471
    %505 = vst.msk [vmem:[#allocation3 + $0x5b] sm:$0x20] %vm492, %v473
    %506 = vst.msk [vmem:[#allocation3 + $0x63] sm:$0x20] %vm492, %v167
    %507 = vst.msk [vmem:[#allocation3 + $0x6b] sm:$0x20] %vm492, %v475
    %508 = vst.msk [vmem:[#allocation3 + $0x73] sm:$0x20] %vm492, %v477
    %509 = vrot.lane.b32.xlu0 %v99, 24
    %v510 = vpop.permute.xlu0 %509
    %511 = vrot.lane.b32.xlu0 %v100, 24
    %v512 = vpop.permute.xlu0 %511
    %513 = vrot.lane.b32.xlu0 %v101, 24
    %v514 = vpop.permute.xlu0 %513
    %515 = vrot.lane.b32.xlu0 %v102, 24
    %v516 = vpop.permute.xlu0 %515
    %517 = vrot.lane.b32.xlu0 %v103, 24
    %v518 = vpop.permute.xlu0 %517
    %519 = vrot.lane.b32.xlu0 %v104, 24
    %v520 = vpop.permute.xlu0 %519
    %521 = vrot.lane.b32.xlu0 %v106, 24
    %v522 = vpop.permute.xlu0 %521
    %523 = vrot.lane.b32.xlu0 %v107, 24
    %v524 = vpop.permute.xlu0 %523
    %525 = vrot.lane.b32.xlu0 %v108, 24
    %v526 = vpop.permute.xlu0 %525
    %527 = vrot.lane.b32.xlu0 %v109, 24
    %v528 = vpop.permute.xlu0 %527
    %529 = vrot.lane.b32.xlu0 %v110, 24
    %v530 = vpop.permute.xlu0 %529
    %531 = vrot.lane.b32.xlu0 %v111, 24
    %v532 = vpop.permute.xlu0 %531
    %533 = vrot.lane.b32.xlu0 %v112, 24
    %v534 = vpop.permute.xlu0 %533
    %535 = vrot.lane.b32.xlu0 %v114, 24
    %v536 = vpop.permute.xlu0 %535
    %vm551 = vcmask 227526
    %552 = vst.msk [vmem:[#allocation3 - $0x6] sm:$0x40] %vm551, %v510
    %553 = vst.msk [vmem:[#allocation3 + $0x2] sm:$0x40] %vm551, %v512
    %554 = vst.msk [vmem:[#allocation3 + $0xa] sm:$0x40] %vm551, %v514
    %555 = vst.msk [vmem:[#allocation3 + $0x12] sm:$0x40] %vm551, %v516
    %556 = vst.msk [vmem:[#allocation3 + $0x1a] sm:$0x40] %vm551, %v518
    %557 = vst.msk [vmem:[#allocation3 + $0x22] sm:$0x40] %vm551, %v520
    %558 = vst.msk [vmem:[#allocation3 + $0x2a] sm:$0x40] %vm551, %v176
    %559 = vst.msk [vmem:[#allocation3 + $0x32] sm:$0x40] %vm551, %v522
    %560 = vst.msk [vmem:[#allocation3 + $0x3a] sm:$0x40] %vm551, %v524
    %561 = vst.msk [vmem:[#allocation3 + $0x42] sm:$0x40] %vm551, %v526
    %562 = vst.msk [vmem:[#allocation3 + $0x4a] sm:$0x40] %vm551, %v528
    %563 = vst.msk [vmem:[#allocation3 + $0x52] sm:$0x40] %vm551, %v530
    %564 = vst.msk [vmem:[#allocation3 + $0x5a] sm:$0x40] %vm551, %v532
    %565 = vst.msk [vmem:[#allocation3 + $0x62] sm:$0x40] %vm551, %v534
    %566 = vst.msk [vmem:[#allocation3 + $0x6a] sm:$0x40] %vm551, %v178
    %567 = vst.msk [vmem:[#allocation3 + $0x72] sm:$0x40] %vm551, %v536
    %568 = vrot.lane.b32.xlu0 %v99, 28
    %v569 = vpop.permute.xlu0 %568
    %570 = vrot.lane.b32.xlu0 %v100, 28
    %v571 = vpop.permute.xlu0 %570
    %572 = vrot.lane.b32.xlu0 %v101, 28
    %v573 = vpop.permute.xlu0 %572
    %574 = vrot.lane.b32.xlu0 %v102, 28
    %v575 = vpop.permute.xlu0 %574
    %576 = vrot.lane.b32.xlu0 %v103, 28
    %v577 = vpop.permute.xlu0 %576
    %578 = vrot.lane.b32.xlu0 %v104, 28
    %v579 = vpop.permute.xlu0 %578
    %580 = vrot.lane.b32.xlu0 %v105, 28
    %v581 = vpop.permute.xlu0 %580
    %582 = vrot.lane.b32.xlu0 %v107, 28
    %v583 = vpop.permute.xlu0 %582
    %584 = vrot.lane.b32.xlu0 %v108, 28
    %v585 = vpop.permute.xlu0 %584
    %586 = vrot.lane.b32.xlu0 %v109, 28
    %v587 = vpop.permute.xlu0 %586
    %588 = vrot.lane.b32.xlu0 %v110, 28
    %v589 = vpop.permute.xlu0 %588
    %590 = vrot.lane.b32.xlu0 %v111, 28
    %v591 = vpop.permute.xlu0 %590
    %592 = vrot.lane.b32.xlu0 %v112, 28
    %v593 = vpop.permute.xlu0 %592
    %594 = vrot.lane.b32.xlu0 %v113, 28
    %v595 = vpop.permute.xlu0 %594
    %vm610 = vcmask 261351
    %611 = vst.msk [vmem:[#allocation3 - $0x7] sm:$0x80] %vm610, %v569
    %612 = vst.msk [vmem:[#allocation3 + $0x1] sm:$0x80] %vm610, %v571
    %613 = vst.msk [vmem:[#allocation3 + $0x9] sm:$0x80] %vm610, %v573
    %614 = vst.msk [vmem:[#allocation3 + $0x11] sm:$0x80] %vm610, %v575
    %615 = vst.msk [vmem:[#allocation3 + $0x19] sm:$0x80] %vm610, %v577
    %616 = vst.msk [vmem:[#allocation3 + $0x21] sm:$0x80] %vm610, %v579
    %617 = vst.msk [vmem:[#allocation3 + $0x29] sm:$0x80] %vm610, %v581
    %618 = vst.msk [vmem:[#allocation3 + $0x31] sm:$0x80] %vm610, %v187
    %619 = vst.msk [vmem:[#allocation3 + $0x39] sm:$0x80] %vm610, %v583
    %620 = vst.msk [vmem:[#allocation3 + $0x41] sm:$0x80] %vm610, %v585
    %621 = vst.msk [vmem:[#allocation3 + $0x49] sm:$0x80] %vm610, %v587
    %622 = vst.msk [vmem:[#allocation3 + $0x51] sm:$0x80] %vm610, %v589
    %623 = vst.msk [vmem:[#allocation3 + $0x59] sm:$0x80] %vm610, %v591
    %624 = vst.msk [vmem:[#allocation3 + $0x61] sm:$0x80] %vm610, %v593
    %625 = vst.msk [vmem:[#allocation3 + $0x69] sm:$0x80] %vm610, %v595
    %626 = vst.msk [vmem:[#allocation3 + $0x71] sm:$0x80] %vm610, %v189
    %627 = vrot.lane.b32.xlu0 %v99, 124
    %v628 = vpop.permute.xlu0 %627
    %629 = vrot.lane.b32.xlu0 %v107, 124
    %v630 = vpop.permute.xlu0 %629
    %s633 = scalar_lea.vmem [#allocation2], 8
    %634 = vst.msk [vmem:[%s633] sm:$0xff] %vm115, %v628
    %635 = vst.msk [vmem:[%s633 + $0x40] sm:$0xff] %vm115, %v630
    %636 = vst.msk [vmem:[%s633] sm:$0xff] %vm126, %v100
    %637 = vst.msk [vmem:[%s633 + $0x40] sm:$0xff] %vm126, %v108
    %638 = vst.msk [vmem:[%s633] sm:$0xff] %vm137, %v217
    %639 = vst.msk [vmem:[%s633 + $0x40] sm:$0xff] %vm137, %v231
    %640 = vst.msk [vmem:[%s633] sm:$0xff] %vm148, %v278
    %641 = vst.msk [vmem:[%s633 + $0x40] sm:$0xff] %vm148, %v292
    %642 = vst.msk [vmem:[%s633] sm:$0xff] %vm159, %v339
    %643 = vst.msk [vmem:[%s633 + $0x40] sm:$0xff] %vm159, %v353
    %644 = vst.msk [vmem:[%s633] sm:$0xff] %vm170, %v400
    %645 = vst.msk [vmem:[%s633 + $0x40] sm:$0xff] %vm170, %v414
    %646 = vst.msk [vmem:[%s633] sm:$0xff] %vm181, %v461
    %647 = vst.msk [vmem:[%s633 + $0x40] sm:$0xff] %vm181, %v475
    %648 = vst.msk [vmem:[%s633] sm:$0xff] %vm192, %v522
    %649 = vst.msk [vmem:[%s633 + $0x40] sm:$0xff] %vm192, %v536
    %650 = vrot.lane.b32.xlu0 %v100, 124
    %v651 = vpop.permute.xlu0 %650
    %652 = vrot.lane.b32.xlu0 %v101, 124
    %v653 = vpop.permute.xlu0 %652
    %654 = vrot.lane.b32.xlu0 %v102, 124
    %v655 = vpop.permute.xlu0 %654
    %656 = vrot.lane.b32.xlu0 %v103, 124
    %v657 = vpop.permute.xlu0 %656
    %658 = vrot.lane.b32.xlu0 %v104, 124
    %v659 = vpop.permute.xlu0 %658
    %660 = vrot.lane.b32.xlu0 %v105, 124
    %v661 = vpop.permute.xlu0 %660
    %662 = vrot.lane.b32.xlu0 %v106, 124
    %v663 = vpop.permute.xlu0 %662
    %664 = vrot.lane.b32.xlu0 %v108, 124
    %v665 = vpop.permute.xlu0 %664
    %666 = vrot.lane.b32.xlu0 %v109, 124
    %v667 = vpop.permute.xlu0 %666
    %668 = vrot.lane.b32.xlu0 %v110, 124
    %v669 = vpop.permute.xlu0 %668
    %670 = vrot.lane.b32.xlu0 %v111, 124
    %v671 = vpop.permute.xlu0 %670
    %672 = vrot.lane.b32.xlu0 %v112, 124
    %v673 = vpop.permute.xlu0 %672
    %674 = vrot.lane.b32.xlu0 %v113, 124
    %v675 = vpop.permute.xlu0 %674
    %676 = vrot.lane.b32.xlu0 %v114, 124
    %v677 = vpop.permute.xlu0 %676
    %692 = vst.msk [vmem:[#allocation3 + $0x1] sm:$0x1] %vm195, %v628
    %693 = vst.msk [vmem:[#allocation3 + $0x9] sm:$0x1] %vm195, %v651
    %694 = vst.msk [vmem:[#allocation3 + $0x11] sm:$0x1] %vm195, %v653
    %695 = vst.msk [vmem:[#allocation3 + $0x19] sm:$0x1] %vm195, %v655
    %696 = vst.msk [vmem:[#allocation3 + $0x21] sm:$0x1] %vm195, %v657
    %697 = vst.msk [vmem:[#allocation3 + $0x29] sm:$0x1] %vm195, %v659
    %698 = vst.msk [vmem:[#allocation3 + $0x31] sm:$0x1] %vm195, %v661
    %699 = vst.msk [vmem:[#allocation3 + $0x39] sm:$0x1] %vm195, %v663
    %700 = vst.msk [vmem:[#allocation3 + $0x41] sm:$0x1] %vm195, %v630
    %701 = vst.msk [vmem:[#allocation3 + $0x49] sm:$0x1] %vm195, %v665
    %702 = vst.msk [vmem:[#allocation3 + $0x51] sm:$0x1] %vm195, %v667
    %703 = vst.msk [vmem:[#allocation3 + $0x59] sm:$0x1] %vm195, %v669
    %704 = vst.msk [vmem:[#allocation3 + $0x61] sm:$0x1] %vm195, %v671
    %705 = vst.msk [vmem:[#allocation3 + $0x69] sm:$0x1] %vm195, %v673
    %706 = vst.msk [vmem:[#allocation3 + $0x71] sm:$0x1] %vm195, %v675
    %707 = vst.msk [vmem:[#allocation3 + $0x79] sm:$0x1] %vm195, %v677
    %708 = vst.msk [vmem:[#allocation3] sm:$0x2] %vm256, %v99
    %709 = vst.msk [vmem:[#allocation3 + $0x8] sm:$0x2] %vm256, %v100
    %710 = vst.msk [vmem:[#allocation3 + $0x10] sm:$0x2] %vm256, %v101
    %711 = vst.msk [vmem:[#allocation3 + $0x18] sm:$0x2] %vm256, %v102
    %712 = vst.msk [vmem:[#allocation3 + $0x20] sm:$0x2] %vm256, %v103
    %713 = vst.msk [vmem:[#allocation3 + $0x28] sm:$0x2] %vm256, %v104
    %714 = vst.msk [vmem:[#allocation3 + $0x30] sm:$0x2] %vm256, %v105
    %715 = vst.msk [vmem:[#allocation3 + $0x38] sm:$0x2] %vm256, %v106
    %716 = vst.msk [vmem:[#allocation3 + $0x40] sm:$0x2] %vm256, %v107
    %717 = vst.msk [vmem:[#allocation3 + $0x48] sm:$0x2] %vm256, %v108
    %718 = vst.msk [vmem:[#allocation3 + $0x50] sm:$0x2] %vm256, %v109
    %719 = vst.msk [vmem:[#allocation3 + $0x58] sm:$0x2] %vm256, %v110
    %720 = vst.msk [vmem:[#allocation3 + $0x60] sm:$0x2] %vm256, %v111
    %721 = vst.msk [vmem:[#allocation3 + $0x68] sm:$0x2] %vm256, %v112
    %722 = vst.msk [vmem:[#allocation3 + $0x70] sm:$0x2] %vm256, %v113
    %723 = vst.msk [vmem:[#allocation3 + $0x78] sm:$0x2] %vm256, %v114
    %724 = vst.msk [vmem:[#allocation3 - $0x1] sm:$0x4] %vm315, %v215
    %725 = vst.msk [vmem:[#allocation3 + $0x7] sm:$0x4] %vm315, %v121
    %726 = vst.msk [vmem:[#allocation3 + $0xf] sm:$0x4] %vm315, %v217
    %727 = vst.msk [vmem:[#allocation3 + $0x17] sm:$0x4] %vm315, %v219
    %728 = vst.msk [vmem:[#allocation3 + $0x1f] sm:$0x4] %vm315, %v221
    %729 = vst.msk [vmem:[#allocation3 + $0x27] sm:$0x4] %vm315, %v223
    %730 = vst.msk [vmem:[#allocation3 + $0x2f] sm:$0x4] %vm315, %v225
    %731 = vst.msk [vmem:[#allocation3 + $0x37] sm:$0x4] %vm315, %v227
    %732 = vst.msk [vmem:[#allocation3 + $0x3f] sm:$0x4] %vm315, %v229
    %733 = vst.msk [vmem:[#allocation3 + $0x47] sm:$0x4] %vm315, %v123
    %734 = vst.msk [vmem:[#allocation3 + $0x4f] sm:$0x4] %vm315, %v231
    %735 = vst.msk [vmem:[#allocation3 + $0x57] sm:$0x4] %vm315, %v233
    %736 = vst.msk [vmem:[#allocation3 + $0x5f] sm:$0x4] %vm315, %v235
    %737 = vst.msk [vmem:[#allocation3 + $0x67] sm:$0x4] %vm315, %v237
    %738 = vst.msk [vmem:[#allocation3 + $0x6f] sm:$0x4] %vm315, %v239
    %739 = vst.msk [vmem:[#allocation3 + $0x77] sm:$0x4] %vm315, %v241
    %740 = vst.msk [vmem:[#allocation3 - $0x2] sm:$0x8] %vm374, %v274
    %741 = vst.msk [vmem:[#allocation3 + $0x6] sm:$0x8] %vm374, %v276
    %742 = vst.msk [vmem:[#allocation3 + $0xe] sm:$0x8] %vm374, %v132
    %743 = vst.msk [vmem:[#allocation3 + $0x16] sm:$0x8] %vm374, %v278
    %744 = vst.msk [vmem:[#allocation3 + $0x1e] sm:$0x8] %vm374, %v280
    %745 = vst.msk [vmem:[#allocation3 + $0x26] sm:$0x8] %vm374, %v282
    %746 = vst.msk [vmem:[#allocation3 + $0x2e] sm:$0x8] %vm374, %v284
    %747 = vst.msk [vmem:[#allocation3 + $0x36] sm:$0x8] %vm374, %v286
    %748 = vst.msk [vmem:[#allocation3 + $0x3e] sm:$0x8] %vm374, %v288
    %749 = vst.msk [vmem:[#allocation3 + $0x46] sm:$0x8] %vm374, %v290
    %750 = vst.msk [vmem:[#allocation3 + $0x4e] sm:$0x8] %vm374, %v134
    %751 = vst.msk [vmem:[#allocation3 + $0x56] sm:$0x8] %vm374, %v292
    %752 = vst.msk [vmem:[#allocation3 + $0x5e] sm:$0x8] %vm374, %v294
    %753 = vst.msk [vmem:[#allocation3 + $0x66] sm:$0x8] %vm374, %v296
    %754 = vst.msk [vmem:[#allocation3 + $0x6e] sm:$0x8] %vm374, %v298
    %755 = vst.msk [vmem:[#allocation3 + $0x76] sm:$0x8] %vm374, %v300
    %756 = vst.msk [vmem:[#allocation3 - $0x3] sm:$0x10] %vm433, %v333
    %757 = vst.msk [vmem:[#allocation3 + $0x5] sm:$0x10] %vm433, %v335
    %758 = vst.msk [vmem:[#allocation3 + $0xd] sm:$0x10] %vm433, %v337
    %759 = vst.msk [vmem:[#allocation3 + $0x15] sm:$0x10] %vm433, %v143
    %760 = vst.msk [vmem:[#allocation3 + $0x1d] sm:$0x10] %vm433, %v339
    %761 = vst.msk [vmem:[#allocation3 + $0x25] sm:$0x10] %vm433, %v341
    %762 = vst.msk [vmem:[#allocation3 + $0x2d] sm:$0x10] %vm433, %v343
    %763 = vst.msk [vmem:[#allocation3 + $0x35] sm:$0x10] %vm433, %v345
    %764 = vst.msk [vmem:[#allocation3 + $0x3d] sm:$0x10] %vm433, %v347
    %765 = vst.msk [vmem:[#allocation3 + $0x45] sm:$0x10] %vm433, %v349
    %766 = vst.msk [vmem:[#allocation3 + $0x4d] sm:$0x10] %vm433, %v351
    %767 = vst.msk [vmem:[#allocation3 + $0x55] sm:$0x10] %vm433, %v145
    %768 = vst.msk [vmem:[#allocation3 + $0x5d] sm:$0x10] %vm433, %v353
    %769 = vst.msk [vmem:[#allocation3 + $0x65] sm:$0x10] %vm433, %v355
    %770 = vst.msk [vmem:[#allocation3 + $0x6d] sm:$0x10] %vm433, %v357
    %771 = vst.msk [vmem:[#allocation3 + $0x75] sm:$0x10] %vm433, %v359
    %772 = vst.msk [vmem:[#allocation3 - $0x4] sm:$0x20] %vm492, %v392
    %773 = vst.msk [vmem:[#allocation3 + $0x4] sm:$0x20] %vm492, %v394
    %774 = vst.msk [vmem:[#allocation3 + $0xc] sm:$0x20] %vm492, %v396
    %775 = vst.msk [vmem:[#allocation3 + $0x14] sm:$0x20] %vm492, %v398
    %776 = vst.msk [vmem:[#allocation3 + $0x1c] sm:$0x20] %vm492, %v154
    %777 = vst.msk [vmem:[#allocation3 + $0x24] sm:$0x20] %vm492, %v400
    %778 = vst.msk [vmem:[#allocation3 + $0x2c] sm:$0x20] %vm492, %v402
    %779 = vst.msk [vmem:[#allocation3 + $0x34] sm:$0x20] %vm492, %v404
    %780 = vst.msk [vmem:[#allocation3 + $0x3c] sm:$0x20] %vm492, %v406
    %781 = vst.msk [vmem:[#allocation3 + $0x44] sm:$0x20] %vm492, %v408
    %782 = vst.msk [vmem:[#allocation3 + $0x4c] sm:$0x20] %vm492, %v410
    %783 = vst.msk [vmem:[#allocation3 + $0x54] sm:$0x20] %vm492, %v412
    %784 = vst.msk [vmem:[#allocation3 + $0x5c] sm:$0x20] %vm492, %v156
    %785 = vst.msk [vmem:[#allocation3 + $0x64] sm:$0x20] %vm492, %v414
    %786 = vst.msk [vmem:[#allocation3 + $0x6c] sm:$0x20] %vm492, %v416
    %787 = vst.msk [vmem:[#allocation3 + $0x74] sm:$0x20] %vm492, %v418
    %788 = vst.msk [vmem:[#allocation3 - $0x5] sm:$0x40] %vm551, %v451
    %789 = vst.msk [vmem:[#allocation3 + $0x3] sm:$0x40] %vm551, %v453
    %790 = vst.msk [vmem:[#allocation3 + $0xb] sm:$0x40] %vm551, %v455
    %791 = vst.msk [vmem:[#allocation3 + $0x13] sm:$0x40] %vm551, %v457
    %792 = vst.msk [vmem:[#allocation3 + $0x1b] sm:$0x40] %vm551, %v459
    %793 = vst.msk [vmem:[#allocation3 + $0x23] sm:$0x40] %vm551, %v165
    %794 = vst.msk [vmem:[#allocation3 + $0x2b] sm:$0x40] %vm551, %v461
    %795 = vst.msk [vmem:[#allocation3 + $0x33] sm:$0x40] %vm551, %v463
    %796 = vst.msk [vmem:[#allocation3 + $0x3b] sm:$0x40] %vm551, %v465
    %797 = vst.msk [vmem:[#allocation3 + $0x43] sm:$0x40] %vm551, %v467
    %798 = vst.msk [vmem:[#allocation3 + $0x4b] sm:$0x40] %vm551, %v469
    %799 = vst.msk [vmem:[#allocation3 + $0x53] sm:$0x40] %vm551, %v471
    %800 = vst.msk [vmem:[#allocation3 + $0x5b] sm:$0x40] %vm551, %v473
    %801 = vst.msk [vmem:[#allocation3 + $0x63] sm:$0x40] %vm551, %v167
    %802 = vst.msk [vmem:[#allocation3 + $0x6b] sm:$0x40] %vm551, %v475
    %803 = vst.msk [vmem:[#allocation3 + $0x73] sm:$0x40] %vm551, %v477
    %804 = vst.msk [vmem:[#allocation3 - $0x6] sm:$0x80] %vm610, %v510
    %805 = vst.msk [vmem:[#allocation3 + $0x2] sm:$0x80] %vm610, %v512
    %806 = vst.msk [vmem:[#allocation3 + $0xa] sm:$0x80] %vm610, %v514
    %807 = vst.msk [vmem:[#allocation3 + $0x12] sm:$0x80] %vm610, %v516
    %808 = vst.msk [vmem:[#allocation3 + $0x1a] sm:$0x80] %vm610, %v518
    %809 = vst.msk [vmem:[#allocation3 + $0x22] sm:$0x80] %vm610, %v520
    %810 = vst.msk [vmem:[#allocation3 + $0x2a] sm:$0x80] %vm610, %v176
    %811 = vst.msk [vmem:[#allocation3 + $0x32] sm:$0x80] %vm610, %v522
    %812 = vst.msk [vmem:[#allocation3 + $0x3a] sm:$0x80] %vm610, %v524
    %813 = vst.msk [vmem:[#allocation3 + $0x42] sm:$0x80] %vm610, %v526
    %814 = vst.msk [vmem:[#allocation3 + $0x4a] sm:$0x80] %vm610, %v528
    %815 = vst.msk [vmem:[#allocation3 + $0x52] sm:$0x80] %vm610, %v530
    %816 = vst.msk [vmem:[#allocation3 + $0x5a] sm:$0x80] %vm610, %v532
    %817 = vst.msk [vmem:[#allocation3 + $0x62] sm:$0x80] %vm610, %v534
    %818 = vst.msk [vmem:[#allocation3 + $0x6a] sm:$0x80] %vm610, %v178
    %819 = vst.msk [vmem:[#allocation3 + $0x72] sm:$0x80] %vm610, %v536
    %820 = vrot.lane.b32.xlu0 %v99, 120
    %v821 = vpop.permute.xlu0 %820
    %822 = vrot.lane.b32.xlu0 %v107, 120
    %v823 = vpop.permute.xlu0 %822
    %s826 = scalar_lea.vmem [#allocation2], 16
    %827 = vst.msk [vmem:[%s826] sm:$0xff] %vm115, %v821
    %828 = vst.msk [vmem:[%s826 + $0x40] sm:$0xff] %vm115, %v823
    %829 = vst.msk [vmem:[%s826] sm:$0xff] %vm126, %v651
    %830 = vst.msk [vmem:[%s826 + $0x40] sm:$0xff] %vm126, %v665
    %831 = vst.msk [vmem:[%s826] sm:$0xff] %vm137, %v101
    %832 = vst.msk [vmem:[%s826 + $0x40] sm:$0xff] %vm137, %v109
    %833 = vst.msk [vmem:[%s826] sm:$0xff] %vm148, %v219
    %834 = vst.msk [vmem:[%s826 + $0x40] sm:$0xff] %vm148, %v233
    %835 = vst.msk [vmem:[%s826] sm:$0xff] %vm159, %v280
    %836 = vst.msk [vmem:[%s826 + $0x40] sm:$0xff] %vm159, %v294
    %837 = vst.msk [vmem:[%s826] sm:$0xff] %vm170, %v341
    %838 = vst.msk [vmem:[%s826 + $0x40] sm:$0xff] %vm170, %v355
    %839 = vst.msk [vmem:[%s826] sm:$0xff] %vm181, %v402
    %840 = vst.msk [vmem:[%s826 + $0x40] sm:$0xff] %vm181, %v416
    %841 = vst.msk [vmem:[%s826] sm:$0xff] %vm192, %v463
    %842 = vst.msk [vmem:[%s826 + $0x40] sm:$0xff] %vm192, %v477
    %843 = vrot.lane.b32.xlu0 %v100, 120
    %v844 = vpop.permute.xlu0 %843
    %845 = vrot.lane.b32.xlu0 %v101, 120
    %v846 = vpop.permute.xlu0 %845
    %847 = vrot.lane.b32.xlu0 %v102, 120
    %v848 = vpop.permute.xlu0 %847
    %849 = vrot.lane.b32.xlu0 %v103, 120
    %v850 = vpop.permute.xlu0 %849
    %851 = vrot.lane.b32.xlu0 %v104, 120
    %v852 = vpop.permute.xlu0 %851
    %853 = vrot.lane.b32.xlu0 %v105, 120
    %v854 = vpop.permute.xlu0 %853
    %855 = vrot.lane.b32.xlu0 %v106, 120
    %v856 = vpop.permute.xlu0 %855
    %857 = vrot.lane.b32.xlu0 %v108, 120
    %v858 = vpop.permute.xlu0 %857
    %859 = vrot.lane.b32.xlu0 %v109, 120
    %v860 = vpop.permute.xlu0 %859
    %861 = vrot.lane.b32.xlu0 %v110, 120
    %v862 = vpop.permute.xlu0 %861
    %863 = vrot.lane.b32.xlu0 %v111, 120
    %v864 = vpop.permute.xlu0 %863
    %865 = vrot.lane.b32.xlu0 %v112, 120
    %v866 = vpop.permute.xlu0 %865
    %867 = vrot.lane.b32.xlu0 %v113, 120
    %v868 = vpop.permute.xlu0 %867
    %869 = vrot.lane.b32.xlu0 %v114, 120
    %v870 = vpop.permute.xlu0 %869
    %885 = vst.msk [vmem:[#allocation3 + $0x2] sm:$0x1] %vm195, %v821
    %886 = vst.msk [vmem:[#allocation3 + $0xa] sm:$0x1] %vm195, %v844
    %887 = vst.msk [vmem:[#allocation3 + $0x12] sm:$0x1] %vm195, %v846
    %888 = vst.msk [vmem:[#allocation3 + $0x1a] sm:$0x1] %vm195, %v848
    %889 = vst.msk [vmem:[#allocation3 + $0x22] sm:$0x1] %vm195, %v850
    %890 = vst.msk [vmem:[#allocation3 + $0x2a] sm:$0x1] %vm195, %v852
    %891 = vst.msk [vmem:[#allocation3 + $0x32] sm:$0x1] %vm195, %v854
    %892 = vst.msk [vmem:[#allocation3 + $0x3a] sm:$0x1] %vm195, %v856
    %893 = vst.msk [vmem:[#allocation3 + $0x42] sm:$0x1] %vm195, %v823
    %894 = vst.msk [vmem:[#allocation3 + $0x4a] sm:$0x1] %vm195, %v858
    %895 = vst.msk [vmem:[#allocation3 + $0x52] sm:$0x1] %vm195, %v860
    %896 = vst.msk [vmem:[#allocation3 + $0x5a] sm:$0x1] %vm195, %v862
    %897 = vst.msk [vmem:[#allocation3 + $0x62] sm:$0x1] %vm195, %v864
    %898 = vst.msk [vmem:[#allocation3 + $0x6a] sm:$0x1] %vm195, %v866
    %899 = vst.msk [vmem:[#allocation3 + $0x72] sm:$0x1] %vm195, %v868
    %900 = vst.msk [vmem:[#allocation3 + $0x7a] sm:$0x1] %vm195, %v870
    %901 = vst.msk [vmem:[#allocation3 + $0x1] sm:$0x2] %vm256, %v628
    %902 = vst.msk [vmem:[#allocation3 + $0x9] sm:$0x2] %vm256, %v651
    %903 = vst.msk [vmem:[#allocation3 + $0x11] sm:$0x2] %vm256, %v653
    %904 = vst.msk [vmem:[#allocation3 + $0x19] sm:$0x2] %vm256, %v655
    %905 = vst.msk [vmem:[#allocation3 + $0x21] sm:$0x2] %vm256, %v657
    %906 = vst.msk [vmem:[#allocation3 + $0x29] sm:$0x2] %vm256, %v659
    %907 = vst.msk [vmem:[#allocation3 + $0x31] sm:$0x2] %vm256, %v661
    %908 = vst.msk [vmem:[#allocation3 + $0x39] sm:$0x2] %vm256, %v663
    %909 = vst.msk [vmem:[#allocation3 + $0x41] sm:$0x2] %vm256, %v630
    %910 = vst.msk [vmem:[#allocation3 + $0x49] sm:$0x2] %vm256, %v665
    %911 = vst.msk [vmem:[#allocation3 + $0x51] sm:$0x2] %vm256, %v667
    %912 = vst.msk [vmem:[#allocation3 + $0x59] sm:$0x2] %vm256, %v669
    %913 = vst.msk [vmem:[#allocation3 + $0x61] sm:$0x2] %vm256, %v671
    %914 = vst.msk [vmem:[#allocation3 + $0x69] sm:$0x2] %vm256, %v673
    %915 = vst.msk [vmem:[#allocation3 + $0x71] sm:$0x2] %vm256, %v675
    %916 = vst.msk [vmem:[#allocation3 + $0x79] sm:$0x2] %vm256, %v677
    %917 = vst.msk [vmem:[#allocation3] sm:$0x4] %vm315, %v99
    %918 = vst.msk [vmem:[#allocation3 + $0x8] sm:$0x4] %vm315, %v100
    %919 = vst.msk [vmem:[#allocation3 + $0x10] sm:$0x4] %vm315, %v101
    %920 = vst.msk [vmem:[#allocation3 + $0x18] sm:$0x4] %vm315, %v102
    %921 = vst.msk [vmem:[#allocation3 + $0x20] sm:$0x4] %vm315, %v103
    %922 = vst.msk [vmem:[#allocation3 + $0x28] sm:$0x4] %vm315, %v104
    %923 = vst.msk [vmem:[#allocation3 + $0x30] sm:$0x4] %vm315, %v105
    %924 = vst.msk [vmem:[#allocation3 + $0x38] sm:$0x4] %vm315, %v106
    %925 = vst.msk [vmem:[#allocation3 + $0x40] sm:$0x4] %vm315, %v107
    %926 = vst.msk [vmem:[#allocation3 + $0x48] sm:$0x4] %vm315, %v108
    %927 = vst.msk [vmem:[#allocation3 + $0x50] sm:$0x4] %vm315, %v109
    %928 = vst.msk [vmem:[#allocation3 + $0x58] sm:$0x4] %vm315, %v110
    %929 = vst.msk [vmem:[#allocation3 + $0x60] sm:$0x4] %vm315, %v111
    %930 = vst.msk [vmem:[#allocation3 + $0x68] sm:$0x4] %vm315, %v112
    %931 = vst.msk [vmem:[#allocation3 + $0x70] sm:$0x4] %vm315, %v113
    %932 = vst.msk [vmem:[#allocation3 + $0x78] sm:$0x4] %vm315, %v114
    %933 = vst.msk [vmem:[#allocation3 - $0x1] sm:$0x8] %vm374, %v215
    %934 = vst.msk [vmem:[#allocation3 + $0x7] sm:$0x8] %vm374, %v121
    %935 = vst.msk [vmem:[#allocation3 + $0xf] sm:$0x8] %vm374, %v217
    %936 = vst.msk [vmem:[#allocation3 + $0x17] sm:$0x8] %vm374, %v219
    %937 = vst.msk [vmem:[#allocation3 + $0x1f] sm:$0x8] %vm374, %v221
    %938 = vst.msk [vmem:[#allocation3 + $0x27] sm:$0x8] %vm374, %v223
    %939 = vst.msk [vmem:[#allocation3 + $0x2f] sm:$0x8] %vm374, %v225
    %940 = vst.msk [vmem:[#allocation3 + $0x37] sm:$0x8] %vm374, %v227
    %941 = vst.msk [vmem:[#allocation3 + $0x3f] sm:$0x8] %vm374, %v229
    %942 = vst.msk [vmem:[#allocation3 + $0x47] sm:$0x8] %vm374, %v123
    %943 = vst.msk [vmem:[#allocation3 + $0x4f] sm:$0x8] %vm374, %v231
    %944 = vst.msk [vmem:[#allocation3 + $0x57] sm:$0x8] %vm374, %v233
    %945 = vst.msk [vmem:[#allocation3 + $0x5f] sm:$0x8] %vm374, %v235
    %946 = vst.msk [vmem:[#allocation3 + $0x67] sm:$0x8] %vm374, %v237
    %947 = vst.msk [vmem:[#allocation3 + $0x6f] sm:$0x8] %vm374, %v239
    %948 = vst.msk [vmem:[#allocation3 + $0x77] sm:$0x8] %vm374, %v241
    %949 = vst.msk [vmem:[#allocation3 - $0x2] sm:$0x10] %vm433, %v274
    %950 = vst.msk [vmem:[#allocation3 + $0x6] sm:$0x10] %vm433, %v276
    %951 = vst.msk [vmem:[#allocation3 + $0xe] sm:$0x10] %vm433, %v132
    %952 = vst.msk [vmem:[#allocation3 + $0x16] sm:$0x10] %vm433, %v278
    %953 = vst.msk [vmem:[#allocation3 + $0x1e] sm:$0x10] %vm433, %v280
    %954 = vst.msk [vmem:[#allocation3 + $0x26] sm:$0x10] %vm433, %v282
    %955 = vst.msk [vmem:[#allocation3 + $0x2e] sm:$0x10] %vm433, %v284
    %956 = vst.msk [vmem:[#allocation3 + $0x36] sm:$0x10] %vm433, %v286
    %957 = vst.msk [vmem:[#allocation3 + $0x3e] sm:$0x10] %vm433, %v288
    %958 = vst.msk [vmem:[#allocation3 + $0x46] sm:$0x10] %vm433, %v290
    %959 = vst.msk [vmem:[#allocation3 + $0x4e] sm:$0x10] %vm433, %v134
    %960 = vst.msk [vmem:[#allocation3 + $0x56] sm:$0x10] %vm433, %v292
    %961 = vst.msk [vmem:[#allocation3 + $0x5e] sm:$0x10] %vm433, %v294
    %962 = vst.msk [vmem:[#allocation3 + $0x66] sm:$0x10] %vm433, %v296
    %963 = vst.msk [vmem:[#allocation3 + $0x6e] sm:$0x10] %vm433, %v298
    %964 = vst.msk [vmem:[#allocation3 + $0x76] sm:$0x10] %vm433, %v300
    %965 = vst.msk [vmem:[#allocation3 - $0x3] sm:$0x20] %vm492, %v333
    %966 = vst.msk [vmem:[#allocation3 + $0x5] sm:$0x20] %vm492, %v335
    %967 = vst.msk [vmem:[#allocation3 + $0xd] sm:$0x20] %vm492, %v337
    %968 = vst.msk [vmem:[#allocation3 + $0x15] sm:$0x20] %vm492, %v143
    %969 = vst.msk [vmem:[#allocation3 + $0x1d] sm:$0x20] %vm492, %v339
    %970 = vst.msk [vmem:[#allocation3 + $0x25] sm:$0x20] %vm492, %v341
    %971 = vst.msk [vmem:[#allocation3 + $0x2d] sm:$0x20] %vm492, %v343
    %972 = vst.msk [vmem:[#allocation3 + $0x35] sm:$0x20] %vm492, %v345
    %973 = vst.msk [vmem:[#allocation3 + $0x3d] sm:$0x20] %vm492, %v347
    %974 = vst.msk [vmem:[#allocation3 + $0x45] sm:$0x20] %vm492, %v349
    %975 = vst.msk [vmem:[#allocation3 + $0x4d] sm:$0x20] %vm492, %v351
    %976 = vst.msk [vmem:[#allocation3 + $0x55] sm:$0x20] %vm492, %v145
    %977 = vst.msk [vmem:[#allocation3 + $0x5d] sm:$0x20] %vm492, %v353
    %978 = vst.msk [vmem:[#allocation3 + $0x65] sm:$0x20] %vm492, %v355
    %979 = vst.msk [vmem:[#allocation3 + $0x6d] sm:$0x20] %vm492, %v357
    %980 = vst.msk [vmem:[#allocation3 + $0x75] sm:$0x20] %vm492, %v359
    %981 = vst.msk [vmem:[#allocation3 - $0x4] sm:$0x40] %vm551, %v392
    %982 = vst.msk [vmem:[#allocation3 + $0x4] sm:$0x40] %vm551, %v394
    %983 = vst.msk [vmem:[#allocation3 + $0xc] sm:$0x40] %vm551, %v396
    %984 = vst.msk [vmem:[#allocation3 + $0x14] sm:$0x40] %vm551, %v398
    %985 = vst.msk [vmem:[#allocation3 + $0x1c] sm:$0x40] %vm551, %v154
    %986 = vst.msk [vmem:[#allocation3 + $0x24] sm:$0x40] %vm551, %v400
    %987 = vst.msk [vmem:[#allocation3 + $0x2c] sm:$0x40] %vm551, %v402
    %988 = vst.msk [vmem:[#allocation3 + $0x34] sm:$0x40] %vm551, %v404
    %989 = vst.msk [vmem:[#allocation3 + $0x3c] sm:$0x40] %vm551, %v406
    %990 = vst.msk [vmem:[#allocation3 + $0x44] sm:$0x40] %vm551, %v408
    %991 = vst.msk [vmem:[#allocation3 + $0x4c] sm:$0x40] %vm551, %v410
    %992 = vst.msk [vmem:[#allocation3 + $0x54] sm:$0x40] %vm551, %v412
    %993 = vst.msk [vmem:[#allocation3 + $0x5c] sm:$0x40] %vm551, %v156
    %994 = vst.msk [vmem:[#allocation3 + $0x64] sm:$0x40] %vm551, %v414
    %995 = vst.msk [vmem:[#allocation3 + $0x6c] sm:$0x40] %vm551, %v416
    %996 = vst.msk [vmem:[#allocation3 + $0x74] sm:$0x40] %vm551, %v418
    %997 = vst.msk [vmem:[#allocation3 - $0x5] sm:$0x80] %vm610, %v451
    %998 = vst.msk [vmem:[#allocation3 + $0x3] sm:$0x80] %vm610, %v453
    %999 = vst.msk [vmem:[#allocation3 + $0xb] sm:$0x80] %vm610, %v455
    %1000 = vst.msk [vmem:[#allocation3 + $0x13] sm:$0x80] %vm610, %v457
    %1001 = vst.msk [vmem:[#allocation3 + $0x1b] sm:$0x80] %vm610, %v459
    %1002 = vst.msk [vmem:[#allocation3 + $0x23] sm:$0x80] %vm610, %v165
    %1003 = vst.msk [vmem:[#allocation3 + $0x2b] sm:$0x80] %vm610, %v461
    %1004 = vst.msk [vmem:[#allocation3 + $0x33] sm:$0x80] %vm610, %v463
    %1005 = vst.msk [vmem:[#allocation3 + $0x3b] sm:$0x80] %vm610, %v465
    %1006 = vst.msk [vmem:[#allocation3 + $0x43] sm:$0x80] %vm610, %v467
    %1007 = vst.msk [vmem:[#allocation3 + $0x4b] sm:$0x80] %vm610, %v469
    %1008 = vst.msk [vmem:[#allocation3 + $0x53] sm:$0x80] %vm610, %v471
    %1009 = vst.msk [vmem:[#allocation3 + $0x5b] sm:$0x80] %vm610, %v473
    %1010 = vst.msk [vmem:[#allocation3 + $0x63] sm:$0x80] %vm610, %v167
    %1011 = vst.msk [vmem:[#allocation3 + $0x6b] sm:$0x80] %vm610, %v475
    %1012 = vst.msk [vmem:[#allocation3 + $0x73] sm:$0x80] %vm610, %v477
    %1013 = vrot.lane.b32.xlu0 %v99, 116
    %v1014 = vpop.permute.xlu0 %1013
    %1015 = vrot.lane.b32.xlu0 %v107, 116
    %v1016 = vpop.permute.xlu0 %1015
    %s1019 = scalar_lea.vmem [#allocation2], 24
    %1020 = vst.msk [vmem:[%s1019] sm:$0xff] %vm115, %v1014
    %1021 = vst.msk [vmem:[%s1019 + $0x40] sm:$0xff] %vm115, %v1016
    %1022 = vst.msk [vmem:[%s1019] sm:$0xff] %vm126, %v844
    %1023 = vst.msk [vmem:[%s1019 + $0x40] sm:$0xff] %vm126, %v858
    %1024 = vst.msk [vmem:[%s1019] sm:$0xff] %vm137, %v653
    %1025 = vst.msk [vmem:[%s1019 + $0x40] sm:$0xff] %vm137, %v667
    %1026 = vst.msk [vmem:[%s1019] sm:$0xff] %vm148, %v102
    %1027 = vst.msk [vmem:[%s1019 + $0x40] sm:$0xff] %vm148, %v110
    %1028 = vst.msk [vmem:[%s1019] sm:$0xff] %vm159, %v221
    %1029 = vst.msk [vmem:[%s1019 + $0x40] sm:$0xff] %vm159, %v235
    %1030 = vst.msk [vmem:[%s1019] sm:$0xff] %vm170, %v282
    %1031 = vst.msk [vmem:[%s1019 + $0x40] sm:$0xff] %vm170, %v296
    %1032 = vst.msk [vmem:[%s1019] sm:$0xff] %vm181, %v343
    %1033 = vst.msk [vmem:[%s1019 + $0x40] sm:$0xff] %vm181, %v357
    %1034 = vst.msk [vmem:[%s1019] sm:$0xff] %vm192, %v404
    %1035 = vst.msk [vmem:[%s1019 + $0x40] sm:$0xff] %vm192, %v418
    %1036 = vrot.lane.b32.xlu0 %v100, 116
    %v1037 = vpop.permute.xlu0 %1036
    %1038 = vrot.lane.b32.xlu0 %v101, 116
    %v1039 = vpop.permute.xlu0 %1038
    %1040 = vrot.lane.b32.xlu0 %v102, 116
    %v1041 = vpop.permute.xlu0 %1040
    %1042 = vrot.lane.b32.xlu0 %v103, 116
    %v1043 = vpop.permute.xlu0 %1042
    %1044 = vrot.lane.b32.xlu0 %v104, 116
    %v1045 = vpop.permute.xlu0 %1044
    %1046 = vrot.lane.b32.xlu0 %v105, 116
    %v1047 = vpop.permute.xlu0 %1046
    %1048 = vrot.lane.b32.xlu0 %v106, 116
    %v1049 = vpop.permute.xlu0 %1048
    %1050 = vrot.lane.b32.xlu0 %v108, 116
    %v1051 = vpop.permute.xlu0 %1050
    %1052 = vrot.lane.b32.xlu0 %v109, 116
    %v1053 = vpop.permute.xlu0 %1052
    %1054 = vrot.lane.b32.xlu0 %v110, 116
    %v1055 = vpop.permute.xlu0 %1054
    %1056 = vrot.lane.b32.xlu0 %v111, 116
    %v1057 = vpop.permute.xlu0 %1056
    %1058 = vrot.lane.b32.xlu0 %v112, 116
    %v1059 = vpop.permute.xlu0 %1058
    %1060 = vrot.lane.b32.xlu0 %v113, 116
    %v1061 = vpop.permute.xlu0 %1060
    %1062 = vrot.lane.b32.xlu0 %v114, 116
    %v1063 = vpop.permute.xlu0 %1062
    %1078 = vst.msk [vmem:[#allocation3 + $0x3] sm:$0x1] %vm195, %v1014
    %1079 = vst.msk [vmem:[#allocation3 + $0xb] sm:$0x1] %vm195, %v1037
    %1080 = vst.msk [vmem:[#allocation3 + $0x13] sm:$0x1] %vm195, %v1039
    %1081 = vst.msk [vmem:[#allocation3 + $0x1b] sm:$0x1] %vm195, %v1041
    %1082 = vst.msk [vmem:[#allocation3 + $0x23] sm:$0x1] %vm195, %v1043
    %1083 = vst.msk [vmem:[#allocation3 + $0x2b] sm:$0x1] %vm195, %v1045
    %1084 = vst.msk [vmem:[#allocation3 + $0x33] sm:$0x1] %vm195, %v1047
    %1085 = vst.msk [vmem:[#allocation3 + $0x3b] sm:$0x1] %vm195, %v1049
    %1086 = vst.msk [vmem:[#allocation3 + $0x43] sm:$0x1] %vm195, %v1016
    %1087 = vst.msk [vmem:[#allocation3 + $0x4b] sm:$0x1] %vm195, %v1051
    %1088 = vst.msk [vmem:[#allocation3 + $0x53] sm:$0x1] %vm195, %v1053
    %1089 = vst.msk [vmem:[#allocation3 + $0x5b] sm:$0x1] %vm195, %v1055
    %1090 = vst.msk [vmem:[#allocation3 + $0x63] sm:$0x1] %vm195, %v1057
    %1091 = vst.msk [vmem:[#allocation3 + $0x6b] sm:$0x1] %vm195, %v1059
    %1092 = vst.msk [vmem:[#allocation3 + $0x73] sm:$0x1] %vm195, %v1061
    %1093 = vst.msk [vmem:[#allocation3 + $0x7b] sm:$0x1] %vm195, %v1063
    %1094 = vst.msk [vmem:[#allocation3 + $0x2] sm:$0x2] %vm256, %v821
    %1095 = vst.msk [vmem:[#allocation3 + $0xa] sm:$0x2] %vm256, %v844
    %1096 = vst.msk [vmem:[#allocation3 + $0x12] sm:$0x2] %vm256, %v846
    %1097 = vst.msk [vmem:[#allocation3 + $0x1a] sm:$0x2] %vm256, %v848
    %1098 = vst.msk [vmem:[#allocation3 + $0x22] sm:$0x2] %vm256, %v850
    %1099 = vst.msk [vmem:[#allocation3 + $0x2a] sm:$0x2] %vm256, %v852
    %1100 = vst.msk [vmem:[#allocation3 + $0x32] sm:$0x2] %vm256, %v854
    %1101 = vst.msk [vmem:[#allocation3 + $0x3a] sm:$0x2] %vm256, %v856
    %1102 = vst.msk [vmem:[#allocation3 + $0x42] sm:$0x2] %vm256, %v823
    %1103 = vst.msk [vmem:[#allocation3 + $0x4a] sm:$0x2] %vm256, %v858
    %1104 = vst.msk [vmem:[#allocation3 + $0x52] sm:$0x2] %vm256, %v860
    %1105 = vst.msk [vmem:[#allocation3 + $0x5a] sm:$0x2] %vm256, %v862
    %1106 = vst.msk [vmem:[#allocation3 + $0x62] sm:$0x2] %vm256, %v864
    %1107 = vst.msk [vmem:[#allocation3 + $0x6a] sm:$0x2] %vm256, %v866
    %1108 = vst.msk [vmem:[#allocation3 + $0x72] sm:$0x2] %vm256, %v868
    %1109 = vst.msk [vmem:[#allocation3 + $0x7a] sm:$0x2] %vm256, %v870
    %1110 = vst.msk [vmem:[#allocation3 + $0x1] sm:$0x4] %vm315, %v628
    %1111 = vst.msk [vmem:[#allocation3 + $0x9] sm:$0x4] %vm315, %v651
    %1112 = vst.msk [vmem:[#allocation3 + $0x11] sm:$0x4] %vm315, %v653
    %1113 = vst.msk [vmem:[#allocation3 + $0x19] sm:$0x4] %vm315, %v655
    %1114 = vst.msk [vmem:[#allocation3 + $0x21] sm:$0x4] %vm315, %v657
    %1115 = vst.msk [vmem:[#allocation3 + $0x29] sm:$0x4] %vm315, %v659
    %1116 = vst.msk [vmem:[#allocation3 + $0x31] sm:$0x4] %vm315, %v661
    %1117 = vst.msk [vmem:[#allocation3 + $0x39] sm:$0x4] %vm315, %v663
    %1118 = vst.msk [vmem:[#allocation3 + $0x41] sm:$0x4] %vm315, %v630
    %1119 = vst.msk [vmem:[#allocation3 + $0x49] sm:$0x4] %vm315, %v665
    %1120 = vst.msk [vmem:[#allocation3 + $0x51] sm:$0x4] %vm315, %v667
    %1121 = vst.msk [vmem:[#allocation3 + $0x59] sm:$0x4] %vm315, %v669
    %1122 = vst.msk [vmem:[#allocation3 + $0x61] sm:$0x4] %vm315, %v671
    %1123 = vst.msk [vmem:[#allocation3 + $0x69] sm:$0x4] %vm315, %v673
    %1124 = vst.msk [vmem:[#allocation3 + $0x71] sm:$0x4] %vm315, %v675
    %1125 = vst.msk [vmem:[#allocation3 + $0x79] sm:$0x4] %vm315, %v677
    %1126 = vst.msk [vmem:[#allocation3] sm:$0x8] %vm374, %v99
    %1127 = vst.msk [vmem:[#allocation3 + $0x8] sm:$0x8] %vm374, %v100
    %1128 = vst.msk [vmem:[#allocation3 + $0x10] sm:$0x8] %vm374, %v101
    %1129 = vst.msk [vmem:[#allocation3 + $0x18] sm:$0x8] %vm374, %v102
    %1130 = vst.msk [vmem:[#allocation3 + $0x20] sm:$0x8] %vm374, %v103
    %1131 = vst.msk [vmem:[#allocation3 + $0x28] sm:$0x8] %vm374, %v104
    %1132 = vst.msk [vmem:[#allocation3 + $0x30] sm:$0x8] %vm374, %v105
    %1133 = vst.msk [vmem:[#allocation3 + $0x38] sm:$0x8] %vm374, %v106
    %1134 = vst.msk [vmem:[#allocation3 + $0x40] sm:$0x8] %vm374, %v107
    %1135 = vst.msk [vmem:[#allocation3 + $0x48] sm:$0x8] %vm374, %v108
    %1136 = vst.msk [vmem:[#allocation3 + $0x50] sm:$0x8] %vm374, %v109
    %1137 = vst.msk [vmem:[#allocation3 + $0x58] sm:$0x8] %vm374, %v110
    %1138 = vst.msk [vmem:[#allocation3 + $0x60] sm:$0x8] %vm374, %v111
    %1139 = vst.msk [vmem:[#allocation3 + $0x68] sm:$0x8] %vm374, %v112
    %1140 = vst.msk [vmem:[#allocation3 + $0x70] sm:$0x8] %vm374, %v113
    %1141 = vst.msk [vmem:[#allocation3 + $0x78] sm:$0x8] %vm374, %v114
    %1142 = vst.msk [vmem:[#allocation3 - $0x1] sm:$0x10] %vm433, %v215
    %1143 = vst.msk [vmem:[#allocation3 + $0x7] sm:$0x10] %vm433, %v121
    %1144 = vst.msk [vmem:[#allocation3 + $0xf] sm:$0x10] %vm433, %v217
    %1145 = vst.msk [vmem:[#allocation3 + $0x17] sm:$0x10] %vm433, %v219
    %1146 = vst.msk [vmem:[#allocation3 + $0x1f] sm:$0x10] %vm433, %v221
    %1147 = vst.msk [vmem:[#allocation3 + $0x27] sm:$0x10] %vm433, %v223
    %1148 = vst.msk [vmem:[#allocation3 + $0x2f] sm:$0x10] %vm433, %v225
    %1149 = vst.msk [vmem:[#allocation3 + $0x37] sm:$0x10] %vm433, %v227
    %1150 = vst.msk [vmem:[#allocation3 + $0x3f] sm:$0x10] %vm433, %v229
    %1151 = vst.msk [vmem:[#allocation3 + $0x47] sm:$0x10] %vm433, %v123
    %1152 = vst.msk [vmem:[#allocation3 + $0x4f] sm:$0x10] %vm433, %v231
    %1153 = vst.msk [vmem:[#allocation3 + $0x57] sm:$0x10] %vm433, %v233
    %1154 = vst.msk [vmem:[#allocation3 + $0x5f] sm:$0x10] %vm433, %v235
    %1155 = vst.msk [vmem:[#allocation3 + $0x67] sm:$0x10] %vm433, %v237
    %1156 = vst.msk [vmem:[#allocation3 + $0x6f] sm:$0x10] %vm433, %v239
    %1157 = vst.msk [vmem:[#allocation3 + $0x77] sm:$0x10] %vm433, %v241
    %1158 = vst.msk [vmem:[#allocation3 - $0x2] sm:$0x20] %vm492, %v274
    %1159 = vst.msk [vmem:[#allocation3 + $0x6] sm:$0x20] %vm492, %v276
    %1160 = vst.msk [vmem:[#allocation3 + $0xe] sm:$0x20] %vm492, %v132
    %1161 = vst.msk [vmem:[#allocation3 + $0x16] sm:$0x20] %vm492, %v278
    %1162 = vst.msk [vmem:[#allocation3 + $0x1e] sm:$0x20] %vm492, %v280
    %1163 = vst.msk [vmem:[#allocation3 + $0x26] sm:$0x20] %vm492, %v282
    %1164 = vst.msk [vmem:[#allocation3 + $0x2e] sm:$0x20] %vm492, %v284
    %1165 = vst.msk [vmem:[#allocation3 + $0x36] sm:$0x20] %vm492, %v286
    %1166 = vst.msk [vmem:[#allocation3 + $0x3e] sm:$0x20] %vm492, %v288
    %1167 = vst.msk [vmem:[#allocation3 + $0x46] sm:$0x20] %vm492, %v290
    %1168 = vst.msk [vmem:[#allocation3 + $0x4e] sm:$0x20] %vm492, %v134
    %1169 = vst.msk [vmem:[#allocation3 + $0x56] sm:$0x20] %vm492, %v292
    %1170 = vst.msk [vmem:[#allocation3 + $0x5e] sm:$0x20] %vm492, %v294
    %1171 = vst.msk [vmem:[#allocation3 + $0x66] sm:$0x20] %vm492, %v296
    %1172 = vst.msk [vmem:[#allocation3 + $0x6e] sm:$0x20] %vm492, %v298
    %1173 = vst.msk [vmem:[#allocation3 + $0x76] sm:$0x20] %vm492, %v300
    %1174 = vst.msk [vmem:[#allocation3 - $0x3] sm:$0x40] %vm551, %v333
    %1175 = vst.msk [vmem:[#allocation3 + $0x5] sm:$0x40] %vm551, %v335
    %1176 = vst.msk [vmem:[#allocation3 + $0xd] sm:$0x40] %vm551, %v337
    %1177 = vst.msk [vmem:[#allocation3 + $0x15] sm:$0x40] %vm551, %v143
    %1178 = vst.msk [vmem:[#allocation3 + $0x1d] sm:$0x40] %vm551, %v339
    %1179 = vst.msk [vmem:[#allocation3 + $0x25] sm:$0x40] %vm551, %v341
    %1180 = vst.msk [vmem:[#allocation3 + $0x2d] sm:$0x40] %vm551, %v343
    %1181 = vst.msk [vmem:[#allocation3 + $0x35] sm:$0x40] %vm551, %v345
    %1182 = vst.msk [vmem:[#allocation3 + $0x3d] sm:$0x40] %vm551, %v347
    %1183 = vst.msk [vmem:[#allocation3 + $0x45] sm:$0x40] %vm551, %v349
    %1184 = vst.msk [vmem:[#allocation3 + $0x4d] sm:$0x40] %vm551, %v351
    %1185 = vst.msk [vmem:[#allocation3 + $0x55] sm:$0x40] %vm551, %v145
    %1186 = vst.msk [vmem:[#allocation3 + $0x5d] sm:$0x40] %vm551, %v353
    %1187 = vst.msk [vmem:[#allocation3 + $0x65] sm:$0x40] %vm551, %v355
    %1188 = vst.msk [vmem:[#allocation3 + $0x6d] sm:$0x40] %vm551, %v357
    %1189 = vst.msk [vmem:[#allocation3 + $0x75] sm:$0x40] %vm551, %v359
    %1190 = vst.msk [vmem:[#allocation3 - $0x4] sm:$0x80] %vm610, %v392
    %1191 = vst.msk [vmem:[#allocation3 + $0x4] sm:$0x80] %vm610, %v394
    %1192 = vst.msk [vmem:[#allocation3 + $0xc] sm:$0x80] %vm610, %v396
    %1193 = vst.msk [vmem:[#allocation3 + $0x14] sm:$0x80] %vm610, %v398
    %1194 = vst.msk [vmem:[#allocation3 + $0x1c] sm:$0x80] %vm610, %v154
    %1195 = vst.msk [vmem:[#allocation3 + $0x24] sm:$0x80] %vm610, %v400
    %1196 = vst.msk [vmem:[#allocation3 + $0x2c] sm:$0x80] %vm610, %v402
    %1197 = vst.msk [vmem:[#allocation3 + $0x34] sm:$0x80] %vm610, %v404
    %1198 = vst.msk [vmem:[#allocation3 + $0x3c] sm:$0x80] %vm610, %v406
    %1199 = vst.msk [vmem:[#allocation3 + $0x44] sm:$0x80] %vm610, %v408
    %1200 = vst.msk [vmem:[#allocation3 + $0x4c] sm:$0x80] %vm610, %v410
    %1201 = vst.msk [vmem:[#allocation3 + $0x54] sm:$0x80] %vm610, %v412
    %1202 = vst.msk [vmem:[#allocation3 + $0x5c] sm:$0x80] %vm610, %v156
    %1203 = vst.msk [vmem:[#allocation3 + $0x64] sm:$0x80] %vm610, %v414
    %1204 = vst.msk [vmem:[#allocation3 + $0x6c] sm:$0x80] %vm610, %v416
    %1205 = vst.msk [vmem:[#allocation3 + $0x74] sm:$0x80] %vm610, %v418
    %1206 = vrot.lane.b32.xlu0 %v99, 112
    %v1207 = vpop.permute.xlu0 %1206
    %1208 = vrot.lane.b32.xlu0 %v107, 112
    %v1209 = vpop.permute.xlu0 %1208
    %s1212 = scalar_lea.vmem [#allocation2], 32
    %1213 = vst.msk [vmem:[%s1212] sm:$0xff] %vm115, %v1207
    %1214 = vst.msk [vmem:[%s1212 + $0x40] sm:$0xff] %vm115, %v1209
    %1215 = vst.msk [vmem:[%s1212] sm:$0xff] %vm126, %v1037
    %1216 = vst.msk [vmem:[%s1212 + $0x40] sm:$0xff] %vm126, %v1051
    %1217 = vst.msk [vmem:[%s1212] sm:$0xff] %vm137, %v846
    %1218 = vst.msk [vmem:[%s1212 + $0x40] sm:$0xff] %vm137, %v860
    %1219 = vst.msk [vmem:[%s1212] sm:$0xff] %vm148, %v655
    %1220 = vst.msk [vmem:[%s1212 + $0x40] sm:$0xff] %vm148, %v669
    %1221 = vst.msk [vmem:[%s1212] sm:$0xff] %vm159, %v103
    %1222 = vst.msk [vmem:[%s1212 + $0x40] sm:$0xff] %vm159, %v111
    %1223 = vst.msk [vmem:[%s1212] sm:$0xff] %vm170, %v223
    %1224 = vst.msk [vmem:[%s1212 + $0x40] sm:$0xff] %vm170, %v237
    %1225 = vst.msk [vmem:[%s1212] sm:$0xff] %vm181, %v284
    %1226 = vst.msk [vmem:[%s1212 + $0x40] sm:$0xff] %vm181, %v298
    %1227 = vst.msk [vmem:[%s1212] sm:$0xff] %vm192, %v345
    %1228 = vst.msk [vmem:[%s1212 + $0x40] sm:$0xff] %vm192, %v359
    %1229 = vrot.lane.b32.xlu0 %v100, 112
    %v1230 = vpop.permute.xlu0 %1229
    %1231 = vrot.lane.b32.xlu0 %v101, 112
    %v1232 = vpop.permute.xlu0 %1231
    %1233 = vrot.lane.b32.xlu0 %v102, 112
    %v1234 = vpop.permute.xlu0 %1233
    %1235 = vrot.lane.b32.xlu0 %v103, 112
    %v1236 = vpop.permute.xlu0 %1235
    %1237 = vrot.lane.b32.xlu0 %v104, 112
    %v1238 = vpop.permute.xlu0 %1237
    %1239 = vrot.lane.b32.xlu0 %v105, 112
    %v1240 = vpop.permute.xlu0 %1239
    %1241 = vrot.lane.b32.xlu0 %v106, 112
    %v1242 = vpop.permute.xlu0 %1241
    %1243 = vrot.lane.b32.xlu0 %v108, 112
    %v1244 = vpop.permute.xlu0 %1243
    %1245 = vrot.lane.b32.xlu0 %v109, 112
    %v1246 = vpop.permute.xlu0 %1245
    %1247 = vrot.lane.b32.xlu0 %v110, 112
    %v1248 = vpop.permute.xlu0 %1247
    %1249 = vrot.lane.b32.xlu0 %v111, 112
    %v1250 = vpop.permute.xlu0 %1249
    %1251 = vrot.lane.b32.xlu0 %v112, 112
    %v1252 = vpop.permute.xlu0 %1251
    %1253 = vrot.lane.b32.xlu0 %v113, 112
    %v1254 = vpop.permute.xlu0 %1253
    %1255 = vrot.lane.b32.xlu0 %v114, 112
    %v1256 = vpop.permute.xlu0 %1255
    %1271 = vst.msk [vmem:[#allocation3 + $0x4] sm:$0x1] %vm195, %v1207
    %1272 = vst.msk [vmem:[#allocation3 + $0xc] sm:$0x1] %vm195, %v1230
    %1273 = vst.msk [vmem:[#allocation3 + $0x14] sm:$0x1] %vm195, %v1232
    %1274 = vst.msk [vmem:[#allocation3 + $0x1c] sm:$0x1] %vm195, %v1234
    %1275 = vst.msk [vmem:[#allocation3 + $0x24] sm:$0x1] %vm195, %v1236
    %1276 = vst.msk [vmem:[#allocation3 + $0x2c] sm:$0x1] %vm195, %v1238
    %1277 = vst.msk [vmem:[#allocation3 + $0x34] sm:$0x1] %vm195, %v1240
    %1278 = vst.msk [vmem:[#allocation3 + $0x3c] sm:$0x1] %vm195, %v1242
    %1279 = vst.msk [vmem:[#allocation3 + $0x44] sm:$0x1] %vm195, %v1209
    %1280 = vst.msk [vmem:[#allocation3 + $0x4c] sm:$0x1] %vm195, %v1244
    %1281 = vst.msk [vmem:[#allocation3 + $0x54] sm:$0x1] %vm195, %v1246
    %1282 = vst.msk [vmem:[#allocation3 + $0x5c] sm:$0x1] %vm195, %v1248
    %1283 = vst.msk [vmem:[#allocation3 + $0x64] sm:$0x1] %vm195, %v1250
    %1284 = vst.msk [vmem:[#allocation3 + $0x6c] sm:$0x1] %vm195, %v1252
    %1285 = vst.msk [vmem:[#allocation3 + $0x74] sm:$0x1] %vm195, %v1254
    %1286 = vst.msk [vmem:[#allocation3 + $0x7c] sm:$0x1] %vm195, %v1256
    %1287 = vst.msk [vmem:[#allocation3 + $0x3] sm:$0x2] %vm256, %v1014
    %1288 = vst.msk [vmem:[#allocation3 + $0xb] sm:$0x2] %vm256, %v1037
    %1289 = vst.msk [vmem:[#allocation3 + $0x13] sm:$0x2] %vm256, %v1039
    %1290 = vst.msk [vmem:[#allocation3 + $0x1b] sm:$0x2] %vm256, %v1041
    %1291 = vst.msk [vmem:[#allocation3 + $0x23] sm:$0x2] %vm256, %v1043
    %1292 = vst.msk [vmem:[#allocation3 + $0x2b] sm:$0x2] %vm256, %v1045
    %1293 = vst.msk [vmem:[#allocation3 + $0x33] sm:$0x2] %vm256, %v1047
    %1294 = vst.msk [vmem:[#allocation3 + $0x3b] sm:$0x2] %vm256, %v1049
    %1295 = vst.msk [vmem:[#allocation3 + $0x43] sm:$0x2] %vm256, %v1016
    %1296 = vst.msk [vmem:[#allocation3 + $0x4b] sm:$0x2] %vm256, %v1051
    %1297 = vst.msk [vmem:[#allocation3 + $0x53] sm:$0x2] %vm256, %v1053
    %1298 = vst.msk [vmem:[#allocation3 + $0x5b] sm:$0x2] %vm256, %v1055
    %1299 = vst.msk [vmem:[#allocation3 + $0x63] sm:$0x2] %vm256, %v1057
    %1300 = vst.msk [vmem:[#allocation3 + $0x6b] sm:$0x2] %vm256, %v1059
    %1301 = vst.msk [vmem:[#allocation3 + $0x73] sm:$0x2] %vm256, %v1061
    %1302 = vst.msk [vmem:[#allocation3 + $0x7b] sm:$0x2] %vm256, %v1063
    %1303 = vst.msk [vmem:[#allocation3 + $0x2] sm:$0x4] %vm315, %v821
    %1304 = vst.msk [vmem:[#allocation3 + $0xa] sm:$0x4] %vm315, %v844
    %1305 = vst.msk [vmem:[#allocation3 + $0x12] sm:$0x4] %vm315, %v846
    %1306 = vst.msk [vmem:[#allocation3 + $0x1a] sm:$0x4] %vm315, %v848
    %1307 = vst.msk [vmem:[#allocation3 + $0x22] sm:$0x4] %vm315, %v850
    %1308 = vst.msk [vmem:[#allocation3 + $0x2a] sm:$0x4] %vm315, %v852
    %1309 = vst.msk [vmem:[#allocation3 + $0x32] sm:$0x4] %vm315, %v854
    %1310 = vst.msk [vmem:[#allocation3 + $0x3a] sm:$0x4] %vm315, %v856
    %1311 = vst.msk [vmem:[#allocation3 + $0x42] sm:$0x4] %vm315, %v823
    %1312 = vst.msk [vmem:[#allocation3 + $0x4a] sm:$0x4] %vm315, %v858
    %1313 = vst.msk [vmem:[#allocation3 + $0x52] sm:$0x4] %vm315, %v860
    %1314 = vst.msk [vmem:[#allocation3 + $0x5a] sm:$0x4] %vm315, %v862
    %1315 = vst.msk [vmem:[#allocation3 + $0x62] sm:$0x4] %vm315, %v864
    %1316 = vst.msk [vmem:[#allocation3 + $0x6a] sm:$0x4] %vm315, %v866
    %1317 = vst.msk [vmem:[#allocation3 + $0x72] sm:$0x4] %vm315, %v868
    %1318 = vst.msk [vmem:[#allocation3 + $0x7a] sm:$0x4] %vm315, %v870
    %1319 = vst.msk [vmem:[#allocation3 + $0x1] sm:$0x8] %vm374, %v628
    %1320 = vst.msk [vmem:[#allocation3 + $0x9] sm:$0x8] %vm374, %v651
    %1321 = vst.msk [vmem:[#allocation3 + $0x11] sm:$0x8] %vm374, %v653
    %1322 = vst.msk [vmem:[#allocation3 + $0x19] sm:$0x8] %vm374, %v655
    %1323 = vst.msk [vmem:[#allocation3 + $0x21] sm:$0x8] %vm374, %v657
    %1324 = vst.msk [vmem:[#allocation3 + $0x29] sm:$0x8] %vm374, %v659
    %1325 = vst.msk [vmem:[#allocation3 + $0x31] sm:$0x8] %vm374, %v661
    %1326 = vst.msk [vmem:[#allocation3 + $0x39] sm:$0x8] %vm374, %v663
    %1327 = vst.msk [vmem:[#allocation3 + $0x41] sm:$0x8] %vm374, %v630
    %1328 = vst.msk [vmem:[#allocation3 + $0x49] sm:$0x8] %vm374, %v665
    %1329 = vst.msk [vmem:[#allocation3 + $0x51] sm:$0x8] %vm374, %v667
    %1330 = vst.msk [vmem:[#allocation3 + $0x59] sm:$0x8] %vm374, %v669
    %1331 = vst.msk [vmem:[#allocation3 + $0x61] sm:$0x8] %vm374, %v671
    %1332 = vst.msk [vmem:[#allocation3 + $0x69] sm:$0x8] %vm374, %v673
    %1333 = vst.msk [vmem:[#allocation3 + $0x71] sm:$0x8] %vm374, %v675
    %1334 = vst.msk [vmem:[#allocation3 + $0x79] sm:$0x8] %vm374, %v677
    %1335 = vst.msk [vmem:[#allocation3] sm:$0x10] %vm433, %v99
    %1336 = vst.msk [vmem:[#allocation3 + $0x8] sm:$0x10] %vm433, %v100
    %1337 = vst.msk [vmem:[#allocation3 + $0x10] sm:$0x10] %vm433, %v101
    %1338 = vst.msk [vmem:[#allocation3 + $0x18] sm:$0x10] %vm433, %v102
    %1339 = vst.msk [vmem:[#allocation3 + $0x20] sm:$0x10] %vm433, %v103
    %1340 = vst.msk [vmem:[#allocation3 + $0x28] sm:$0x10] %vm433, %v104
    %1341 = vst.msk [vmem:[#allocation3 + $0x30] sm:$0x10] %vm433, %v105
    %1342 = vst.msk [vmem:[#allocation3 + $0x38] sm:$0x10] %vm433, %v106
    %1343 = vst.msk [vmem:[#allocation3 + $0x40] sm:$0x10] %vm433, %v107
    %1344 = vst.msk [vmem:[#allocation3 + $0x48] sm:$0x10] %vm433, %v108
    %1345 = vst.msk [vmem:[#allocation3 + $0x50] sm:$0x10] %vm433, %v109
    %1346 = vst.msk [vmem:[#allocation3 + $0x58] sm:$0x10] %vm433, %v110
    %1347 = vst.msk [vmem:[#allocation3 + $0x60] sm:$0x10] %vm433, %v111
    %1348 = vst.msk [vmem:[#allocation3 + $0x68] sm:$0x10] %vm433, %v112
    %1349 = vst.msk [vmem:[#allocation3 + $0x70] sm:$0x10] %vm433, %v113
    %1350 = vst.msk [vmem:[#allocation3 + $0x78] sm:$0x10] %vm433, %v114
    %1351 = vst.msk [vmem:[#allocation3 - $0x1] sm:$0x20] %vm492, %v215
    %1352 = vst.msk [vmem:[#allocation3 + $0x7] sm:$0x20] %vm492, %v121
    %1353 = vst.msk [vmem:[#allocation3 + $0xf] sm:$0x20] %vm492, %v217
    %1354 = vst.msk [vmem:[#allocation3 + $0x17] sm:$0x20] %vm492, %v219
    %1355 = vst.msk [vmem:[#allocation3 + $0x1f] sm:$0x20] %vm492, %v221
    %1356 = vst.msk [vmem:[#allocation3 + $0x27] sm:$0x20] %vm492, %v223
    %1357 = vst.msk [vmem:[#allocation3 + $0x2f] sm:$0x20] %vm492, %v225
    %1358 = vst.msk [vmem:[#allocation3 + $0x37] sm:$0x20] %vm492, %v227
    %1359 = vst.msk [vmem:[#allocation3 + $0x3f] sm:$0x20] %vm492, %v229
    %1360 = vst.msk [vmem:[#allocation3 + $0x47] sm:$0x20] %vm492, %v123
    %1361 = vst.msk [vmem:[#allocation3 + $0x4f] sm:$0x20] %vm492, %v231
    %1362 = vst.msk [vmem:[#allocation3 + $0x57] sm:$0x20] %vm492, %v233
    %1363 = vst.msk [vmem:[#allocation3 + $0x5f] sm:$0x20] %vm492, %v235
    %1364 = vst.msk [vmem:[#allocation3 + $0x67] sm:$0x20] %vm492, %v237
    %1365 = vst.msk [vmem:[#allocation3 + $0x6f] sm:$0x20] %vm492, %v239
    %1366 = vst.msk [vmem:[#allocation3 + $0x77] sm:$0x20] %vm492, %v241
    %1367 = vst.msk [vmem:[#allocation3 - $0x2] sm:$0x40] %vm551, %v274
    %1368 = vst.msk [vmem:[#allocation3 + $0x6] sm:$0x40] %vm551, %v276
    %1369 = vst.msk [vmem:[#allocation3 + $0xe] sm:$0x40] %vm551, %v132
    %1370 = vst.msk [vmem:[#allocation3 + $0x16] sm:$0x40] %vm551, %v278
    %1371 = vst.msk [vmem:[#allocation3 + $0x1e] sm:$0x40] %vm551, %v280
    %1372 = vst.msk [vmem:[#allocation3 + $0x26] sm:$0x40] %vm551, %v282
    %1373 = vst.msk [vmem:[#allocation3 + $0x2e] sm:$0x40] %vm551, %v284
    %1374 = vst.msk [vmem:[#allocation3 + $0x36] sm:$0x40] %vm551, %v286
    %1375 = vst.msk [vmem:[#allocation3 + $0x3e] sm:$0x40] %vm551, %v288
    %1376 = vst.msk [vmem:[#allocation3 + $0x46] sm:$0x40] %vm551, %v290
    %1377 = vst.msk [vmem:[#allocation3 + $0x4e] sm:$0x40] %vm551, %v134
    %1378 = vst.msk [vmem:[#allocation3 + $0x56] sm:$0x40] %vm551, %v292
    %1379 = vst.msk [vmem:[#allocation3 + $0x5e] sm:$0x40] %vm551, %v294
    %1380 = vst.msk [vmem:[#allocation3 + $0x66] sm:$0x40] %vm551, %v296
    %1381 = vst.msk [vmem:[#allocation3 + $0x6e] sm:$0x40] %vm551, %v298
    %1382 = vst.msk [vmem:[#allocation3 + $0x76] sm:$0x40] %vm551, %v300
    %1383 = vst.msk [vmem:[#allocation3 - $0x3] sm:$0x80] %vm610, %v333
    %1384 = vst.msk [vmem:[#allocation3 + $0x5] sm:$0x80] %vm610, %v335
    %1385 = vst.msk [vmem:[#allocation3 + $0xd] sm:$0x80] %vm610, %v337
    %1386 = vst.msk [vmem:[#allocation3 + $0x15] sm:$0x80] %vm610, %v143
    %1387 = vst.msk [vmem:[#allocation3 + $0x1d] sm:$0x80] %vm610, %v339
    %1388 = vst.msk [vmem:[#allocation3 + $0x25] sm:$0x80] %vm610, %v341
    %1389 = vst.msk [vmem:[#allocation3 + $0x2d] sm:$0x80] %vm610, %v343
    %1390 = vst.msk [vmem:[#allocation3 + $0x35] sm:$0x80] %vm610, %v345
    %1391 = vst.msk [vmem:[#allocation3 + $0x3d] sm:$0x80] %vm610, %v347
    %1392 = vst.msk [vmem:[#allocation3 + $0x45] sm:$0x80] %vm610, %v349
    %1393 = vst.msk [vmem:[#allocation3 + $0x4d] sm:$0x80] %vm610, %v351
    %1394 = vst.msk [vmem:[#allocation3 + $0x55] sm:$0x80] %vm610, %v145
    %1395 = vst.msk [vmem:[#allocation3 + $0x5d] sm:$0x80] %vm610, %v353
    %1396 = vst.msk [vmem:[#allocation3 + $0x65] sm:$0x80] %vm610, %v355
    %1397 = vst.msk [vmem:[#allocation3 + $0x6d] sm:$0x80] %vm610, %v357
    %1398 = vst.msk [vmem:[#allocation3 + $0x75] sm:$0x80] %vm610, %v359
    %1399 = vrot.lane.b32.xlu0 %v99, 108
    %v1400 = vpop.permute.xlu0 %1399
    %1401 = vrot.lane.b32.xlu0 %v107, 108
    %v1402 = vpop.permute.xlu0 %1401
    %s1405 = scalar_lea.vmem [#allocation2], 40
    %1406 = vst.msk [vmem:[%s1405] sm:$0xff] %vm115, %v1400
    %1407 = vst.msk [vmem:[%s1405 + $0x40] sm:$0xff] %vm115, %v1402
    %1408 = vst.msk [vmem:[%s1405] sm:$0xff] %vm126, %v1230
    %1409 = vst.msk [vmem:[%s1405 + $0x40] sm:$0xff] %vm126, %v1244
    %1410 = vst.msk [vmem:[%s1405] sm:$0xff] %vm137, %v1039
    %1411 = vst.msk [vmem:[%s1405 + $0x40] sm:$0xff] %vm137, %v1053
    %1412 = vst.msk [vmem:[%s1405] sm:$0xff] %vm148, %v848
    %1413 = vst.msk [vmem:[%s1405 + $0x40] sm:$0xff] %vm148, %v862
    %1414 = vst.msk [vmem:[%s1405] sm:$0xff] %vm159, %v657
    %1415 = vst.msk [vmem:[%s1405 + $0x40] sm:$0xff] %vm159, %v671
    %1416 = vst.msk [vmem:[%s1405] sm:$0xff] %vm170, %v104
    %1417 = vst.msk [vmem:[%s1405 + $0x40] sm:$0xff] %vm170, %v112
    %1418 = vst.msk [vmem:[%s1405] sm:$0xff] %vm181, %v225
    %1419 = vst.msk [vmem:[%s1405 + $0x40] sm:$0xff] %vm181, %v239
    %1420 = vst.msk [vmem:[%s1405] sm:$0xff] %vm192, %v286
    %1421 = vst.msk [vmem:[%s1405 + $0x40] sm:$0xff] %vm192, %v300
    %1422 = vrot.lane.b32.xlu0 %v100, 108
    %v1423 = vpop.permute.xlu0 %1422
    %1424 = vrot.lane.b32.xlu0 %v101, 108
    %v1425 = vpop.permute.xlu0 %1424
    %1426 = vrot.lane.b32.xlu0 %v102, 108
    %v1427 = vpop.permute.xlu0 %1426
    %1428 = vrot.lane.b32.xlu0 %v103, 108
    %v1429 = vpop.permute.xlu0 %1428
    %1430 = vrot.lane.b32.xlu0 %v104, 108
    %v1431 = vpop.permute.xlu0 %1430
    %1432 = vrot.lane.b32.xlu0 %v105, 108
    %v1433 = vpop.permute.xlu0 %1432
    %1434 = vrot.lane.b32.xlu0 %v106, 108
    %v1435 = vpop.permute.xlu0 %1434
    %1436 = vrot.lane.b32.xlu0 %v108, 108
    %v1437 = vpop.permute.xlu0 %1436
    %1438 = vrot.lane.b32.xlu0 %v109, 108
    %v1439 = vpop.permute.xlu0 %1438
    %1440 = vrot.lane.b32.xlu0 %v110, 108
    %v1441 = vpop.permute.xlu0 %1440
    %1442 = vrot.lane.b32.xlu0 %v111, 108
    %v1443 = vpop.permute.xlu0 %1442
    %1444 = vrot.lane.b32.xlu0 %v112, 108
    %v1445 = vpop.permute.xlu0 %1444
    %1446 = vrot.lane.b32.xlu0 %v113, 108
    %v1447 = vpop.permute.xlu0 %1446
    %1448 = vrot.lane.b32.xlu0 %v114, 108
    %v1449 = vpop.permute.xlu0 %1448
    %1464 = vst.msk [vmem:[#allocation3 + $0x5] sm:$0x1] %vm195, %v1400
    %1465 = vst.msk [vmem:[#allocation3 + $0xd] sm:$0x1] %vm195, %v1423
    %1466 = vst.msk [vmem:[#allocation3 + $0x15] sm:$0x1] %vm195, %v1425
    %1467 = vst.msk [vmem:[#allocation3 + $0x1d] sm:$0x1] %vm195, %v1427
    %1468 = vst.msk [vmem:[#allocation3 + $0x25] sm:$0x1] %vm195, %v1429
    %1469 = vst.msk [vmem:[#allocation3 + $0x2d] sm:$0x1] %vm195, %v1431
    %1470 = vst.msk [vmem:[#allocation3 + $0x35] sm:$0x1] %vm195, %v1433
    %1471 = vst.msk [vmem:[#allocation3 + $0x3d] sm:$0x1] %vm195, %v1435
    %1472 = vst.msk [vmem:[#allocation3 + $0x45] sm:$0x1] %vm195, %v1402
    %1473 = vst.msk [vmem:[#allocation3 + $0x4d] sm:$0x1] %vm195, %v1437
    %1474 = vst.msk [vmem:[#allocation3 + $0x55] sm:$0x1] %vm195, %v1439
    %1475 = vst.msk [vmem:[#allocation3 + $0x5d] sm:$0x1] %vm195, %v1441
    %1476 = vst.msk [vmem:[#allocation3 + $0x65] sm:$0x1] %vm195, %v1443
    %1477 = vst.msk [vmem:[#allocation3 + $0x6d] sm:$0x1] %vm195, %v1445
    %1478 = vst.msk [vmem:[#allocation3 + $0x75] sm:$0x1] %vm195, %v1447
    %1479 = vst.msk [vmem:[#allocation3 + $0x7d] sm:$0x1] %vm195, %v1449
    %1480 = vst.msk [vmem:[#allocation3 + $0x4] sm:$0x2] %vm256, %v1207
    %1481 = vst.msk [vmem:[#allocation3 + $0xc] sm:$0x2] %vm256, %v1230
    %1482 = vst.msk [vmem:[#allocation3 + $0x14] sm:$0x2] %vm256, %v1232
    %1483 = vst.msk [vmem:[#allocation3 + $0x1c] sm:$0x2] %vm256, %v1234
    %1484 = vst.msk [vmem:[#allocation3 + $0x24] sm:$0x2] %vm256, %v1236
    %1485 = vst.msk [vmem:[#allocation3 + $0x2c] sm:$0x2] %vm256, %v1238
    %1486 = vst.msk [vmem:[#allocation3 + $0x34] sm:$0x2] %vm256, %v1240
    %1487 = vst.msk [vmem:[#allocation3 + $0x3c] sm:$0x2] %vm256, %v1242
    %1488 = vst.msk [vmem:[#allocation3 + $0x44] sm:$0x2] %vm256, %v1209
    %1489 = vst.msk [vmem:[#allocation3 + $0x4c] sm:$0x2] %vm256, %v1244
    %1490 = vst.msk [vmem:[#allocation3 + $0x54] sm:$0x2] %vm256, %v1246
    %1491 = vst.msk [vmem:[#allocation3 + $0x5c] sm:$0x2] %vm256, %v1248
    %1492 = vst.msk [vmem:[#allocation3 + $0x64] sm:$0x2] %vm256, %v1250
    %1493 = vst.msk [vmem:[#allocation3 + $0x6c] sm:$0x2] %vm256, %v1252
    %1494 = vst.msk [vmem:[#allocation3 + $0x74] sm:$0x2] %vm256, %v1254
    %1495 = vst.msk [vmem:[#allocation3 + $0x7c] sm:$0x2] %vm256, %v1256
    %1496 = vst.msk [vmem:[#allocation3 + $0x3] sm:$0x4] %vm315, %v1014
    %1497 = vst.msk [vmem:[#allocation3 + $0xb] sm:$0x4] %vm315, %v1037
    %1498 = vst.msk [vmem:[#allocation3 + $0x13] sm:$0x4] %vm315, %v1039
    %1499 = vst.msk [vmem:[#allocation3 + $0x1b] sm:$0x4] %vm315, %v1041
    %1500 = vst.msk [vmem:[#allocation3 + $0x23] sm:$0x4] %vm315, %v1043
    %1501 = vst.msk [vmem:[#allocation3 + $0x2b] sm:$0x4] %vm315, %v1045
    %1502 = vst.msk [vmem:[#allocation3 + $0x33] sm:$0x4] %vm315, %v1047
    %1503 = vst.msk [vmem:[#allocation3 + $0x3b] sm:$0x4] %vm315, %v1049
    %1504 = vst.msk [vmem:[#allocation3 + $0x43] sm:$0x4] %vm315, %v1016
    %1505 = vst.msk [vmem:[#allocation3 + $0x4b] sm:$0x4] %vm315, %v1051
    %1506 = vst.msk [vmem:[#allocation3 + $0x53] sm:$0x4] %vm315, %v1053
    %1507 = vst.msk [vmem:[#allocation3 + $0x5b] sm:$0x4] %vm315, %v1055
    %1508 = vst.msk [vmem:[#allocation3 + $0x63] sm:$0x4] %vm315, %v1057
    %1509 = vst.msk [vmem:[#allocation3 + $0x6b] sm:$0x4] %vm315, %v1059
    %1510 = vst.msk [vmem:[#allocation3 + $0x73] sm:$0x4] %vm315, %v1061
    %1511 = vst.msk [vmem:[#allocation3 + $0x7b] sm:$0x4] %vm315, %v1063
    %1512 = vst.msk [vmem:[#allocation3 + $0x2] sm:$0x8] %vm374, %v821
    %1513 = vst.msk [vmem:[#allocation3 + $0xa] sm:$0x8] %vm374, %v844
    %1514 = vst.msk [vmem:[#allocation3 + $0x12] sm:$0x8] %vm374, %v846
    %1515 = vst.msk [vmem:[#allocation3 + $0x1a] sm:$0x8] %vm374, %v848
    %1516 = vst.msk [vmem:[#allocation3 + $0x22] sm:$0x8] %vm374, %v850
    %1517 = vst.msk [vmem:[#allocation3 + $0x2a] sm:$0x8] %vm374, %v852
    %1518 = vst.msk [vmem:[#allocation3 + $0x32] sm:$0x8] %vm374, %v854
    %1519 = vst.msk [vmem:[#allocation3 + $0x3a] sm:$0x8] %vm374, %v856
    %1520 = vst.msk [vmem:[#allocation3 + $0x42] sm:$0x8] %vm374, %v823
    %1521 = vst.msk [vmem:[#allocation3 + $0x4a] sm:$0x8] %vm374, %v858
    %1522 = vst.msk [vmem:[#allocation3 + $0x52] sm:$0x8] %vm374, %v860
    %1523 = vst.msk [vmem:[#allocation3 + $0x5a] sm:$0x8] %vm374, %v862
    %1524 = vst.msk [vmem:[#allocation3 + $0x62] sm:$0x8] %vm374, %v864
    %1525 = vst.msk [vmem:[#allocation3 + $0x6a] sm:$0x8] %vm374, %v866
    %1526 = vst.msk [vmem:[#allocation3 + $0x72] sm:$0x8] %vm374, %v868
    %1527 = vst.msk [vmem:[#allocation3 + $0x7a] sm:$0x8] %vm374, %v870
    %1528 = vst.msk [vmem:[#allocation3 + $0x1] sm:$0x10] %vm433, %v628
    %1529 = vst.msk [vmem:[#allocation3 + $0x9] sm:$0x10] %vm433, %v651
    %1530 = vst.msk [vmem:[#allocation3 + $0x11] sm:$0x10] %vm433, %v653
    %1531 = vst.msk [vmem:[#allocation3 + $0x19] sm:$0x10] %vm433, %v655
    %1532 = vst.msk [vmem:[#allocation3 + $0x21] sm:$0x10] %vm433, %v657
    %1533 = vst.msk [vmem:[#allocation3 + $0x29] sm:$0x10] %vm433, %v659
    %1534 = vst.msk [vmem:[#allocation3 + $0x31] sm:$0x10] %vm433, %v661
    %1535 = vst.msk [vmem:[#allocation3 + $0x39] sm:$0x10] %vm433, %v663
    %1536 = vst.msk [vmem:[#allocation3 + $0x41] sm:$0x10] %vm433, %v630
    %1537 = vst.msk [vmem:[#allocation3 + $0x49] sm:$0x10] %vm433, %v665
    %1538 = vst.msk [vmem:[#allocation3 + $0x51] sm:$0x10] %vm433, %v667
    %1539 = vst.msk [vmem:[#allocation3 + $0x59] sm:$0x10] %vm433, %v669
    %1540 = vst.msk [vmem:[#allocation3 + $0x61] sm:$0x10] %vm433, %v671
    %1541 = vst.msk [vmem:[#allocation3 + $0x69] sm:$0x10] %vm433, %v673
    %1542 = vst.msk [vmem:[#allocation3 + $0x71] sm:$0x10] %vm433, %v675
    %1543 = vst.msk [vmem:[#allocation3 + $0x79] sm:$0x10] %vm433, %v677
    %1544 = vst.msk [vmem:[#allocation3] sm:$0x20] %vm492, %v99
    %1545 = vst.msk [vmem:[#allocation3 + $0x8] sm:$0x20] %vm492, %v100
    %1546 = vst.msk [vmem:[#allocation3 + $0x10] sm:$0x20] %vm492, %v101
    %1547 = vst.msk [vmem:[#allocation3 + $0x18] sm:$0x20] %vm492, %v102
    %1548 = vst.msk [vmem:[#allocation3 + $0x20] sm:$0x20] %vm492, %v103
    %1549 = vst.msk [vmem:[#allocation3 + $0x28] sm:$0x20] %vm492, %v104
    %1550 = vst.msk [vmem:[#allocation3 + $0x30] sm:$0x20] %vm492, %v105
    %1551 = vst.msk [vmem:[#allocation3 + $0x38] sm:$0x20] %vm492, %v106
    %1552 = vst.msk [vmem:[#allocation3 + $0x40] sm:$0x20] %vm492, %v107
    %1553 = vst.msk [vmem:[#allocation3 + $0x48] sm:$0x20] %vm492, %v108
    %1554 = vst.msk [vmem:[#allocation3 + $0x50] sm:$0x20] %vm492, %v109
    %1555 = vst.msk [vmem:[#allocation3 + $0x58] sm:$0x20] %vm492, %v110
    %1556 = vst.msk [vmem:[#allocation3 + $0x60] sm:$0x20] %vm492, %v111
    %1557 = vst.msk [vmem:[#allocation3 + $0x68] sm:$0x20] %vm492, %v112
    %1558 = vst.msk [vmem:[#allocation3 + $0x70] sm:$0x20] %vm492, %v113
    %1559 = vst.msk [vmem:[#allocation3 + $0x78] sm:$0x20] %vm492, %v114
    %1560 = vst.msk [vmem:[#allocation3 - $0x1] sm:$0x40] %vm551, %v215
    %1561 = vst.msk [vmem:[#allocation3 + $0x7] sm:$0x40] %vm551, %v121
    %1562 = vst.msk [vmem:[#allocation3 + $0xf] sm:$0x40] %vm551, %v217
    %1563 = vst.msk [vmem:[#allocation3 + $0x17] sm:$0x40] %vm551, %v219
    %1564 = vst.msk [vmem:[#allocation3 + $0x1f] sm:$0x40] %vm551, %v221
    %1565 = vst.msk [vmem:[#allocation3 + $0x27] sm:$0x40] %vm551, %v223
    %1566 = vst.msk [vmem:[#allocation3 + $0x2f] sm:$0x40] %vm551, %v225
    %1567 = vst.msk [vmem:[#allocation3 + $0x37] sm:$0x40] %vm551, %v227
    %1568 = vst.msk [vmem:[#allocation3 + $0x3f] sm:$0x40] %vm551, %v229
    %1569 = vst.msk [vmem:[#allocation3 + $0x47] sm:$0x40] %vm551, %v123
    %1570 = vst.msk [vmem:[#allocation3 + $0x4f] sm:$0x40] %vm551, %v231
    %1571 = vst.msk [vmem:[#allocation3 + $0x57] sm:$0x40] %vm551, %v233
    %1572 = vst.msk [vmem:[#allocation3 + $0x5f] sm:$0x40] %vm551, %v235
    %1573 = vst.msk [vmem:[#allocation3 + $0x67] sm:$0x40] %vm551, %v237
    %1574 = vst.msk [vmem:[#allocation3 + $0x6f] sm:$0x40] %vm551, %v239
    %1575 = vst.msk [vmem:[#allocation3 + $0x77] sm:$0x40] %vm551, %v241
    %1576 = vst.msk [vmem:[#allocation3 - $0x2] sm:$0x80] %vm610, %v274
    %1577 = vst.msk [vmem:[#allocation3 + $0x6] sm:$0x80] %vm610, %v276
    %1578 = vst.msk [vmem:[#allocation3 + $0xe] sm:$0x80] %vm610, %v132
    %1579 = vst.msk [vmem:[#allocation3 + $0x16] sm:$0x80] %vm610, %v278
    %1580 = vst.msk [vmem:[#allocation3 + $0x1e] sm:$0x80] %vm610, %v280
    %1581 = vst.msk [vmem:[#allocation3 + $0x26] sm:$0x80] %vm610, %v282
    %1582 = vst.msk [vmem:[#allocation3 + $0x2e] sm:$0x80] %vm610, %v284
    %1583 = vst.msk [vmem:[#allocation3 + $0x36] sm:$0x80] %vm610, %v286
    %1584 = vst.msk [vmem:[#allocation3 + $0x3e] sm:$0x80] %vm610, %v288
    %1585 = vst.msk [vmem:[#allocation3 + $0x46] sm:$0x80] %vm610, %v290
    %1586 = vst.msk [vmem:[#allocation3 + $0x4e] sm:$0x80] %vm610, %v134
    %1587 = vst.msk [vmem:[#allocation3 + $0x56] sm:$0x80] %vm610, %v292
    %1588 = vst.msk [vmem:[#allocation3 + $0x5e] sm:$0x80] %vm610, %v294
    %1589 = vst.msk [vmem:[#allocation3 + $0x66] sm:$0x80] %vm610, %v296
    %1590 = vst.msk [vmem:[#allocation3 + $0x6e] sm:$0x80] %vm610, %v298
    %1591 = vst.msk [vmem:[#allocation3 + $0x76] sm:$0x80] %vm610, %v300
    %1592 = vrot.lane.b32.xlu0 %v99, 104
    %v1593 = vpop.permute.xlu0 %1592
    %1594 = vrot.lane.b32.xlu0 %v107, 104
    %v1595 = vpop.permute.xlu0 %1594
    %s1598 = scalar_lea.vmem [#allocation2], 48
    %1599 = vst.msk [vmem:[%s1598] sm:$0xff] %vm115, %v1593
    %1600 = vst.msk [vmem:[%s1598 + $0x40] sm:$0xff] %vm115, %v1595
    %1601 = vst.msk [vmem:[%s1598] sm:$0xff] %vm126, %v1423
    %1602 = vst.msk [vmem:[%s1598 + $0x40] sm:$0xff] %vm126, %v1437
    %1603 = vst.msk [vmem:[%s1598] sm:$0xff] %vm137, %v1232
    %1604 = vst.msk [vmem:[%s1598 + $0x40] sm:$0xff] %vm137, %v1246
    %1605 = vst.msk [vmem:[%s1598] sm:$0xff] %vm148, %v1041
    %1606 = vst.msk [vmem:[%s1598 + $0x40] sm:$0xff] %vm148, %v1055
    %1607 = vst.msk [vmem:[%s1598] sm:$0xff] %vm159, %v850
    %1608 = vst.msk [vmem:[%s1598 + $0x40] sm:$0xff] %vm159, %v864
    %1609 = vst.msk [vmem:[%s1598] sm:$0xff] %vm170, %v659
    %1610 = vst.msk [vmem:[%s1598 + $0x40] sm:$0xff] %vm170, %v673
    %1611 = vst.msk [vmem:[%s1598] sm:$0xff] %vm181, %v105
    %1612 = vst.msk [vmem:[%s1598 + $0x40] sm:$0xff] %vm181, %v113
    %1613 = vst.msk [vmem:[%s1598] sm:$0xff] %vm192, %v227
    %1614 = vst.msk [vmem:[%s1598 + $0x40] sm:$0xff] %vm192, %v241
    %1615 = vrot.lane.b32.xlu0 %v100, 104
    %v1616 = vpop.permute.xlu0 %1615
    %1617 = vrot.lane.b32.xlu0 %v101, 104
    %v1618 = vpop.permute.xlu0 %1617
    %1619 = vrot.lane.b32.xlu0 %v102, 104
    %v1620 = vpop.permute.xlu0 %1619
    %1621 = vrot.lane.b32.xlu0 %v103, 104
    %v1622 = vpop.permute.xlu0 %1621
    %1623 = vrot.lane.b32.xlu0 %v104, 104
    %v1624 = vpop.permute.xlu0 %1623
    %1625 = vrot.lane.b32.xlu0 %v105, 104
    %v1626 = vpop.permute.xlu0 %1625
    %1627 = vrot.lane.b32.xlu0 %v106, 104
    %v1628 = vpop.permute.xlu0 %1627
    %1629 = vrot.lane.b32.xlu0 %v108, 104
    %v1630 = vpop.permute.xlu0 %1629
    %1631 = vrot.lane.b32.xlu0 %v109, 104
    %v1632 = vpop.permute.xlu0 %1631
    %1633 = vrot.lane.b32.xlu0 %v110, 104
    %v1634 = vpop.permute.xlu0 %1633
    %1635 = vrot.lane.b32.xlu0 %v111, 104
    %v1636 = vpop.permute.xlu0 %1635
    %1637 = vrot.lane.b32.xlu0 %v112, 104
    %v1638 = vpop.permute.xlu0 %1637
    %1639 = vrot.lane.b32.xlu0 %v113, 104
    %v1640 = vpop.permute.xlu0 %1639
    %1641 = vrot.lane.b32.xlu0 %v114, 104
    %v1642 = vpop.permute.xlu0 %1641
    %1657 = vst.msk [vmem:[#allocation3 + $0x6] sm:$0x1] %vm195, %v1593
    %1658 = vst.msk [vmem:[#allocation3 + $0xe] sm:$0x1] %vm195, %v1616
    %1659 = vst.msk [vmem:[#allocation3 + $0x16] sm:$0x1] %vm195, %v1618
    %1660 = vst.msk [vmem:[#allocation3 + $0x1e] sm:$0x1] %vm195, %v1620
    %1661 = vst.msk [vmem:[#allocation3 + $0x26] sm:$0x1] %vm195, %v1622
    %1662 = vst.msk [vmem:[#allocation3 + $0x2e] sm:$0x1] %vm195, %v1624
    %1663 = vst.msk [vmem:[#allocation3 + $0x36] sm:$0x1] %vm195, %v1626
    %1664 = vst.msk [vmem:[#allocation3 + $0x3e] sm:$0x1] %vm195, %v1628
    %1665 = vst.msk [vmem:[#allocation3 + $0x46] sm:$0x1] %vm195, %v1595
    %1666 = vst.msk [vmem:[#allocation3 + $0x4e] sm:$0x1] %vm195, %v1630
    %1667 = vst.msk [vmem:[#allocation3 + $0x56] sm:$0x1] %vm195, %v1632
    %1668 = vst.msk [vmem:[#allocation3 + $0x5e] sm:$0x1] %vm195, %v1634
    %1669 = vst.msk [vmem:[#allocation3 + $0x66] sm:$0x1] %vm195, %v1636
    %1670 = vst.msk [vmem:[#allocation3 + $0x6e] sm:$0x1] %vm195, %v1638
    %1671 = vst.msk [vmem:[#allocation3 + $0x76] sm:$0x1] %vm195, %v1640
    %1672 = vst.msk [vmem:[#allocation3 + $0x7e] sm:$0x1] %vm195, %v1642
    %1673 = vst.msk [vmem:[#allocation3 + $0x5] sm:$0x2] %vm256, %v1400
    %1674 = vst.msk [vmem:[#allocation3 + $0xd] sm:$0x2] %vm256, %v1423
    %1675 = vst.msk [vmem:[#allocation3 + $0x15] sm:$0x2] %vm256, %v1425
    %1676 = vst.msk [vmem:[#allocation3 + $0x1d] sm:$0x2] %vm256, %v1427
    %1677 = vst.msk [vmem:[#allocation3 + $0x25] sm:$0x2] %vm256, %v1429
    %1678 = vst.msk [vmem:[#allocation3 + $0x2d] sm:$0x2] %vm256, %v1431
    %1679 = vst.msk [vmem:[#allocation3 + $0x35] sm:$0x2] %vm256, %v1433
    %1680 = vst.msk [vmem:[#allocation3 + $0x3d] sm:$0x2] %vm256, %v1435
    %1681 = vst.msk [vmem:[#allocation3 + $0x45] sm:$0x2] %vm256, %v1402
    %1682 = vst.msk [vmem:[#allocation3 + $0x4d] sm:$0x2] %vm256, %v1437
    %1683 = vst.msk [vmem:[#allocation3 + $0x55] sm:$0x2] %vm256, %v1439
    %1684 = vst.msk [vmem:[#allocation3 + $0x5d] sm:$0x2] %vm256, %v1441
    %1685 = vst.msk [vmem:[#allocation3 + $0x65] sm:$0x2] %vm256, %v1443
    %1686 = vst.msk [vmem:[#allocation3 + $0x6d] sm:$0x2] %vm256, %v1445
    %1687 = vst.msk [vmem:[#allocation3 + $0x75] sm:$0x2] %vm256, %v1447
    %1688 = vst.msk [vmem:[#allocation3 + $0x7d] sm:$0x2] %vm256, %v1449
    %1689 = vst.msk [vmem:[#allocation3 + $0x4] sm:$0x4] %vm315, %v1207
    %1690 = vst.msk [vmem:[#allocation3 + $0xc] sm:$0x4] %vm315, %v1230
    %1691 = vst.msk [vmem:[#allocation3 + $0x14] sm:$0x4] %vm315, %v1232
    %1692 = vst.msk [vmem:[#allocation3 + $0x1c] sm:$0x4] %vm315, %v1234
    %1693 = vst.msk [vmem:[#allocation3 + $0x24] sm:$0x4] %vm315, %v1236
    %1694 = vst.msk [vmem:[#allocation3 + $0x2c] sm:$0x4] %vm315, %v1238
    %1695 = vst.msk [vmem:[#allocation3 + $0x34] sm:$0x4] %vm315, %v1240
    %1696 = vst.msk [vmem:[#allocation3 + $0x3c] sm:$0x4] %vm315, %v1242
    %1697 = vst.msk [vmem:[#allocation3 + $0x44] sm:$0x4] %vm315, %v1209
    %1698 = vst.msk [vmem:[#allocation3 + $0x4c] sm:$0x4] %vm315, %v1244
    %1699 = vst.msk [vmem:[#allocation3 + $0x54] sm:$0x4] %vm315, %v1246
    %1700 = vst.msk [vmem:[#allocation3 + $0x5c] sm:$0x4] %vm315, %v1248
    %1701 = vst.msk [vmem:[#allocation3 + $0x64] sm:$0x4] %vm315, %v1250
    %1702 = vst.msk [vmem:[#allocation3 + $0x6c] sm:$0x4] %vm315, %v1252
    %1703 = vst.msk [vmem:[#allocation3 + $0x74] sm:$0x4] %vm315, %v1254
    %1704 = vst.msk [vmem:[#allocation3 + $0x7c] sm:$0x4] %vm315, %v1256
    %1705 = vst.msk [vmem:[#allocation3 + $0x3] sm:$0x8] %vm374, %v1014
    %1706 = vst.msk [vmem:[#allocation3 + $0xb] sm:$0x8] %vm374, %v1037
    %1707 = vst.msk [vmem:[#allocation3 + $0x13] sm:$0x8] %vm374, %v1039
    %1708 = vst.msk [vmem:[#allocation3 + $0x1b] sm:$0x8] %vm374, %v1041
    %1709 = vst.msk [vmem:[#allocation3 + $0x23] sm:$0x8] %vm374, %v1043
    %1710 = vst.msk [vmem:[#allocation3 + $0x2b] sm:$0x8] %vm374, %v1045
    %1711 = vst.msk [vmem:[#allocation3 + $0x33] sm:$0x8] %vm374, %v1047
    %1712 = vst.msk [vmem:[#allocation3 + $0x3b] sm:$0x8] %vm374, %v1049
    %1713 = vst.msk [vmem:[#allocation3 + $0x43] sm:$0x8] %vm374, %v1016
    %1714 = vst.msk [vmem:[#allocation3 + $0x4b] sm:$0x8] %vm374, %v1051
    %1715 = vst.msk [vmem:[#allocation3 + $0x53] sm:$0x8] %vm374, %v1053
    %1716 = vst.msk [vmem:[#allocation3 + $0x5b] sm:$0x8] %vm374, %v1055
    %1717 = vst.msk [vmem:[#allocation3 + $0x63] sm:$0x8] %vm374, %v1057
    %1718 = vst.msk [vmem:[#allocation3 + $0x6b] sm:$0x8] %vm374, %v1059
    %1719 = vst.msk [vmem:[#allocation3 + $0x73] sm:$0x8] %vm374, %v1061
    %1720 = vst.msk [vmem:[#allocation3 + $0x7b] sm:$0x8] %vm374, %v1063
    %1721 = vst.msk [vmem:[#allocation3 + $0x2] sm:$0x10] %vm433, %v821
    %1722 = vst.msk [vmem:[#allocation3 + $0xa] sm:$0x10] %vm433, %v844
    %1723 = vst.msk [vmem:[#allocation3 + $0x12] sm:$0x10] %vm433, %v846
    %1724 = vst.msk [vmem:[#allocation3 + $0x1a] sm:$0x10] %vm433, %v848
    %1725 = vst.msk [vmem:[#allocation3 + $0x22] sm:$0x10] %vm433, %v850
    %1726 = vst.msk [vmem:[#allocation3 + $0x2a] sm:$0x10] %vm433, %v852
    %1727 = vst.msk [vmem:[#allocation3 + $0x32] sm:$0x10] %vm433, %v854
    %1728 = vst.msk [vmem:[#allocation3 + $0x3a] sm:$0x10] %vm433, %v856
    %1729 = vst.msk [vmem:[#allocation3 + $0x42] sm:$0x10] %vm433, %v823
    %1730 = vst.msk [vmem:[#allocation3 + $0x4a] sm:$0x10] %vm433, %v858
    %1731 = vst.msk [vmem:[#allocation3 + $0x52] sm:$0x10] %vm433, %v860
    %1732 = vst.msk [vmem:[#allocation3 + $0x5a] sm:$0x10] %vm433, %v862
    %1733 = vst.msk [vmem:[#allocation3 + $0x62] sm:$0x10] %vm433, %v864
    %1734 = vst.msk [vmem:[#allocation3 + $0x6a] sm:$0x10] %vm433, %v866
    %1735 = vst.msk [vmem:[#allocation3 + $0x72] sm:$0x10] %vm433, %v868
    %1736 = vst.msk [vmem:[#allocation3 + $0x7a] sm:$0x10] %vm433, %v870
    %1737 = vst.msk [vmem:[#allocation3 + $0x1] sm:$0x20] %vm492, %v628
    %1738 = vst.msk [vmem:[#allocation3 + $0x9] sm:$0x20] %vm492, %v651
    %1739 = vst.msk [vmem:[#allocation3 + $0x11] sm:$0x20] %vm492, %v653
    %1740 = vst.msk [vmem:[#allocation3 + $0x19] sm:$0x20] %vm492, %v655
    %1741 = vst.msk [vmem:[#allocation3 + $0x21] sm:$0x20] %vm492, %v657
    %1742 = vst.msk [vmem:[#allocation3 + $0x29] sm:$0x20] %vm492, %v659
    %1743 = vst.msk [vmem:[#allocation3 + $0x31] sm:$0x20] %vm492, %v661
    %1744 = vst.msk [vmem:[#allocation3 + $0x39] sm:$0x20] %vm492, %v663
    %1745 = vst.msk [vmem:[#allocation3 + $0x41] sm:$0x20] %vm492, %v630
    %1746 = vst.msk [vmem:[#allocation3 + $0x49] sm:$0x20] %vm492, %v665
    %1747 = vst.msk [vmem:[#allocation3 + $0x51] sm:$0x20] %vm492, %v667
    %1748 = vst.msk [vmem:[#allocation3 + $0x59] sm:$0x20] %vm492, %v669
    %1749 = vst.msk [vmem:[#allocation3 + $0x61] sm:$0x20] %vm492, %v671
    %1750 = vst.msk [vmem:[#allocation3 + $0x69] sm:$0x20] %vm492, %v673
    %1751 = vst.msk [vmem:[#allocation3 + $0x71] sm:$0x20] %vm492, %v675
    %1752 = vst.msk [vmem:[#allocation3 + $0x79] sm:$0x20] %vm492, %v677
    %1753 = vst.msk [vmem:[#allocation3] sm:$0x40] %vm551, %v99
    %1754 = vst.msk [vmem:[#allocation3 + $0x8] sm:$0x40] %vm551, %v100
    %1755 = vst.msk [vmem:[#allocation3 + $0x10] sm:$0x40] %vm551, %v101
    %1756 = vst.msk [vmem:[#allocation3 + $0x18] sm:$0x40] %vm551, %v102
    %1757 = vst.msk [vmem:[#allocation3 + $0x20] sm:$0x40] %vm551, %v103
    %1758 = vst.msk [vmem:[#allocation3 + $0x28] sm:$0x40] %vm551, %v104
    %1759 = vst.msk [vmem:[#allocation3 + $0x30] sm:$0x40] %vm551, %v105
    %1760 = vst.msk [vmem:[#allocation3 + $0x38] sm:$0x40] %vm551, %v106
    %1761 = vst.msk [vmem:[#allocation3 + $0x40] sm:$0x40] %vm551, %v107
    %1762 = vst.msk [vmem:[#allocation3 + $0x48] sm:$0x40] %vm551, %v108
    %1763 = vst.msk [vmem:[#allocation3 + $0x50] sm:$0x40] %vm551, %v109
    %1764 = vst.msk [vmem:[#allocation3 + $0x58] sm:$0x40] %vm551, %v110
    %1765 = vst.msk [vmem:[#allocation3 + $0x60] sm:$0x40] %vm551, %v111
    %1766 = vst.msk [vmem:[#allocation3 + $0x68] sm:$0x40] %vm551, %v112
    %1767 = vst.msk [vmem:[#allocation3 + $0x70] sm:$0x40] %vm551, %v113
    %1768 = vst.msk [vmem:[#allocation3 + $0x78] sm:$0x40] %vm551, %v114
    %1769 = vst.msk [vmem:[#allocation3 - $0x1] sm:$0x80] %vm610, %v215
    %1770 = vst.msk [vmem:[#allocation3 + $0x7] sm:$0x80] %vm610, %v121
    %1771 = vst.msk [vmem:[#allocation3 + $0xf] sm:$0x80] %vm610, %v217
    %1772 = vst.msk [vmem:[#allocation3 + $0x17] sm:$0x80] %vm610, %v219
    %1773 = vst.msk [vmem:[#allocation3 + $0x1f] sm:$0x80] %vm610, %v221
    %1774 = vst.msk [vmem:[#allocation3 + $0x27] sm:$0x80] %vm610, %v223
    %1775 = vst.msk [vmem:[#allocation3 + $0x2f] sm:$0x80] %vm610, %v225
    %1776 = vst.msk [vmem:[#allocation3 + $0x37] sm:$0x80] %vm610, %v227
    %1777 = vst.msk [vmem:[#allocation3 + $0x3f] sm:$0x80] %vm610, %v229
    %1778 = vst.msk [vmem:[#allocation3 + $0x47] sm:$0x80] %vm610, %v123
    %1779 = vst.msk [vmem:[#allocation3 + $0x4f] sm:$0x80] %vm610, %v231
    %1780 = vst.msk [vmem:[#allocation3 + $0x57] sm:$0x80] %vm610, %v233
    %1781 = vst.msk [vmem:[#allocation3 + $0x5f] sm:$0x80] %vm610, %v235
    %1782 = vst.msk [vmem:[#allocation3 + $0x67] sm:$0x80] %vm610, %v237
    %1783 = vst.msk [vmem:[#allocation3 + $0x6f] sm:$0x80] %vm610, %v239
    %1784 = vst.msk [vmem:[#allocation3 + $0x77] sm:$0x80] %vm610, %v241
    %1785 = vrot.lane.b32.xlu0 %v99, 100
    %v1786 = vpop.permute.xlu0 %1785
    %1787 = vrot.lane.b32.xlu0 %v107, 100
    %v1788 = vpop.permute.xlu0 %1787
    %s1791 = scalar_lea.vmem [#allocation2], 56
    %1792 = vst.msk [vmem:[%s1791] sm:$0xff] %vm115, %v1786
    %1793 = vst.msk [vmem:[%s1791 + $0x40] sm:$0xff] %vm115, %v1788
    %1794 = vst.msk [vmem:[%s1791] sm:$0xff] %vm126, %v1616
    %1795 = vst.msk [vmem:[%s1791 + $0x40] sm:$0xff] %vm126, %v1630
    %1796 = vst.msk [vmem:[%s1791] sm:$0xff] %vm137, %v1425
    %1797 = vst.msk [vmem:[%s1791 + $0x40] sm:$0xff] %vm137, %v1439
    %1798 = vst.msk [vmem:[%s1791] sm:$0xff] %vm148, %v1234
    %1799 = vst.msk [vmem:[%s1791 + $0x40] sm:$0xff] %vm148, %v1248
    %1800 = vst.msk [vmem:[%s1791] sm:$0xff] %vm159, %v1043
    %1801 = vst.msk [vmem:[%s1791 + $0x40] sm:$0xff] %vm159, %v1057
    %1802 = vst.msk [vmem:[%s1791] sm:$0xff] %vm170, %v852
    %1803 = vst.msk [vmem:[%s1791 + $0x40] sm:$0xff] %vm170, %v866
    %1804 = vst.msk [vmem:[%s1791] sm:$0xff] %vm181, %v661
    %1805 = vst.msk [vmem:[%s1791 + $0x40] sm:$0xff] %vm181, %v675
    %1806 = vst.msk [vmem:[%s1791] sm:$0xff] %vm192, %v106
    %1807 = vst.msk [vmem:[%s1791 + $0x40] sm:$0xff] %vm192, %v114
    %1808 = vrot.lane.b32.xlu0 %v100, 100
    %v1809 = vpop.permute.xlu0 %1808
    %1810 = vrot.lane.b32.xlu0 %v101, 100
    %v1811 = vpop.permute.xlu0 %1810
    %1812 = vrot.lane.b32.xlu0 %v102, 100
    %v1813 = vpop.permute.xlu0 %1812
    %1814 = vrot.lane.b32.xlu0 %v103, 100
    %v1815 = vpop.permute.xlu0 %1814
    %1816 = vrot.lane.b32.xlu0 %v104, 100
    %v1817 = vpop.permute.xlu0 %1816
    %1818 = vrot.lane.b32.xlu0 %v105, 100
    %v1819 = vpop.permute.xlu0 %1818
    %1820 = vrot.lane.b32.xlu0 %v106, 100
    %v1821 = vpop.permute.xlu0 %1820
    %1822 = vrot.lane.b32.xlu0 %v108, 100
    %v1823 = vpop.permute.xlu0 %1822
    %1824 = vrot.lane.b32.xlu0 %v109, 100
    %v1825 = vpop.permute.xlu0 %1824
    %1826 = vrot.lane.b32.xlu0 %v110, 100
    %v1827 = vpop.permute.xlu0 %1826
    %1828 = vrot.lane.b32.xlu0 %v111, 100
    %v1829 = vpop.permute.xlu0 %1828
    %1830 = vrot.lane.b32.xlu0 %v112, 100
    %v1831 = vpop.permute.xlu0 %1830
    %1832 = vrot.lane.b32.xlu0 %v113, 100
    %v1833 = vpop.permute.xlu0 %1832
    %1834 = vrot.lane.b32.xlu0 %v114, 100
    %v1835 = vpop.permute.xlu0 %1834
    %1850 = vst.msk [vmem:[#allocation3 + $0x7] sm:$0x1] %vm195, %v1786
    %1851 = vst.msk [vmem:[#allocation3 + $0xf] sm:$0x1] %vm195, %v1809
    %1852 = vst.msk [vmem:[#allocation3 + $0x17] sm:$0x1] %vm195, %v1811
    %1853 = vst.msk [vmem:[#allocation3 + $0x1f] sm:$0x1] %vm195, %v1813
    %1854 = vst.msk [vmem:[#allocation3 + $0x27] sm:$0x1] %vm195, %v1815
    %1855 = vst.msk [vmem:[#allocation3 + $0x2f] sm:$0x1] %vm195, %v1817
    %1856 = vst.msk [vmem:[#allocation3 + $0x37] sm:$0x1] %vm195, %v1819
    %1857 = vst.msk [vmem:[#allocation3 + $0x3f] sm:$0x1] %vm195, %v1821
    %1858 = vst.msk [vmem:[#allocation3 + $0x47] sm:$0x1] %vm195, %v1788
    %1859 = vst.msk [vmem:[#allocation3 + $0x4f] sm:$0x1] %vm195, %v1823
    %1860 = vst.msk [vmem:[#allocation3 + $0x57] sm:$0x1] %vm195, %v1825
    %1861 = vst.msk [vmem:[#allocation3 + $0x5f] sm:$0x1] %vm195, %v1827
    %1862 = vst.msk [vmem:[#allocation3 + $0x67] sm:$0x1] %vm195, %v1829
    %1863 = vst.msk [vmem:[#allocation3 + $0x6f] sm:$0x1] %vm195, %v1831
    %1864 = vst.msk [vmem:[#allocation3 + $0x77] sm:$0x1] %vm195, %v1833
    %1865 = vst.msk [vmem:[#allocation3 + $0x7f] sm:$0x1] %vm195, %v1835
    %1866 = vst.msk [vmem:[#allocation3 + $0x6] sm:$0x2] %vm256, %v1593
    %1867 = vst.msk [vmem:[#allocation3 + $0xe] sm:$0x2] %vm256, %v1616
    %1868 = vst.msk [vmem:[#allocation3 + $0x16] sm:$0x2] %vm256, %v1618
    %1869 = vst.msk [vmem:[#allocation3 + $0x1e] sm:$0x2] %vm256, %v1620
    %1870 = vst.msk [vmem:[#allocation3 + $0x26] sm:$0x2] %vm256, %v1622
    %1871 = vst.msk [vmem:[#allocation3 + $0x2e] sm:$0x2] %vm256, %v1624
    %1872 = vst.msk [vmem:[#allocation3 + $0x36] sm:$0x2] %vm256, %v1626
    %1873 = vst.msk [vmem:[#allocation3 + $0x3e] sm:$0x2] %vm256, %v1628
    %1874 = vst.msk [vmem:[#allocation3 + $0x46] sm:$0x2] %vm256, %v1595
    %1875 = vst.msk [vmem:[#allocation3 + $0x4e] sm:$0x2] %vm256, %v1630
    %1876 = vst.msk [vmem:[#allocation3 + $0x56] sm:$0x2] %vm256, %v1632
    %1877 = vst.msk [vmem:[#allocation3 + $0x5e] sm:$0x2] %vm256, %v1634
    %1878 = vst.msk [vmem:[#allocation3 + $0x66] sm:$0x2] %vm256, %v1636
    %1879 = vst.msk [vmem:[#allocation3 + $0x6e] sm:$0x2] %vm256, %v1638
    %1880 = vst.msk [vmem:[#allocation3 + $0x76] sm:$0x2] %vm256, %v1640
    %1881 = vst.msk [vmem:[#allocation3 + $0x7e] sm:$0x2] %vm256, %v1642
    %1882 = vst.msk [vmem:[#allocation3 + $0x5] sm:$0x4] %vm315, %v1400
    %1883 = vst.msk [vmem:[#allocation3 + $0xd] sm:$0x4] %vm315, %v1423
    %1884 = vst.msk [vmem:[#allocation3 + $0x15] sm:$0x4] %vm315, %v1425
    %1885 = vst.msk [vmem:[#allocation3 + $0x1d] sm:$0x4] %vm315, %v1427
    %1886 = vst.msk [vmem:[#allocation3 + $0x25] sm:$0x4] %vm315, %v1429
    %1887 = vst.msk [vmem:[#allocation3 + $0x2d] sm:$0x4] %vm315, %v1431
    %1888 = vst.msk [vmem:[#allocation3 + $0x35] sm:$0x4] %vm315, %v1433
    %1889 = vst.msk [vmem:[#allocation3 + $0x3d] sm:$0x4] %vm315, %v1435
    %1890 = vst.msk [vmem:[#allocation3 + $0x45] sm:$0x4] %vm315, %v1402
    %1891 = vst.msk [vmem:[#allocation3 + $0x4d] sm:$0x4] %vm315, %v1437
    %1892 = vst.msk [vmem:[#allocation3 + $0x55] sm:$0x4] %vm315, %v1439
    %1893 = vst.msk [vmem:[#allocation3 + $0x5d] sm:$0x4] %vm315, %v1441
    %1894 = vst.msk [vmem:[#allocation3 + $0x65] sm:$0x4] %vm315, %v1443
    %1895 = vst.msk [vmem:[#allocation3 + $0x6d] sm:$0x4] %vm315, %v1445
    %1896 = vst.msk [vmem:[#allocation3 + $0x75] sm:$0x4] %vm315, %v1447
    %1897 = vst.msk [vmem:[#allocation3 + $0x7d] sm:$0x4] %vm315, %v1449
    %1898 = vst.msk [vmem:[#allocation3 + $0x4] sm:$0x8] %vm374, %v1207
    %1899 = vst.msk [vmem:[#allocation3 + $0xc] sm:$0x8] %vm374, %v1230
    %1900 = vst.msk [vmem:[#allocation3 + $0x14] sm:$0x8] %vm374, %v1232
    %1901 = vst.msk [vmem:[#allocation3 + $0x1c] sm:$0x8] %vm374, %v1234
    %1902 = vst.msk [vmem:[#allocation3 + $0x24] sm:$0x8] %vm374, %v1236
    %1903 = vst.msk [vmem:[#allocation3 + $0x2c] sm:$0x8] %vm374, %v1238
    %1904 = vst.msk [vmem:[#allocation3 + $0x34] sm:$0x8] %vm374, %v1240
    %1905 = vst.msk [vmem:[#allocation3 + $0x3c] sm:$0x8] %vm374, %v1242
    %1906 = vst.msk [vmem:[#allocation3 + $0x44] sm:$0x8] %vm374, %v1209
    %1907 = vst.msk [vmem:[#allocation3 + $0x4c] sm:$0x8] %vm374, %v1244
    %1908 = vst.msk [vmem:[#allocation3 + $0x54] sm:$0x8] %vm374, %v1246
    %1909 = vst.msk [vmem:[#allocation3 + $0x5c] sm:$0x8] %vm374, %v1248
    %1910 = vst.msk [vmem:[#allocation3 + $0x64] sm:$0x8] %vm374, %v1250
    %1911 = vst.msk [vmem:[#allocation3 + $0x6c] sm:$0x8] %vm374, %v1252
    %1912 = vst.msk [vmem:[#allocation3 + $0x74] sm:$0x8] %vm374, %v1254
    %1913 = vst.msk [vmem:[#allocation3 + $0x7c] sm:$0x8] %vm374, %v1256
    %1914 = vst.msk [vmem:[#allocation3 + $0x3] sm:$0x10] %vm433, %v1014
    %1915 = vst.msk [vmem:[#allocation3 + $0xb] sm:$0x10] %vm433, %v1037
    %1916 = vst.msk [vmem:[#allocation3 + $0x13] sm:$0x10] %vm433, %v1039
    %1917 = vst.msk [vmem:[#allocation3 + $0x1b] sm:$0x10] %vm433, %v1041
    %1918 = vst.msk [vmem:[#allocation3 + $0x23] sm:$0x10] %vm433, %v1043
    %1919 = vst.msk [vmem:[#allocation3 + $0x2b] sm:$0x10] %vm433, %v1045
    %1920 = vst.msk [vmem:[#allocation3 + $0x33] sm:$0x10] %vm433, %v1047
    %1921 = vst.msk [vmem:[#allocation3 + $0x3b] sm:$0x10] %vm433, %v1049
    %1922 = vst.msk [vmem:[#allocation3 + $0x43] sm:$0x10] %vm433, %v1016
    %1923 = vst.msk [vmem:[#allocation3 + $0x4b] sm:$0x10] %vm433, %v1051
    %1924 = vst.msk [vmem:[#allocation3 + $0x53] sm:$0x10] %vm433, %v1053
    %1925 = vst.msk [vmem:[#allocation3 + $0x5b] sm:$0x10] %vm433, %v1055
    %1926 = vst.msk [vmem:[#allocation3 + $0x63] sm:$0x10] %vm433, %v1057
    %1927 = vst.msk [vmem:[#allocation3 + $0x6b] sm:$0x10] %vm433, %v1059
    %1928 = vst.msk [vmem:[#allocation3 + $0x73] sm:$0x10] %vm433, %v1061
    %1929 = vst.msk [vmem:[#allocation3 + $0x7b] sm:$0x10] %vm433, %v1063
    %1930 = vst.msk [vmem:[#allocation3 + $0x2] sm:$0x20] %vm492, %v821
    %1931 = vst.msk [vmem:[#allocation3 + $0xa] sm:$0x20] %vm492, %v844
    %1932 = vst.msk [vmem:[#allocation3 + $0x12] sm:$0x20] %vm492, %v846
    %1933 = vst.msk [vmem:[#allocation3 + $0x1a] sm:$0x20] %vm492, %v848
    %1934 = vst.msk [vmem:[#allocation3 + $0x22] sm:$0x20] %vm492, %v850
    %1935 = vst.msk [vmem:[#allocation3 + $0x2a] sm:$0x20] %vm492, %v852
    %1936 = vst.msk [vmem:[#allocation3 + $0x32] sm:$0x20] %vm492, %v854
    %1937 = vst.msk [vmem:[#allocation3 + $0x3a] sm:$0x20] %vm492, %v856
    %1938 = vst.msk [vmem:[#allocation3 + $0x42] sm:$0x20] %vm492, %v823
    %1939 = vst.msk [vmem:[#allocation3 + $0x4a] sm:$0x20] %vm492, %v858
    %1940 = vst.msk [vmem:[#allocation3 + $0x52] sm:$0x20] %vm492, %v860
    %1941 = vst.msk [vmem:[#allocation3 + $0x5a] sm:$0x20] %vm492, %v862
    %1942 = vst.msk [vmem:[#allocation3 + $0x62] sm:$0x20] %vm492, %v864
    %1943 = vst.msk [vmem:[#allocation3 + $0x6a] sm:$0x20] %vm492, %v866
    %1944 = vst.msk [vmem:[#allocation3 + $0x72] sm:$0x20] %vm492, %v868
    %1945 = vst.msk [vmem:[#allocation3 + $0x7a] sm:$0x20] %vm492, %v870
    %1946 = vst.msk [vmem:[#allocation3 + $0x1] sm:$0x40] %vm551, %v628
    %1947 = vst.msk [vmem:[#allocation3 + $0x9] sm:$0x40] %vm551, %v651
    %1948 = vst.msk [vmem:[#allocation3 + $0x11] sm:$0x40] %vm551, %v653
    %1949 = vst.msk [vmem:[#allocation3 + $0x19] sm:$0x40] %vm551, %v655
    %1950 = vst.msk [vmem:[#allocation3 + $0x21] sm:$0x40] %vm551, %v657
    %1951 = vst.msk [vmem:[#allocation3 + $0x29] sm:$0x40] %vm551, %v659
    %1952 = vst.msk [vmem:[#allocation3 + $0x31] sm:$0x40] %vm551, %v661
    %1953 = vst.msk [vmem:[#allocation3 + $0x39] sm:$0x40] %vm551, %v663
    %1954 = vst.msk [vmem:[#allocation3 + $0x41] sm:$0x40] %vm551, %v630
    %1955 = vst.msk [vmem:[#allocation3 + $0x49] sm:$0x40] %vm551, %v665
    %1956 = vst.msk [vmem:[#allocation3 + $0x51] sm:$0x40] %vm551, %v667
    %1957 = vst.msk [vmem:[#allocation3 + $0x59] sm:$0x40] %vm551, %v669
    %1958 = vst.msk [vmem:[#allocation3 + $0x61] sm:$0x40] %vm551, %v671
    %1959 = vst.msk [vmem:[#allocation3 + $0x69] sm:$0x40] %vm551, %v673
    %1960 = vst.msk [vmem:[#allocation3 + $0x71] sm:$0x40] %vm551, %v675
    %1961 = vst.msk [vmem:[#allocation3 + $0x79] sm:$0x40] %vm551, %v677
    %1962 = vst.msk [vmem:[#allocation3] sm:$0x80] %vm610, %v99
    %1963 = vst.msk [vmem:[#allocation3 + $0x8] sm:$0x80] %vm610, %v100
    %1964 = vst.msk [vmem:[#allocation3 + $0x10] sm:$0x80] %vm610, %v101
    %1965 = vst.msk [vmem:[#allocation3 + $0x18] sm:$0x80] %vm610, %v102
    %1966 = vst.msk [vmem:[#allocation3 + $0x20] sm:$0x80] %vm610, %v103
    %1967 = vst.msk [vmem:[#allocation3 + $0x28] sm:$0x80] %vm610, %v104
    %1968 = vst.msk [vmem:[#allocation3 + $0x30] sm:$0x80] %vm610, %v105
    %1969 = vst.msk [vmem:[#allocation3 + $0x38] sm:$0x80] %vm610, %v106
    %1970 = vst.msk [vmem:[#allocation3 + $0x40] sm:$0x80] %vm610, %v107
    %1971 = vst.msk [vmem:[#allocation3 + $0x48] sm:$0x80] %vm610, %v108
    %1972 = vst.msk [vmem:[#allocation3 + $0x50] sm:$0x80] %vm610, %v109
    %1973 = vst.msk [vmem:[#allocation3 + $0x58] sm:$0x80] %vm610, %v110
    %1974 = vst.msk [vmem:[#allocation3 + $0x60] sm:$0x80] %vm610, %v111
    %1975 = vst.msk [vmem:[#allocation3 + $0x68] sm:$0x80] %vm610, %v112
    %1976 = vst.msk [vmem:[#allocation3 + $0x70] sm:$0x80] %vm610, %v113
    %1977 = vst.msk [vmem:[#allocation3 + $0x78] sm:$0x80] %vm610, %v114
    %v1978 = vld [vmem:[%s1] sm:$0xff]
    %v1979 = vld [vmem:[%s1 + $0x8] sm:$0xff]
    %v1980 = vld [vmem:[%s1 + $0x10] sm:$0xff]
    %v1981 = vld [vmem:[%s1 + $0x18] sm:$0xff]
    %vm1982 = vcmask 261120
    %v1983 = vsel %vm1982, %v99, 0
    %v1985 = vsel %vm1982, %v100, 0
    %v1987 = vsel %vm1982, %v101, 0
    %v1989 = vsel %vm1982, %v102, 0
    %v1991 = vsel %vm1982, %v103, 0
    %v1993 = vsel %vm1982, %v104, 0
    %v1995 = vsel %vm1982, %v105, 0
    %v1997 = vsel %vm1982, %v106, 0
    %v1999 = vsel %vm1982, %v107, 0
    %v2001 = vsel %vm1982, %v108, 0
    %v2003 = vsel %vm1982, %v109, 0
    %v2005 = vsel %vm1982, %v110, 0
    %v2007 = vsel %vm1982, %v111, 0
    %v2009 = vsel %vm1982, %v112, 0
    %v2011 = vsel %vm1982, %v113, 0
    %v2013 = vsel %vm1982, %v114, 0
    %2015 = vmatpush.msra.mxu0 0.0
    %2016 = vmatpush.msra.mxu0 0.0
    %2017 = vmatpush.msra.mxu0 0.0
    %2018 = vmatpush.msra.mxu0 0.0
    %2019 = vmatpush.msra.mxu0 0.0
    %2020 = vmatpush.msra.mxu0 0.0
    %2021 = vmatpush.msra.mxu0 0.0
    %2022 = vmatpush.msra.mxu0 0.0
    %2023 = vmatpush.msra.mxu0 0.0
    %2024 = vmatpush.msra.mxu0 0.0
    %2025 = vmatpush.msra.mxu0 0.0
    %2026 = vmatpush.msra.mxu0 0.0
    %2027 = vmatpush.msra.mxu0 %v1981
    %2028 = vmatpush.msra.mxu0 %v1980
    %2029 = vmatpush.msra.mxu0 %v1979
    %2030 = vmatpush.msra.mxu0 %v1978
    %2031 = vmatmul.f32.gmra.mxu0 %v1983
    %v2032 = vpop.f32.mrf.mxu0
    %v2033 = vadd.f32 0.0, %v2032
    %2034 = vmatmul.f32.gmra.mxu0 %v1985
    %v2035 = vpop.f32.mrf.mxu0
    %v2036 = vadd.f32 0.0, %v2035
    %2037 = vmatmul.f32.gmra.mxu0 %v1987
    %v2038 = vpop.f32.mrf.mxu0
    %v2039 = vadd.f32 0.0, %v2038
    %2040 = vmatmul.f32.gmra.mxu0 %v1989
    %v2041 = vpop.f32.mrf.mxu0
    %v2042 = vadd.f32 0.0, %v2041
    %2043 = vmatmul.f32.gmra.mxu0 %v1991
    %v2044 = vpop.f32.mrf.mxu0
    %v2045 = vadd.f32 0.0, %v2044
    %2046 = vmatmul.f32.gmra.mxu0 %v1993
    %v2047 = vpop.f32.mrf.mxu0
    %v2048 = vadd.f32 0.0, %v2047
    %2049 = vmatmul.f32.gmra.mxu0 %v1995
    %v2050 = vpop.f32.mrf.mxu0
    %v2051 = vadd.f32 0.0, %v2050
    %2052 = vmatmul.f32.gmra.mxu0 %v1997
    %v2053 = vpop.f32.mrf.mxu0
    %v2054 = vadd.f32 0.0, %v2053
    %2055 = vmatmul.f32.gmra.mxu0 %v1999
    %v2056 = vpop.f32.mrf.mxu0
    %v2057 = vadd.f32 0.0, %v2056
    %2058 = vmatmul.f32.gmra.mxu0 %v2001
    %v2059 = vpop.f32.mrf.mxu0
    %v2060 = vadd.f32 0.0, %v2059
    %2061 = vmatmul.f32.gmra.mxu0 %v2003
    %v2062 = vpop.f32.mrf.mxu0
    %v2063 = vadd.f32 0.0, %v2062
    %2064 = vmatmul.f32.gmra.mxu0 %v2005
    %v2065 = vpop.f32.mrf.mxu0
    %v2066 = vadd.f32 0.0, %v2065
    %2067 = vmatmul.f32.gmra.mxu0 %v2007
    %v2068 = vpop.f32.mrf.mxu0
    %v2069 = vadd.f32 0.0, %v2068
    %2070 = vmatmul.f32.gmra.mxu0 %v2009
    %v2071 = vpop.f32.mrf.mxu0
    %v2072 = vadd.f32 0.0, %v2071
    %2073 = vmatmul.f32.gmra.mxu0 %v2011
    %v2074 = vpop.f32.mrf.mxu0
    %v2075 = vadd.f32 0.0, %v2074
    %2076 = vmatmul.f32.gmra.mxu0 %v2013
    %v2077 = vpop.f32.mrf.mxu0
    %v2078 = vadd.f32 0.0, %v2077
    %2079 = vdwg.mxu0
    %v2080 = vld [vmem:[#allocation2] sm:$0xff]
    %v2081 = vld [vmem:[#allocation2 + $0x8] sm:$0xff]
    %v2082 = vld [vmem:[#allocation2 + $0x10] sm:$0xff]
    %v2083 = vld [vmem:[#allocation2 + $0x18] sm:$0xff]
    %v2084 = vld [vmem:[#allocation2 + $0x20] sm:$0xff]
    %v2085 = vld [vmem:[#allocation2 + $0x28] sm:$0xff]
    %v2086 = vld [vmem:[#allocation2 + $0x30] sm:$0xff]
    %v2087 = vld [vmem:[#allocation2 + $0x38] sm:$0xff]
    %v2088 = vld [vmem:[#allocation2 + $0x40] sm:$0xff]
    %v2089 = vld [vmem:[#allocation2 + $0x48] sm:$0xff]
    %v2090 = vld [vmem:[#allocation2 + $0x50] sm:$0xff]
    %v2091 = vld [vmem:[#allocation2 + $0x58] sm:$0xff]
    %v2092 = vld [vmem:[#allocation2 + $0x60] sm:$0xff]
    %v2093 = vld [vmem:[#allocation2 + $0x68] sm:$0xff]
    %v2094 = vld [vmem:[#allocation2 + $0x70] sm:$0xff]
    %v2095 = vld [vmem:[#allocation2 + $0x78] sm:$0xff]
    %v2096 = vld [vmem:[#allocation9] sm:$0xff]
    %v2097 = vld [vmem:[#allocation9 + $0x8] sm:$0xff]
    %v2098 = vld [vmem:[#allocation9 + $0x10] sm:$0xff]
    %v2099 = vld [vmem:[#allocation9 + $0x18] sm:$0xff]
    %v2101 = vsel %vm1982, %v2080, 0
    %v2104 = vsel %vm1982, %v2081, 0
    %v2107 = vsel %vm1982, %v2082, 0
    %v2110 = vsel %vm1982, %v2083, 0
    %v2113 = vsel %vm1982, %v2084, 0
    %v2116 = vsel %vm1982, %v2085, 0
    %v2119 = vsel %vm1982, %v2086, 0
    %v2122 = vsel %vm1982, %v2087, 0
    %v2125 = vsel %vm1982, %v2088, 0
    %v2128 = vsel %vm1982, %v2089, 0
    %v2131 = vsel %vm1982, %v2090, 0
    %v2134 = vsel %vm1982, %v2091, 0
    %v2137 = vsel %vm1982, %v2092, 0
    %v2140 = vsel %vm1982, %v2093, 0
    %v2143 = vsel %vm1982, %v2094, 0
    %v2146 = vsel %vm1982, %v2095, 0
    %2148 = vmatpush.msra.mxu0 0.0
    %2149 = vmatpush.msra.mxu0 0.0
    %2150 = vmatpush.msra.mxu0 0.0
    %2151 = vmatpush.msra.mxu0 0.0
    %2152 = vmatpush.msra.mxu0 0.0
    %2153 = vmatpush.msra.mxu0 0.0
    %2154 = vmatpush.msra.mxu0 0.0
    %2155 = vmatpush.msra.mxu0 0.0
    %2156 = vmatpush.msra.mxu0 0.0
    %2157 = vmatpush.msra.mxu0 0.0
    %2158 = vmatpush.msra.mxu0 0.0
    %2159 = vmatpush.msra.mxu0 0.0
    %2160 = vmatpush.msra.mxu0 %v2099
    %2161 = vmatpush.msra.mxu0 %v2098
    %2162 = vmatpush.msra.mxu0 %v2097
    %2163 = vmatpush.msra.mxu0 %v2096
    %2164 = vmatmul.f32.gmra.mxu0 %v2101
    %v2165 = vpop.f32.mrf.mxu0
    %v2166 = vadd.f32 0.0, %v2165
    %2167 = vmatmul.f32.gmra.mxu0 %v2104
    %v2168 = vpop.f32.mrf.mxu0
    %v2169 = vadd.f32 0.0, %v2168
    %2170 = vmatmul.f32.gmra.mxu0 %v2107
    %v2171 = vpop.f32.mrf.mxu0
    %v2172 = vadd.f32 0.0, %v2171
    %2173 = vmatmul.f32.gmra.mxu0 %v2110
    %v2174 = vpop.f32.mrf.mxu0
    %v2175 = vadd.f32 0.0, %v2174
    %2176 = vmatmul.f32.gmra.mxu0 %v2113
    %v2177 = vpop.f32.mrf.mxu0
    %v2178 = vadd.f32 0.0, %v2177
    %2179 = vmatmul.f32.gmra.mxu0 %v2116
    %v2180 = vpop.f32.mrf.mxu0
    %v2181 = vadd.f32 0.0, %v2180
    %2182 = vmatmul.f32.gmra.mxu0 %v2119
    %v2183 = vpop.f32.mrf.mxu0
    %v2184 = vadd.f32 0.0, %v2183
    %2185 = vmatmul.f32.gmra.mxu0 %v2122
    %v2186 = vpop.f32.mrf.mxu0
    %v2187 = vadd.f32 0.0, %v2186
    %2188 = vmatmul.f32.gmra.mxu0 %v2125
    %v2189 = vpop.f32.mrf.mxu0
    %v2190 = vadd.f32 0.0, %v2189
    %2191 = vmatmul.f32.gmra.mxu0 %v2128
    %v2192 = vpop.f32.mrf.mxu0
    %v2193 = vadd.f32 0.0, %v2192
    %2194 = vmatmul.f32.gmra.mxu0 %v2131
    %v2195 = vpop.f32.mrf.mxu0
    %v2196 = vadd.f32 0.0, %v2195
    %2197 = vmatmul.f32.gmra.mxu0 %v2134
    %v2198 = vpop.f32.mrf.mxu0
    %v2199 = vadd.f32 0.0, %v2198
    %2200 = vmatmul.f32.gmra.mxu0 %v2137
    %v2201 = vpop.f32.mrf.mxu0
    %v2202 = vadd.f32 0.0, %v2201
    %2203 = vmatmul.f32.gmra.mxu0 %v2140
    %v2204 = vpop.f32.mrf.mxu0
    %v2205 = vadd.f32 0.0, %v2204
    %2206 = vmatmul.f32.gmra.mxu0 %v2143
    %v2207 = vpop.f32.mrf.mxu0
    %v2208 = vadd.f32 0.0, %v2207
    %2209 = vmatmul.f32.gmra.mxu0 %v2146
    %v2210 = vpop.f32.mrf.mxu0
    %v2211 = vadd.f32 0.0, %v2210
    %2212 = vdwg.mxu0
    %v2213 = vld [vmem:[#allocation3] sm:$0xff]
    %v2214 = vld [vmem:[#allocation3 + $0x8] sm:$0xff]
    %v2215 = vld [vmem:[#allocation3 + $0x10] sm:$0xff]
    %v2216 = vld [vmem:[#allocation3 + $0x18] sm:$0xff]
    %v2217 = vld [vmem:[#allocation3 + $0x20] sm:$0xff]
    %v2218 = vld [vmem:[#allocation3 + $0x28] sm:$0xff]
    %v2219 = vld [vmem:[#allocation3 + $0x30] sm:$0xff]
    %v2220 = vld [vmem:[#allocation3 + $0x38] sm:$0xff]
    %v2221 = vld [vmem:[#allocation3 + $0x40] sm:$0xff]
    %v2222 = vld [vmem:[#allocation3 + $0x48] sm:$0xff]
    %v2223 = vld [vmem:[#allocation3 + $0x50] sm:$0xff]
    %v2224 = vld [vmem:[#allocation3 + $0x58] sm:$0xff]
    %v2225 = vld [vmem:[#allocation3 + $0x60] sm:$0xff]
    %v2226 = vld [vmem:[#allocation3 + $0x68] sm:$0xff]
    %v2227 = vld [vmem:[#allocation3 + $0x70] sm:$0xff]
    %v2228 = vld [vmem:[#allocation3 + $0x78] sm:$0xff]
    %v2229 = vld [vmem:[#allocation11] sm:$0xff]
    %v2230 = vld [vmem:[#allocation11 + $0x8] sm:$0xff]
    %v2231 = vld [vmem:[#allocation11 + $0x10] sm:$0xff]
    %v2232 = vld [vmem:[#allocation11 + $0x18] sm:$0xff]
    %v2234 = vsel %vm1982, %v2213, 0
    %v2237 = vsel %vm1982, %v2214, 0
    %v2240 = vsel %vm1982, %v2215, 0
    %v2243 = vsel %vm1982, %v2216, 0
    %v2246 = vsel %vm1982, %v2217, 0
    %v2249 = vsel %vm1982, %v2218, 0
    %v2252 = vsel %vm1982, %v2219, 0
    %v2255 = vsel %vm1982, %v2220, 0
    %v2258 = vsel %vm1982, %v2221, 0
    %v2261 = vsel %vm1982, %v2222, 0
    %v2264 = vsel %vm1982, %v2223, 0
    %v2267 = vsel %vm1982, %v2224, 0
    %v2270 = vsel %vm1982, %v2225, 0
    %v2273 = vsel %vm1982, %v2226, 0
    %v2276 = vsel %vm1982, %v2227, 0
    %v2279 = vsel %vm1982, %v2228, 0
    %2281 = vmatpush.msra.mxu0 0.0
    %2282 = vmatpush.msra.mxu0 0.0
    %2283 = vmatpush.msra.mxu0 0.0
    %2284 = vmatpush.msra.mxu0 0.0
    %2285 = vmatpush.msra.mxu0 0.0
    %2286 = vmatpush.msra.mxu0 0.0
    %2287 = vmatpush.msra.mxu0 0.0
    %2288 = vmatpush.msra.mxu0 0.0
    %2289 = vmatpush.msra.mxu0 0.0
    %2290 = vmatpush.msra.mxu0 0.0
    %2291 = vmatpush.msra.mxu0 0.0
    %2292 = vmatpush.msra.mxu0 0.0
    %2293 = vmatpush.msra.mxu0 %v2232
    %2294 = vmatpush.msra.mxu0 %v2231
    %2295 = vmatpush.msra.mxu0 %v2230
    %2296 = vmatpush.msra.mxu0 %v2229
    %2297 = vmatmul.f32.gmra.mxu0 %v2234
    %v2298 = vpop.f32.mrf.mxu0
    %v2299 = vadd.f32 0.0, %v2298
    %2300 = vmatmul.f32.gmra.mxu0 %v2237
    %v2301 = vpop.f32.mrf.mxu0
    %v2302 = vadd.f32 0.0, %v2301
    %2303 = vmatmul.f32.gmra.mxu0 %v2240
    %v2304 = vpop.f32.mrf.mxu0
    %v2305 = vadd.f32 0.0, %v2304
    %2306 = vmatmul.f32.gmra.mxu0 %v2243
    %v2307 = vpop.f32.mrf.mxu0
    %v2308 = vadd.f32 0.0, %v2307
    %2309 = vmatmul.f32.gmra.mxu0 %v2246
    %v2310 = vpop.f32.mrf.mxu0
    %v2311 = vadd.f32 0.0, %v2310
    %2312 = vmatmul.f32.gmra.mxu0 %v2249
    %v2313 = vpop.f32.mrf.mxu0
    %v2314 = vadd.f32 0.0, %v2313
    %2315 = vmatmul.f32.gmra.mxu0 %v2252
    %v2316 = vpop.f32.mrf.mxu0
    %v2317 = vadd.f32 0.0, %v2316
    %2318 = vmatmul.f32.gmra.mxu0 %v2255
    %v2319 = vpop.f32.mrf.mxu0
    %v2320 = vadd.f32 0.0, %v2319
    %2321 = vmatmul.f32.gmra.mxu0 %v2258
    %v2322 = vpop.f32.mrf.mxu0
    %v2323 = vadd.f32 0.0, %v2322
    %2324 = vmatmul.f32.gmra.mxu0 %v2261
    %v2325 = vpop.f32.mrf.mxu0
    %v2326 = vadd.f32 0.0, %v2325
    %2327 = vmatmul.f32.gmra.mxu0 %v2264
    %v2328 = vpop.f32.mrf.mxu0
    %v2329 = vadd.f32 0.0, %v2328
    %2330 = vmatmul.f32.gmra.mxu0 %v2267
    %v2331 = vpop.f32.mrf.mxu0
    %v2332 = vadd.f32 0.0, %v2331
    %2333 = vmatmul.f32.gmra.mxu0 %v2270
    %v2334 = vpop.f32.mrf.mxu0
    %v2335 = vadd.f32 0.0, %v2334
    %2336 = vmatmul.f32.gmra.mxu0 %v2273
    %v2337 = vpop.f32.mrf.mxu0
    %v2338 = vadd.f32 0.0, %v2337
    %2339 = vmatmul.f32.gmra.mxu0 %v2276
    %v2340 = vpop.f32.mrf.mxu0
    %v2341 = vadd.f32 0.0, %v2340
    %2342 = vmatmul.f32.gmra.mxu0 %v2279
    %v2343 = vpop.f32.mrf.mxu0
    %v2344 = vadd.f32 0.0, %v2343
    %2345 = vdwg.mxu0
    %2346 = vst.msk [vmem:[#allocation4] sm:$0xff] %vm115, %v2166
    %2347 = vst.msk [vmem:[#allocation4 + $0x40] sm:$0xff] %vm115, %v2190
    %2350 = vrot.lane.b32.xlu0 %v2166, 124
    %v2351 = vpop.permute.xlu0 %2350
    %2352 = vrot.lane.b32.xlu0 %v2190, 124
    %v2353 = vpop.permute.xlu0 %2352
    %s2356 = scalar_lea.vmem [#allocation4], 8
    %2357 = vst.msk [vmem:[%s2356] sm:$0xff] %vm115, %v2351
    %2358 = vst.msk [vmem:[%s2356 + $0x40] sm:$0xff] %vm115, %v2353
    %2359 = vrot.lane.b32.xlu0 %v2166, 120
    %v2360 = vpop.permute.xlu0 %2359
    %2361 = vrot.lane.b32.xlu0 %v2190, 120
    %v2362 = vpop.permute.xlu0 %2361
    %s2365 = scalar_lea.vmem [#allocation4], 16
    %2366 = vst.msk [vmem:[%s2365] sm:$0xff] %vm115, %v2360
    %2367 = vst.msk [vmem:[%s2365 + $0x40] sm:$0xff] %vm115, %v2362
    %2368 = vrot.lane.b32.xlu0 %v2166, 116
    %v2369 = vpop.permute.xlu0 %2368
    %2370 = vrot.lane.b32.xlu0 %v2190, 116
    %v2371 = vpop.permute.xlu0 %2370
    %s2374 = scalar_lea.vmem [#allocation4], 24
    %2375 = vst.msk [vmem:[%s2374] sm:$0xff] %vm115, %v2369
    %2376 = vst.msk [vmem:[%s2374 + $0x40] sm:$0xff] %vm115, %v2371
    %2377 = vrot.lane.b32.xlu0 %v2166, 112
    %v2378 = vpop.permute.xlu0 %2377
    %2379 = vrot.lane.b32.xlu0 %v2190, 112
    %v2380 = vpop.permute.xlu0 %2379
    %s2383 = scalar_lea.vmem [#allocation4], 32
    %2384 = vst.msk [vmem:[%s2383] sm:$0xff] %vm115, %v2378
    %2385 = vst.msk [vmem:[%s2383 + $0x40] sm:$0xff] %vm115, %v2380
    %2386 = vrot.lane.b32.xlu0 %v2166, 108
    %v2387 = vpop.permute.xlu0 %2386
    %2388 = vrot.lane.b32.xlu0 %v2190, 108
    %v2389 = vpop.permute.xlu0 %2388
    %s2392 = scalar_lea.vmem [#allocation4], 40
    %2393 = vst.msk [vmem:[%s2392] sm:$0xff] %vm115, %v2387
    %2394 = vst.msk [vmem:[%s2392 + $0x40] sm:$0xff] %vm115, %v2389
    %2395 = vrot.lane.b32.xlu0 %v2166, 104
    %v2396 = vpop.permute.xlu0 %2395
    %2397 = vrot.lane.b32.xlu0 %v2190, 104
    %v2398 = vpop.permute.xlu0 %2397
    %s2401 = scalar_lea.vmem [#allocation4], 48
    %2402 = vst.msk [vmem:[%s2401] sm:$0xff] %vm115, %v2396
    %2403 = vst.msk [vmem:[%s2401 + $0x40] sm:$0xff] %vm115, %v2398
    %2404 = vrot.lane.b32.xlu0 %v2166, 100
    %v2405 = vpop.permute.xlu0 %2404
    %2406 = vrot.lane.b32.xlu0 %v2190, 100
    %v2407 = vpop.permute.xlu0 %2406
    %s2410 = scalar_lea.vmem [#allocation4], 56
    %2411 = vst.msk [vmem:[%s2410] sm:$0xff] %vm115, %v2405
    %2412 = vst.msk [vmem:[%s2410 + $0x40] sm:$0xff] %vm115, %v2407
    %2413 = vst.msk [vmem:[#allocation5] sm:$0x1] %vm195, %v2299
    %2414 = vst.msk [vmem:[#allocation5 + $0x8] sm:$0x1] %vm195, %v2302
    %2415 = vst.msk [vmem:[#allocation5 + $0x10] sm:$0x1] %vm195, %v2305
    %2416 = vst.msk [vmem:[#allocation5 + $0x18] sm:$0x1] %vm195, %v2308
    %2417 = vst.msk [vmem:[#allocation5 + $0x20] sm:$0x1] %vm195, %v2311
    %2418 = vst.msk [vmem:[#allocation5 + $0x28] sm:$0x1] %vm195, %v2314
    %2419 = vst.msk [vmem:[#allocation5 + $0x30] sm:$0x1] %vm195, %v2317
    %2420 = vst.msk [vmem:[#allocation5 + $0x38] sm:$0x1] %vm195, %v2320
    %2421 = vst.msk [vmem:[#allocation5 + $0x40] sm:$0x1] %vm195, %v2323
    %2422 = vst.msk [vmem:[#allocation5 + $0x48] sm:$0x1] %vm195, %v2326
    %2423 = vst.msk [vmem:[#allocation5 + $0x50] sm:$0x1] %vm195, %v2329
    %2424 = vst.msk [vmem:[#allocation5 + $0x58] sm:$0x1] %vm195, %v2332
    %2425 = vst.msk [vmem:[#allocation5 + $0x60] sm:$0x1] %vm195, %v2335
    %2426 = vst.msk [vmem:[#allocation5 + $0x68] sm:$0x1] %vm195, %v2338
    %2427 = vst.msk [vmem:[#allocation5 + $0x70] sm:$0x1] %vm195, %v2341
    %2428 = vst.msk [vmem:[#allocation5 + $0x78] sm:$0x1] %vm195, %v2344
    %2445 = vrot.lane.b32.xlu0 %v2299, 124
    %v2446 = vpop.permute.xlu0 %2445
    %2447 = vrot.lane.b32.xlu0 %v2302, 124
    %v2448 = vpop.permute.xlu0 %2447
    %2449 = vrot.lane.b32.xlu0 %v2305, 124
    %v2450 = vpop.permute.xlu0 %2449
    %2451 = vrot.lane.b32.xlu0 %v2308, 124
    %v2452 = vpop.permute.xlu0 %2451
    %2453 = vrot.lane.b32.xlu0 %v2311, 124
    %v2454 = vpop.permute.xlu0 %2453
    %2455 = vrot.lane.b32.xlu0 %v2314, 124
    %v2456 = vpop.permute.xlu0 %2455
    %2457 = vrot.lane.b32.xlu0 %v2317, 124
    %v2458 = vpop.permute.xlu0 %2457
    %2459 = vrot.lane.b32.xlu0 %v2320, 124
    %v2460 = vpop.permute.xlu0 %2459
    %2461 = vrot.lane.b32.xlu0 %v2323, 124
    %v2462 = vpop.permute.xlu0 %2461
    %2463 = vrot.lane.b32.xlu0 %v2326, 124
    %v2464 = vpop.permute.xlu0 %2463
    %2465 = vrot.lane.b32.xlu0 %v2329, 124
    %v2466 = vpop.permute.xlu0 %2465
    %2467 = vrot.lane.b32.xlu0 %v2332, 124
    %v2468 = vpop.permute.xlu0 %2467
    %2469 = vrot.lane.b32.xlu0 %v2335, 124
    %v2470 = vpop.permute.xlu0 %2469
    %2471 = vrot.lane.b32.xlu0 %v2338, 124
    %v2472 = vpop.permute.xlu0 %2471
    %2473 = vrot.lane.b32.xlu0 %v2341, 124
    %v2474 = vpop.permute.xlu0 %2473
    %2475 = vrot.lane.b32.xlu0 %v2344, 124
    %v2476 = vpop.permute.xlu0 %2475
    %2493 = vst.msk [vmem:[#allocation5 + $0x1] sm:$0x1] %vm195, %v2446
    %2494 = vst.msk [vmem:[#allocation5 + $0x9] sm:$0x1] %vm195, %v2448
    %2495 = vst.msk [vmem:[#allocation5 + $0x11] sm:$0x1] %vm195, %v2450
    %2496 = vst.msk [vmem:[#allocation5 + $0x19] sm:$0x1] %vm195, %v2452
    %2497 = vst.msk [vmem:[#allocation5 + $0x21] sm:$0x1] %vm195, %v2454
    %2498 = vst.msk [vmem:[#allocation5 + $0x29] sm:$0x1] %vm195, %v2456
    %2499 = vst.msk [vmem:[#allocation5 + $0x31] sm:$0x1] %vm195, %v2458
    %2500 = vst.msk [vmem:[#allocation5 + $0x39] sm:$0x1] %vm195, %v2460
    %2501 = vst.msk [vmem:[#allocation5 + $0x41] sm:$0x1] %vm195, %v2462
    %2502 = vst.msk [vmem:[#allocation5 + $0x49] sm:$0x1] %vm195, %v2464
    %2503 = vst.msk [vmem:[#allocation5 + $0x51] sm:$0x1] %vm195, %v2466
    %2504 = vst.msk [vmem:[#allocation5 + $0x59] sm:$0x1] %vm195, %v2468
    %2505 = vst.msk [vmem:[#allocation5 + $0x61] sm:$0x1] %vm195, %v2470
    %2506 = vst.msk [vmem:[#allocation5 + $0x69] sm:$0x1] %vm195, %v2472
    %2507 = vst.msk [vmem:[#allocation5 + $0x71] sm:$0x1] %vm195, %v2474
    %2508 = vst.msk [vmem:[#allocation5 + $0x79] sm:$0x1] %vm195, %v2476
    %2509 = vrot.lane.b32.xlu0 %v2299, 120
    %v2510 = vpop.permute.xlu0 %2509
    %2511 = vrot.lane.b32.xlu0 %v2302, 120
    %v2512 = vpop.permute.xlu0 %2511
    %2513 = vrot.lane.b32.xlu0 %v2305, 120
    %v2514 = vpop.permute.xlu0 %2513
    %2515 = vrot.lane.b32.xlu0 %v2308, 120
    %v2516 = vpop.permute.xlu0 %2515
    %2517 = vrot.lane.b32.xlu0 %v2311, 120
    %v2518 = vpop.permute.xlu0 %2517
    %2519 = vrot.lane.b32.xlu0 %v2314, 120
    %v2520 = vpop.permute.xlu0 %2519
    %2521 = vrot.lane.b32.xlu0 %v2317, 120
    %v2522 = vpop.permute.xlu0 %2521
    %2523 = vrot.lane.b32.xlu0 %v2320, 120
    %v2524 = vpop.permute.xlu0 %2523
    %2525 = vrot.lane.b32.xlu0 %v2323, 120
    %v2526 = vpop.permute.xlu0 %2525
    %2527 = vrot.lane.b32.xlu0 %v2326, 120
    %v2528 = vpop.permute.xlu0 %2527
    %2529 = vrot.lane.b32.xlu0 %v2329, 120
    %v2530 = vpop.permute.xlu0 %2529
    %2531 = vrot.lane.b32.xlu0 %v2332, 120
    %v2532 = vpop.permute.xlu0 %2531
    %2533 = vrot.lane.b32.xlu0 %v2335, 120
    %v2534 = vpop.permute.xlu0 %2533
    %2535 = vrot.lane.b32.xlu0 %v2338, 120
    %v2536 = vpop.permute.xlu0 %2535
    %2537 = vrot.lane.b32.xlu0 %v2341, 120
    %v2538 = vpop.permute.xlu0 %2537
    %2539 = vrot.lane.b32.xlu0 %v2344, 120
    %v2540 = vpop.permute.xlu0 %2539
    %2557 = vst.msk [vmem:[#allocation5 + $0x2] sm:$0x1] %vm195, %v2510
    %2558 = vst.msk [vmem:[#allocation5 + $0xa] sm:$0x1] %vm195, %v2512
    %2559 = vst.msk [vmem:[#allocation5 + $0x12] sm:$0x1] %vm195, %v2514
    %2560 = vst.msk [vmem:[#allocation5 + $0x1a] sm:$0x1] %vm195, %v2516
    %2561 = vst.msk [vmem:[#allocation5 + $0x22] sm:$0x1] %vm195, %v2518
    %2562 = vst.msk [vmem:[#allocation5 + $0x2a] sm:$0x1] %vm195, %v2520
    %2563 = vst.msk [vmem:[#allocation5 + $0x32] sm:$0x1] %vm195, %v2522
    %2564 = vst.msk [vmem:[#allocation5 + $0x3a] sm:$0x1] %vm195, %v2524
    %2565 = vst.msk [vmem:[#allocation5 + $0x42] sm:$0x1] %vm195, %v2526
    %2566 = vst.msk [vmem:[#allocation5 + $0x4a] sm:$0x1] %vm195, %v2528
    %2567 = vst.msk [vmem:[#allocation5 + $0x52] sm:$0x1] %vm195, %v2530
    %2568 = vst.msk [vmem:[#allocation5 + $0x5a] sm:$0x1] %vm195, %v2532
    %2569 = vst.msk [vmem:[#allocation5 + $0x62] sm:$0x1] %vm195, %v2534
    %2570 = vst.msk [vmem:[#allocation5 + $0x6a] sm:$0x1] %vm195, %v2536
    %2571 = vst.msk [vmem:[#allocation5 + $0x72] sm:$0x1] %vm195, %v2538
    %2572 = vst.msk [vmem:[#allocation5 + $0x7a] sm:$0x1] %vm195, %v2540
    %2573 = vrot.lane.b32.xlu0 %v2299, 116
    %v2574 = vpop.permute.xlu0 %2573
    %2575 = vrot.lane.b32.xlu0 %v2302, 116
    %v2576 = vpop.permute.xlu0 %2575
    %2577 = vrot.lane.b32.xlu0 %v2305, 116
    %v2578 = vpop.permute.xlu0 %2577
    %2579 = vrot.lane.b32.xlu0 %v2308, 116
    %v2580 = vpop.permute.xlu0 %2579
    %2581 = vrot.lane.b32.xlu0 %v2311, 116
    %v2582 = vpop.permute.xlu0 %2581
    %2583 = vrot.lane.b32.xlu0 %v2314, 116
    %v2584 = vpop.permute.xlu0 %2583
    %2585 = vrot.lane.b32.xlu0 %v2317, 116
    %v2586 = vpop.permute.xlu0 %2585
    %2587 = vrot.lane.b32.xlu0 %v2320, 116
    %v2588 = vpop.permute.xlu0 %2587
    %2589 = vrot.lane.b32.xlu0 %v2323, 116
    %v2590 = vpop.permute.xlu0 %2589
    %2591 = vrot.lane.b32.xlu0 %v2326, 116
    %v2592 = vpop.permute.xlu0 %2591
    %2593 = vrot.lane.b32.xlu0 %v2329, 116
    %v2594 = vpop.permute.xlu0 %2593
    %2595 = vrot.lane.b32.xlu0 %v2332, 116
    %v2596 = vpop.permute.xlu0 %2595
    %2597 = vrot.lane.b32.xlu0 %v2335, 116
    %v2598 = vpop.permute.xlu0 %2597
    %2599 = vrot.lane.b32.xlu0 %v2338, 116
    %v2600 = vpop.permute.xlu0 %2599
    %2601 = vrot.lane.b32.xlu0 %v2341, 116
    %v2602 = vpop.permute.xlu0 %2601
    %2603 = vrot.lane.b32.xlu0 %v2344, 116
    %v2604 = vpop.permute.xlu0 %2603
    %2621 = vst.msk [vmem:[#allocation5 + $0x3] sm:$0x1] %vm195, %v2574
    %2622 = vst.msk [vmem:[#allocation5 + $0xb] sm:$0x1] %vm195, %v2576
    %2623 = vst.msk [vmem:[#allocation5 + $0x13] sm:$0x1] %vm195, %v2578
    %2624 = vst.msk [vmem:[#allocation5 + $0x1b] sm:$0x1] %vm195, %v2580
    %2625 = vst.msk [vmem:[#allocation5 + $0x23] sm:$0x1] %vm195, %v2582
    %2626 = vst.msk [vmem:[#allocation5 + $0x2b] sm:$0x1] %vm195, %v2584
    %2627 = vst.msk [vmem:[#allocation5 + $0x33] sm:$0x1] %vm195, %v2586
    %2628 = vst.msk [vmem:[#allocation5 + $0x3b] sm:$0x1] %vm195, %v2588
    %2629 = vst.msk [vmem:[#allocation5 + $0x43] sm:$0x1] %vm195, %v2590
    %2630 = vst.msk [vmem:[#allocation5 + $0x4b] sm:$0x1] %vm195, %v2592
    %2631 = vst.msk [vmem:[#allocation5 + $0x53] sm:$0x1] %vm195, %v2594
    %2632 = vst.msk [vmem:[#allocation5 + $0x5b] sm:$0x1] %vm195, %v2596
    %2633 = vst.msk [vmem:[#allocation5 + $0x63] sm:$0x1] %vm195, %v2598
    %2634 = vst.msk [vmem:[#allocation5 + $0x6b] sm:$0x1] %vm195, %v2600
    %2635 = vst.msk [vmem:[#allocation5 + $0x73] sm:$0x1] %vm195, %v2602
    %2636 = vst.msk [vmem:[#allocation5 + $0x7b] sm:$0x1] %vm195, %v2604
    %2637 = vrot.lane.b32.xlu0 %v2299, 112
    %v2638 = vpop.permute.xlu0 %2637
    %2639 = vrot.lane.b32.xlu0 %v2302, 112
    %v2640 = vpop.permute.xlu0 %2639
    %2641 = vrot.lane.b32.xlu0 %v2305, 112
    %v2642 = vpop.permute.xlu0 %2641
    %2643 = vrot.lane.b32.xlu0 %v2308, 112
    %v2644 = vpop.permute.xlu0 %2643
    %2645 = vrot.lane.b32.xlu0 %v2311, 112
    %v2646 = vpop.permute.xlu0 %2645
    %2647 = vrot.lane.b32.xlu0 %v2314, 112
    %v2648 = vpop.permute.xlu0 %2647
    %2649 = vrot.lane.b32.xlu0 %v2317, 112
    %v2650 = vpop.permute.xlu0 %2649
    %2651 = vrot.lane.b32.xlu0 %v2320, 112
    %v2652 = vpop.permute.xlu0 %2651
    %2653 = vrot.lane.b32.xlu0 %v2323, 112
    %v2654 = vpop.permute.xlu0 %2653
    %2655 = vrot.lane.b32.xlu0 %v2326, 112
    %v2656 = vpop.permute.xlu0 %2655
    %2657 = vrot.lane.b32.xlu0 %v2329, 112
    %v2658 = vpop.permute.xlu0 %2657
    %2659 = vrot.lane.b32.xlu0 %v2332, 112
    %v2660 = vpop.permute.xlu0 %2659
    %2661 = vrot.lane.b32.xlu0 %v2335, 112
    %v2662 = vpop.permute.xlu0 %2661
    %2663 = vrot.lane.b32.xlu0 %v2338, 112
    %v2664 = vpop.permute.xlu0 %2663
    %2665 = vrot.lane.b32.xlu0 %v2341, 112
    %v2666 = vpop.permute.xlu0 %2665
    %2667 = vrot.lane.b32.xlu0 %v2344, 112
    %v2668 = vpop.permute.xlu0 %2667
    %2685 = vst.msk [vmem:[#allocation5 + $0x4] sm:$0x1] %vm195, %v2638
    %2686 = vst.msk [vmem:[#allocation5 + $0xc] sm:$0x1] %vm195, %v2640
    %2687 = vst.msk [vmem:[#allocation5 + $0x14] sm:$0x1] %vm195, %v2642
    %2688 = vst.msk [vmem:[#allocation5 + $0x1c] sm:$0x1] %vm195, %v2644
    %2689 = vst.msk [vmem:[#allocation5 + $0x24] sm:$0x1] %vm195, %v2646
    %2690 = vst.msk [vmem:[#allocation5 + $0x2c] sm:$0x1] %vm195, %v2648
    %2691 = vst.msk [vmem:[#allocation5 + $0x34] sm:$0x1] %vm195, %v2650
    %2692 = vst.msk [vmem:[#allocation5 + $0x3c] sm:$0x1] %vm195, %v2652
    %2693 = vst.msk [vmem:[#allocation5 + $0x44] sm:$0x1] %vm195, %v2654
    %2694 = vst.msk [vmem:[#allocation5 + $0x4c] sm:$0x1] %vm195, %v2656
    %2695 = vst.msk [vmem:[#allocation5 + $0x54] sm:$0x1] %vm195, %v2658
    %2696 = vst.msk [vmem:[#allocation5 + $0x5c] sm:$0x1] %vm195, %v2660
    %2697 = vst.msk [vmem:[#allocation5 + $0x64] sm:$0x1] %vm195, %v2662
    %2698 = vst.msk [vmem:[#allocation5 + $0x6c] sm:$0x1] %vm195, %v2664
    %2699 = vst.msk [vmem:[#allocation5 + $0x74] sm:$0x1] %vm195, %v2666
    %2700 = vst.msk [vmem:[#allocation5 + $0x7c] sm:$0x1] %vm195, %v2668
    %2701 = vrot.lane.b32.xlu0 %v2299, 108
    %v2702 = vpop.permute.xlu0 %2701
    %2703 = vrot.lane.b32.xlu0 %v2302, 108
    %v2704 = vpop.permute.xlu0 %2703
    %2705 = vrot.lane.b32.xlu0 %v2305, 108
    %v2706 = vpop.permute.xlu0 %2705
    %2707 = vrot.lane.b32.xlu0 %v2308, 108
    %v2708 = vpop.permute.xlu0 %2707
    %2709 = vrot.lane.b32.xlu0 %v2311, 108
    %v2710 = vpop.permute.xlu0 %2709
    %2711 = vrot.lane.b32.xlu0 %v2314, 108
    %v2712 = vpop.permute.xlu0 %2711
    %2713 = vrot.lane.b32.xlu0 %v2317, 108
    %v2714 = vpop.permute.xlu0 %2713
    %2715 = vrot.lane.b32.xlu0 %v2320, 108
    %v2716 = vpop.permute.xlu0 %2715
    %2717 = vrot.lane.b32.xlu0 %v2323, 108
    %v2718 = vpop.permute.xlu0 %2717
    %2719 = vrot.lane.b32.xlu0 %v2326, 108
    %v2720 = vpop.permute.xlu0 %2719
    %2721 = vrot.lane.b32.xlu0 %v2329, 108
    %v2722 = vpop.permute.xlu0 %2721
    %2723 = vrot.lane.b32.xlu0 %v2332, 108
    %v2724 = vpop.permute.xlu0 %2723
    %2725 = vrot.lane.b32.xlu0 %v2335, 108
    %v2726 = vpop.permute.xlu0 %2725
    %2727 = vrot.lane.b32.xlu0 %v2338, 108
    %v2728 = vpop.permute.xlu0 %2727
    %2729 = vrot.lane.b32.xlu0 %v2341, 108
    %v2730 = vpop.permute.xlu0 %2729
    %2731 = vrot.lane.b32.xlu0 %v2344, 108
    %v2732 = vpop.permute.xlu0 %2731
    %2749 = vst.msk [vmem:[#allocation5 + $0x5] sm:$0x1] %vm195, %v2702
    %2750 = vst.msk [vmem:[#allocation5 + $0xd] sm:$0x1] %vm195, %v2704
    %2751 = vst.msk [vmem:[#allocation5 + $0x15] sm:$0x1] %vm195, %v2706
    %2752 = vst.msk [vmem:[#allocation5 + $0x1d] sm:$0x1] %vm195, %v2708
    %2753 = vst.msk [vmem:[#allocation5 + $0x25] sm:$0x1] %vm195, %v2710
    %2754 = vst.msk [vmem:[#allocation5 + $0x2d] sm:$0x1] %vm195, %v2712
    %2755 = vst.msk [vmem:[#allocation5 + $0x35] sm:$0x1] %vm195, %v2714
    %2756 = vst.msk [vmem:[#allocation5 + $0x3d] sm:$0x1] %vm195, %v2716
    %2757 = vst.msk [vmem:[#allocation5 + $0x45] sm:$0x1] %vm195, %v2718
    %2758 = vst.msk [vmem:[#allocation5 + $0x4d] sm:$0x1] %vm195, %v2720
    %2759 = vst.msk [vmem:[#allocation5 + $0x55] sm:$0x1] %vm195, %v2722
    %2760 = vst.msk [vmem:[#allocation5 + $0x5d] sm:$0x1] %vm195, %v2724
    %2761 = vst.msk [vmem:[#allocation5 + $0x65] sm:$0x1] %vm195, %v2726
    %2762 = vst.msk [vmem:[#allocation5 + $0x6d] sm:$0x1] %vm195, %v2728
    %2763 = vst.msk [vmem:[#allocation5 + $0x75] sm:$0x1] %vm195, %v2730
    %2764 = vst.msk [vmem:[#allocation5 + $0x7d] sm:$0x1] %vm195, %v2732
    %2765 = vrot.lane.b32.xlu0 %v2299, 104
    %v2766 = vpop.permute.xlu0 %2765
    %2767 = vrot.lane.b32.xlu0 %v2302, 104
    %v2768 = vpop.permute.xlu0 %2767
    %2769 = vrot.lane.b32.xlu0 %v2305, 104
    %v2770 = vpop.permute.xlu0 %2769
    %2771 = vrot.lane.b32.xlu0 %v2308, 104
    %v2772 = vpop.permute.xlu0 %2771
    %2773 = vrot.lane.b32.xlu0 %v2311, 104
    %v2774 = vpop.permute.xlu0 %2773
    %2775 = vrot.lane.b32.xlu0 %v2314, 104
    %v2776 = vpop.permute.xlu0 %2775
    %2777 = vrot.lane.b32.xlu0 %v2317, 104
    %v2778 = vpop.permute.xlu0 %2777
    %2779 = vrot.lane.b32.xlu0 %v2320, 104
    %v2780 = vpop.permute.xlu0 %2779
    %2781 = vrot.lane.b32.xlu0 %v2323, 104
    %v2782 = vpop.permute.xlu0 %2781
    %2783 = vrot.lane.b32.xlu0 %v2326, 104
    %v2784 = vpop.permute.xlu0 %2783
    %2785 = vrot.lane.b32.xlu0 %v2329, 104
    %v2786 = vpop.permute.xlu0 %2785
    %2787 = vrot.lane.b32.xlu0 %v2332, 104
    %v2788 = vpop.permute.xlu0 %2787
    %2789 = vrot.lane.b32.xlu0 %v2335, 104
    %v2790 = vpop.permute.xlu0 %2789
    %2791 = vrot.lane.b32.xlu0 %v2338, 104
    %v2792 = vpop.permute.xlu0 %2791
    %2793 = vrot.lane.b32.xlu0 %v2341, 104
    %v2794 = vpop.permute.xlu0 %2793
    %2795 = vrot.lane.b32.xlu0 %v2344, 104
    %v2796 = vpop.permute.xlu0 %2795
    %2813 = vst.msk [vmem:[#allocation5 + $0x6] sm:$0x1] %vm195, %v2766
    %2814 = vst.msk [vmem:[#allocation5 + $0xe] sm:$0x1] %vm195, %v2768
    %2815 = vst.msk [vmem:[#allocation5 + $0x16] sm:$0x1] %vm195, %v2770
    %2816 = vst.msk [vmem:[#allocation5 + $0x1e] sm:$0x1] %vm195, %v2772
    %2817 = vst.msk [vmem:[#allocation5 + $0x26] sm:$0x1] %vm195, %v2774
    %2818 = vst.msk [vmem:[#allocation5 + $0x2e] sm:$0x1] %vm195, %v2776
    %2819 = vst.msk [vmem:[#allocation5 + $0x36] sm:$0x1] %vm195, %v2778
    %2820 = vst.msk [vmem:[#allocation5 + $0x3e] sm:$0x1] %vm195, %v2780
    %2821 = vst.msk [vmem:[#allocation5 + $0x46] sm:$0x1] %vm195, %v2782
    %2822 = vst.msk [vmem:[#allocation5 + $0x4e] sm:$0x1] %vm195, %v2784
    %2823 = vst.msk [vmem:[#allocation5 + $0x56] sm:$0x1] %vm195, %v2786
    %2824 = vst.msk [vmem:[#allocation5 + $0x5e] sm:$0x1] %vm195, %v2788
    %2825 = vst.msk [vmem:[#allocation5 + $0x66] sm:$0x1] %vm195, %v2790
    %2826 = vst.msk [vmem:[#allocation5 + $0x6e] sm:$0x1] %vm195, %v2792
    %2827 = vst.msk [vmem:[#allocation5 + $0x76] sm:$0x1] %vm195, %v2794
    %2828 = vst.msk [vmem:[#allocation5 + $0x7e] sm:$0x1] %vm195, %v2796
    %2829 = vrot.lane.b32.xlu0 %v2299, 100
    %v2830 = vpop.permute.xlu0 %2829
    %2831 = vrot.lane.b32.xlu0 %v2302, 100
    %v2832 = vpop.permute.xlu0 %2831
    %2833 = vrot.lane.b32.xlu0 %v2305, 100
    %v2834 = vpop.permute.xlu0 %2833
    %2835 = vrot.lane.b32.xlu0 %v2308, 100
    %v2836 = vpop.permute.xlu0 %2835
    %2837 = vrot.lane.b32.xlu0 %v2311, 100
    %v2838 = vpop.permute.xlu0 %2837
    %2839 = vrot.lane.b32.xlu0 %v2314, 100
    %v2840 = vpop.permute.xlu0 %2839
    %2841 = vrot.lane.b32.xlu0 %v2317, 100
    %v2842 = vpop.permute.xlu0 %2841
    %2843 = vrot.lane.b32.xlu0 %v2320, 100
    %v2844 = vpop.permute.xlu0 %2843
    %2845 = vrot.lane.b32.xlu0 %v2323, 100
    %v2846 = vpop.permute.xlu0 %2845
    %2847 = vrot.lane.b32.xlu0 %v2326, 100
    %v2848 = vpop.permute.xlu0 %2847
    %2849 = vrot.lane.b32.xlu0 %v2329, 100
    %v2850 = vpop.permute.xlu0 %2849
    %2851 = vrot.lane.b32.xlu0 %v2332, 100
    %v2852 = vpop.permute.xlu0 %2851
    %2853 = vrot.lane.b32.xlu0 %v2335, 100
    %v2854 = vpop.permute.xlu0 %2853
    %2855 = vrot.lane.b32.xlu0 %v2338, 100
    %v2856 = vpop.permute.xlu0 %2855
    %2857 = vrot.lane.b32.xlu0 %v2341, 100
    %v2858 = vpop.permute.xlu0 %2857
    %2859 = vrot.lane.b32.xlu0 %v2344, 100
    %v2860 = vpop.permute.xlu0 %2859
    %2877 = vst.msk [vmem:[#allocation5 + $0x7] sm:$0x1] %vm195, %v2830
    %2878 = vst.msk [vmem:[#allocation5 + $0xf] sm:$0x1] %vm195, %v2832
    %2879 = vst.msk [vmem:[#allocation5 + $0x17] sm:$0x1] %vm195, %v2834
    %2880 = vst.msk [vmem:[#allocation5 + $0x1f] sm:$0x1] %vm195, %v2836
    %2881 = vst.msk [vmem:[#allocation5 + $0x27] sm:$0x1] %vm195, %v2838
    %2882 = vst.msk [vmem:[#allocation5 + $0x2f] sm:$0x1] %vm195, %v2840
    %2883 = vst.msk [vmem:[#allocation5 + $0x37] sm:$0x1] %vm195, %v2842
    %2884 = vst.msk [vmem:[#allocation5 + $0x3f] sm:$0x1] %vm195, %v2844
    %2885 = vst.msk [vmem:[#allocation5 + $0x47] sm:$0x1] %vm195, %v2846
    %2886 = vst.msk [vmem:[#allocation5 + $0x4f] sm:$0x1] %vm195, %v2848
    %2887 = vst.msk [vmem:[#allocation5 + $0x57] sm:$0x1] %vm195, %v2850
    %2888 = vst.msk [vmem:[#allocation5 + $0x5f] sm:$0x1] %vm195, %v2852
    %2889 = vst.msk [vmem:[#allocation5 + $0x67] sm:$0x1] %vm195, %v2854
    %2890 = vst.msk [vmem:[#allocation5 + $0x6f] sm:$0x1] %vm195, %v2856
    %2891 = vst.msk [vmem:[#allocation5 + $0x77] sm:$0x1] %vm195, %v2858
    %2892 = vst.msk [vmem:[#allocation5 + $0x7f] sm:$0x1] %vm195, %v2860
    %2895 = vrot.lane.b32.xlu0 %v2169, 4
    %v2896 = vpop.permute.xlu0 %2895
    %2897 = vrot.lane.b32.xlu0 %v2193, 4
    %v2898 = vpop.permute.xlu0 %2897
    %2901 = vst.msk [vmem:[#allocation4] sm:$0xff] %vm126, %v2896
    %2902 = vst.msk [vmem:[#allocation4 + $0x40] sm:$0xff] %vm126, %v2898
    %2903 = vst.msk [vmem:[%s2356] sm:$0xff] %vm126, %v2169
    %2904 = vst.msk [vmem:[%s2356 + $0x40] sm:$0xff] %vm126, %v2193
    %2905 = vrot.lane.b32.xlu0 %v2169, 124
    %v2906 = vpop.permute.xlu0 %2905
    %2907 = vrot.lane.b32.xlu0 %v2193, 124
    %v2908 = vpop.permute.xlu0 %2907
    %2911 = vst.msk [vmem:[%s2365] sm:$0xff] %vm126, %v2906
    %2912 = vst.msk [vmem:[%s2365 + $0x40] sm:$0xff] %vm126, %v2908
    %2913 = vrot.lane.b32.xlu0 %v2169, 120
    %v2914 = vpop.permute.xlu0 %2913
    %2915 = vrot.lane.b32.xlu0 %v2193, 120
    %v2916 = vpop.permute.xlu0 %2915
    %2919 = vst.msk [vmem:[%s2374] sm:$0xff] %vm126, %v2914
    %2920 = vst.msk [vmem:[%s2374 + $0x40] sm:$0xff] %vm126, %v2916
    %2921 = vrot.lane.b32.xlu0 %v2169, 116
    %v2922 = vpop.permute.xlu0 %2921
    %2923 = vrot.lane.b32.xlu0 %v2193, 116
    %v2924 = vpop.permute.xlu0 %2923
    %2927 = vst.msk [vmem:[%s2383] sm:$0xff] %vm126, %v2922
    %2928 = vst.msk [vmem:[%s2383 + $0x40] sm:$0xff] %vm126, %v2924
    %2929 = vrot.lane.b32.xlu0 %v2169, 112
    %v2930 = vpop.permute.xlu0 %2929
    %2931 = vrot.lane.b32.xlu0 %v2193, 112
    %v2932 = vpop.permute.xlu0 %2931
    %2935 = vst.msk [vmem:[%s2392] sm:$0xff] %vm126, %v2930
    %2936 = vst.msk [vmem:[%s2392 + $0x40] sm:$0xff] %vm126, %v2932
    %2937 = vrot.lane.b32.xlu0 %v2169, 108
    %v2938 = vpop.permute.xlu0 %2937
    %2939 = vrot.lane.b32.xlu0 %v2193, 108
    %v2940 = vpop.permute.xlu0 %2939
    %2943 = vst.msk [vmem:[%s2401] sm:$0xff] %vm126, %v2938
    %2944 = vst.msk [vmem:[%s2401 + $0x40] sm:$0xff] %vm126, %v2940
    %2945 = vrot.lane.b32.xlu0 %v2169, 104
    %v2946 = vpop.permute.xlu0 %2945
    %2947 = vrot.lane.b32.xlu0 %v2193, 104
    %v2948 = vpop.permute.xlu0 %2947
    %2951 = vst.msk [vmem:[%s2410] sm:$0xff] %vm126, %v2946
    %2952 = vst.msk [vmem:[%s2410 + $0x40] sm:$0xff] %vm126, %v2948
    %2953 = vrot.lane.b32.xlu0 %v2299, 4
    %v2954 = vpop.permute.xlu0 %2953
    %2955 = vrot.lane.b32.xlu0 %v2302, 4
    %v2956 = vpop.permute.xlu0 %2955
    %2957 = vrot.lane.b32.xlu0 %v2305, 4
    %v2958 = vpop.permute.xlu0 %2957
    %2959 = vrot.lane.b32.xlu0 %v2308, 4
    %v2960 = vpop.permute.xlu0 %2959
    %2961 = vrot.lane.b32.xlu0 %v2311, 4
    %v2962 = vpop.permute.xlu0 %2961
    %2963 = vrot.lane.b32.xlu0 %v2314, 4
    %v2964 = vpop.permute.xlu0 %2963
    %2965 = vrot.lane.b32.xlu0 %v2317, 4
    %v2966 = vpop.permute.xlu0 %2965
    %2967 = vrot.lane.b32.xlu0 %v2320, 4
    %v2968 = vpop.permute.xlu0 %2967
    %2969 = vrot.lane.b32.xlu0 %v2323, 4
    %v2970 = vpop.permute.xlu0 %2969
    %2971 = vrot.lane.b32.xlu0 %v2326, 4
    %v2972 = vpop.permute.xlu0 %2971
    %2973 = vrot.lane.b32.xlu0 %v2329, 4
    %v2974 = vpop.permute.xlu0 %2973
    %2975 = vrot.lane.b32.xlu0 %v2332, 4
    %v2976 = vpop.permute.xlu0 %2975
    %2977 = vrot.lane.b32.xlu0 %v2335, 4
    %v2978 = vpop.permute.xlu0 %2977
    %2979 = vrot.lane.b32.xlu0 %v2338, 4
    %v2980 = vpop.permute.xlu0 %2979
    %2981 = vrot.lane.b32.xlu0 %v2341, 4
    %v2982 = vpop.permute.xlu0 %2981
    %2983 = vrot.lane.b32.xlu0 %v2344, 4
    %v2984 = vpop.permute.xlu0 %2983
    %3001 = vst.msk [vmem:[#allocation5 - $0x1] sm:$0x2] %vm256, %v2954
    %3002 = vst.msk [vmem:[#allocation5 + $0x7] sm:$0x2] %vm256, %v2956
    %3003 = vst.msk [vmem:[#allocation5 + $0xf] sm:$0x2] %vm256, %v2958
    %3004 = vst.msk [vmem:[#allocation5 + $0x17] sm:$0x2] %vm256, %v2960
    %3005 = vst.msk [vmem:[#allocation5 + $0x1f] sm:$0x2] %vm256, %v2962
    %3006 = vst.msk [vmem:[#allocation5 + $0x27] sm:$0x2] %vm256, %v2964
    %3007 = vst.msk [vmem:[#allocation5 + $0x2f] sm:$0x2] %vm256, %v2966
    %3008 = vst.msk [vmem:[#allocation5 + $0x37] sm:$0x2] %vm256, %v2968
    %3009 = vst.msk [vmem:[#allocation5 + $0x3f] sm:$0x2] %vm256, %v2970
    %3010 = vst.msk [vmem:[#allocation5 + $0x47] sm:$0x2] %vm256, %v2972
    %3011 = vst.msk [vmem:[#allocation5 + $0x4f] sm:$0x2] %vm256, %v2974
    %3012 = vst.msk [vmem:[#allocation5 + $0x57] sm:$0x2] %vm256, %v2976
    %3013 = vst.msk [vmem:[#allocation5 + $0x5f] sm:$0x2] %vm256, %v2978
    %3014 = vst.msk [vmem:[#allocation5 + $0x67] sm:$0x2] %vm256, %v2980
    %3015 = vst.msk [vmem:[#allocation5 + $0x6f] sm:$0x2] %vm256, %v2982
    %3016 = vst.msk [vmem:[#allocation5 + $0x77] sm:$0x2] %vm256, %v2984
    %3017 = vst.msk [vmem:[#allocation5] sm:$0x2] %vm256, %v2299
    %3018 = vst.msk [vmem:[#allocation5 + $0x8] sm:$0x2] %vm256, %v2302
    %3019 = vst.msk [vmem:[#allocation5 + $0x10] sm:$0x2] %vm256, %v2305
    %3020 = vst.msk [vmem:[#allocation5 + $0x18] sm:$0x2] %vm256, %v2308
    %3021 = vst.msk [vmem:[#allocation5 + $0x20] sm:$0x2] %vm256, %v2311
    %3022 = vst.msk [vmem:[#allocation5 + $0x28] sm:$0x2] %vm256, %v2314
    %3023 = vst.msk [vmem:[#allocation5 + $0x30] sm:$0x2] %vm256, %v2317
    %3024 = vst.msk [vmem:[#allocation5 + $0x38] sm:$0x2] %vm256, %v2320
    %3025 = vst.msk [vmem:[#allocation5 + $0x40] sm:$0x2] %vm256, %v2323
    %3026 = vst.msk [vmem:[#allocation5 + $0x48] sm:$0x2] %vm256, %v2326
    %3027 = vst.msk [vmem:[#allocation5 + $0x50] sm:$0x2] %vm256, %v2329
    %3028 = vst.msk [vmem:[#allocation5 + $0x58] sm:$0x2] %vm256, %v2332
    %3029 = vst.msk [vmem:[#allocation5 + $0x60] sm:$0x2] %vm256, %v2335
    %3030 = vst.msk [vmem:[#allocation5 + $0x68] sm:$0x2] %vm256, %v2338
    %3031 = vst.msk [vmem:[#allocation5 + $0x70] sm:$0x2] %vm256, %v2341
    %3032 = vst.msk [vmem:[#allocation5 + $0x78] sm:$0x2] %vm256, %v2344
    %3033 = vst.msk [vmem:[#allocation5 + $0x1] sm:$0x2] %vm256, %v2446
    %3034 = vst.msk [vmem:[#allocation5 + $0x9] sm:$0x2] %vm256, %v2448
    %3035 = vst.msk [vmem:[#allocation5 + $0x11] sm:$0x2] %vm256, %v2450
    %3036 = vst.msk [vmem:[#allocation5 + $0x19] sm:$0x2] %vm256, %v2452
    %3037 = vst.msk [vmem:[#allocation5 + $0x21] sm:$0x2] %vm256, %v2454
    %3038 = vst.msk [vmem:[#allocation5 + $0x29] sm:$0x2] %vm256, %v2456
    %3039 = vst.msk [vmem:[#allocation5 + $0x31] sm:$0x2] %vm256, %v2458
    %3040 = vst.msk [vmem:[#allocation5 + $0x39] sm:$0x2] %vm256, %v2460
    %3041 = vst.msk [vmem:[#allocation5 + $0x41] sm:$0x2] %vm256, %v2462
    %3042 = vst.msk [vmem:[#allocation5 + $0x49] sm:$0x2] %vm256, %v2464
    %3043 = vst.msk [vmem:[#allocation5 + $0x51] sm:$0x2] %vm256, %v2466
    %3044 = vst.msk [vmem:[#allocation5 + $0x59] sm:$0x2] %vm256, %v2468
    %3045 = vst.msk [vmem:[#allocation5 + $0x61] sm:$0x2] %vm256, %v2470
    %3046 = vst.msk [vmem:[#allocation5 + $0x69] sm:$0x2] %vm256, %v2472
    %3047 = vst.msk [vmem:[#allocation5 + $0x71] sm:$0x2] %vm256, %v2474
    %3048 = vst.msk [vmem:[#allocation5 + $0x79] sm:$0x2] %vm256, %v2476
    %3049 = vst.msk [vmem:[#allocation5 + $0x2] sm:$0x2] %vm256, %v2510
    %3050 = vst.msk [vmem:[#allocation5 + $0xa] sm:$0x2] %vm256, %v2512
    %3051 = vst.msk [vmem:[#allocation5 + $0x12] sm:$0x2] %vm256, %v2514
    %3052 = vst.msk [vmem:[#allocation5 + $0x1a] sm:$0x2] %vm256, %v2516
    %3053 = vst.msk [vmem:[#allocation5 + $0x22] sm:$0x2] %vm256, %v2518
    %3054 = vst.msk [vmem:[#allocation5 + $0x2a] sm:$0x2] %vm256, %v2520
    %3055 = vst.msk [vmem:[#allocation5 + $0x32] sm:$0x2] %vm256, %v2522
    %3056 = vst.msk [vmem:[#allocation5 + $0x3a] sm:$0x2] %vm256, %v2524
    %3057 = vst.msk [vmem:[#allocation5 + $0x42] sm:$0x2] %vm256, %v2526
    %3058 = vst.msk [vmem:[#allocation5 + $0x4a] sm:$0x2] %vm256, %v2528
    %3059 = vst.msk [vmem:[#allocation5 + $0x52] sm:$0x2] %vm256, %v2530
    %3060 = vst.msk [vmem:[#allocation5 + $0x5a] sm:$0x2] %vm256, %v2532
    %3061 = vst.msk [vmem:[#allocation5 + $0x62] sm:$0x2] %vm256, %v2534
    %3062 = vst.msk [vmem:[#allocation5 + $0x6a] sm:$0x2] %vm256, %v2536
    %3063 = vst.msk [vmem:[#allocation5 + $0x72] sm:$0x2] %vm256, %v2538
    %3064 = vst.msk [vmem:[#allocation5 + $0x7a] sm:$0x2] %vm256, %v2540
    %3065 = vst.msk [vmem:[#allocation5 + $0x3] sm:$0x2] %vm256, %v2574
    %3066 = vst.msk [vmem:[#allocation5 + $0xb] sm:$0x2] %vm256, %v2576
    %3067 = vst.msk [vmem:[#allocation5 + $0x13] sm:$0x2] %vm256, %v2578
    %3068 = vst.msk [vmem:[#allocation5 + $0x1b] sm:$0x2] %vm256, %v2580
    %3069 = vst.msk [vmem:[#allocation5 + $0x23] sm:$0x2] %vm256, %v2582
    %3070 = vst.msk [vmem:[#allocation5 + $0x2b] sm:$0x2] %vm256, %v2584
    %3071 = vst.msk [vmem:[#allocation5 + $0x33] sm:$0x2] %vm256, %v2586
    %3072 = vst.msk [vmem:[#allocation5 + $0x3b] sm:$0x2] %vm256, %v2588
    %3073 = vst.msk [vmem:[#allocation5 + $0x43] sm:$0x2] %vm256, %v2590
    %3074 = vst.msk [vmem:[#allocation5 + $0x4b] sm:$0x2] %vm256, %v2592
    %3075 = vst.msk [vmem:[#allocation5 + $0x53] sm:$0x2] %vm256, %v2594
    %3076 = vst.msk [vmem:[#allocation5 + $0x5b] sm:$0x2] %vm256, %v2596
    %3077 = vst.msk [vmem:[#allocation5 + $0x63] sm:$0x2] %vm256, %v2598
    %3078 = vst.msk [vmem:[#allocation5 + $0x6b] sm:$0x2] %vm256, %v2600
    %3079 = vst.msk [vmem:[#allocation5 + $0x73] sm:$0x2] %vm256, %v2602
    %3080 = vst.msk [vmem:[#allocation5 + $0x7b] sm:$0x2] %vm256, %v2604
    %3081 = vst.msk [vmem:[#allocation5 + $0x4] sm:$0x2] %vm256, %v2638
    %3082 = vst.msk [vmem:[#allocation5 + $0xc] sm:$0x2] %vm256, %v2640
    %3083 = vst.msk [vmem:[#allocation5 + $0x14] sm:$0x2] %vm256, %v2642
    %3084 = vst.msk [vmem:[#allocation5 + $0x1c] sm:$0x2] %vm256, %v2644
    %3085 = vst.msk [vmem:[#allocation5 + $0x24] sm:$0x2] %vm256, %v2646
    %3086 = vst.msk [vmem:[#allocation5 + $0x2c] sm:$0x2] %vm256, %v2648
    %3087 = vst.msk [vmem:[#allocation5 + $0x34] sm:$0x2] %vm256, %v2650
    %3088 = vst.msk [vmem:[#allocation5 + $0x3c] sm:$0x2] %vm256, %v2652
    %3089 = vst.msk [vmem:[#allocation5 + $0x44] sm:$0x2] %vm256, %v2654
    %3090 = vst.msk [vmem:[#allocation5 + $0x4c] sm:$0x2] %vm256, %v2656
    %3091 = vst.msk [vmem:[#allocation5 + $0x54] sm:$0x2] %vm256, %v2658
    %3092 = vst.msk [vmem:[#allocation5 + $0x5c] sm:$0x2] %vm256, %v2660
    %3093 = vst.msk [vmem:[#allocation5 + $0x64] sm:$0x2] %vm256, %v2662
    %3094 = vst.msk [vmem:[#allocation5 + $0x6c] sm:$0x2] %vm256, %v2664
    %3095 = vst.msk [vmem:[#allocation5 + $0x74] sm:$0x2] %vm256, %v2666
    %3096 = vst.msk [vmem:[#allocation5 + $0x7c] sm:$0x2] %vm256, %v2668
    %3097 = vst.msk [vmem:[#allocation5 + $0x5] sm:$0x2] %vm256, %v2702
    %3098 = vst.msk [vmem:[#allocation5 + $0xd] sm:$0x2] %vm256, %v2704
    %3099 = vst.msk [vmem:[#allocation5 + $0x15] sm:$0x2] %vm256, %v2706
    %3100 = vst.msk [vmem:[#allocation5 + $0x1d] sm:$0x2] %vm256, %v2708
    %3101 = vst.msk [vmem:[#allocation5 + $0x25] sm:$0x2] %vm256, %v2710
    %3102 = vst.msk [vmem:[#allocation5 + $0x2d] sm:$0x2] %vm256, %v2712
    %3103 = vst.msk [vmem:[#allocation5 + $0x35] sm:$0x2] %vm256, %v2714
    %3104 = vst.msk [vmem:[#allocation5 + $0x3d] sm:$0x2] %vm256, %v2716
    %3105 = vst.msk [vmem:[#allocation5 + $0x45] sm:$0x2] %vm256, %v2718
    %3106 = vst.msk [vmem:[#allocation5 + $0x4d] sm:$0x2] %vm256, %v2720
    %3107 = vst.msk [vmem:[#allocation5 + $0x55] sm:$0x2] %vm256, %v2722
    %3108 = vst.msk [vmem:[#allocation5 + $0x5d] sm:$0x2] %vm256, %v2724
    %3109 = vst.msk [vmem:[#allocation5 + $0x65] sm:$0x2] %vm256, %v2726
    %3110 = vst.msk [vmem:[#allocation5 + $0x6d] sm:$0x2] %vm256, %v2728
    %3111 = vst.msk [vmem:[#allocation5 + $0x75] sm:$0x2] %vm256, %v2730
    %3112 = vst.msk [vmem:[#allocation5 + $0x7d] sm:$0x2] %vm256, %v2732
    %3113 = vst.msk [vmem:[#allocation5 + $0x6] sm:$0x2] %vm256, %v2766
    %3114 = vst.msk [vmem:[#allocation5 + $0xe] sm:$0x2] %vm256, %v2768
    %3115 = vst.msk [vmem:[#allocation5 + $0x16] sm:$0x2] %vm256, %v2770
    %3116 = vst.msk [vmem:[#allocation5 + $0x1e] sm:$0x2] %vm256, %v2772
    %3117 = vst.msk [vmem:[#allocation5 + $0x26] sm:$0x2] %vm256, %v2774
    %3118 = vst.msk [vmem:[#allocation5 + $0x2e] sm:$0x2] %vm256, %v2776
    %3119 = vst.msk [vmem:[#allocation5 + $0x36] sm:$0x2] %vm256, %v2778
    %3120 = vst.msk [vmem:[#allocation5 + $0x3e] sm:$0x2] %vm256, %v2780
    %3121 = vst.msk [vmem:[#allocation5 + $0x46] sm:$0x2] %vm256, %v2782
    %3122 = vst.msk [vmem:[#allocation5 + $0x4e] sm:$0x2] %vm256, %v2784
    %3123 = vst.msk [vmem:[#allocation5 + $0x56] sm:$0x2] %vm256, %v2786
    %3124 = vst.msk [vmem:[#allocation5 + $0x5e] sm:$0x2] %vm256, %v2788
    %3125 = vst.msk [vmem:[#allocation5 + $0x66] sm:$0x2] %vm256, %v2790
    %3126 = vst.msk [vmem:[#allocation5 + $0x6e] sm:$0x2] %vm256, %v2792
    %3127 = vst.msk [vmem:[#allocation5 + $0x76] sm:$0x2] %vm256, %v2794
    %3128 = vst.msk [vmem:[#allocation5 + $0x7e] sm:$0x2] %vm256, %v2796
    %3131 = vrot.lane.b32.xlu0 %v2172, 8
    %v3132 = vpop.permute.xlu0 %3131
    %3133 = vrot.lane.b32.xlu0 %v2196, 8
    %v3134 = vpop.permute.xlu0 %3133
    %3137 = vst.msk [vmem:[#allocation4] sm:$0xff] %vm137, %v3132
    %3138 = vst.msk [vmem:[#allocation4 + $0x40] sm:$0xff] %vm137, %v3134
    %3139 = vrot.lane.b32.xlu0 %v2172, 4
    %v3140 = vpop.permute.xlu0 %3139
    %3141 = vrot.lane.b32.xlu0 %v2196, 4
    %v3142 = vpop.permute.xlu0 %3141
    %3145 = vst.msk [vmem:[%s2356] sm:$0xff] %vm137, %v3140
    %3146 = vst.msk [vmem:[%s2356 + $0x40] sm:$0xff] %vm137, %v3142
    %3147 = vst.msk [vmem:[%s2365] sm:$0xff] %vm137, %v2172
    %3148 = vst.msk [vmem:[%s2365 + $0x40] sm:$0xff] %vm137, %v2196
    %3149 = vrot.lane.b32.xlu0 %v2172, 124
    %v3150 = vpop.permute.xlu0 %3149
    %3151 = vrot.lane.b32.xlu0 %v2196, 124
    %v3152 = vpop.permute.xlu0 %3151
    %3155 = vst.msk [vmem:[%s2374] sm:$0xff] %vm137, %v3150
    %3156 = vst.msk [vmem:[%s2374 + $0x40] sm:$0xff] %vm137, %v3152
    %3157 = vrot.lane.b32.xlu0 %v2172, 120
    %v3158 = vpop.permute.xlu0 %3157
    %3159 = vrot.lane.b32.xlu0 %v2196, 120
    %v3160 = vpop.permute.xlu0 %3159
    %3163 = vst.msk [vmem:[%s2383] sm:$0xff] %vm137, %v3158
    %3164 = vst.msk [vmem:[%s2383 + $0x40] sm:$0xff] %vm137, %v3160
    %3165 = vrot.lane.b32.xlu0 %v2172, 116
    %v3166 = vpop.permute.xlu0 %3165
    %3167 = vrot.lane.b32.xlu0 %v2196, 116
    %v3168 = vpop.permute.xlu0 %3167
    %3171 = vst.msk [vmem:[%s2392] sm:$0xff] %vm137, %v3166
    %3172 = vst.msk [vmem:[%s2392 + $0x40] sm:$0xff] %vm137, %v3168
    %3173 = vrot.lane.b32.xlu0 %v2172, 112
    %v3174 = vpop.permute.xlu0 %3173
    %3175 = vrot.lane.b32.xlu0 %v2196, 112
    %v3176 = vpop.permute.xlu0 %3175
    %3179 = vst.msk [vmem:[%s2401] sm:$0xff] %vm137, %v3174
    %3180 = vst.msk [vmem:[%s2401 + $0x40] sm:$0xff] %vm137, %v3176
    %3181 = vrot.lane.b32.xlu0 %v2172, 108
    %v3182 = vpop.permute.xlu0 %3181
    %3183 = vrot.lane.b32.xlu0 %v2196, 108
    %v3184 = vpop.permute.xlu0 %3183
    %3187 = vst.msk [vmem:[%s2410] sm:$0xff] %vm137, %v3182
    %3188 = vst.msk [vmem:[%s2410 + $0x40] sm:$0xff] %vm137, %v3184
    %3189 = vrot.lane.b32.xlu0 %v2299, 8
    %v3190 = vpop.permute.xlu0 %3189
    %3191 = vrot.lane.b32.xlu0 %v2302, 8
    %v3192 = vpop.permute.xlu0 %3191
    %3193 = vrot.lane.b32.xlu0 %v2305, 8
    %v3194 = vpop.permute.xlu0 %3193
    %3195 = vrot.lane.b32.xlu0 %v2308, 8
    %v3196 = vpop.permute.xlu0 %3195
    %3197 = vrot.lane.b32.xlu0 %v2311, 8
    %v3198 = vpop.permute.xlu0 %3197
    %3199 = vrot.lane.b32.xlu0 %v2314, 8
    %v3200 = vpop.permute.xlu0 %3199
    %3201 = vrot.lane.b32.xlu0 %v2317, 8
    %v3202 = vpop.permute.xlu0 %3201
    %3203 = vrot.lane.b32.xlu0 %v2320, 8
    %v3204 = vpop.permute.xlu0 %3203
    %3205 = vrot.lane.b32.xlu0 %v2323, 8
    %v3206 = vpop.permute.xlu0 %3205
    %3207 = vrot.lane.b32.xlu0 %v2326, 8
    %v3208 = vpop.permute.xlu0 %3207
    %3209 = vrot.lane.b32.xlu0 %v2329, 8
    %v3210 = vpop.permute.xlu0 %3209
    %3211 = vrot.lane.b32.xlu0 %v2332, 8
    %v3212 = vpop.permute.xlu0 %3211
    %3213 = vrot.lane.b32.xlu0 %v2335, 8
    %v3214 = vpop.permute.xlu0 %3213
    %3215 = vrot.lane.b32.xlu0 %v2338, 8
    %v3216 = vpop.permute.xlu0 %3215
    %3217 = vrot.lane.b32.xlu0 %v2341, 8
    %v3218 = vpop.permute.xlu0 %3217
    %3219 = vrot.lane.b32.xlu0 %v2344, 8
    %v3220 = vpop.permute.xlu0 %3219
    %3237 = vst.msk [vmem:[#allocation5 - $0x2] sm:$0x4] %vm315, %v3190
    %3238 = vst.msk [vmem:[#allocation5 + $0x6] sm:$0x4] %vm315, %v3192
    %3239 = vst.msk [vmem:[#allocation5 + $0xe] sm:$0x4] %vm315, %v3194
    %3240 = vst.msk [vmem:[#allocation5 + $0x16] sm:$0x4] %vm315, %v3196
    %3241 = vst.msk [vmem:[#allocation5 + $0x1e] sm:$0x4] %vm315, %v3198
    %3242 = vst.msk [vmem:[#allocation5 + $0x26] sm:$0x4] %vm315, %v3200
    %3243 = vst.msk [vmem:[#allocation5 + $0x2e] sm:$0x4] %vm315, %v3202
    %3244 = vst.msk [vmem:[#allocation5 + $0x36] sm:$0x4] %vm315, %v3204
    %3245 = vst.msk [vmem:[#allocation5 + $0x3e] sm:$0x4] %vm315, %v3206
    %3246 = vst.msk [vmem:[#allocation5 + $0x46] sm:$0x4] %vm315, %v3208
    %3247 = vst.msk [vmem:[#allocation5 + $0x4e] sm:$0x4] %vm315, %v3210
    %3248 = vst.msk [vmem:[#allocation5 + $0x56] sm:$0x4] %vm315, %v3212
    %3249 = vst.msk [vmem:[#allocation5 + $0x5e] sm:$0x4] %vm315, %v3214
    %3250 = vst.msk [vmem:[#allocation5 + $0x66] sm:$0x4] %vm315, %v3216
    %3251 = vst.msk [vmem:[#allocation5 + $0x6e] sm:$0x4] %vm315, %v3218
    %3252 = vst.msk [vmem:[#allocation5 + $0x76] sm:$0x4] %vm315, %v3220
    %3253 = vst.msk [vmem:[#allocation5 - $0x1] sm:$0x4] %vm315, %v2954
    %3254 = vst.msk [vmem:[#allocation5 + $0x7] sm:$0x4] %vm315, %v2956
    %3255 = vst.msk [vmem:[#allocation5 + $0xf] sm:$0x4] %vm315, %v2958
    %3256 = vst.msk [vmem:[#allocation5 + $0x17] sm:$0x4] %vm315, %v2960
    %3257 = vst.msk [vmem:[#allocation5 + $0x1f] sm:$0x4] %vm315, %v2962
    %3258 = vst.msk [vmem:[#allocation5 + $0x27] sm:$0x4] %vm315, %v2964
    %3259 = vst.msk [vmem:[#allocation5 + $0x2f] sm:$0x4] %vm315, %v2966
    %3260 = vst.msk [vmem:[#allocation5 + $0x37] sm:$0x4] %vm315, %v2968
    %3261 = vst.msk [vmem:[#allocation5 + $0x3f] sm:$0x4] %vm315, %v2970
    %3262 = vst.msk [vmem:[#allocation5 + $0x47] sm:$0x4] %vm315, %v2972
    %3263 = vst.msk [vmem:[#allocation5 + $0x4f] sm:$0x4] %vm315, %v2974
    %3264 = vst.msk [vmem:[#allocation5 + $0x57] sm:$0x4] %vm315, %v2976
    %3265 = vst.msk [vmem:[#allocation5 + $0x5f] sm:$0x4] %vm315, %v2978
    %3266 = vst.msk [vmem:[#allocation5 + $0x67] sm:$0x4] %vm315, %v2980
    %3267 = vst.msk [vmem:[#allocation5 + $0x6f] sm:$0x4] %vm315, %v2982
    %3268 = vst.msk [vmem:[#allocation5 + $0x77] sm:$0x4] %vm315, %v2984
    %3269 = vst.msk [vmem:[#allocation5] sm:$0x4] %vm315, %v2299
    %3270 = vst.msk [vmem:[#allocation5 + $0x8] sm:$0x4] %vm315, %v2302
    %3271 = vst.msk [vmem:[#allocation5 + $0x10] sm:$0x4] %vm315, %v2305
    %3272 = vst.msk [vmem:[#allocation5 + $0x18] sm:$0x4] %vm315, %v2308
    %3273 = vst.msk [vmem:[#allocation5 + $0x20] sm:$0x4] %vm315, %v2311
    %3274 = vst.msk [vmem:[#allocation5 + $0x28] sm:$0x4] %vm315, %v2314
    %3275 = vst.msk [vmem:[#allocation5 + $0x30] sm:$0x4] %vm315, %v2317
    %3276 = vst.msk [vmem:[#allocation5 + $0x38] sm:$0x4] %vm315, %v2320
    %3277 = vst.msk [vmem:[#allocation5 + $0x40] sm:$0x4] %vm315, %v2323
    %3278 = vst.msk [vmem:[#allocation5 + $0x48] sm:$0x4] %vm315, %v2326
    %3279 = vst.msk [vmem:[#allocation5 + $0x50] sm:$0x4] %vm315, %v2329
    %3280 = vst.msk [vmem:[#allocation5 + $0x58] sm:$0x4] %vm315, %v2332
    %3281 = vst.msk [vmem:[#allocation5 + $0x60] sm:$0x4] %vm315, %v2335
    %3282 = vst.msk [vmem:[#allocation5 + $0x68] sm:$0x4] %vm315, %v2338
    %3283 = vst.msk [vmem:[#allocation5 + $0x70] sm:$0x4] %vm315, %v2341
    %3284 = vst.msk [vmem:[#allocation5 + $0x78] sm:$0x4] %vm315, %v2344
    %3285 = vst.msk [vmem:[#allocation5 + $0x1] sm:$0x4] %vm315, %v2446
    %3286 = vst.msk [vmem:[#allocation5 + $0x9] sm:$0x4] %vm315, %v2448
    %3287 = vst.msk [vmem:[#allocation5 + $0x11] sm:$0x4] %vm315, %v2450
    %3288 = vst.msk [vmem:[#allocation5 + $0x19] sm:$0x4] %vm315, %v2452
    %3289 = vst.msk [vmem:[#allocation5 + $0x21] sm:$0x4] %vm315, %v2454
    %3290 = vst.msk [vmem:[#allocation5 + $0x29] sm:$0x4] %vm315, %v2456
    %3291 = vst.msk [vmem:[#allocation5 + $0x31] sm:$0x4] %vm315, %v2458
    %3292 = vst.msk [vmem:[#allocation5 + $0x39] sm:$0x4] %vm315, %v2460
    %3293 = vst.msk [vmem:[#allocation5 + $0x41] sm:$0x4] %vm315, %v2462
    %3294 = vst.msk [vmem:[#allocation5 + $0x49] sm:$0x4] %vm315, %v2464
    %3295 = vst.msk [vmem:[#allocation5 + $0x51] sm:$0x4] %vm315, %v2466
    %3296 = vst.msk [vmem:[#allocation5 + $0x59] sm:$0x4] %vm315, %v2468
    %3297 = vst.msk [vmem:[#allocation5 + $0x61] sm:$0x4] %vm315, %v2470
    %3298 = vst.msk [vmem:[#allocation5 + $0x69] sm:$0x4] %vm315, %v2472
    %3299 = vst.msk [vmem:[#allocation5 + $0x71] sm:$0x4] %vm315, %v2474
    %3300 = vst.msk [vmem:[#allocation5 + $0x79] sm:$0x4] %vm315, %v2476
    %3301 = vst.msk [vmem:[#allocation5 + $0x2] sm:$0x4] %vm315, %v2510
    %3302 = vst.msk [vmem:[#allocation5 + $0xa] sm:$0x4] %vm315, %v2512
    %3303 = vst.msk [vmem:[#allocation5 + $0x12] sm:$0x4] %vm315, %v2514
    %3304 = vst.msk [vmem:[#allocation5 + $0x1a] sm:$0x4] %vm315, %v2516
    %3305 = vst.msk [vmem:[#allocation5 + $0x22] sm:$0x4] %vm315, %v2518
    %3306 = vst.msk [vmem:[#allocation5 + $0x2a] sm:$0x4] %vm315, %v2520
    %3307 = vst.msk [vmem:[#allocation5 + $0x32] sm:$0x4] %vm315, %v2522
    %3308 = vst.msk [vmem:[#allocation5 + $0x3a] sm:$0x4] %vm315, %v2524
    %3309 = vst.msk [vmem:[#allocation5 + $0x42] sm:$0x4] %vm315, %v2526
    %3310 = vst.msk [vmem:[#allocation5 + $0x4a] sm:$0x4] %vm315, %v2528
    %3311 = vst.msk [vmem:[#allocation5 + $0x52] sm:$0x4] %vm315, %v2530
    %3312 = vst.msk [vmem:[#allocation5 + $0x5a] sm:$0x4] %vm315, %v2532
    %3313 = vst.msk [vmem:[#allocation5 + $0x62] sm:$0x4] %vm315, %v2534
    %3314 = vst.msk [vmem:[#allocation5 + $0x6a] sm:$0x4] %vm315, %v2536
    %3315 = vst.msk [vmem:[#allocation5 + $0x72] sm:$0x4] %vm315, %v2538
    %3316 = vst.msk [vmem:[#allocation5 + $0x7a] sm:$0x4] %vm315, %v2540
    %3317 = vst.msk [vmem:[#allocation5 + $0x3] sm:$0x4] %vm315, %v2574
    %3318 = vst.msk [vmem:[#allocation5 + $0xb] sm:$0x4] %vm315, %v2576
    %3319 = vst.msk [vmem:[#allocation5 + $0x13] sm:$0x4] %vm315, %v2578
    %3320 = vst.msk [vmem:[#allocation5 + $0x1b] sm:$0x4] %vm315, %v2580
    %3321 = vst.msk [vmem:[#allocation5 + $0x23] sm:$0x4] %vm315, %v2582
    %3322 = vst.msk [vmem:[#allocation5 + $0x2b] sm:$0x4] %vm315, %v2584
    %3323 = vst.msk [vmem:[#allocation5 + $0x33] sm:$0x4] %vm315, %v2586
    %3324 = vst.msk [vmem:[#allocation5 + $0x3b] sm:$0x4] %vm315, %v2588
    %3325 = vst.msk [vmem:[#allocation5 + $0x43] sm:$0x4] %vm315, %v2590
    %3326 = vst.msk [vmem:[#allocation5 + $0x4b] sm:$0x4] %vm315, %v2592
    %3327 = vst.msk [vmem:[#allocation5 + $0x53] sm:$0x4] %vm315, %v2594
    %3328 = vst.msk [vmem:[#allocation5 + $0x5b] sm:$0x4] %vm315, %v2596
    %3329 = vst.msk [vmem:[#allocation5 + $0x63] sm:$0x4] %vm315, %v2598
    %3330 = vst.msk [vmem:[#allocation5 + $0x6b] sm:$0x4] %vm315, %v2600
    %3331 = vst.msk [vmem:[#allocation5 + $0x73] sm:$0x4] %vm315, %v2602
    %3332 = vst.msk [vmem:[#allocation5 + $0x7b] sm:$0x4] %vm315, %v2604
    %3333 = vst.msk [vmem:[#allocation5 + $0x4] sm:$0x4] %vm315, %v2638
    %3334 = vst.msk [vmem:[#allocation5 + $0xc] sm:$0x4] %vm315, %v2640
    %3335 = vst.msk [vmem:[#allocation5 + $0x14] sm:$0x4] %vm315, %v2642
    %3336 = vst.msk [vmem:[#allocation5 + $0x1c] sm:$0x4] %vm315, %v2644
    %3337 = vst.msk [vmem:[#allocation5 + $0x24] sm:$0x4] %vm315, %v2646
    %3338 = vst.msk [vmem:[#allocation5 + $0x2c] sm:$0x4] %vm315, %v2648
    %3339 = vst.msk [vmem:[#allocation5 + $0x34] sm:$0x4] %vm315, %v2650
    %3340 = vst.msk [vmem:[#allocation5 + $0x3c] sm:$0x4] %vm315, %v2652
    %3341 = vst.msk [vmem:[#allocation5 + $0x44] sm:$0x4] %vm315, %v2654
    %3342 = vst.msk [vmem:[#allocation5 + $0x4c] sm:$0x4] %vm315, %v2656
    %3343 = vst.msk [vmem:[#allocation5 + $0x54] sm:$0x4] %vm315, %v2658
    %3344 = vst.msk [vmem:[#allocation5 + $0x5c] sm:$0x4] %vm315, %v2660
    %3345 = vst.msk [vmem:[#allocation5 + $0x64] sm:$0x4] %vm315, %v2662
    %3346 = vst.msk [vmem:[#allocation5 + $0x6c] sm:$0x4] %vm315, %v2664
    %3347 = vst.msk [vmem:[#allocation5 + $0x74] sm:$0x4] %vm315, %v2666
    %3348 = vst.msk [vmem:[#allocation5 + $0x7c] sm:$0x4] %vm315, %v2668
    %3349 = vst.msk [vmem:[#allocation5 + $0x5] sm:$0x4] %vm315, %v2702
    %3350 = vst.msk [vmem:[#allocation5 + $0xd] sm:$0x4] %vm315, %v2704
    %3351 = vst.msk [vmem:[#allocation5 + $0x15] sm:$0x4] %vm315, %v2706
    %3352 = vst.msk [vmem:[#allocation5 + $0x1d] sm:$0x4] %vm315, %v2708
    %3353 = vst.msk [vmem:[#allocation5 + $0x25] sm:$0x4] %vm315, %v2710
    %3354 = vst.msk [vmem:[#allocation5 + $0x2d] sm:$0x4] %vm315, %v2712
    %3355 = vst.msk [vmem:[#allocation5 + $0x35] sm:$0x4] %vm315, %v2714
    %3356 = vst.msk [vmem:[#allocation5 + $0x3d] sm:$0x4] %vm315, %v2716
    %3357 = vst.msk [vmem:[#allocation5 + $0x45] sm:$0x4] %vm315, %v2718
    %3358 = vst.msk [vmem:[#allocation5 + $0x4d] sm:$0x4] %vm315, %v2720
    %3359 = vst.msk [vmem:[#allocation5 + $0x55] sm:$0x4] %vm315, %v2722
    %3360 = vst.msk [vmem:[#allocation5 + $0x5d] sm:$0x4] %vm315, %v2724
    %3361 = vst.msk [vmem:[#allocation5 + $0x65] sm:$0x4] %vm315, %v2726
    %3362 = vst.msk [vmem:[#allocation5 + $0x6d] sm:$0x4] %vm315, %v2728
    %3363 = vst.msk [vmem:[#allocation5 + $0x75] sm:$0x4] %vm315, %v2730
    %3364 = vst.msk [vmem:[#allocation5 + $0x7d] sm:$0x4] %vm315, %v2732
    %3367 = vrot.lane.b32.xlu0 %v2175, 12
    %v3368 = vpop.permute.xlu0 %3367
    %3369 = vrot.lane.b32.xlu0 %v2199, 12
    %v3370 = vpop.permute.xlu0 %3369
    %3373 = vst.msk [vmem:[#allocation4] sm:$0xff] %vm148, %v3368
    %3374 = vst.msk [vmem:[#allocation4 + $0x40] sm:$0xff] %vm148, %v3370
    %3375 = vrot.lane.b32.xlu0 %v2175, 8
    %v3376 = vpop.permute.xlu0 %3375
    %3377 = vrot.lane.b32.xlu0 %v2199, 8
    %v3378 = vpop.permute.xlu0 %3377
    %3381 = vst.msk [vmem:[%s2356] sm:$0xff] %vm148, %v3376
    %3382 = vst.msk [vmem:[%s2356 + $0x40] sm:$0xff] %vm148, %v3378
    %3383 = vrot.lane.b32.xlu0 %v2175, 4
    %v3384 = vpop.permute.xlu0 %3383
    %3385 = vrot.lane.b32.xlu0 %v2199, 4
    %v3386 = vpop.permute.xlu0 %3385
    %3389 = vst.msk [vmem:[%s2365] sm:$0xff] %vm148, %v3384
    %3390 = vst.msk [vmem:[%s2365 + $0x40] sm:$0xff] %vm148, %v3386
    %3391 = vst.msk [vmem:[%s2374] sm:$0xff] %vm148, %v2175
    %3392 = vst.msk [vmem:[%s2374 + $0x40] sm:$0xff] %vm148, %v2199
    %3393 = vrot.lane.b32.xlu0 %v2175, 124
    %v3394 = vpop.permute.xlu0 %3393
    %3395 = vrot.lane.b32.xlu0 %v2199, 124
    %v3396 = vpop.permute.xlu0 %3395
    %3399 = vst.msk [vmem:[%s2383] sm:$0xff] %vm148, %v3394
    %3400 = vst.msk [vmem:[%s2383 + $0x40] sm:$0xff] %vm148, %v3396
    %3401 = vrot.lane.b32.xlu0 %v2175, 120
    %v3402 = vpop.permute.xlu0 %3401
    %3403 = vrot.lane.b32.xlu0 %v2199, 120
    %v3404 = vpop.permute.xlu0 %3403
    %3407 = vst.msk [vmem:[%s2392] sm:$0xff] %vm148, %v3402
    %3408 = vst.msk [vmem:[%s2392 + $0x40] sm:$0xff] %vm148, %v3404
    %3409 = vrot.lane.b32.xlu0 %v2175, 116
    %v3410 = vpop.permute.xlu0 %3409
    %3411 = vrot.lane.b32.xlu0 %v2199, 116
    %v3412 = vpop.permute.xlu0 %3411
    %3415 = vst.msk [vmem:[%s2401] sm:$0xff] %vm148, %v3410
    %3416 = vst.msk [vmem:[%s2401 + $0x40] sm:$0xff] %vm148, %v3412
    %3417 = vrot.lane.b32.xlu0 %v2175, 112
    %v3418 = vpop.permute.xlu0 %3417
    %3419 = vrot.lane.b32.xlu0 %v2199, 112
    %v3420 = vpop.permute.xlu0 %3419
    %3423 = vst.msk [vmem:[%s2410] sm:$0xff] %vm148, %v3418
    %3424 = vst.msk [vmem:[%s2410 + $0x40] sm:$0xff] %vm148, %v3420
    %3425 = vrot.lane.b32.xlu0 %v2299, 12
    %v3426 = vpop.permute.xlu0 %3425
    %3427 = vrot.lane.b32.xlu0 %v2302, 12
    %v3428 = vpop.permute.xlu0 %3427
    %3429 = vrot.lane.b32.xlu0 %v2305, 12
    %v3430 = vpop.permute.xlu0 %3429
    %3431 = vrot.lane.b32.xlu0 %v2308, 12
    %v3432 = vpop.permute.xlu0 %3431
    %3433 = vrot.lane.b32.xlu0 %v2311, 12
    %v3434 = vpop.permute.xlu0 %3433
    %3435 = vrot.lane.b32.xlu0 %v2314, 12
    %v3436 = vpop.permute.xlu0 %3435
    %3437 = vrot.lane.b32.xlu0 %v2317, 12
    %v3438 = vpop.permute.xlu0 %3437
    %3439 = vrot.lane.b32.xlu0 %v2320, 12
    %v3440 = vpop.permute.xlu0 %3439
    %3441 = vrot.lane.b32.xlu0 %v2323, 12
    %v3442 = vpop.permute.xlu0 %3441
    %3443 = vrot.lane.b32.xlu0 %v2326, 12
    %v3444 = vpop.permute.xlu0 %3443
    %3445 = vrot.lane.b32.xlu0 %v2329, 12
    %v3446 = vpop.permute.xlu0 %3445
    %3447 = vrot.lane.b32.xlu0 %v2332, 12
    %v3448 = vpop.permute.xlu0 %3447
    %3449 = vrot.lane.b32.xlu0 %v2335, 12
    %v3450 = vpop.permute.xlu0 %3449
    %3451 = vrot.lane.b32.xlu0 %v2338, 12
    %v3452 = vpop.permute.xlu0 %3451
    %3453 = vrot.lane.b32.xlu0 %v2341, 12
    %v3454 = vpop.permute.xlu0 %3453
    %3455 = vrot.lane.b32.xlu0 %v2344, 12
    %v3456 = vpop.permute.xlu0 %3455
    %3473 = vst.msk [vmem:[#allocation5 - $0x3] sm:$0x8] %vm374, %v3426
    %3474 = vst.msk [vmem:[#allocation5 + $0x5] sm:$0x8] %vm374, %v3428
    %3475 = vst.msk [vmem:[#allocation5 + $0xd] sm:$0x8] %vm374, %v3430
    %3476 = vst.msk [vmem:[#allocation5 + $0x15] sm:$0x8] %vm374, %v3432
    %3477 = vst.msk [vmem:[#allocation5 + $0x1d] sm:$0x8] %vm374, %v3434
    %3478 = vst.msk [vmem:[#allocation5 + $0x25] sm:$0x8] %vm374, %v3436
    %3479 = vst.msk [vmem:[#allocation5 + $0x2d] sm:$0x8] %vm374, %v3438
    %3480 = vst.msk [vmem:[#allocation5 + $0x35] sm:$0x8] %vm374, %v3440
    %3481 = vst.msk [vmem:[#allocation5 + $0x3d] sm:$0x8] %vm374, %v3442
    %3482 = vst.msk [vmem:[#allocation5 + $0x45] sm:$0x8] %vm374, %v3444
    %3483 = vst.msk [vmem:[#allocation5 + $0x4d] sm:$0x8] %vm374, %v3446
    %3484 = vst.msk [vmem:[#allocation5 + $0x55] sm:$0x8] %vm374, %v3448
    %3485 = vst.msk [vmem:[#allocation5 + $0x5d] sm:$0x8] %vm374, %v3450
    %3486 = vst.msk [vmem:[#allocation5 + $0x65] sm:$0x8] %vm374, %v3452
    %3487 = vst.msk [vmem:[#allocation5 + $0x6d] sm:$0x8] %vm374, %v3454
    %3488 = vst.msk [vmem:[#allocation5 + $0x75] sm:$0x8] %vm374, %v3456
    %3489 = vst.msk [vmem:[#allocation5 - $0x2] sm:$0x8] %vm374, %v3190
    %3490 = vst.msk [vmem:[#allocation5 + $0x6] sm:$0x8] %vm374, %v3192
    %3491 = vst.msk [vmem:[#allocation5 + $0xe] sm:$0x8] %vm374, %v3194
    %3492 = vst.msk [vmem:[#allocation5 + $0x16] sm:$0x8] %vm374, %v3196
    %3493 = vst.msk [vmem:[#allocation5 + $0x1e] sm:$0x8] %vm374, %v3198
    %3494 = vst.msk [vmem:[#allocation5 + $0x26] sm:$0x8] %vm374, %v3200
    %3495 = vst.msk [vmem:[#allocation5 + $0x2e] sm:$0x8] %vm374, %v3202
    %3496 = vst.msk [vmem:[#allocation5 + $0x36] sm:$0x8] %vm374, %v3204
    %3497 = vst.msk [vmem:[#allocation5 + $0x3e] sm:$0x8] %vm374, %v3206
    %3498 = vst.msk [vmem:[#allocation5 + $0x46] sm:$0x8] %vm374, %v3208
    %3499 = vst.msk [vmem:[#allocation5 + $0x4e] sm:$0x8] %vm374, %v3210
    %3500 = vst.msk [vmem:[#allocation5 + $0x56] sm:$0x8] %vm374, %v3212
    %3501 = vst.msk [vmem:[#allocation5 + $0x5e] sm:$0x8] %vm374, %v3214
    %3502 = vst.msk [vmem:[#allocation5 + $0x66] sm:$0x8] %vm374, %v3216
    %3503 = vst.msk [vmem:[#allocation5 + $0x6e] sm:$0x8] %vm374, %v3218
    %3504 = vst.msk [vmem:[#allocation5 + $0x76] sm:$0x8] %vm374, %v3220
    %3505 = vst.msk [vmem:[#allocation5 - $0x1] sm:$0x8] %vm374, %v2954
    %3506 = vst.msk [vmem:[#allocation5 + $0x7] sm:$0x8] %vm374, %v2956
    %3507 = vst.msk [vmem:[#allocation5 + $0xf] sm:$0x8] %vm374, %v2958
    %3508 = vst.msk [vmem:[#allocation5 + $0x17] sm:$0x8] %vm374, %v2960
    %3509 = vst.msk [vmem:[#allocation5 + $0x1f] sm:$0x8] %vm374, %v2962
    %3510 = vst.msk [vmem:[#allocation5 + $0x27] sm:$0x8] %vm374, %v2964
    %3511 = vst.msk [vmem:[#allocation5 + $0x2f] sm:$0x8] %vm374, %v2966
    %3512 = vst.msk [vmem:[#allocation5 + $0x37] sm:$0x8] %vm374, %v2968
    %3513 = vst.msk [vmem:[#allocation5 + $0x3f] sm:$0x8] %vm374, %v2970
    %3514 = vst.msk [vmem:[#allocation5 + $0x47] sm:$0x8] %vm374, %v2972
    %3515 = vst.msk [vmem:[#allocation5 + $0x4f] sm:$0x8] %vm374, %v2974
    %3516 = vst.msk [vmem:[#allocation5 + $0x57] sm:$0x8] %vm374, %v2976
    %3517 = vst.msk [vmem:[#allocation5 + $0x5f] sm:$0x8] %vm374, %v2978
    %3518 = vst.msk [vmem:[#allocation5 + $0x67] sm:$0x8] %vm374, %v2980
    %3519 = vst.msk [vmem:[#allocation5 + $0x6f] sm:$0x8] %vm374, %v2982
    %3520 = vst.msk [vmem:[#allocation5 + $0x77] sm:$0x8] %vm374, %v2984
    %3521 = vst.msk [vmem:[#allocation5] sm:$0x8] %vm374, %v2299
    %3522 = vst.msk [vmem:[#allocation5 + $0x8] sm:$0x8] %vm374, %v2302
    %3523 = vst.msk [vmem:[#allocation5 + $0x10] sm:$0x8] %vm374, %v2305
    %3524 = vst.msk [vmem:[#allocation5 + $0x18] sm:$0x8] %vm374, %v2308
    %3525 = vst.msk [vmem:[#allocation5 + $0x20] sm:$0x8] %vm374, %v2311
    %3526 = vst.msk [vmem:[#allocation5 + $0x28] sm:$0x8] %vm374, %v2314
    %3527 = vst.msk [vmem:[#allocation5 + $0x30] sm:$0x8] %vm374, %v2317
    %3528 = vst.msk [vmem:[#allocation5 + $0x38] sm:$0x8] %vm374, %v2320
    %3529 = vst.msk [vmem:[#allocation5 + $0x40] sm:$0x8] %vm374, %v2323
    %3530 = vst.msk [vmem:[#allocation5 + $0x48] sm:$0x8] %vm374, %v2326
    %3531 = vst.msk [vmem:[#allocation5 + $0x50] sm:$0x8] %vm374, %v2329
    %3532 = vst.msk [vmem:[#allocation5 + $0x58] sm:$0x8] %vm374, %v2332
    %3533 = vst.msk [vmem:[#allocation5 + $0x60] sm:$0x8] %vm374, %v2335
    %3534 = vst.msk [vmem:[#allocation5 + $0x68] sm:$0x8] %vm374, %v2338
    %3535 = vst.msk [vmem:[#allocation5 + $0x70] sm:$0x8] %vm374, %v2341
    %3536 = vst.msk [vmem:[#allocation5 + $0x78] sm:$0x8] %vm374, %v2344
    %3537 = vst.msk [vmem:[#allocation5 + $0x1] sm:$0x8] %vm374, %v2446
    %3538 = vst.msk [vmem:[#allocation5 + $0x9] sm:$0x8] %vm374, %v2448
    %3539 = vst.msk [vmem:[#allocation5 + $0x11] sm:$0x8] %vm374, %v2450
    %3540 = vst.msk [vmem:[#allocation5 + $0x19] sm:$0x8] %vm374, %v2452
    %3541 = vst.msk [vmem:[#allocation5 + $0x21] sm:$0x8] %vm374, %v2454
    %3542 = vst.msk [vmem:[#allocation5 + $0x29] sm:$0x8] %vm374, %v2456
    %3543 = vst.msk [vmem:[#allocation5 + $0x31] sm:$0x8] %vm374, %v2458
    %3544 = vst.msk [vmem:[#allocation5 + $0x39] sm:$0x8] %vm374, %v2460
    %3545 = vst.msk [vmem:[#allocation5 + $0x41] sm:$0x8] %vm374, %v2462
    %3546 = vst.msk [vmem:[#allocation5 + $0x49] sm:$0x8] %vm374, %v2464
    %3547 = vst.msk [vmem:[#allocation5 + $0x51] sm:$0x8] %vm374, %v2466
    %3548 = vst.msk [vmem:[#allocation5 + $0x59] sm:$0x8] %vm374, %v2468
    %3549 = vst.msk [vmem:[#allocation5 + $0x61] sm:$0x8] %vm374, %v2470
    %3550 = vst.msk [vmem:[#allocation5 + $0x69] sm:$0x8] %vm374, %v2472
    %3551 = vst.msk [vmem:[#allocation5 + $0x71] sm:$0x8] %vm374, %v2474
    %3552 = vst.msk [vmem:[#allocation5 + $0x79] sm:$0x8] %vm374, %v2476
    %3553 = vst.msk [vmem:[#allocation5 + $0x2] sm:$0x8] %vm374, %v2510
    %3554 = vst.msk [vmem:[#allocation5 + $0xa] sm:$0x8] %vm374, %v2512
    %3555 = vst.msk [vmem:[#allocation5 + $0x12] sm:$0x8] %vm374, %v2514
    %3556 = vst.msk [vmem:[#allocation5 + $0x1a] sm:$0x8] %vm374, %v2516
    %3557 = vst.msk [vmem:[#allocation5 + $0x22] sm:$0x8] %vm374, %v2518
    %3558 = vst.msk [vmem:[#allocation5 + $0x2a] sm:$0x8] %vm374, %v2520
    %3559 = vst.msk [vmem:[#allocation5 + $0x32] sm:$0x8] %vm374, %v2522
    %3560 = vst.msk [vmem:[#allocation5 + $0x3a] sm:$0x8] %vm374, %v2524
    %3561 = vst.msk [vmem:[#allocation5 + $0x42] sm:$0x8] %vm374, %v2526
    %3562 = vst.msk [vmem:[#allocation5 + $0x4a] sm:$0x8] %vm374, %v2528
    %3563 = vst.msk [vmem:[#allocation5 + $0x52] sm:$0x8] %vm374, %v2530
    %3564 = vst.msk [vmem:[#allocation5 + $0x5a] sm:$0x8] %vm374, %v2532
    %3565 = vst.msk [vmem:[#allocation5 + $0x62] sm:$0x8] %vm374, %v2534
    %3566 = vst.msk [vmem:[#allocation5 + $0x6a] sm:$0x8] %vm374, %v2536
    %3567 = vst.msk [vmem:[#allocation5 + $0x72] sm:$0x8] %vm374, %v2538
    %3568 = vst.msk [vmem:[#allocation5 + $0x7a] sm:$0x8] %vm374, %v2540
    %3569 = vst.msk [vmem:[#allocation5 + $0x3] sm:$0x8] %vm374, %v2574
    %3570 = vst.msk [vmem:[#allocation5 + $0xb] sm:$0x8] %vm374, %v2576
    %3571 = vst.msk [vmem:[#allocation5 + $0x13] sm:$0x8] %vm374, %v2578
    %3572 = vst.msk [vmem:[#allocation5 + $0x1b] sm:$0x8] %vm374, %v2580
    %3573 = vst.msk [vmem:[#allocation5 + $0x23] sm:$0x8] %vm374, %v2582
    %3574 = vst.msk [vmem:[#allocation5 + $0x2b] sm:$0x8] %vm374, %v2584
    %3575 = vst.msk [vmem:[#allocation5 + $0x33] sm:$0x8] %vm374, %v2586
    %3576 = vst.msk [vmem:[#allocation5 + $0x3b] sm:$0x8] %vm374, %v2588
    %3577 = vst.msk [vmem:[#allocation5 + $0x43] sm:$0x8] %vm374, %v2590
    %3578 = vst.msk [vmem:[#allocation5 + $0x4b] sm:$0x8] %vm374, %v2592
    %3579 = vst.msk [vmem:[#allocation5 + $0x53] sm:$0x8] %vm374, %v2594
    %3580 = vst.msk [vmem:[#allocation5 + $0x5b] sm:$0x8] %vm374, %v2596
    %3581 = vst.msk [vmem:[#allocation5 + $0x63] sm:$0x8] %vm374, %v2598
    %3582 = vst.msk [vmem:[#allocation5 + $0x6b] sm:$0x8] %vm374, %v2600
    %3583 = vst.msk [vmem:[#allocation5 + $0x73] sm:$0x8] %vm374, %v2602
    %3584 = vst.msk [vmem:[#allocation5 + $0x7b] sm:$0x8] %vm374, %v2604
    %3585 = vst.msk [vmem:[#allocation5 + $0x4] sm:$0x8] %vm374, %v2638
    %3586 = vst.msk [vmem:[#allocation5 + $0xc] sm:$0x8] %vm374, %v2640
    %3587 = vst.msk [vmem:[#allocation5 + $0x14] sm:$0x8] %vm374, %v2642
    %3588 = vst.msk [vmem:[#allocation5 + $0x1c] sm:$0x8] %vm374, %v2644
    %3589 = vst.msk [vmem:[#allocation5 + $0x24] sm:$0x8] %vm374, %v2646
    %3590 = vst.msk [vmem:[#allocation5 + $0x2c] sm:$0x8] %vm374, %v2648
    %3591 = vst.msk [vmem:[#allocation5 + $0x34] sm:$0x8] %vm374, %v2650
    %3592 = vst.msk [vmem:[#allocation5 + $0x3c] sm:$0x8] %vm374, %v2652
    %3593 = vst.msk [vmem:[#allocation5 + $0x44] sm:$0x8] %vm374, %v2654
    %3594 = vst.msk [vmem:[#allocation5 + $0x4c] sm:$0x8] %vm374, %v2656
    %3595 = vst.msk [vmem:[#allocation5 + $0x54] sm:$0x8] %vm374, %v2658
    %3596 = vst.msk [vmem:[#allocation5 + $0x5c] sm:$0x8] %vm374, %v2660
    %3597 = vst.msk [vmem:[#allocation5 + $0x64] sm:$0x8] %vm374, %v2662
    %3598 = vst.msk [vmem:[#allocation5 + $0x6c] sm:$0x8] %vm374, %v2664
    %3599 = vst.msk [vmem:[#allocation5 + $0x74] sm:$0x8] %vm374, %v2666
    %3600 = vst.msk [vmem:[#allocation5 + $0x7c] sm:$0x8] %vm374, %v2668
    %3603 = vrot.lane.b32.xlu0 %v2178, 16
    %v3604 = vpop.permute.xlu0 %3603
    %3605 = vrot.lane.b32.xlu0 %v2202, 16
    %v3606 = vpop.permute.xlu0 %3605
    %3609 = vst.msk [vmem:[#allocation4] sm:$0xff] %vm159, %v3604
    %3610 = vst.msk [vmem:[#allocation4 + $0x40] sm:$0xff] %vm159, %v3606
    %3611 = vrot.lane.b32.xlu0 %v2178, 12
    %v3612 = vpop.permute.xlu0 %3611
    %3613 = vrot.lane.b32.xlu0 %v2202, 12
    %v3614 = vpop.permute.xlu0 %3613
    %3617 = vst.msk [vmem:[%s2356] sm:$0xff] %vm159, %v3612
    %3618 = vst.msk [vmem:[%s2356 + $0x40] sm:$0xff] %vm159, %v3614
    %3619 = vrot.lane.b32.xlu0 %v2178, 8
    %v3620 = vpop.permute.xlu0 %3619
    %3621 = vrot.lane.b32.xlu0 %v2202, 8
    %v3622 = vpop.permute.xlu0 %3621
    %3625 = vst.msk [vmem:[%s2365] sm:$0xff] %vm159, %v3620
    %3626 = vst.msk [vmem:[%s2365 + $0x40] sm:$0xff] %vm159, %v3622
    %3627 = vrot.lane.b32.xlu0 %v2178, 4
    %v3628 = vpop.permute.xlu0 %3627
    %3629 = vrot.lane.b32.xlu0 %v2202, 4
    %v3630 = vpop.permute.xlu0 %3629
    %3633 = vst.msk [vmem:[%s2374] sm:$0xff] %vm159, %v3628
    %3634 = vst.msk [vmem:[%s2374 + $0x40] sm:$0xff] %vm159, %v3630
    %3635 = vst.msk [vmem:[%s2383] sm:$0xff] %vm159, %v2178
    %3636 = vst.msk [vmem:[%s2383 + $0x40] sm:$0xff] %vm159, %v2202
    %3637 = vrot.lane.b32.xlu0 %v2178, 124
    %v3638 = vpop.permute.xlu0 %3637
    %3639 = vrot.lane.b32.xlu0 %v2202, 124
    %v3640 = vpop.permute.xlu0 %3639
    %3643 = vst.msk [vmem:[%s2392] sm:$0xff] %vm159, %v3638
    %3644 = vst.msk [vmem:[%s2392 + $0x40] sm:$0xff] %vm159, %v3640
    %3645 = vrot.lane.b32.xlu0 %v2178, 120
    %v3646 = vpop.permute.xlu0 %3645
    %3647 = vrot.lane.b32.xlu0 %v2202, 120
    %v3648 = vpop.permute.xlu0 %3647
    %3651 = vst.msk [vmem:[%s2401] sm:$0xff] %vm159, %v3646
    %3652 = vst.msk [vmem:[%s2401 + $0x40] sm:$0xff] %vm159, %v3648
    %3653 = vrot.lane.b32.xlu0 %v2178, 116
    %v3654 = vpop.permute.xlu0 %3653
    %3655 = vrot.lane.b32.xlu0 %v2202, 116
    %v3656 = vpop.permute.xlu0 %3655
    %3659 = vst.msk [vmem:[%s2410] sm:$0xff] %vm159, %v3654
    %3660 = vst.msk [vmem:[%s2410 + $0x40] sm:$0xff] %vm159, %v3656
    %3661 = vrot.lane.b32.xlu0 %v2299, 16
    %v3662 = vpop.permute.xlu0 %3661
    %3663 = vrot.lane.b32.xlu0 %v2302, 16
    %v3664 = vpop.permute.xlu0 %3663
    %3665 = vrot.lane.b32.xlu0 %v2305, 16
    %v3666 = vpop.permute.xlu0 %3665
    %3667 = vrot.lane.b32.xlu0 %v2308, 16
    %v3668 = vpop.permute.xlu0 %3667
    %3669 = vrot.lane.b32.xlu0 %v2311, 16
    %v3670 = vpop.permute.xlu0 %3669
    %3671 = vrot.lane.b32.xlu0 %v2314, 16
    %v3672 = vpop.permute.xlu0 %3671
    %3673 = vrot.lane.b32.xlu0 %v2317, 16
    %v3674 = vpop.permute.xlu0 %3673
    %3675 = vrot.lane.b32.xlu0 %v2320, 16
    %v3676 = vpop.permute.xlu0 %3675
    %3677 = vrot.lane.b32.xlu0 %v2323, 16
    %v3678 = vpop.permute.xlu0 %3677
    %3679 = vrot.lane.b32.xlu0 %v2326, 16
    %v3680 = vpop.permute.xlu0 %3679
    %3681 = vrot.lane.b32.xlu0 %v2329, 16
    %v3682 = vpop.permute.xlu0 %3681
    %3683 = vrot.lane.b32.xlu0 %v2332, 16
    %v3684 = vpop.permute.xlu0 %3683
    %3685 = vrot.lane.b32.xlu0 %v2335, 16
    %v3686 = vpop.permute.xlu0 %3685
    %3687 = vrot.lane.b32.xlu0 %v2338, 16
    %v3688 = vpop.permute.xlu0 %3687
    %3689 = vrot.lane.b32.xlu0 %v2341, 16
    %v3690 = vpop.permute.xlu0 %3689
    %3691 = vrot.lane.b32.xlu0 %v2344, 16
    %v3692 = vpop.permute.xlu0 %3691
    %3709 = vst.msk [vmem:[#allocation5 - $0x4] sm:$0x10] %vm433, %v3662
    %3710 = vst.msk [vmem:[#allocation5 + $0x4] sm:$0x10] %vm433, %v3664
    %3711 = vst.msk [vmem:[#allocation5 + $0xc] sm:$0x10] %vm433, %v3666
    %3712 = vst.msk [vmem:[#allocation5 + $0x14] sm:$0x10] %vm433, %v3668
    %3713 = vst.msk [vmem:[#allocation5 + $0x1c] sm:$0x10] %vm433, %v3670
    %3714 = vst.msk [vmem:[#allocation5 + $0x24] sm:$0x10] %vm433, %v3672
    %3715 = vst.msk [vmem:[#allocation5 + $0x2c] sm:$0x10] %vm433, %v3674
    %3716 = vst.msk [vmem:[#allocation5 + $0x34] sm:$0x10] %vm433, %v3676
    %3717 = vst.msk [vmem:[#allocation5 + $0x3c] sm:$0x10] %vm433, %v3678
    %3718 = vst.msk [vmem:[#allocation5 + $0x44] sm:$0x10] %vm433, %v3680
    %3719 = vst.msk [vmem:[#allocation5 + $0x4c] sm:$0x10] %vm433, %v3682
    %3720 = vst.msk [vmem:[#allocation5 + $0x54] sm:$0x10] %vm433, %v3684
    %3721 = vst.msk [vmem:[#allocation5 + $0x5c] sm:$0x10] %vm433, %v3686
    %3722 = vst.msk [vmem:[#allocation5 + $0x64] sm:$0x10] %vm433, %v3688
    %3723 = vst.msk [vmem:[#allocation5 + $0x6c] sm:$0x10] %vm433, %v3690
    %3724 = vst.msk [vmem:[#allocation5 + $0x74] sm:$0x10] %vm433, %v3692
    %3725 = vst.msk [vmem:[#allocation5 - $0x3] sm:$0x10] %vm433, %v3426
    %3726 = vst.msk [vmem:[#allocation5 + $0x5] sm:$0x10] %vm433, %v3428
    %3727 = vst.msk [vmem:[#allocation5 + $0xd] sm:$0x10] %vm433, %v3430
    %3728 = vst.msk [vmem:[#allocation5 + $0x15] sm:$0x10] %vm433, %v3432
    %3729 = vst.msk [vmem:[#allocation5 + $0x1d] sm:$0x10] %vm433, %v3434
    %3730 = vst.msk [vmem:[#allocation5 + $0x25] sm:$0x10] %vm433, %v3436
    %3731 = vst.msk [vmem:[#allocation5 + $0x2d] sm:$0x10] %vm433, %v3438
    %3732 = vst.msk [vmem:[#allocation5 + $0x35] sm:$0x10] %vm433, %v3440
    %3733 = vst.msk [vmem:[#allocation5 + $0x3d] sm:$0x10] %vm433, %v3442
    %3734 = vst.msk [vmem:[#allocation5 + $0x45] sm:$0x10] %vm433, %v3444
    %3735 = vst.msk [vmem:[#allocation5 + $0x4d] sm:$0x10] %vm433, %v3446
    %3736 = vst.msk [vmem:[#allocation5 + $0x55] sm:$0x10] %vm433, %v3448
    %3737 = vst.msk [vmem:[#allocation5 + $0x5d] sm:$0x10] %vm433, %v3450
    %3738 = vst.msk [vmem:[#allocation5 + $0x65] sm:$0x10] %vm433, %v3452
    %3739 = vst.msk [vmem:[#allocation5 + $0x6d] sm:$0x10] %vm433, %v3454
    %3740 = vst.msk [vmem:[#allocation5 + $0x75] sm:$0x10] %vm433, %v3456
    %3741 = vst.msk [vmem:[#allocation5 - $0x2] sm:$0x10] %vm433, %v3190
    %3742 = vst.msk [vmem:[#allocation5 + $0x6] sm:$0x10] %vm433, %v3192
    %3743 = vst.msk [vmem:[#allocation5 + $0xe] sm:$0x10] %vm433, %v3194
    %3744 = vst.msk [vmem:[#allocation5 + $0x16] sm:$0x10] %vm433, %v3196
    %3745 = vst.msk [vmem:[#allocation5 + $0x1e] sm:$0x10] %vm433, %v3198
    %3746 = vst.msk [vmem:[#allocation5 + $0x26] sm:$0x10] %vm433, %v3200
    %3747 = vst.msk [vmem:[#allocation5 + $0x2e] sm:$0x10] %vm433, %v3202
    %3748 = vst.msk [vmem:[#allocation5 + $0x36] sm:$0x10] %vm433, %v3204
    %3749 = vst.msk [vmem:[#allocation5 + $0x3e] sm:$0x10] %vm433, %v3206
    %3750 = vst.msk [vmem:[#allocation5 + $0x46] sm:$0x10] %vm433, %v3208
    %3751 = vst.msk [vmem:[#allocation5 + $0x4e] sm:$0x10] %vm433, %v3210
    %3752 = vst.msk [vmem:[#allocation5 + $0x56] sm:$0x10] %vm433, %v3212
    %3753 = vst.msk [vmem:[#allocation5 + $0x5e] sm:$0x10] %vm433, %v3214
    %3754 = vst.msk [vmem:[#allocation5 + $0x66] sm:$0x10] %vm433, %v3216
    %3755 = vst.msk [vmem:[#allocation5 + $0x6e] sm:$0x10] %vm433, %v3218
    %3756 = vst.msk [vmem:[#allocation5 + $0x76] sm:$0x10] %vm433, %v3220
    %3757 = vst.msk [vmem:[#allocation5 - $0x1] sm:$0x10] %vm433, %v2954
    %3758 = vst.msk [vmem:[#allocation5 + $0x7] sm:$0x10] %vm433, %v2956
    %3759 = vst.msk [vmem:[#allocation5 + $0xf] sm:$0x10] %vm433, %v2958
    %3760 = vst.msk [vmem:[#allocation5 + $0x17] sm:$0x10] %vm433, %v2960
    %3761 = vst.msk [vmem:[#allocation5 + $0x1f] sm:$0x10] %vm433, %v2962
    %3762 = vst.msk [vmem:[#allocation5 + $0x27] sm:$0x10] %vm433, %v2964
    %3763 = vst.msk [vmem:[#allocation5 + $0x2f] sm:$0x10] %vm433, %v2966
    %3764 = vst.msk [vmem:[#allocation5 + $0x37] sm:$0x10] %vm433, %v2968
    %3765 = vst.msk [vmem:[#allocation5 + $0x3f] sm:$0x10] %vm433, %v2970
    %3766 = vst.msk [vmem:[#allocation5 + $0x47] sm:$0x10] %vm433, %v2972
    %3767 = vst.msk [vmem:[#allocation5 + $0x4f] sm:$0x10] %vm433, %v2974
    %3768 = vst.msk [vmem:[#allocation5 + $0x57] sm:$0x10] %vm433, %v2976
    %3769 = vst.msk [vmem:[#allocation5 + $0x5f] sm:$0x10] %vm433, %v2978
    %3770 = vst.msk [vmem:[#allocation5 + $0x67] sm:$0x10] %vm433, %v2980
    %3771 = vst.msk [vmem:[#allocation5 + $0x6f] sm:$0x10] %vm433, %v2982
    %3772 = vst.msk [vmem:[#allocation5 + $0x77] sm:$0x10] %vm433, %v2984
    %3773 = vst.msk [vmem:[#allocation5] sm:$0x10] %vm433, %v2299
    %3774 = vst.msk [vmem:[#allocation5 + $0x8] sm:$0x10] %vm433, %v2302
    %3775 = vst.msk [vmem:[#allocation5 + $0x10] sm:$0x10] %vm433, %v2305
    %3776 = vst.msk [vmem:[#allocation5 + $0x18] sm:$0x10] %vm433, %v2308
    %3777 = vst.msk [vmem:[#allocation5 + $0x20] sm:$0x10] %vm433, %v2311
    %3778 = vst.msk [vmem:[#allocation5 + $0x28] sm:$0x10] %vm433, %v2314
    %3779 = vst.msk [vmem:[#allocation5 + $0x30] sm:$0x10] %vm433, %v2317
    %3780 = vst.msk [vmem:[#allocation5 + $0x38] sm:$0x10] %vm433, %v2320
    %3781 = vst.msk [vmem:[#allocation5 + $0x40] sm:$0x10] %vm433, %v2323
    %3782 = vst.msk [vmem:[#allocation5 + $0x48] sm:$0x10] %vm433, %v2326
    %3783 = vst.msk [vmem:[#allocation5 + $0x50] sm:$0x10] %vm433, %v2329
    %3784 = vst.msk [vmem:[#allocation5 + $0x58] sm:$0x10] %vm433, %v2332
    %3785 = vst.msk [vmem:[#allocation5 + $0x60] sm:$0x10] %vm433, %v2335
    %3786 = vst.msk [vmem:[#allocation5 + $0x68] sm:$0x10] %vm433, %v2338
    %3787 = vst.msk [vmem:[#allocation5 + $0x70] sm:$0x10] %vm433, %v2341
    %3788 = vst.msk [vmem:[#allocation5 + $0x78] sm:$0x10] %vm433, %v2344
    %3789 = vst.msk [vmem:[#allocation5 + $0x1] sm:$0x10] %vm433, %v2446
    %3790 = vst.msk [vmem:[#allocation5 + $0x9] sm:$0x10] %vm433, %v2448
    %3791 = vst.msk [vmem:[#allocation5 + $0x11] sm:$0x10] %vm433, %v2450
    %3792 = vst.msk [vmem:[#allocation5 + $0x19] sm:$0x10] %vm433, %v2452
    %3793 = vst.msk [vmem:[#allocation5 + $0x21] sm:$0x10] %vm433, %v2454
    %3794 = vst.msk [vmem:[#allocation5 + $0x29] sm:$0x10] %vm433, %v2456
    %3795 = vst.msk [vmem:[#allocation5 + $0x31] sm:$0x10] %vm433, %v2458
    %3796 = vst.msk [vmem:[#allocation5 + $0x39] sm:$0x10] %vm433, %v2460
    %3797 = vst.msk [vmem:[#allocation5 + $0x41] sm:$0x10] %vm433, %v2462
    %3798 = vst.msk [vmem:[#allocation5 + $0x49] sm:$0x10] %vm433, %v2464
    %3799 = vst.msk [vmem:[#allocation5 + $0x51] sm:$0x10] %vm433, %v2466
    %3800 = vst.msk [vmem:[#allocation5 + $0x59] sm:$0x10] %vm433, %v2468
    %3801 = vst.msk [vmem:[#allocation5 + $0x61] sm:$0x10] %vm433, %v2470
    %3802 = vst.msk [vmem:[#allocation5 + $0x69] sm:$0x10] %vm433, %v2472
    %3803 = vst.msk [vmem:[#allocation5 + $0x71] sm:$0x10] %vm433, %v2474
    %3804 = vst.msk [vmem:[#allocation5 + $0x79] sm:$0x10] %vm433, %v2476
    %3805 = vst.msk [vmem:[#allocation5 + $0x2] sm:$0x10] %vm433, %v2510
    %3806 = vst.msk [vmem:[#allocation5 + $0xa] sm:$0x10] %vm433, %v2512
    %3807 = vst.msk [vmem:[#allocation5 + $0x12] sm:$0x10] %vm433, %v2514
    %3808 = vst.msk [vmem:[#allocation5 + $0x1a] sm:$0x10] %vm433, %v2516
    %3809 = vst.msk [vmem:[#allocation5 + $0x22] sm:$0x10] %vm433, %v2518
    %3810 = vst.msk [vmem:[#allocation5 + $0x2a] sm:$0x10] %vm433, %v2520
    %3811 = vst.msk [vmem:[#allocation5 + $0x32] sm:$0x10] %vm433, %v2522
    %3812 = vst.msk [vmem:[#allocation5 + $0x3a] sm:$0x10] %vm433, %v2524
    %3813 = vst.msk [vmem:[#allocation5 + $0x42] sm:$0x10] %vm433, %v2526
    %3814 = vst.msk [vmem:[#allocation5 + $0x4a] sm:$0x10] %vm433, %v2528
    %3815 = vst.msk [vmem:[#allocation5 + $0x52] sm:$0x10] %vm433, %v2530
    %3816 = vst.msk [vmem:[#allocation5 + $0x5a] sm:$0x10] %vm433, %v2532
    %3817 = vst.msk [vmem:[#allocation5 + $0x62] sm:$0x10] %vm433, %v2534
    %3818 = vst.msk [vmem:[#allocation5 + $0x6a] sm:$0x10] %vm433, %v2536
    %3819 = vst.msk [vmem:[#allocation5 + $0x72] sm:$0x10] %vm433, %v2538
    %3820 = vst.msk [vmem:[#allocation5 + $0x7a] sm:$0x10] %vm433, %v2540
    %3821 = vst.msk [vmem:[#allocation5 + $0x3] sm:$0x10] %vm433, %v2574
    %3822 = vst.msk [vmem:[#allocation5 + $0xb] sm:$0x10] %vm433, %v2576
    %3823 = vst.msk [vmem:[#allocation5 + $0x13] sm:$0x10] %vm433, %v2578
    %3824 = vst.msk [vmem:[#allocation5 + $0x1b] sm:$0x10] %vm433, %v2580
    %3825 = vst.msk [vmem:[#allocation5 + $0x23] sm:$0x10] %vm433, %v2582
    %3826 = vst.msk [vmem:[#allocation5 + $0x2b] sm:$0x10] %vm433, %v2584
    %3827 = vst.msk [vmem:[#allocation5 + $0x33] sm:$0x10] %vm433, %v2586
    %3828 = vst.msk [vmem:[#allocation5 + $0x3b] sm:$0x10] %vm433, %v2588
    %3829 = vst.msk [vmem:[#allocation5 + $0x43] sm:$0x10] %vm433, %v2590
    %3830 = vst.msk [vmem:[#allocation5 + $0x4b] sm:$0x10] %vm433, %v2592
    %3831 = vst.msk [vmem:[#allocation5 + $0x53] sm:$0x10] %vm433, %v2594
    %3832 = vst.msk [vmem:[#allocation5 + $0x5b] sm:$0x10] %vm433, %v2596
    %3833 = vst.msk [vmem:[#allocation5 + $0x63] sm:$0x10] %vm433, %v2598
    %3834 = vst.msk [vmem:[#allocation5 + $0x6b] sm:$0x10] %vm433, %v2600
    %3835 = vst.msk [vmem:[#allocation5 + $0x73] sm:$0x10] %vm433, %v2602
    %3836 = vst.msk [vmem:[#allocation5 + $0x7b] sm:$0x10] %vm433, %v2604
    %3839 = vrot.lane.b32.xlu0 %v2181, 20
    %v3840 = vpop.permute.xlu0 %3839
    %3841 = vrot.lane.b32.xlu0 %v2205, 20
    %v3842 = vpop.permute.xlu0 %3841
    %3845 = vst.msk [vmem:[#allocation4] sm:$0xff] %vm170, %v3840
    %3846 = vst.msk [vmem:[#allocation4 + $0x40] sm:$0xff] %vm170, %v3842
    %3847 = vrot.lane.b32.xlu0 %v2181, 16
    %v3848 = vpop.permute.xlu0 %3847
    %3849 = vrot.lane.b32.xlu0 %v2205, 16
    %v3850 = vpop.permute.xlu0 %3849
    %3853 = vst.msk [vmem:[%s2356] sm:$0xff] %vm170, %v3848
    %3854 = vst.msk [vmem:[%s2356 + $0x40] sm:$0xff] %vm170, %v3850
    %3855 = vrot.lane.b32.xlu0 %v2181, 12
    %v3856 = vpop.permute.xlu0 %3855
    %3857 = vrot.lane.b32.xlu0 %v2205, 12
    %v3858 = vpop.permute.xlu0 %3857
    %3861 = vst.msk [vmem:[%s2365] sm:$0xff] %vm170, %v3856
    %3862 = vst.msk [vmem:[%s2365 + $0x40] sm:$0xff] %vm170, %v3858
    %3863 = vrot.lane.b32.xlu0 %v2181, 8
    %v3864 = vpop.permute.xlu0 %3863
    %3865 = vrot.lane.b32.xlu0 %v2205, 8
    %v3866 = vpop.permute.xlu0 %3865
    %3869 = vst.msk [vmem:[%s2374] sm:$0xff] %vm170, %v3864
    %3870 = vst.msk [vmem:[%s2374 + $0x40] sm:$0xff] %vm170, %v3866
    %3871 = vrot.lane.b32.xlu0 %v2181, 4
    %v3872 = vpop.permute.xlu0 %3871
    %3873 = vrot.lane.b32.xlu0 %v2205, 4
    %v3874 = vpop.permute.xlu0 %3873
    %3877 = vst.msk [vmem:[%s2383] sm:$0xff] %vm170, %v3872
    %3878 = vst.msk [vmem:[%s2383 + $0x40] sm:$0xff] %vm170, %v3874
    %3879 = vst.msk [vmem:[%s2392] sm:$0xff] %vm170, %v2181
    %3880 = vst.msk [vmem:[%s2392 + $0x40] sm:$0xff] %vm170, %v2205
    %3881 = vrot.lane.b32.xlu0 %v2181, 124
    %v3882 = vpop.permute.xlu0 %3881
    %3883 = vrot.lane.b32.xlu0 %v2205, 124
    %v3884 = vpop.permute.xlu0 %3883
    %3887 = vst.msk [vmem:[%s2401] sm:$0xff] %vm170, %v3882
    %3888 = vst.msk [vmem:[%s2401 + $0x40] sm:$0xff] %vm170, %v3884
    %3889 = vrot.lane.b32.xlu0 %v2181, 120
    %v3890 = vpop.permute.xlu0 %3889
    %3891 = vrot.lane.b32.xlu0 %v2205, 120
    %v3892 = vpop.permute.xlu0 %3891
    %3895 = vst.msk [vmem:[%s2410] sm:$0xff] %vm170, %v3890
    %3896 = vst.msk [vmem:[%s2410 + $0x40] sm:$0xff] %vm170, %v3892
    %3897 = vrot.lane.b32.xlu0 %v2299, 20
    %v3898 = vpop.permute.xlu0 %3897
    %3899 = vrot.lane.b32.xlu0 %v2302, 20
    %v3900 = vpop.permute.xlu0 %3899
    %3901 = vrot.lane.b32.xlu0 %v2305, 20
    %v3902 = vpop.permute.xlu0 %3901
    %3903 = vrot.lane.b32.xlu0 %v2308, 20
    %v3904 = vpop.permute.xlu0 %3903
    %3905 = vrot.lane.b32.xlu0 %v2311, 20
    %v3906 = vpop.permute.xlu0 %3905
    %3907 = vrot.lane.b32.xlu0 %v2314, 20
    %v3908 = vpop.permute.xlu0 %3907
    %3909 = vrot.lane.b32.xlu0 %v2317, 20
    %v3910 = vpop.permute.xlu0 %3909
    %3911 = vrot.lane.b32.xlu0 %v2320, 20
    %v3912 = vpop.permute.xlu0 %3911
    %3913 = vrot.lane.b32.xlu0 %v2323, 20
    %v3914 = vpop.permute.xlu0 %3913
    %3915 = vrot.lane.b32.xlu0 %v2326, 20
    %v3916 = vpop.permute.xlu0 %3915
    %3917 = vrot.lane.b32.xlu0 %v2329, 20
    %v3918 = vpop.permute.xlu0 %3917
    %3919 = vrot.lane.b32.xlu0 %v2332, 20
    %v3920 = vpop.permute.xlu0 %3919
    %3921 = vrot.lane.b32.xlu0 %v2335, 20
    %v3922 = vpop.permute.xlu0 %3921
    %3923 = vrot.lane.b32.xlu0 %v2338, 20
    %v3924 = vpop.permute.xlu0 %3923
    %3925 = vrot.lane.b32.xlu0 %v2341, 20
    %v3926 = vpop.permute.xlu0 %3925
    %3927 = vrot.lane.b32.xlu0 %v2344, 20
    %v3928 = vpop.permute.xlu0 %3927
    %3945 = vst.msk [vmem:[#allocation5 - $0x5] sm:$0x20] %vm492, %v3898
    %3946 = vst.msk [vmem:[#allocation5 + $0x3] sm:$0x20] %vm492, %v3900
    %3947 = vst.msk [vmem:[#allocation5 + $0xb] sm:$0x20] %vm492, %v3902
    %3948 = vst.msk [vmem:[#allocation5 + $0x13] sm:$0x20] %vm492, %v3904
    %3949 = vst.msk [vmem:[#allocation5 + $0x1b] sm:$0x20] %vm492, %v3906
    %3950 = vst.msk [vmem:[#allocation5 + $0x23] sm:$0x20] %vm492, %v3908
    %3951 = vst.msk [vmem:[#allocation5 + $0x2b] sm:$0x20] %vm492, %v3910
    %3952 = vst.msk [vmem:[#allocation5 + $0x33] sm:$0x20] %vm492, %v3912
    %3953 = vst.msk [vmem:[#allocation5 + $0x3b] sm:$0x20] %vm492, %v3914
    %3954 = vst.msk [vmem:[#allocation5 + $0x43] sm:$0x20] %vm492, %v3916
    %3955 = vst.msk [vmem:[#allocation5 + $0x4b] sm:$0x20] %vm492, %v3918
    %3956 = vst.msk [vmem:[#allocation5 + $0x53] sm:$0x20] %vm492, %v3920
    %3957 = vst.msk [vmem:[#allocation5 + $0x5b] sm:$0x20] %vm492, %v3922
    %3958 = vst.msk [vmem:[#allocation5 + $0x63] sm:$0x20] %vm492, %v3924
    %3959 = vst.msk [vmem:[#allocation5 + $0x6b] sm:$0x20] %vm492, %v3926
    %3960 = vst.msk [vmem:[#allocation5 + $0x73] sm:$0x20] %vm492, %v3928
    %3961 = vst.msk [vmem:[#allocation5 - $0x4] sm:$0x20] %vm492, %v3662
    %3962 = vst.msk [vmem:[#allocation5 + $0x4] sm:$0x20] %vm492, %v3664
    %3963 = vst.msk [vmem:[#allocation5 + $0xc] sm:$0x20] %vm492, %v3666
    %3964 = vst.msk [vmem:[#allocation5 + $0x14] sm:$0x20] %vm492, %v3668
    %3965 = vst.msk [vmem:[#allocation5 + $0x1c] sm:$0x20] %vm492, %v3670
    %3966 = vst.msk [vmem:[#allocation5 + $0x24] sm:$0x20] %vm492, %v3672
    %3967 = vst.msk [vmem:[#allocation5 + $0x2c] sm:$0x20] %vm492, %v3674
    %3968 = vst.msk [vmem:[#allocation5 + $0x34] sm:$0x20] %vm492, %v3676
    %3969 = vst.msk [vmem:[#allocation5 + $0x3c] sm:$0x20] %vm492, %v3678
    %3970 = vst.msk [vmem:[#allocation5 + $0x44] sm:$0x20] %vm492, %v3680
    %3971 = vst.msk [vmem:[#allocation5 + $0x4c] sm:$0x20] %vm492, %v3682
    %3972 = vst.msk [vmem:[#allocation5 + $0x54] sm:$0x20] %vm492, %v3684
    %3973 = vst.msk [vmem:[#allocation5 + $0x5c] sm:$0x20] %vm492, %v3686
    %3974 = vst.msk [vmem:[#allocation5 + $0x64] sm:$0x20] %vm492, %v3688
    %3975 = vst.msk [vmem:[#allocation5 + $0x6c] sm:$0x20] %vm492, %v3690
    %3976 = vst.msk [vmem:[#allocation5 + $0x74] sm:$0x20] %vm492, %v3692
    %3977 = vst.msk [vmem:[#allocation5 - $0x3] sm:$0x20] %vm492, %v3426
    %3978 = vst.msk [vmem:[#allocation5 + $0x5] sm:$0x20] %vm492, %v3428
    %3979 = vst.msk [vmem:[#allocation5 + $0xd] sm:$0x20] %vm492, %v3430
    %3980 = vst.msk [vmem:[#allocation5 + $0x15] sm:$0x20] %vm492, %v3432
    %3981 = vst.msk [vmem:[#allocation5 + $0x1d] sm:$0x20] %vm492, %v3434
    %3982 = vst.msk [vmem:[#allocation5 + $0x25] sm:$0x20] %vm492, %v3436
    %3983 = vst.msk [vmem:[#allocation5 + $0x2d] sm:$0x20] %vm492, %v3438
    %3984 = vst.msk [vmem:[#allocation5 + $0x35] sm:$0x20] %vm492, %v3440
    %3985 = vst.msk [vmem:[#allocation5 + $0x3d] sm:$0x20] %vm492, %v3442
    %3986 = vst.msk [vmem:[#allocation5 + $0x45] sm:$0x20] %vm492, %v3444
    %3987 = vst.msk [vmem:[#allocation5 + $0x4d] sm:$0x20] %vm492, %v3446
    %3988 = vst.msk [vmem:[#allocation5 + $0x55] sm:$0x20] %vm492, %v3448
    %3989 = vst.msk [vmem:[#allocation5 + $0x5d] sm:$0x20] %vm492, %v3450
    %3990 = vst.msk [vmem:[#allocation5 + $0x65] sm:$0x20] %vm492, %v3452
    %3991 = vst.msk [vmem:[#allocation5 + $0x6d] sm:$0x20] %vm492, %v3454
    %3992 = vst.msk [vmem:[#allocation5 + $0x75] sm:$0x20] %vm492, %v3456
    %3993 = vst.msk [vmem:[#allocation5 - $0x2] sm:$0x20] %vm492, %v3190
    %3994 = vst.msk [vmem:[#allocation5 + $0x6] sm:$0x20] %vm492, %v3192
    %3995 = vst.msk [vmem:[#allocation5 + $0xe] sm:$0x20] %vm492, %v3194
    %3996 = vst.msk [vmem:[#allocation5 + $0x16] sm:$0x20] %vm492, %v3196
    %3997 = vst.msk [vmem:[#allocation5 + $0x1e] sm:$0x20] %vm492, %v3198
    %3998 = vst.msk [vmem:[#allocation5 + $0x26] sm:$0x20] %vm492, %v3200
    %3999 = vst.msk [vmem:[#allocation5 + $0x2e] sm:$0x20] %vm492, %v3202
    %4000 = vst.msk [vmem:[#allocation5 + $0x36] sm:$0x20] %vm492, %v3204
    %4001 = vst.msk [vmem:[#allocation5 + $0x3e] sm:$0x20] %vm492, %v3206
    %4002 = vst.msk [vmem:[#allocation5 + $0x46] sm:$0x20] %vm492, %v3208
    %4003 = vst.msk [vmem:[#allocation5 + $0x4e] sm:$0x20] %vm492, %v3210
    %4004 = vst.msk [vmem:[#allocation5 + $0x56] sm:$0x20] %vm492, %v3212
    %4005 = vst.msk [vmem:[#allocation5 + $0x5e] sm:$0x20] %vm492, %v3214
    %4006 = vst.msk [vmem:[#allocation5 + $0x66] sm:$0x20] %vm492, %v3216
    %4007 = vst.msk [vmem:[#allocation5 + $0x6e] sm:$0x20] %vm492, %v3218
    %4008 = vst.msk [vmem:[#allocation5 + $0x76] sm:$0x20] %vm492, %v3220
    %4009 = vst.msk [vmem:[#allocation5 - $0x1] sm:$0x20] %vm492, %v2954
    %4010 = vst.msk [vmem:[#allocation5 + $0x7] sm:$0x20] %vm492, %v2956
    %4011 = vst.msk [vmem:[#allocation5 + $0xf] sm:$0x20] %vm492, %v2958
    %4012 = vst.msk [vmem:[#allocation5 + $0x17] sm:$0x20] %vm492, %v2960
    %4013 = vst.msk [vmem:[#allocation5 + $0x1f] sm:$0x20] %vm492, %v2962
    %4014 = vst.msk [vmem:[#allocation5 + $0x27] sm:$0x20] %vm492, %v2964
    %4015 = vst.msk [vmem:[#allocation5 + $0x2f] sm:$0x20] %vm492, %v2966
    %4016 = vst.msk [vmem:[#allocation5 + $0x37] sm:$0x20] %vm492, %v2968
    %4017 = vst.msk [vmem:[#allocation5 + $0x3f] sm:$0x20] %vm492, %v2970
    %4018 = vst.msk [vmem:[#allocation5 + $0x47] sm:$0x20] %vm492, %v2972
    %4019 = vst.msk [vmem:[#allocation5 + $0x4f] sm:$0x20] %vm492, %v2974
    %4020 = vst.msk [vmem:[#allocation5 + $0x57] sm:$0x20] %vm492, %v2976
    %4021 = vst.msk [vmem:[#allocation5 + $0x5f] sm:$0x20] %vm492, %v2978
    %4022 = vst.msk [vmem:[#allocation5 + $0x67] sm:$0x20] %vm492, %v2980
    %4023 = vst.msk [vmem:[#allocation5 + $0x6f] sm:$0x20] %vm492, %v2982
    %4024 = vst.msk [vmem:[#allocation5 + $0x77] sm:$0x20] %vm492, %v2984
    %4025 = vst.msk [vmem:[#allocation5] sm:$0x20] %vm492, %v2299
    %4026 = vst.msk [vmem:[#allocation5 + $0x8] sm:$0x20] %vm492, %v2302
    %4027 = vst.msk [vmem:[#allocation5 + $0x10] sm:$0x20] %vm492, %v2305
    %4028 = vst.msk [vmem:[#allocation5 + $0x18] sm:$0x20] %vm492, %v2308
    %4029 = vst.msk [vmem:[#allocation5 + $0x20] sm:$0x20] %vm492, %v2311
    %4030 = vst.msk [vmem:[#allocation5 + $0x28] sm:$0x20] %vm492, %v2314
    %4031 = vst.msk [vmem:[#allocation5 + $0x30] sm:$0x20] %vm492, %v2317
    %4032 = vst.msk [vmem:[#allocation5 + $0x38] sm:$0x20] %vm492, %v2320
    %4033 = vst.msk [vmem:[#allocation5 + $0x40] sm:$0x20] %vm492, %v2323
    %4034 = vst.msk [vmem:[#allocation5 + $0x48] sm:$0x20] %vm492, %v2326
    %4035 = vst.msk [vmem:[#allocation5 + $0x50] sm:$0x20] %vm492, %v2329
    %4036 = vst.msk [vmem:[#allocation5 + $0x58] sm:$0x20] %vm492, %v2332
    %4037 = vst.msk [vmem:[#allocation5 + $0x60] sm:$0x20] %vm492, %v2335
    %4038 = vst.msk [vmem:[#allocation5 + $0x68] sm:$0x20] %vm492, %v2338
    %4039 = vst.msk [vmem:[#allocation5 + $0x70] sm:$0x20] %vm492, %v2341
    %4040 = vst.msk [vmem:[#allocation5 + $0x78] sm:$0x20] %vm492, %v2344
    %4041 = vst.msk [vmem:[#allocation5 + $0x1] sm:$0x20] %vm492, %v2446
    %4042 = vst.msk [vmem:[#allocation5 + $0x9] sm:$0x20] %vm492, %v2448
    %4043 = vst.msk [vmem:[#allocation5 + $0x11] sm:$0x20] %vm492, %v2450
    %4044 = vst.msk [vmem:[#allocation5 + $0x19] sm:$0x20] %vm492, %v2452
    %4045 = vst.msk [vmem:[#allocation5 + $0x21] sm:$0x20] %vm492, %v2454
    %4046 = vst.msk [vmem:[#allocation5 + $0x29] sm:$0x20] %vm492, %v2456
    %4047 = vst.msk [vmem:[#allocation5 + $0x31] sm:$0x20] %vm492, %v2458
    %4048 = vst.msk [vmem:[#allocation5 + $0x39] sm:$0x20] %vm492, %v2460
    %4049 = vst.msk [vmem:[#allocation5 + $0x41] sm:$0x20] %vm492, %v2462
    %4050 = vst.msk [vmem:[#allocation5 + $0x49] sm:$0x20] %vm492, %v2464
    %4051 = vst.msk [vmem:[#allocation5 + $0x51] sm:$0x20] %vm492, %v2466
    %4052 = vst.msk [vmem:[#allocation5 + $0x59] sm:$0x20] %vm492, %v2468
    %4053 = vst.msk [vmem:[#allocation5 + $0x61] sm:$0x20] %vm492, %v2470
    %4054 = vst.msk [vmem:[#allocation5 + $0x69] sm:$0x20] %vm492, %v2472
    %4055 = vst.msk [vmem:[#allocation5 + $0x71] sm:$0x20] %vm492, %v2474
    %4056 = vst.msk [vmem:[#allocation5 + $0x79] sm:$0x20] %vm492, %v2476
    %4057 = vst.msk [vmem:[#allocation5 + $0x2] sm:$0x20] %vm492, %v2510
    %4058 = vst.msk [vmem:[#allocation5 + $0xa] sm:$0x20] %vm492, %v2512
    %4059 = vst.msk [vmem:[#allocation5 + $0x12] sm:$0x20] %vm492, %v2514
    %4060 = vst.msk [vmem:[#allocation5 + $0x1a] sm:$0x20] %vm492, %v2516
    %4061 = vst.msk [vmem:[#allocation5 + $0x22] sm:$0x20] %vm492, %v2518
    %4062 = vst.msk [vmem:[#allocation5 + $0x2a] sm:$0x20] %vm492, %v2520
    %4063 = vst.msk [vmem:[#allocation5 + $0x32] sm:$0x20] %vm492, %v2522
    %4064 = vst.msk [vmem:[#allocation5 + $0x3a] sm:$0x20] %vm492, %v2524
    %4065 = vst.msk [vmem:[#allocation5 + $0x42] sm:$0x20] %vm492, %v2526
    %4066 = vst.msk [vmem:[#allocation5 + $0x4a] sm:$0x20] %vm492, %v2528
    %4067 = vst.msk [vmem:[#allocation5 + $0x52] sm:$0x20] %vm492, %v2530
    %4068 = vst.msk [vmem:[#allocation5 + $0x5a] sm:$0x20] %vm492, %v2532
    %4069 = vst.msk [vmem:[#allocation5 + $0x62] sm:$0x20] %vm492, %v2534
    %4070 = vst.msk [vmem:[#allocation5 + $0x6a] sm:$0x20] %vm492, %v2536
    %4071 = vst.msk [vmem:[#allocation5 + $0x72] sm:$0x20] %vm492, %v2538
    %4072 = vst.msk [vmem:[#allocation5 + $0x7a] sm:$0x20] %vm492, %v2540
    %4075 = vrot.lane.b32.xlu0 %v2184, 24
    %v4076 = vpop.permute.xlu0 %4075
    %4077 = vrot.lane.b32.xlu0 %v2208, 24
    %v4078 = vpop.permute.xlu0 %4077
    %4081 = vst.msk [vmem:[#allocation4] sm:$0xff] %vm181, %v4076
    %4082 = vst.msk [vmem:[#allocation4 + $0x40] sm:$0xff] %vm181, %v4078
    %4083 = vrot.lane.b32.xlu0 %v2184, 20
    %v4084 = vpop.permute.xlu0 %4083
    %4085 = vrot.lane.b32.xlu0 %v2208, 20
    %v4086 = vpop.permute.xlu0 %4085
    %4089 = vst.msk [vmem:[%s2356] sm:$0xff] %vm181, %v4084
    %4090 = vst.msk [vmem:[%s2356 + $0x40] sm:$0xff] %vm181, %v4086
    %4091 = vrot.lane.b32.xlu0 %v2184, 16
    %v4092 = vpop.permute.xlu0 %4091
    %4093 = vrot.lane.b32.xlu0 %v2208, 16
    %v4094 = vpop.permute.xlu0 %4093
    %4097 = vst.msk [vmem:[%s2365] sm:$0xff] %vm181, %v4092
    %4098 = vst.msk [vmem:[%s2365 + $0x40] sm:$0xff] %vm181, %v4094
    %4099 = vrot.lane.b32.xlu0 %v2184, 12
    %v4100 = vpop.permute.xlu0 %4099
    %4101 = vrot.lane.b32.xlu0 %v2208, 12
    %v4102 = vpop.permute.xlu0 %4101
    %4105 = vst.msk [vmem:[%s2374] sm:$0xff] %vm181, %v4100
    %4106 = vst.msk [vmem:[%s2374 + $0x40] sm:$0xff] %vm181, %v4102
    %4107 = vrot.lane.b32.xlu0 %v2184, 8
    %v4108 = vpop.permute.xlu0 %4107
    %4109 = vrot.lane.b32.xlu0 %v2208, 8
    %v4110 = vpop.permute.xlu0 %4109
    %4113 = vst.msk [vmem:[%s2383] sm:$0xff] %vm181, %v4108
    %4114 = vst.msk [vmem:[%s2383 + $0x40] sm:$0xff] %vm181, %v4110
    %4115 = vrot.lane.b32.xlu0 %v2184, 4
    %v4116 = vpop.permute.xlu0 %4115
    %4117 = vrot.lane.b32.xlu0 %v2208, 4
    %v4118 = vpop.permute.xlu0 %4117
    %4121 = vst.msk [vmem:[%s2392] sm:$0xff] %vm181, %v4116
    %4122 = vst.msk [vmem:[%s2392 + $0x40] sm:$0xff] %vm181, %v4118
    %4123 = vst.msk [vmem:[%s2401] sm:$0xff] %vm181, %v2184
    %4124 = vst.msk [vmem:[%s2401 + $0x40] sm:$0xff] %vm181, %v2208
    %4125 = vrot.lane.b32.xlu0 %v2184, 124
    %v4126 = vpop.permute.xlu0 %4125
    %4127 = vrot.lane.b32.xlu0 %v2208, 124
    %v4128 = vpop.permute.xlu0 %4127
    %4131 = vst.msk [vmem:[%s2410] sm:$0xff] %vm181, %v4126
    %4132 = vst.msk [vmem:[%s2410 + $0x40] sm:$0xff] %vm181, %v4128
    %4133 = vrot.lane.b32.xlu0 %v2299, 24
    %v4134 = vpop.permute.xlu0 %4133
    %4135 = vrot.lane.b32.xlu0 %v2302, 24
    %v4136 = vpop.permute.xlu0 %4135
    %4137 = vrot.lane.b32.xlu0 %v2305, 24
    %v4138 = vpop.permute.xlu0 %4137
    %4139 = vrot.lane.b32.xlu0 %v2308, 24
    %v4140 = vpop.permute.xlu0 %4139
    %4141 = vrot.lane.b32.xlu0 %v2311, 24
    %v4142 = vpop.permute.xlu0 %4141
    %4143 = vrot.lane.b32.xlu0 %v2314, 24
    %v4144 = vpop.permute.xlu0 %4143
    %4145 = vrot.lane.b32.xlu0 %v2317, 24
    %v4146 = vpop.permute.xlu0 %4145
    %4147 = vrot.lane.b32.xlu0 %v2320, 24
    %v4148 = vpop.permute.xlu0 %4147
    %4149 = vrot.lane.b32.xlu0 %v2323, 24
    %v4150 = vpop.permute.xlu0 %4149
    %4151 = vrot.lane.b32.xlu0 %v2326, 24
    %v4152 = vpop.permute.xlu0 %4151
    %4153 = vrot.lane.b32.xlu0 %v2329, 24
    %v4154 = vpop.permute.xlu0 %4153
    %4155 = vrot.lane.b32.xlu0 %v2332, 24
    %v4156 = vpop.permute.xlu0 %4155
    %4157 = vrot.lane.b32.xlu0 %v2335, 24
    %v4158 = vpop.permute.xlu0 %4157
    %4159 = vrot.lane.b32.xlu0 %v2338, 24
    %v4160 = vpop.permute.xlu0 %4159
    %4161 = vrot.lane.b32.xlu0 %v2341, 24
    %v4162 = vpop.permute.xlu0 %4161
    %4163 = vrot.lane.b32.xlu0 %v2344, 24
    %v4164 = vpop.permute.xlu0 %4163
    %4181 = vst.msk [vmem:[#allocation5 - $0x6] sm:$0x40] %vm551, %v4134
    %4182 = vst.msk [vmem:[#allocation5 + $0x2] sm:$0x40] %vm551, %v4136
    %4183 = vst.msk [vmem:[#allocation5 + $0xa] sm:$0x40] %vm551, %v4138
    %4184 = vst.msk [vmem:[#allocation5 + $0x12] sm:$0x40] %vm551, %v4140
    %4185 = vst.msk [vmem:[#allocation5 + $0x1a] sm:$0x40] %vm551, %v4142
    %4186 = vst.msk [vmem:[#allocation5 + $0x22] sm:$0x40] %vm551, %v4144
    %4187 = vst.msk [vmem:[#allocation5 + $0x2a] sm:$0x40] %vm551, %v4146
    %4188 = vst.msk [vmem:[#allocation5 + $0x32] sm:$0x40] %vm551, %v4148
    %4189 = vst.msk [vmem:[#allocation5 + $0x3a] sm:$0x40] %vm551, %v4150
    %4190 = vst.msk [vmem:[#allocation5 + $0x42] sm:$0x40] %vm551, %v4152
    %4191 = vst.msk [vmem:[#allocation5 + $0x4a] sm:$0x40] %vm551, %v4154
    %4192 = vst.msk [vmem:[#allocation5 + $0x52] sm:$0x40] %vm551, %v4156
    %4193 = vst.msk [vmem:[#allocation5 + $0x5a] sm:$0x40] %vm551, %v4158
    %4194 = vst.msk [vmem:[#allocation5 + $0x62] sm:$0x40] %vm551, %v4160
    %4195 = vst.msk [vmem:[#allocation5 + $0x6a] sm:$0x40] %vm551, %v4162
    %4196 = vst.msk [vmem:[#allocation5 + $0x72] sm:$0x40] %vm551, %v4164
    %4197 = vst.msk [vmem:[#allocation5 - $0x5] sm:$0x40] %vm551, %v3898
    %4198 = vst.msk [vmem:[#allocation5 + $0x3] sm:$0x40] %vm551, %v3900
    %4199 = vst.msk [vmem:[#allocation5 + $0xb] sm:$0x40] %vm551, %v3902
    %4200 = vst.msk [vmem:[#allocation5 + $0x13] sm:$0x40] %vm551, %v3904
    %4201 = vst.msk [vmem:[#allocation5 + $0x1b] sm:$0x40] %vm551, %v3906
    %4202 = vst.msk [vmem:[#allocation5 + $0x23] sm:$0x40] %vm551, %v3908
    %4203 = vst.msk [vmem:[#allocation5 + $0x2b] sm:$0x40] %vm551, %v3910
    %4204 = vst.msk [vmem:[#allocation5 + $0x33] sm:$0x40] %vm551, %v3912
    %4205 = vst.msk [vmem:[#allocation5 + $0x3b] sm:$0x40] %vm551, %v3914
    %4206 = vst.msk [vmem:[#allocation5 + $0x43] sm:$0x40] %vm551, %v3916
    %4207 = vst.msk [vmem:[#allocation5 + $0x4b] sm:$0x40] %vm551, %v3918
    %4208 = vst.msk [vmem:[#allocation5 + $0x53] sm:$0x40] %vm551, %v3920
    %4209 = vst.msk [vmem:[#allocation5 + $0x5b] sm:$0x40] %vm551, %v3922
    %4210 = vst.msk [vmem:[#allocation5 + $0x63] sm:$0x40] %vm551, %v3924
    %4211 = vst.msk [vmem:[#allocation5 + $0x6b] sm:$0x40] %vm551, %v3926
    %4212 = vst.msk [vmem:[#allocation5 + $0x73] sm:$0x40] %vm551, %v3928
    %4213 = vst.msk [vmem:[#allocation5 - $0x4] sm:$0x40] %vm551, %v3662
    %4214 = vst.msk [vmem:[#allocation5 + $0x4] sm:$0x40] %vm551, %v3664
    %4215 = vst.msk [vmem:[#allocation5 + $0xc] sm:$0x40] %vm551, %v3666
    %4216 = vst.msk [vmem:[#allocation5 + $0x14] sm:$0x40] %vm551, %v3668
    %4217 = vst.msk [vmem:[#allocation5 + $0x1c] sm:$0x40] %vm551, %v3670
    %4218 = vst.msk [vmem:[#allocation5 + $0x24] sm:$0x40] %vm551, %v3672
    %4219 = vst.msk [vmem:[#allocation5 + $0x2c] sm:$0x40] %vm551, %v3674
    %4220 = vst.msk [vmem:[#allocation5 + $0x34] sm:$0x40] %vm551, %v3676
    %4221 = vst.msk [vmem:[#allocation5 + $0x3c] sm:$0x40] %vm551, %v3678
    %4222 = vst.msk [vmem:[#allocation5 + $0x44] sm:$0x40] %vm551, %v3680
    %4223 = vst.msk [vmem:[#allocation5 + $0x4c] sm:$0x40] %vm551, %v3682
    %4224 = vst.msk [vmem:[#allocation5 + $0x54] sm:$0x40] %vm551, %v3684
    %4225 = vst.msk [vmem:[#allocation5 + $0x5c] sm:$0x40] %vm551, %v3686
    %4226 = vst.msk [vmem:[#allocation5 + $0x64] sm:$0x40] %vm551, %v3688
    %4227 = vst.msk [vmem:[#allocation5 + $0x6c] sm:$0x40] %vm551, %v3690
    %4228 = vst.msk [vmem:[#allocation5 + $0x74] sm:$0x40] %vm551, %v3692
    %4229 = vst.msk [vmem:[#allocation5 - $0x3] sm:$0x40] %vm551, %v3426
    %4230 = vst.msk [vmem:[#allocation5 + $0x5] sm:$0x40] %vm551, %v3428
    %4231 = vst.msk [vmem:[#allocation5 + $0xd] sm:$0x40] %vm551, %v3430
    %4232 = vst.msk [vmem:[#allocation5 + $0x15] sm:$0x40] %vm551, %v3432
    %4233 = vst.msk [vmem:[#allocation5 + $0x1d] sm:$0x40] %vm551, %v3434
    %4234 = vst.msk [vmem:[#allocation5 + $0x25] sm:$0x40] %vm551, %v3436
    %4235 = vst.msk [vmem:[#allocation5 + $0x2d] sm:$0x40] %vm551, %v3438
    %4236 = vst.msk [vmem:[#allocation5 + $0x35] sm:$0x40] %vm551, %v3440
    %4237 = vst.msk [vmem:[#allocation5 + $0x3d] sm:$0x40] %vm551, %v3442
    %4238 = vst.msk [vmem:[#allocation5 + $0x45] sm:$0x40] %vm551, %v3444
    %4239 = vst.msk [vmem:[#allocation5 + $0x4d] sm:$0x40] %vm551, %v3446
    %4240 = vst.msk [vmem:[#allocation5 + $0x55] sm:$0x40] %vm551, %v3448
    %4241 = vst.msk [vmem:[#allocation5 + $0x5d] sm:$0x40] %vm551, %v3450
    %4242 = vst.msk [vmem:[#allocation5 + $0x65] sm:$0x40] %vm551, %v3452
    %4243 = vst.msk [vmem:[#allocation5 + $0x6d] sm:$0x40] %vm551, %v3454
    %4244 = vst.msk [vmem:[#allocation5 + $0x75] sm:$0x40] %vm551, %v3456
    %4245 = vst.msk [vmem:[#allocation5 - $0x2] sm:$0x40] %vm551, %v3190
    %4246 = vst.msk [vmem:[#allocation5 + $0x6] sm:$0x40] %vm551, %v3192
    %4247 = vst.msk [vmem:[#allocation5 + $0xe] sm:$0x40] %vm551, %v3194
    %4248 = vst.msk [vmem:[#allocation5 + $0x16] sm:$0x40] %vm551, %v3196
    %4249 = vst.msk [vmem:[#allocation5 + $0x1e] sm:$0x40] %vm551, %v3198
    %4250 = vst.msk [vmem:[#allocation5 + $0x26] sm:$0x40] %vm551, %v3200
    %4251 = vst.msk [vmem:[#allocation5 + $0x2e] sm:$0x40] %vm551, %v3202
    %4252 = vst.msk [vmem:[#allocation5 + $0x36] sm:$0x40] %vm551, %v3204
    %4253 = vst.msk [vmem:[#allocation5 + $0x3e] sm:$0x40] %vm551, %v3206
    %4254 = vst.msk [vmem:[#allocation5 + $0x46] sm:$0x40] %vm551, %v3208
    %4255 = vst.msk [vmem:[#allocation5 + $0x4e] sm:$0x40] %vm551, %v3210
    %4256 = vst.msk [vmem:[#allocation5 + $0x56] sm:$0x40] %vm551, %v3212
    %4257 = vst.msk [vmem:[#allocation5 + $0x5e] sm:$0x40] %vm551, %v3214
    %4258 = vst.msk [vmem:[#allocation5 + $0x66] sm:$0x40] %vm551, %v3216
    %4259 = vst.msk [vmem:[#allocation5 + $0x6e] sm:$0x40] %vm551, %v3218
    %4260 = vst.msk [vmem:[#allocation5 + $0x76] sm:$0x40] %vm551, %v3220
    %4261 = vst.msk [vmem:[#allocation5 - $0x1] sm:$0x40] %vm551, %v2954
    %4262 = vst.msk [vmem:[#allocation5 + $0x7] sm:$0x40] %vm551, %v2956
    %4263 = vst.msk [vmem:[#allocation5 + $0xf] sm:$0x40] %vm551, %v2958
    %4264 = vst.msk [vmem:[#allocation5 + $0x17] sm:$0x40] %vm551, %v2960
    %4265 = vst.msk [vmem:[#allocation5 + $0x1f] sm:$0x40] %vm551, %v2962
    %4266 = vst.msk [vmem:[#allocation5 + $0x27] sm:$0x40] %vm551, %v2964
    %4267 = vst.msk [vmem:[#allocation5 + $0x2f] sm:$0x40] %vm551, %v2966
    %4268 = vst.msk [vmem:[#allocation5 + $0x37] sm:$0x40] %vm551, %v2968
    %4269 = vst.msk [vmem:[#allocation5 + $0x3f] sm:$0x40] %vm551, %v2970
    %4270 = vst.msk [vmem:[#allocation5 + $0x47] sm:$0x40] %vm551, %v2972
    %4271 = vst.msk [vmem:[#allocation5 + $0x4f] sm:$0x40] %vm551, %v2974
    %4272 = vst.msk [vmem:[#allocation5 + $0x57] sm:$0x40] %vm551, %v2976
    %4273 = vst.msk [vmem:[#allocation5 + $0x5f] sm:$0x40] %vm551, %v2978
    %4274 = vst.msk [vmem:[#allocation5 + $0x67] sm:$0x40] %vm551, %v2980
    %4275 = vst.msk [vmem:[#allocation5 + $0x6f] sm:$0x40] %vm551, %v2982
    %4276 = vst.msk [vmem:[#allocation5 + $0x77] sm:$0x40] %vm551, %v2984
    %4277 = vst.msk [vmem:[#allocation5] sm:$0x40] %vm551, %v2299
    %4278 = vst.msk [vmem:[#allocation5 + $0x8] sm:$0x40] %vm551, %v2302
    %4279 = vst.msk [vmem:[#allocation5 + $0x10] sm:$0x40] %vm551, %v2305
    %4280 = vst.msk [vmem:[#allocation5 + $0x18] sm:$0x40] %vm551, %v2308
    %4281 = vst.msk [vmem:[#allocation5 + $0x20] sm:$0x40] %vm551, %v2311
    %4282 = vst.msk [vmem:[#allocation5 + $0x28] sm:$0x40] %vm551, %v2314
    %4283 = vst.msk [vmem:[#allocation5 + $0x30] sm:$0x40] %vm551, %v2317
    %4284 = vst.msk [vmem:[#allocation5 + $0x38] sm:$0x40] %vm551, %v2320
    %4285 = vst.msk [vmem:[#allocation5 + $0x40] sm:$0x40] %vm551, %v2323
    %4286 = vst.msk [vmem:[#allocation5 + $0x48] sm:$0x40] %vm551, %v2326
    %4287 = vst.msk [vmem:[#allocation5 + $0x50] sm:$0x40] %vm551, %v2329
    %4288 = vst.msk [vmem:[#allocation5 + $0x58] sm:$0x40] %vm551, %v2332
    %4289 = vst.msk [vmem:[#allocation5 + $0x60] sm:$0x40] %vm551, %v2335
    %4290 = vst.msk [vmem:[#allocation5 + $0x68] sm:$0x40] %vm551, %v2338
    %4291 = vst.msk [vmem:[#allocation5 + $0x70] sm:$0x40] %vm551, %v2341
    %4292 = vst.msk [vmem:[#allocation5 + $0x78] sm:$0x40] %vm551, %v2344
    %4293 = vst.msk [vmem:[#allocation5 + $0x1] sm:$0x40] %vm551, %v2446
    %4294 = vst.msk [vmem:[#allocation5 + $0x9] sm:$0x40] %vm551, %v2448
    %4295 = vst.msk [vmem:[#allocation5 + $0x11] sm:$0x40] %vm551, %v2450
    %4296 = vst.msk [vmem:[#allocation5 + $0x19] sm:$0x40] %vm551, %v2452
    %4297 = vst.msk [vmem:[#allocation5 + $0x21] sm:$0x40] %vm551, %v2454
    %4298 = vst.msk [vmem:[#allocation5 + $0x29] sm:$0x40] %vm551, %v2456
    %4299 = vst.msk [vmem:[#allocation5 + $0x31] sm:$0x40] %vm551, %v2458
    %4300 = vst.msk [vmem:[#allocation5 + $0x39] sm:$0x40] %vm551, %v2460
    %4301 = vst.msk [vmem:[#allocation5 + $0x41] sm:$0x40] %vm551, %v2462
    %4302 = vst.msk [vmem:[#allocation5 + $0x49] sm:$0x40] %vm551, %v2464
    %4303 = vst.msk [vmem:[#allocation5 + $0x51] sm:$0x40] %vm551, %v2466
    %4304 = vst.msk [vmem:[#allocation5 + $0x59] sm:$0x40] %vm551, %v2468
    %4305 = vst.msk [vmem:[#allocation5 + $0x61] sm:$0x40] %vm551, %v2470
    %4306 = vst.msk [vmem:[#allocation5 + $0x69] sm:$0x40] %vm551, %v2472
    %4307 = vst.msk [vmem:[#allocation5 + $0x71] sm:$0x40] %vm551, %v2474
    %4308 = vst.msk [vmem:[#allocation5 + $0x79] sm:$0x40] %vm551, %v2476
    %4311 = vrot.lane.b32.xlu0 %v2187, 28
    %v4312 = vpop.permute.xlu0 %4311
    %4313 = vrot.lane.b32.xlu0 %v2211, 28
    %v4314 = vpop.permute.xlu0 %4313
    %4317 = vst.msk [vmem:[#allocation4] sm:$0xff] %vm192, %v4312
    %4318 = vst.msk [vmem:[#allocation4 + $0x40] sm:$0xff] %vm192, %v4314
    %4319 = vrot.lane.b32.xlu0 %v2187, 24
    %v4320 = vpop.permute.xlu0 %4319
    %4321 = vrot.lane.b32.xlu0 %v2211, 24
    %v4322 = vpop.permute.xlu0 %4321
    %4325 = vst.msk [vmem:[%s2356] sm:$0xff] %vm192, %v4320
    %4326 = vst.msk [vmem:[%s2356 + $0x40] sm:$0xff] %vm192, %v4322
    %4327 = vrot.lane.b32.xlu0 %v2187, 20
    %v4328 = vpop.permute.xlu0 %4327
    %4329 = vrot.lane.b32.xlu0 %v2211, 20
    %v4330 = vpop.permute.xlu0 %4329
    %4333 = vst.msk [vmem:[%s2365] sm:$0xff] %vm192, %v4328
    %4334 = vst.msk [vmem:[%s2365 + $0x40] sm:$0xff] %vm192, %v4330
    %4335 = vrot.lane.b32.xlu0 %v2187, 16
    %v4336 = vpop.permute.xlu0 %4335
    %4337 = vrot.lane.b32.xlu0 %v2211, 16
    %v4338 = vpop.permute.xlu0 %4337
    %4341 = vst.msk [vmem:[%s2374] sm:$0xff] %vm192, %v4336
    %4342 = vst.msk [vmem:[%s2374 + $0x40] sm:$0xff] %vm192, %v4338
    %4343 = vrot.lane.b32.xlu0 %v2187, 12
    %v4344 = vpop.permute.xlu0 %4343
    %4345 = vrot.lane.b32.xlu0 %v2211, 12
    %v4346 = vpop.permute.xlu0 %4345
    %4349 = vst.msk [vmem:[%s2383] sm:$0xff] %vm192, %v4344
    %4350 = vst.msk [vmem:[%s2383 + $0x40] sm:$0xff] %vm192, %v4346
    %4351 = vrot.lane.b32.xlu0 %v2187, 8
    %v4352 = vpop.permute.xlu0 %4351
    %4353 = vrot.lane.b32.xlu0 %v2211, 8
    %v4354 = vpop.permute.xlu0 %4353
    %4357 = vst.msk [vmem:[%s2392] sm:$0xff] %vm192, %v4352
    %4358 = vst.msk [vmem:[%s2392 + $0x40] sm:$0xff] %vm192, %v4354
    %4359 = vrot.lane.b32.xlu0 %v2187, 4
    %v4360 = vpop.permute.xlu0 %4359
    %4361 = vrot.lane.b32.xlu0 %v2211, 4
    %v4362 = vpop.permute.xlu0 %4361
    %4365 = vst.msk [vmem:[%s2401] sm:$0xff] %vm192, %v4360
    %4366 = vst.msk [vmem:[%s2401 + $0x40] sm:$0xff] %vm192, %v4362
    %4367 = vst.msk [vmem:[%s2410] sm:$0xff] %vm192, %v2187
    %4368 = vst.msk [vmem:[%s2410 + $0x40] sm:$0xff] %vm192, %v2211
    %4369 = vrot.lane.b32.xlu0 %v2299, 28
    %v4370 = vpop.permute.xlu0 %4369
    %4371 = vrot.lane.b32.xlu0 %v2302, 28
    %v4372 = vpop.permute.xlu0 %4371
    %4373 = vrot.lane.b32.xlu0 %v2305, 28
    %v4374 = vpop.permute.xlu0 %4373
    %4375 = vrot.lane.b32.xlu0 %v2308, 28
    %v4376 = vpop.permute.xlu0 %4375
    %4377 = vrot.lane.b32.xlu0 %v2311, 28
    %v4378 = vpop.permute.xlu0 %4377
    %4379 = vrot.lane.b32.xlu0 %v2314, 28
    %v4380 = vpop.permute.xlu0 %4379
    %4381 = vrot.lane.b32.xlu0 %v2317, 28
    %v4382 = vpop.permute.xlu0 %4381
    %4383 = vrot.lane.b32.xlu0 %v2320, 28
    %v4384 = vpop.permute.xlu0 %4383
    %4385 = vrot.lane.b32.xlu0 %v2323, 28
    %v4386 = vpop.permute.xlu0 %4385
    %4387 = vrot.lane.b32.xlu0 %v2326, 28
    %v4388 = vpop.permute.xlu0 %4387
    %4389 = vrot.lane.b32.xlu0 %v2329, 28
    %v4390 = vpop.permute.xlu0 %4389
    %4391 = vrot.lane.b32.xlu0 %v2332, 28
    %v4392 = vpop.permute.xlu0 %4391
    %4393 = vrot.lane.b32.xlu0 %v2335, 28
    %v4394 = vpop.permute.xlu0 %4393
    %4395 = vrot.lane.b32.xlu0 %v2338, 28
    %v4396 = vpop.permute.xlu0 %4395
    %4397 = vrot.lane.b32.xlu0 %v2341, 28
    %v4398 = vpop.permute.xlu0 %4397
    %4399 = vrot.lane.b32.xlu0 %v2344, 28
    %v4400 = vpop.permute.xlu0 %4399
    %4417 = vst.msk [vmem:[#allocation5 - $0x7] sm:$0x80] %vm610, %v4370
    %4418 = vst.msk [vmem:[#allocation5 + $0x1] sm:$0x80] %vm610, %v4372
    %4419 = vst.msk [vmem:[#allocation5 + $0x9] sm:$0x80] %vm610, %v4374
    %4420 = vst.msk [vmem:[#allocation5 + $0x11] sm:$0x80] %vm610, %v4376
    %4421 = vst.msk [vmem:[#allocation5 + $0x19] sm:$0x80] %vm610, %v4378
    %4422 = vst.msk [vmem:[#allocation5 + $0x21] sm:$0x80] %vm610, %v4380
    %4423 = vst.msk [vmem:[#allocation5 + $0x29] sm:$0x80] %vm610, %v4382
    %4424 = vst.msk [vmem:[#allocation5 + $0x31] sm:$0x80] %vm610, %v4384
    %4425 = vst.msk [vmem:[#allocation5 + $0x39] sm:$0x80] %vm610, %v4386
    %4426 = vst.msk [vmem:[#allocation5 + $0x41] sm:$0x80] %vm610, %v4388
    %4427 = vst.msk [vmem:[#allocation5 + $0x49] sm:$0x80] %vm610, %v4390
    %4428 = vst.msk [vmem:[#allocation5 + $0x51] sm:$0x80] %vm610, %v4392
    %4429 = vst.msk [vmem:[#allocation5 + $0x59] sm:$0x80] %vm610, %v4394
    %4430 = vst.msk [vmem:[#allocation5 + $0x61] sm:$0x80] %vm610, %v4396
    %4431 = vst.msk [vmem:[#allocation5 + $0x69] sm:$0x80] %vm610, %v4398
    %4432 = vst.msk [vmem:[#allocation5 + $0x71] sm:$0x80] %vm610, %v4400
    %4433 = vst.msk [vmem:[#allocation5 - $0x6] sm:$0x80] %vm610, %v4134
    %4434 = vst.msk [vmem:[#allocation5 + $0x2] sm:$0x80] %vm610, %v4136
    %4435 = vst.msk [vmem:[#allocation5 + $0xa] sm:$0x80] %vm610, %v4138
    %4436 = vst.msk [vmem:[#allocation5 + $0x12] sm:$0x80] %vm610, %v4140
    %4437 = vst.msk [vmem:[#allocation5 + $0x1a] sm:$0x80] %vm610, %v4142
    %4438 = vst.msk [vmem:[#allocation5 + $0x22] sm:$0x80] %vm610, %v4144
    %4439 = vst.msk [vmem:[#allocation5 + $0x2a] sm:$0x80] %vm610, %v4146
    %4440 = vst.msk [vmem:[#allocation5 + $0x32] sm:$0x80] %vm610, %v4148
    %4441 = vst.msk [vmem:[#allocation5 + $0x3a] sm:$0x80] %vm610, %v4150
    %4442 = vst.msk [vmem:[#allocation5 + $0x42] sm:$0x80] %vm610, %v4152
    %4443 = vst.msk [vmem:[#allocation5 + $0x4a] sm:$0x80] %vm610, %v4154
    %4444 = vst.msk [vmem:[#allocation5 + $0x52] sm:$0x80] %vm610, %v4156
    %4445 = vst.msk [vmem:[#allocation5 + $0x5a] sm:$0x80] %vm610, %v4158
    %4446 = vst.msk [vmem:[#allocation5 + $0x62] sm:$0x80] %vm610, %v4160
    %4447 = vst.msk [vmem:[#allocation5 + $0x6a] sm:$0x80] %vm610, %v4162
    %4448 = vst.msk [vmem:[#allocation5 + $0x72] sm:$0x80] %vm610, %v4164
    %4449 = vst.msk [vmem:[#allocation5 - $0x5] sm:$0x80] %vm610, %v3898
    %4450 = vst.msk [vmem:[#allocation5 + $0x3] sm:$0x80] %vm610, %v3900
    %4451 = vst.msk [vmem:[#allocation5 + $0xb] sm:$0x80] %vm610, %v3902
    %4452 = vst.msk [vmem:[#allocation5 + $0x13] sm:$0x80] %vm610, %v3904
    %4453 = vst.msk [vmem:[#allocation5 + $0x1b] sm:$0x80] %vm610, %v3906
    %4454 = vst.msk [vmem:[#allocation5 + $0x23] sm:$0x80] %vm610, %v3908
    %4455 = vst.msk [vmem:[#allocation5 + $0x2b] sm:$0x80] %vm610, %v3910
    %4456 = vst.msk [vmem:[#allocation5 + $0x33] sm:$0x80] %vm610, %v3912
    %4457 = vst.msk [vmem:[#allocation5 + $0x3b] sm:$0x80] %vm610, %v3914
    %4458 = vst.msk [vmem:[#allocation5 + $0x43] sm:$0x80] %vm610, %v3916
    %4459 = vst.msk [vmem:[#allocation5 + $0x4b] sm:$0x80] %vm610, %v3918
    %4460 = vst.msk [vmem:[#allocation5 + $0x53] sm:$0x80] %vm610, %v3920
    %4461 = vst.msk [vmem:[#allocation5 + $0x5b] sm:$0x80] %vm610, %v3922
    %4462 = vst.msk [vmem:[#allocation5 + $0x63] sm:$0x80] %vm610, %v3924
    %4463 = vst.msk [vmem:[#allocation5 + $0x6b] sm:$0x80] %vm610, %v3926
    %4464 = vst.msk [vmem:[#allocation5 + $0x73] sm:$0x80] %vm610, %v3928
    %4465 = vst.msk [vmem:[#allocation5 - $0x4] sm:$0x80] %vm610, %v3662
    %4466 = vst.msk [vmem:[#allocation5 + $0x4] sm:$0x80] %vm610, %v3664
    %4467 = vst.msk [vmem:[#allocation5 + $0xc] sm:$0x80] %vm610, %v3666
    %4468 = vst.msk [vmem:[#allocation5 + $0x14] sm:$0x80] %vm610, %v3668
    %4469 = vst.msk [vmem:[#allocation5 + $0x1c] sm:$0x80] %vm610, %v3670
    %4470 = vst.msk [vmem:[#allocation5 + $0x24] sm:$0x80] %vm610, %v3672
    %4471 = vst.msk [vmem:[#allocation5 + $0x2c] sm:$0x80] %vm610, %v3674
    %4472 = vst.msk [vmem:[#allocation5 + $0x34] sm:$0x80] %vm610, %v3676
    %4473 = vst.msk [vmem:[#allocation5 + $0x3c] sm:$0x80] %vm610, %v3678
    %4474 = vst.msk [vmem:[#allocation5 + $0x44] sm:$0x80] %vm610, %v3680
    %4475 = vst.msk [vmem:[#allocation5 + $0x4c] sm:$0x80] %vm610, %v3682
    %4476 = vst.msk [vmem:[#allocation5 + $0x54] sm:$0x80] %vm610, %v3684
    %4477 = vst.msk [vmem:[#allocation5 + $0x5c] sm:$0x80] %vm610, %v3686
    %4478 = vst.msk [vmem:[#allocation5 + $0x64] sm:$0x80] %vm610, %v3688
    %4479 = vst.msk [vmem:[#allocation5 + $0x6c] sm:$0x80] %vm610, %v3690
    %4480 = vst.msk [vmem:[#allocation5 + $0x74] sm:$0x80] %vm610, %v3692
    %4481 = vst.msk [vmem:[#allocation5 - $0x3] sm:$0x80] %vm610, %v3426
    %4482 = vst.msk [vmem:[#allocation5 + $0x5] sm:$0x80] %vm610, %v3428
    %4483 = vst.msk [vmem:[#allocation5 + $0xd] sm:$0x80] %vm610, %v3430
    %4484 = vst.msk [vmem:[#allocation5 + $0x15] sm:$0x80] %vm610, %v3432
    %4485 = vst.msk [vmem:[#allocation5 + $0x1d] sm:$0x80] %vm610, %v3434
    %4486 = vst.msk [vmem:[#allocation5 + $0x25] sm:$0x80] %vm610, %v3436
    %4487 = vst.msk [vmem:[#allocation5 + $0x2d] sm:$0x80] %vm610, %v3438
    %4488 = vst.msk [vmem:[#allocation5 + $0x35] sm:$0x80] %vm610, %v3440
    %4489 = vst.msk [vmem:[#allocation5 + $0x3d] sm:$0x80] %vm610, %v3442
    %4490 = vst.msk [vmem:[#allocation5 + $0x45] sm:$0x80] %vm610, %v3444
    %4491 = vst.msk [vmem:[#allocation5 + $0x4d] sm:$0x80] %vm610, %v3446
    %4492 = vst.msk [vmem:[#allocation5 + $0x55] sm:$0x80] %vm610, %v3448
    %4493 = vst.msk [vmem:[#allocation5 + $0x5d] sm:$0x80] %vm610, %v3450
    %4494 = vst.msk [vmem:[#allocation5 + $0x65] sm:$0x80] %vm610, %v3452
    %4495 = vst.msk [vmem:[#allocation5 + $0x6d] sm:$0x80] %vm610, %v3454
    %4496 = vst.msk [vmem:[#allocation5 + $0x75] sm:$0x80] %vm610, %v3456
    %4497 = vst.msk [vmem:[#allocation5 - $0x2] sm:$0x80] %vm610, %v3190
    %4498 = vst.msk [vmem:[#allocation5 + $0x6] sm:$0x80] %vm610, %v3192
    %4499 = vst.msk [vmem:[#allocation5 + $0xe] sm:$0x80] %vm610, %v3194
    %4500 = vst.msk [vmem:[#allocation5 + $0x16] sm:$0x80] %vm610, %v3196
    %4501 = vst.msk [vmem:[#allocation5 + $0x1e] sm:$0x80] %vm610, %v3198
    %4502 = vst.msk [vmem:[#allocation5 + $0x26] sm:$0x80] %vm610, %v3200
    %4503 = vst.msk [vmem:[#allocation5 + $0x2e] sm:$0x80] %vm610, %v3202
    %4504 = vst.msk [vmem:[#allocation5 + $0x36] sm:$0x80] %vm610, %v3204
    %4505 = vst.msk [vmem:[#allocation5 + $0x3e] sm:$0x80] %vm610, %v3206
    %4506 = vst.msk [vmem:[#allocation5 + $0x46] sm:$0x80] %vm610, %v3208
    %4507 = vst.msk [vmem:[#allocation5 + $0x4e] sm:$0x80] %vm610, %v3210
    %4508 = vst.msk [vmem:[#allocation5 + $0x56] sm:$0x80] %vm610, %v3212
    %4509 = vst.msk [vmem:[#allocation5 + $0x5e] sm:$0x80] %vm610, %v3214
    %4510 = vst.msk [vmem:[#allocation5 + $0x66] sm:$0x80] %vm610, %v3216
    %4511 = vst.msk [vmem:[#allocation5 + $0x6e] sm:$0x80] %vm610, %v3218
    %4512 = vst.msk [vmem:[#allocation5 + $0x76] sm:$0x80] %vm610, %v3220
    %4513 = vst.msk [vmem:[#allocation5 - $0x1] sm:$0x80] %vm610, %v2954
    %4514 = vst.msk [vmem:[#allocation5 + $0x7] sm:$0x80] %vm610, %v2956
    %4515 = vst.msk [vmem:[#allocation5 + $0xf] sm:$0x80] %vm610, %v2958
    %4516 = vst.msk [vmem:[#allocation5 + $0x17] sm:$0x80] %vm610, %v2960
    %4517 = vst.msk [vmem:[#allocation5 + $0x1f] sm:$0x80] %vm610, %v2962
    %4518 = vst.msk [vmem:[#allocation5 + $0x27] sm:$0x80] %vm610, %v2964
    %4519 = vst.msk [vmem:[#allocation5 + $0x2f] sm:$0x80] %vm610, %v2966
    %4520 = vst.msk [vmem:[#allocation5 + $0x37] sm:$0x80] %vm610, %v2968
    %4521 = vst.msk [vmem:[#allocation5 + $0x3f] sm:$0x80] %vm610, %v2970
    %4522 = vst.msk [vmem:[#allocation5 + $0x47] sm:$0x80] %vm610, %v2972
    %4523 = vst.msk [vmem:[#allocation5 + $0x4f] sm:$0x80] %vm610, %v2974
    %4524 = vst.msk [vmem:[#allocation5 + $0x57] sm:$0x80] %vm610, %v2976
    %4525 = vst.msk [vmem:[#allocation5 + $0x5f] sm:$0x80] %vm610, %v2978
    %4526 = vst.msk [vmem:[#allocation5 + $0x67] sm:$0x80] %vm610, %v2980
    %4527 = vst.msk [vmem:[#allocation5 + $0x6f] sm:$0x80] %vm610, %v2982
    %4528 = vst.msk [vmem:[#allocation5 + $0x77] sm:$0x80] %vm610, %v2984
    %4529 = vst.msk [vmem:[#allocation5] sm:$0x80] %vm610, %v2299
    %4530 = vst.msk [vmem:[#allocation5 + $0x8] sm:$0x80] %vm610, %v2302
    %4531 = vst.msk [vmem:[#allocation5 + $0x10] sm:$0x80] %vm610, %v2305
    %4532 = vst.msk [vmem:[#allocation5 + $0x18] sm:$0x80] %vm610, %v2308
    %4533 = vst.msk [vmem:[#allocation5 + $0x20] sm:$0x80] %vm610, %v2311
    %4534 = vst.msk [vmem:[#allocation5 + $0x28] sm:$0x80] %vm610, %v2314
    %4535 = vst.msk [vmem:[#allocation5 + $0x30] sm:$0x80] %vm610, %v2317
    %4536 = vst.msk [vmem:[#allocation5 + $0x38] sm:$0x80] %vm610, %v2320
    %4537 = vst.msk [vmem:[#allocation5 + $0x40] sm:$0x80] %vm610, %v2323
    %4538 = vst.msk [vmem:[#allocation5 + $0x48] sm:$0x80] %vm610, %v2326
    %4539 = vst.msk [vmem:[#allocation5 + $0x50] sm:$0x80] %vm610, %v2329
    %4540 = vst.msk [vmem:[#allocation5 + $0x58] sm:$0x80] %vm610, %v2332
    %4541 = vst.msk [vmem:[#allocation5 + $0x60] sm:$0x80] %vm610, %v2335
    %4542 = vst.msk [vmem:[#allocation5 + $0x68] sm:$0x80] %vm610, %v2338
    %4543 = vst.msk [vmem:[#allocation5 + $0x70] sm:$0x80] %vm610, %v2341
    %4544 = vst.msk [vmem:[#allocation5 + $0x78] sm:$0x80] %vm610, %v2344
    %v4545 = vld [vmem:[#allocation4] sm:$0xff]
    %v4546 = vld [vmem:[#allocation4 + $0x8] sm:$0xff]
    %v4547 = vld [vmem:[#allocation4 + $0x10] sm:$0xff]
    %v4548 = vld [vmem:[#allocation4 + $0x18] sm:$0xff]
    %v4549 = vld [vmem:[#allocation4 + $0x20] sm:$0xff]
    %v4550 = vld [vmem:[#allocation4 + $0x28] sm:$0xff]
    %v4551 = vld [vmem:[#allocation4 + $0x30] sm:$0xff]
    %v4552 = vld [vmem:[#allocation4 + $0x38] sm:$0xff]
    %v4553 = vld [vmem:[#allocation4 + $0x40] sm:$0xff]
    %v4554 = vld [vmem:[#allocation4 + $0x48] sm:$0xff]
    %v4555 = vld [vmem:[#allocation4 + $0x50] sm:$0xff]
    %v4556 = vld [vmem:[#allocation4 + $0x58] sm:$0xff]
    %v4557 = vld [vmem:[#allocation4 + $0x60] sm:$0xff]
    %v4558 = vld [vmem:[#allocation4 + $0x68] sm:$0xff]
    %v4559 = vld [vmem:[#allocation4 + $0x70] sm:$0xff]
    %v4560 = vld [vmem:[#allocation4 + $0x78] sm:$0xff]
    %v4561 = vld [vmem:[#allocation5] sm:$0xff]
    %v4562 = vld [vmem:[#allocation5 + $0x8] sm:$0xff]
    %v4563 = vld [vmem:[#allocation5 + $0x10] sm:$0xff]
    %v4564 = vld [vmem:[#allocation5 + $0x18] sm:$0xff]
    %v4565 = vld [vmem:[#allocation5 + $0x20] sm:$0xff]
    %v4566 = vld [vmem:[#allocation5 + $0x28] sm:$0xff]
    %v4567 = vld [vmem:[#allocation5 + $0x30] sm:$0xff]
    %v4568 = vld [vmem:[#allocation5 + $0x38] sm:$0xff]
    %v4569 = vld [vmem:[#allocation5 + $0x40] sm:$0xff]
    %v4570 = vld [vmem:[#allocation5 + $0x48] sm:$0xff]
    %v4571 = vld [vmem:[#allocation5 + $0x50] sm:$0xff]
    %v4572 = vld [vmem:[#allocation5 + $0x58] sm:$0xff]
    %v4573 = vld [vmem:[#allocation5 + $0x60] sm:$0xff]
    %v4574 = vld [vmem:[#allocation5 + $0x68] sm:$0xff]
    %v4575 = vld [vmem:[#allocation5 + $0x70] sm:$0xff]
    %v4576 = vld [vmem:[#allocation5 + $0x78] sm:$0xff]
    %v4577 = vadd.f32 %v4545, %v4561
    %v4578 = vadd.f32 %v4546, %v4562
    %v4579 = vadd.f32 %v4547, %v4563
    %v4580 = vadd.f32 %v4548, %v4564
    %v4581 = vadd.f32 %v4549, %v4565
    %v4582 = vadd.f32 %v4550, %v4566
    %v4583 = vadd.f32 %v4551, %v4567
    %v4584 = vadd.f32 %v4552, %v4568
    %v4585 = vadd.f32 %v4553, %v4569
    %v4586 = vadd.f32 %v4554, %v4570
    %v4587 = vadd.f32 %v4555, %v4571
    %v4588 = vadd.f32 %v4556, %v4572
    %v4589 = vadd.f32 %v4557, %v4573
    %v4590 = vadd.f32 %v4558, %v4574
    %v4591 = vadd.f32 %v4559, %v4575
    %v4592 = vadd.f32 %v4560, %v4576
    %v4593 = vadd.f32 %v4577, %v2033
    %v4594 = vadd.f32 %v4578, %v2036
    %v4595 = vadd.f32 %v4579, %v2039
    %v4596 = vadd.f32 %v4580, %v2042
    %v4597 = vadd.f32 %v4581, %v2045
    %v4598 = vadd.f32 %v4582, %v2048
    %v4599 = vadd.f32 %v4583, %v2051
    %v4600 = vadd.f32 %v4584, %v2054
    %v4601 = vadd.f32 %v4585, %v2057
    %v4602 = vadd.f32 %v4586, %v2060
    %v4603 = vadd.f32 %v4587, %v2063
    %v4604 = vadd.f32 %v4588, %v2066
    %v4605 = vadd.f32 %v4589, %v2069
    %v4606 = vadd.f32 %v4590, %v2072
    %v4607 = vadd.f32 %v4591, %v2075
    %v4608 = vadd.f32 %v4592, %v2078
    %v4609 = vsel %vm1982, %v4593, 0.0
    %v4610 = vsel %vm1982, %v4594, 0.0
    %v4611 = vadd.f32 %v4609, %v4610
    %v4612 = vsel %vm1982, %v4595, 0.0
    %v4613 = vadd.f32 %v4611, %v4612
    %v4614 = vsel %vm1982, %v4596, 0.0
    %v4615 = vadd.f32 %v4613, %v4614
    %v4616 = vsel %vm1982, %v4597, 0.0
    %v4617 = vadd.f32 %v4615, %v4616
    %v4618 = vsel %vm1982, %v4598, 0.0
    %v4619 = vadd.f32 %v4617, %v4618
    %v4620 = vsel %vm1982, %v4599, 0.0
    %v4621 = vadd.f32 %v4619, %v4620
    %v4622 = vsel %vm1982, %v4600, 0.0
    %v4623 = vadd.f32 %v4621, %v4622
    %v4624 = vrot.slane %v4623, 4
    %v4625 = vadd.f32 %v4623, %v4624
    %v4626 = vrot.slane %v4625, 2
    %v4627 = vadd.f32 %v4625, %v4626
    %v4628 = vrot.slane %v4627, 1
    %v4629 = vadd.f32 %v4627, %v4628
    %v4630 = vsel %vm1982, %v4601, 0.0
    %v4631 = vsel %vm1982, %v4602, 0.0
    %v4632 = vadd.f32 %v4630, %v4631
    %v4633 = vsel %vm1982, %v4603, 0.0
    %v4634 = vadd.f32 %v4632, %v4633
    %v4635 = vsel %vm1982, %v4604, 0.0
    %v4636 = vadd.f32 %v4634, %v4635
    %v4637 = vsel %vm1982, %v4605, 0.0
    %v4638 = vadd.f32 %v4636, %v4637
    %v4639 = vsel %vm1982, %v4606, 0.0
    %v4640 = vadd.f32 %v4638, %v4639
    %v4641 = vsel %vm1982, %v4607, 0.0
    %v4642 = vadd.f32 %v4640, %v4641
    %v4643 = vsel %vm1982, %v4608, 0.0
    %v4644 = vadd.f32 %v4642, %v4643
    %v4645 = vrot.slane %v4644, 4
    %v4646 = vadd.f32 %v4644, %v4645
    %v4647 = vrot.slane %v4646, 2
    %v4648 = vadd.f32 %v4646, %v4647
    %v4649 = vrot.slane %v4648, 1
    %v4650 = vadd.f32 %v4648, %v4649
    %v4651 = vrcp.pop 64.0
    %v4652 = vmul.f32 64.0, %v4651
    %v4653 = vsub.f32 1.0, %v4652
    %v4654 = vmul.f32 %v4651, %v4653
    %v4655 = vadd.f32 %v4651, %v4654
    %vm4656 = vweird.f32 %v4651
    %v4657 = vsel %vm4656, %v4651, %v4655
    %v4658 = vmul.f32 %v4629, %v4657
    %v4659 = vmul.f32 %v4650, %v4657
    %v4660 = vld [vmem:[%s4] sm:$0xff]
    %v4661 = vld [vmem:[%s4 + $0x8] sm:$0xff]
    %v4662 = vld [vmem:[%s4 + $0x10] sm:$0xff]
    %v4663 = vld [vmem:[%s4 + $0x18] sm:$0xff]
    %v4664 = vld [vmem:[%s5] sm:$0x1]
    %v4666 = vperm.slane %v4664, 0
    %vm4670 = vcmask 1041409
    %v4671 = vsel %vm4670, %v4659, %v4658
    %v4672 = vsel %vm1982, %v4671, 0
    %4674 = vmatpush.msra.mxu0 0.0
    %4675 = vmatpush.msra.mxu0 0.0
    %4676 = vmatpush.msra.mxu0 0.0
    %4677 = vmatpush.msra.mxu0 0.0
    %4678 = vmatpush.msra.mxu0 0.0
    %4679 = vmatpush.msra.mxu0 0.0
    %4680 = vmatpush.msra.mxu0 0.0
    %4681 = vmatpush.msra.mxu0 0.0
    %4682 = vmatpush.msra.mxu0 0.0
    %4683 = vmatpush.msra.mxu0 0.0
    %4684 = vmatpush.msra.mxu0 0.0
    %4685 = vmatpush.msra.mxu0 0.0
    %4686 = vmatpush.msra.mxu0 %v4663
    %4687 = vmatpush.msra.mxu0 %v4662
    %4688 = vmatpush.msra.mxu0 %v4661
    %4689 = vmatpush.msra.mxu0 %v4660
    %4690 = vmatmul.f32.gmra.mxu0 %v4672
    %v4691 = vpop.f32.mrf.mxu0
    %v4692 = vadd.f32 %v4666, %v4691
    %4693 = vdwg.mxu0
    %v4694 = vmul.f32 %v4692, 0.5
    %v4695 = vmul.f32 %v4692, 0.70710677
    %v4696 = vmul.f32 %v4695, %v4695
    %v4697 = vmin.f32 16.0, %v4696
    %v4698 = vmul.f32 %v4697, 2.1237322e-06
    %v4699 = vadd.f32 %v4698, 0.00028619796
    %v4700 = vmul.f32 %v4697, %v4699
    %v4701 = vadd.f32 %v4700, 0.0036580483
    %v4702 = vmul.f32 %v4697, %v4701
    %v4703 = vadd.f32 %v4702, 0.05243302
    %v4704 = vmul.f32 %v4697, %v4703
    %v4705 = vadd.f32 %v4704, 0.18741608
    %v4706 = vmul.f32 %v4697, %v4705
    %v4707 = vadd.f32 %v4706, 1.1283791
    %v4708 = vmul.f32 %v4695, %v4707
    %v4709 = vmul.f32 %v4697, 3.8918573e-05
    %v4710 = vadd.f32 %v4709, 0.001143296
    %v4711 = vmul.f32 %v4697, %v4710
    %v4712 = vadd.f32 %v4711, 0.014752088
    %v4713 = vmul.f32 %v4697, %v4712
    %v4714 = vadd.f32 %v4713, 0.112945676
    %v4715 = vmul.f32 %v4697, %v4714
    %v4716 = vadd.f32 %v4715, 0.4994258
    %v4717 = vmul.f32 %v4697, %v4716
    %v4718 = vadd.f32 %v4717, 1.0
    %v4719 = vrcp.pop %v4718
    %v4720 = vmul.f32 %v4718, %v4719
    %v4721 = vsub.f32 1.0, %v4720
    %v4722 = vmul.f32 %v4719, %v4721
    %v4723 = vadd.f32 %v4719, %v4722
    %vm4724 = vweird.f32 %v4718
    %vm4725 = vweird.f32 %v4719
    %vm4726 = vmor %vm4724, %vm4725
    %v4727 = vsel %vm4726, %v4719, %v4723
    %v4728 = vand.u32 2147483647, %v4718
    %vm4729 = vcmp.eq.f32.partialorder %v4728, 8.507059e+37
    %v4730 = vand.u32 %v4718, 2147483648
    %v4731 = vor.u32 1.1754944e-38, %v4730
    %v4732 = vsel %vm4729, %v4731, %v4727
    %v4733 = vmul.f32 %v4708, %v4732
    %v4734 = vmin.f32 %v4733, 1.0
    %v4735 = vmax.f32 %v4734, -1.0
    %v4736 = vadd.f32 %v4735, 1.0
    %v4737 = vmul.f32 %v4694, %v4736
    %v4738 = vld [vmem:[%s6] sm:$0xff]
    %v4739 = vld [vmem:[%s7] sm:$0x1]
    %v4741 = vperm.slane %v4739, 0
    %vm4743 = vcmask 64512
    %v4745 = vsel %vm4743, %v4737, 0
    %4747 = vmatpush.msra.mxu0 0.0
    %4748 = vmatpush.msra.mxu0 0.0
    %4749 = vmatpush.msra.mxu0 0.0
    %4750 = vmatpush.msra.mxu0 0.0
    %4751 = vmatpush.msra.mxu0 0.0
    %4752 = vmatpush.msra.mxu0 0.0
    %4753 = vmatpush.msra.mxu0 0.0
    %4754 = vmatpush.msra.mxu0 0.0
    %4755 = vmatpush.msra.mxu0 0.0
    %4756 = vmatpush.msra.mxu0 0.0
    %4757 = vmatpush.msra.mxu0 0.0
    %4758 = vmatpush.msra.mxu0 0.0
    %4759 = vmatpush.msra.mxu0 0.0
    %4760 = vmatpush.msra.mxu0 0.0
    %4761 = vmatpush.msra.mxu0 0.0
    %4762 = vmatpush.msra.mxu0 %v4738
    %4763 = vmatmul.f32.gmra.mxu0 %v4745
    %v4764 = vpop.f32.mrf.mxu0
    %v4765 = vadd.f32 %v4741, %v4764
    %4766 = vdwg.mxu0
    %4768 = vrot.lane.b32.xlu0 %v4765, 96
    %v4769 = vpop.permute.xlu0 %4768
    %v4771 = vmax.f32 %v4765, %v4769
    %4772 = vrot.lane.b32.xlu0 %v4765, 64
    %v4773 = vpop.permute.xlu0 %4772
    %v4775 = vmax.f32 %v4771, %v4773
    %v4776 = vsub.f32 %v4765, %v4775
    %v4777 = vmul.f32 %v4776, 1.442695
    %v4778 = vpow.pop %v4777
    %4780 = vrot.lane.b32.xlu0 %v4775, 32
    %v4781 = vpop.permute.xlu0 %4780
    %v4783 = vsub.f32 %v4765, %v4781
    %v4784 = vmul.f32 %v4783, 1.442695
    %v4785 = vpow.pop %v4784
    %4786 = vrot.lane.b32.xlu0 %v4775, 64
    %v4787 = vpop.permute.xlu0 %4786
    %v4789 = vsub.f32 %v4765, %v4787
    %v4790 = vmul.f32 %v4789, 1.442695
    %v4791 = vpow.pop %v4790
    %4793 = vrot.lane.b32.xlu0 %v4785, 96
    %v4794 = vpop.permute.xlu0 %4793
    %v4796 = vadd.f32 %v4778, %v4794
    %4798 = vrot.lane.b32.xlu0 %v4791, 64
    %v4799 = vpop.permute.xlu0 %4798
    %v4801 = vadd.f32 %v4796, %v4799
    %v4802 = vrcp.pop %v4801
    %v4803 = vmul.f32 %v4801, %v4802
    %v4804 = vsub.f32 1.0, %v4803
    %v4805 = vmul.f32 %v4802, %v4804
    %v4806 = vadd.f32 %v4802, %v4805
    %vm4807 = vweird.f32 %v4801
    %vm4808 = vweird.f32 %v4802
    %vm4809 = vmor %vm4807, %vm4808
    %v4810 = vsel %vm4809, %v4802, %v4806
    %v4811 = vand.u32 2147483647, %v4801
    %vm4812 = vcmp.eq.f32.partialorder %v4811, 8.507059e+37
    %v4813 = vand.u32 %v4801, 2147483648
    %v4814 = vor.u32 1.1754944e-38, %v4813
    %v4815 = vsel %vm4812, %v4814, %v4810
    %v4816 = vmul.f32 1.0, %v4815
    %v4817 = vmul.f32 %v4778, %v4816
    %v4819 = vrot.slane %v4817, 1
    %4821 = vrot.lane.b32.xlu0 %v4816, 32
    %v4822 = vpop.permute.xlu0 %4821
    %v4824 = vmul.f32 %v4785, %v4822
    %v4826 = vrot.slane %v4824, 1
    %4827 = vrot.lane.b32.xlu0 %v4816, 64
    %v4828 = vpop.permute.xlu0 %4827
    %v4830 = vmul.f32 %v4791, %v4828
    %v4832 = vrot.slane %v4830, 1
    %v4833 = vperm.slane %v4817, 0
    %v4834 = vperm.slane %v4819, 0
    %v4837 = vmul.f32 %v4545, %v4833
    %v4838 = vmul.f32 %v4546, %v4833
    %v4839 = vmul.f32 %v4547, %v4833
    %v4840 = vmul.f32 %v4548, %v4833
    %v4841 = vmul.f32 %v4549, %v4833
    %v4842 = vmul.f32 %v4550, %v4833
    %v4843 = vmul.f32 %v4551, %v4833
    %v4844 = vmul.f32 %v4552, %v4833
    %v4845 = vmul.f32 %v4553, %v4834
    %v4846 = vmul.f32 %v4554, %v4834
    %v4847 = vmul.f32 %v4555, %v4834
    %v4848 = vmul.f32 %v4556, %v4834
    %v4849 = vmul.f32 %v4557, %v4834
    %v4850 = vmul.f32 %v4558, %v4834
    %v4851 = vmul.f32 %v4559, %v4834
    %v4852 = vmul.f32 %v4560, %v4834
    %v4853 = vperm.slane %v4824, 0
    %v4854 = vperm.slane %v4826, 0
    %4855 = vrot.lane.b32.xlu0 %v4853, 96
    %v4856 = vpop.permute.xlu0 %4855
    %4857 = vrot.lane.b32.xlu0 %v4854, 96
    %v4858 = vpop.permute.xlu0 %4857
    %v4861 = vmul.f32 %v4561, %v4856
    %v4862 = vmul.f32 %v4562, %v4856
    %v4863 = vmul.f32 %v4563, %v4856
    %v4864 = vmul.f32 %v4564, %v4856
    %v4865 = vmul.f32 %v4565, %v4856
    %v4866 = vmul.f32 %v4566, %v4856
    %v4867 = vmul.f32 %v4567, %v4856
    %v4868 = vmul.f32 %v4568, %v4856
    %v4869 = vmul.f32 %v4569, %v4858
    %v4870 = vmul.f32 %v4570, %v4858
    %v4871 = vmul.f32 %v4571, %v4858
    %v4872 = vmul.f32 %v4572, %v4858
    %v4873 = vmul.f32 %v4573, %v4858
    %v4874 = vmul.f32 %v4574, %v4858
    %v4875 = vmul.f32 %v4575, %v4858
    %v4876 = vmul.f32 %v4576, %v4858
    %v4877 = vadd.f32 %v4837, %v4861
    %v4878 = vadd.f32 %v4838, %v4862
    %v4879 = vadd.f32 %v4839, %v4863
    %v4880 = vadd.f32 %v4840, %v4864
    %v4881 = vadd.f32 %v4841, %v4865
    %v4882 = vadd.f32 %v4842, %v4866
    %v4883 = vadd.f32 %v4843, %v4867
    %v4884 = vadd.f32 %v4844, %v4868
    %v4885 = vadd.f32 %v4845, %v4869
    %v4886 = vadd.f32 %v4846, %v4870
    %v4887 = vadd.f32 %v4847, %v4871
    %v4888 = vadd.f32 %v4848, %v4872
    %v4889 = vadd.f32 %v4849, %v4873
    %v4890 = vadd.f32 %v4850, %v4874
    %v4891 = vadd.f32 %v4851, %v4875
    %v4892 = vadd.f32 %v4852, %v4876
    %v4893 = vperm.slane %v4830, 0
    %v4894 = vperm.slane %v4832, 0
    %4895 = vrot.lane.b32.xlu0 %v4893, 64
    %v4896 = vpop.permute.xlu0 %4895
    %4897 = vrot.lane.b32.xlu0 %v4894, 64
    %v4898 = vpop.permute.xlu0 %4897
    %v4901 = vmul.f32 %v2033, %v4896
    %v4902 = vmul.f32 %v2036, %v4896
    %v4903 = vmul.f32 %v2039, %v4896
    %v4904 = vmul.f32 %v2042, %v4896
    %v4905 = vmul.f32 %v2045, %v4896
    %v4906 = vmul.f32 %v2048, %v4896
    %v4907 = vmul.f32 %v2051, %v4896
    %v4908 = vmul.f32 %v2054, %v4896
    %v4909 = vmul.f32 %v2057, %v4898
    %v4910 = vmul.f32 %v2060, %v4898
    %v4911 = vmul.f32 %v2063, %v4898
    %v4912 = vmul.f32 %v2066, %v4898
    %v4913 = vmul.f32 %v2069, %v4898
    %v4914 = vmul.f32 %v2072, %v4898
    %v4915 = vmul.f32 %v2075, %v4898
    %v4916 = vmul.f32 %v2078, %v4898
    %v4917 = vadd.f32 %v4877, %v4901
    %v4918 = vadd.f32 %v4878, %v4902
    %v4919 = vadd.f32 %v4879, %v4903
    %v4920 = vadd.f32 %v4880, %v4904
    %v4921 = vadd.f32 %v4881, %v4905
    %v4922 = vadd.f32 %v4882, %v4906
    %v4923 = vadd.f32 %v4883, %v4907
    %v4924 = vadd.f32 %v4884, %v4908
    %v4925 = vadd.f32 %v4885, %v4909
    %v4926 = vadd.f32 %v4886, %v4910
    %v4927 = vadd.f32 %v4887, %v4911
    %v4928 = vadd.f32 %v4888, %v4912
    %v4929 = vadd.f32 %v4889, %v4913
    %v4930 = vadd.f32 %v4890, %v4914
    %v4931 = vadd.f32 %v4891, %v4915
    %v4932 = vadd.f32 %v4892, %v4916
    %v4933 = vld [vmem:[#allocation12] sm:$0xff]
    %v4934 = vld [vmem:[#allocation12 + $0x8] sm:$0xff]
    %v4935 = vld [vmem:[#allocation12 + $0x10] sm:$0xff]
    %v4936 = vld [vmem:[#allocation12 + $0x18] sm:$0xff]
    %v4937 = vld [vmem:[%s9] sm:$0x1]
    %v4939 = vperm.slane %v4937, 0
    %v4942 = vsel %vm1982, %v4917, 0
    %v4945 = vsel %vm1982, %v4918, 0
    %v4948 = vsel %vm1982, %v4919, 0
    %v4951 = vsel %vm1982, %v4920, 0
    %v4954 = vsel %vm1982, %v4921, 0
    %v4957 = vsel %vm1982, %v4922, 0
    %v4960 = vsel %vm1982, %v4923, 0
    %v4963 = vsel %vm1982, %v4924, 0
    %v4966 = vsel %vm1982, %v4925, 0
    %v4969 = vsel %vm1982, %v4926, 0
    %v4972 = vsel %vm1982, %v4927, 0
    %v4975 = vsel %vm1982, %v4928, 0
    %v4978 = vsel %vm1982, %v4929, 0
    %v4981 = vsel %vm1982, %v4930, 0
    %v4984 = vsel %vm1982, %v4931, 0
    %v4987 = vsel %vm1982, %v4932, 0
    %4989 = vmatpush.msra.mxu0 0.0
    %4990 = vmatpush.msra.mxu0 0.0
    %4991 = vmatpush.msra.mxu0 0.0
    %4992 = vmatpush.msra.mxu0 0.0
    %4993 = vmatpush.msra.mxu0 0.0
    %4994 = vmatpush.msra.mxu0 0.0
    %4995 = vmatpush.msra.mxu0 0.0
    %4996 = vmatpush.msra.mxu0 0.0
    %4997 = vmatpush.msra.mxu0 0.0
    %4998 = vmatpush.msra.mxu0 0.0
    %4999 = vmatpush.msra.mxu0 0.0
    %5000 = vmatpush.msra.mxu0 0.0
    %5001 = vmatpush.msra.mxu0 %v4936
    %5002 = vmatpush.msra.mxu0 %v4935
    %5003 = vmatpush.msra.mxu0 %v4934
    %5004 = vmatpush.msra.mxu0 %v4933
    %5005 = vmatmul.f32.gmra.mxu0 %v4942
    %v5006 = vpop.f32.mrf.mxu0
    %v5007 = vadd.f32 %v4939, %v5006
    %5008 = vmatmul.f32.gmra.mxu0 %v4945
    %v5009 = vpop.f32.mrf.mxu0
    %v5010 = vadd.f32 %v4939, %v5009
    %5011 = vmatmul.f32.gmra.mxu0 %v4948
    %v5012 = vpop.f32.mrf.mxu0
    %v5013 = vadd.f32 %v4939, %v5012
    %5014 = vmatmul.f32.gmra.mxu0 %v4951
    %v5015 = vpop.f32.mrf.mxu0
    %v5016 = vadd.f32 %v4939, %v5015
    %5017 = vmatmul.f32.gmra.mxu0 %v4954
    %v5018 = vpop.f32.mrf.mxu0
    %v5019 = vadd.f32 %v4939, %v5018
    %5020 = vmatmul.f32.gmra.mxu0 %v4957
    %v5021 = vpop.f32.mrf.mxu0
    %v5022 = vadd.f32 %v4939, %v5021
    %5023 = vmatmul.f32.gmra.mxu0 %v4960
    %v5024 = vpop.f32.mrf.mxu0
    %v5025 = vadd.f32 %v4939, %v5024
    %5026 = vmatmul.f32.gmra.mxu0 %v4963
    %v5027 = vpop.f32.mrf.mxu0
    %v5028 = vadd.f32 %v4939, %v5027
    %5029 = vmatmul.f32.gmra.mxu0 %v4966
    %v5030 = vpop.f32.mrf.mxu0
    %v5031 = vadd.f32 %v4939, %v5030
    %5032 = vmatmul.f32.gmra.mxu0 %v4969
    %v5033 = vpop.f32.mrf.mxu0
    %v5034 = vadd.f32 %v4939, %v5033
    %5035 = vmatmul.f32.gmra.mxu0 %v4972
    %v5036 = vpop.f32.mrf.mxu0
    %v5037 = vadd.f32 %v4939, %v5036
    %5038 = vmatmul.f32.gmra.mxu0 %v4975
    %v5039 = vpop.f32.mrf.mxu0
    %v5040 = vadd.f32 %v4939, %v5039
    %5041 = vmatmul.f32.gmra.mxu0 %v4978
    %v5042 = vpop.f32.mrf.mxu0
    %v5043 = vadd.f32 %v4939, %v5042
    %5044 = vmatmul.f32.gmra.mxu0 %v4981
    %v5045 = vpop.f32.mrf.mxu0
    %v5046 = vadd.f32 %v4939, %v5045
    %5047 = vmatmul.f32.gmra.mxu0 %v4984
    %v5048 = vpop.f32.mrf.mxu0
    %v5049 = vadd.f32 %v4939, %v5048
    %5050 = vmatmul.f32.gmra.mxu0 %v4987
    %v5051 = vpop.f32.mrf.mxu0
    %v5052 = vadd.f32 %v4939, %v5051
    %5053 = vdwg.mxu0
    %5054 = vst.msk [vmem:[#allocation14] sm:$0xff] %vm1982, %v5007
    %5055 = vst.msk [vmem:[#allocation14 + $0x8] sm:$0xff] %vm1982, %v5010
    %5056 = vst.msk [vmem:[#allocation14 + $0x10] sm:$0xff] %vm1982, %v5013
    %5057 = vst.msk [vmem:[#allocation14 + $0x18] sm:$0xff] %vm1982, %v5016
    %5058 = vst.msk [vmem:[#allocation14 + $0x20] sm:$0xff] %vm1982, %v5019
    %5059 = vst.msk [vmem:[#allocation14 + $0x28] sm:$0xff] %vm1982, %v5022
    %5060 = vst.msk [vmem:[#allocation14 + $0x30] sm:$0xff] %vm1982, %v5025
    %5061 = vst.msk [vmem:[#allocation14 + $0x38] sm:$0xff] %vm1982, %v5028
    %5062 = vst.msk [vmem:[#allocation14 + $0x40] sm:$0xff] %vm1982, %v5031
    %5063 = vst.msk [vmem:[#allocation14 + $0x48] sm:$0xff] %vm1982, %v5034
    %5064 = vst.msk [vmem:[#allocation14 + $0x50] sm:$0xff] %vm1982, %v5037
    %5065 = vst.msk [vmem:[#allocation14 + $0x58] sm:$0xff] %vm1982, %v5040
    %5066 = vst.msk [vmem:[#allocation14 + $0x60] sm:$0xff] %vm1982, %v5043
    %5067 = vst.msk [vmem:[#allocation14 + $0x68] sm:$0xff] %vm1982, %v5046
    %5068 = vst.msk [vmem:[#allocation14 + $0x70] sm:$0xff] %vm1982, %v5049
    %5069 = vst.msk [vmem:[#allocation14 + $0x78] sm:$0xff] %vm1982, %v5052
    // Predicated region
    $region58: #{tpu_custom_call.1} parent=1 // pred_check
      _
    $region59: #{tpu_custom_call.1} parent=1 // pred_check_branch
      %5071 = sbr.rel (0) target = $region61
    $region60: #{tpu_custom_call.1} parent=1 // pred_region
      %5073 = vsyncadd [#allocation8], 0
      %s5074 = sshll.u32 [#allocation14], 4
      %s5075 = int_to_ptr.vmem [resolvable:$true] %s5074
      %s5076 = sshll.u32 %s10, 4
      %s5077 = int_to_ptr.hbm [resolvable:$true] %s5076
      %5082 = dma.vmem_to_hbm [thread:$0]  %s5075, 2048, %s5077, [#allocation8], 128, 128, 8
    $region61: #{tpu_custom_call.1} parent=1 // pred_fallthru
      _
    // Predicated region
    $region62: #{tpu_custom_call.1} parent=1 // pred_check
      _
    $region63: #{tpu_custom_call.1} parent=1 // pred_check_branch
      %5084 = sbr.rel (0) target = $region65
    $region64: #{tpu_custom_call.1} parent=1 // pred_region
      %5086 = dma.done [#allocation8], 2048
    $region65: #{tpu_custom_call.1} parent=1 // pred_fallthru
      _
    %5087 = vsyncpa [#allocation7], 1
    %5088 = vsyncpa [#allocation10], 1
    %5089 = vsyncpa [#allocation13], 1
    %5090 = vsyncpa [#allocation8], 1

</llo_original>
